<compile_context>
chip_gen: v7x
topology: tpu7x:2x2x1
jax: 0.10.0
libtpu: 0.0.40
codegen_flags: <defaults>
</compile_context>

<pallas_src>
import jax
import jax.numpy as jnp
from jax.experimental import pallas as pl
from jax.experimental.pallas import tpu as pltpu

# Module hyper-parameters (fixed by __init__).
FEAT_I = 512
GROUP = 2
CODE_G = 320
FEAT_O = 512
CODE = GROUP * CODE_G          # 640
FEAT_G = FEAT_O // GROUP       # 256
HIDDEN = FEAT_I * 2            # 1024


def _choose_time_tile(t_pad, b):
    """Largest lane-aligned time tile dividing the padded T (prefer 512), while
    keeping at least 2 grid steps so both TensorCores get work on v7x."""
    for cand in (512, 256, 128):
        if t_pad % cand == 0 and b * (t_pad // cand) >= 2:
            return cand
    return 128


def _vq_kernel(x_ref, w1t_ref, b1_ref, w2t_ref, b2_ref, cbhi_ref, cblo_ref,
               q_ref, idx_ref):
    """One (batch, time-tile) block, channel-major (channels on sublanes, time on
    lanes): projection MLP -> per-group hard one-hot -> codebook mix."""
    x = x_ref[0]                                                         # (FEAT_I, TT) bf16

    # projection: Linear(512 -> 1024) + ReLU + Linear(1024 -> 640), transposed
    # form.  bf16 operands, f32 MXU accumulation; bias/ReLU/argmax stay in f32.
    h = jnp.dot(w1t_ref[...], x, preferred_element_type=jnp.float32)     # (HIDDEN, TT)
    h = jnp.maximum(h + b1_ref[...], 0.0)
    logits = jnp.dot(w2t_ref[...], h.astype(jnp.bfloat16),
                     preferred_element_type=jnp.float32) + b2_ref[...]   # (CODE, TT)

    tt = logits.shape[1]
    iota = jax.lax.broadcasted_iota(jnp.int32, (CODE_G, tt), 0)          # hoisted out of loop
    for g in range(GROUP):
        lg = logits[g * CODE_G:(g + 1) * CODE_G, :]                      # (CODE_G, TT)
        m = jnp.max(lg, axis=0, keepdims=True)                           # (1, TT)
        # first index attaining the max (== torch argmax / scatter of max index)
        idx = jnp.min(jnp.where(lg == m, iota, CODE_G), axis=0, keepdims=True)  # (1, TT)
        onehot = (iota == idx).astype(jnp.bfloat16)                      # (CODE_G, TT), exact 0/1
        cb_hi = cbhi_ref[g * FEAT_G:(g + 1) * FEAT_G, :]                 # (FEAT_G, CODE_G) bf16
        cb_lo = cblo_ref[g * FEAT_G:(g + 1) * FEAT_G, :]                 # (FEAT_G, CODE_G) bf16
        # two-term bf16 split of the f32 codebook: q = (hi + lo) @ onehot,
        # f32 accumulation -> ~2^-16 relative to the exact f32 rows, but runs
        # at full bf16 MXU rate (no multi-pass f32 path).
        q_ref[0, g * FEAT_G:(g + 1) * FEAT_G, :] = (
            jnp.dot(cb_hi, onehot, preferred_element_type=jnp.float32)
            + jnp.dot(cb_lo, onehot, preferred_element_type=jnp.float32))  # (FEAT_G, TT)
        # lane-dense per-group store; no concatenate / re-layout.
        idx_ref[0, g:g + 1, :] = idx.astype(jnp.int32)


def gumbel_group_vq_forward(series, params):
    """series :: (B, FEAT_I, T) -> (q_series (B, FEAT_O, T) f32, maxidx (B, T, GROUP) i32)."""
    w1, b1, w2, b2, codebook = params
    B, C, T = series.shape
    assert C == FEAT_I

    # Pad time up to a multiple of 128 (zeros) so every matmul/store is
    # lane-dense; outputs are sliced back to T below.
    T_pad = ((T + 127) // 128) * 128
    TT = _choose_time_tile(T_pad, B)

    x = series.astype(jnp.bfloat16)                                      # bf16 activations: half DMA
    if T_pad != T:
        x = jnp.pad(x, ((0, 0), (0, 0), (0, T_pad - T)))

    # One-time parameter repack so the kernel is NCT-native (self-consistent
    # (in, out) weight convention; torch stores (out, in)):
    #   W^T / cb^T, matmul weights cast to bf16 (f32 accumulation in-kernel),
    #   biases as f32 column vectors, codebook as a bf16 hi/lo split.
    w1t = jnp.asarray(w1, jnp.float32).T.astype(jnp.bfloat16)            # (HIDDEN, FEAT_I)
    w2t = jnp.asarray(w2, jnp.float32).T.astype(jnp.bfloat16)            # (CODE, HIDDEN)
    b1c = jnp.asarray(b1, jnp.float32).reshape(HIDDEN, 1)                # (HIDDEN, 1)
    b2c = jnp.asarray(b2, jnp.float32).reshape(CODE, 1)                  # (CODE, 1)
    cbt = (jnp.asarray(codebook, jnp.float32)
           .reshape(GROUP, CODE_G, FEAT_G)
           .transpose(0, 2, 1)
           .reshape(GROUP * FEAT_G, CODE_G))                             # (FEAT_O, CODE_G) f32
    cbt_hi = cbt.astype(jnp.bfloat16)
    cbt_lo = (cbt - cbt_hi.astype(jnp.float32)).astype(jnp.bfloat16)

    grid = (B, T_pad // TT)
    # NOTE: weight/bias/codebook blocks have constant index maps, so they stay
    # resident across grid steps; total live VMEM (incl. double buffers) is well
    # under the 32 MiB scoped default at TT=512 on all of v5e/v6e/v7x.
    q_pad, idx_pad = pl.pallas_call(
        _vq_kernel,
        out_shape=(
            jax.ShapeDtypeStruct((B, FEAT_O, T_pad), jnp.float32),
            jax.ShapeDtypeStruct((B, GROUP, T_pad), jnp.int32),
        ),
        grid_spec=pltpu.PrefetchScalarGridSpec(
            num_scalar_prefetch=0,
            grid=grid,
            in_specs=[
                pl.BlockSpec((1, FEAT_I, TT), lambda b, t: (b, 0, t)),   # x block (NCT, bf16)
                pl.BlockSpec((HIDDEN, FEAT_I), lambda b, t: (0, 0)),     # W1^T (bf16)
                pl.BlockSpec((HIDDEN, 1), lambda b, t: (0, 0)),          # b1 column (f32)
                pl.BlockSpec((CODE, HIDDEN), lambda b, t: (0, 0)),       # W2^T (bf16)
                pl.BlockSpec((CODE, 1), lambda b, t: (0, 0)),            # b2 column (f32)
                pl.BlockSpec((FEAT_O, CODE_G), lambda b, t: (0, 0)),     # codebook^T hi (bf16)
                pl.BlockSpec((FEAT_O, CODE_G), lambda b, t: (0, 0)),     # codebook^T lo (bf16)
            ],
            out_specs=[
                pl.BlockSpec((1, FEAT_O, TT), lambda b, t: (b, 0, t)),   # q, final layout
                pl.BlockSpec((1, GROUP, TT), lambda b, t: (b, 0, t)),    # idx, lane-dense
            ],
        ),
        compiler_params=pltpu.CompilerParams(
            dimension_semantics=("parallel", "parallel"),
        ),
    )(x, w1t, b1c, w2t, b2c, cbt_hi, cbt_lo)

    q_series = q_pad if T_pad == T else q_pad[:, :, :T]
    idx_gt = idx_pad if T_pad == T else idx_pad[:, :, :T]
    # TODO(synk): torch argmax returns int64; emitted as int32 (x64 disabled in JAX).
    maxidx_series = jnp.transpose(idx_gt, (0, 2, 1))                     # (B, T, GROUP), tiny
    return q_series, maxidx_series


def init_params(key):
    """Deterministic synthetic parameters with the module's shapes."""
    k1, k2, k3, k4, k5 = jax.random.split(key, 5)
    w1 = jax.random.normal(k1, (FEAT_I, HIDDEN), jnp.float32) * 0.02    # Linear1 weight (in, out)
    b1 = jax.random.normal(k2, (HIDDEN,), jnp.float32) * 0.02
    w2 = jax.random.normal(k3, (HIDDEN, CODE), jnp.float32) * 0.02      # Linear2 weight (in, out)
    b2 = jax.random.normal(k4, (CODE,), jnp.float32) * 0.02
    codebook = jax.random.normal(k5, (1, CODE, FEAT_G), jnp.float32)    # nn.Parameter (1, code, feat_g)
    return (w1, b1, w2, b2, codebook)


def _reference_forward(series, params):
    """Pure-JAX reference mirroring the PyTorch eval-mode forward (same
    bf16-operand / f32-accumulation projection matmuls as the kernel so the
    argmax comparison is exact; codebook mix kept exact f32)."""
    w1, b1, w2, b2, codebook = params
    B, _, T = series.shape
    x = jnp.transpose(series, (0, 2, 1)).reshape(-1, FEAT_I)
    h = jnp.dot(x.astype(jnp.bfloat16), w1.astype(jnp.bfloat16),
                preferred_element_type=jnp.float32) + b1
    h = jnp.maximum(h, 0.0)
    logits = jnp.dot(h.astype(jnp.bfloat16), w2.astype(jnp.bfloat16),
                     preferred_element_type=jnp.float32) + b2            # (N, CODE)
    lg = logits.reshape(-1, CODE_G)                                      # (N*GROUP, CODE_G)
    idx = jnp.argmax(lg, axis=-1)
    onehot = jax.nn.one_hot(idx, CODE_G, dtype=jnp.float32).reshape(-1, CODE)
    maxidx = idx.reshape(B, T, GROUP)
    s = onehot[:, :, None] * codebook                                    # (N, CODE, FEAT_G)
    q = s.reshape(-1, GROUP, CODE_G, FEAT_G).sum(-2).reshape(B, T, -1)
    return jnp.transpose(q, (0, 2, 1)), maxidx


if __name__ == "__main__":
    key = jax.random.PRNGKey(0)
    pkey, xkey = jax.random.split(key)
    params = init_params(pkey)

    B, T = 2, 8
    series = jax.random.normal(xkey, (B, FEAT_I, T), jnp.float32)

    q_series, maxidx_series = gumbel_group_vq_forward(series, params)
    jax.block_until_ready((q_series, maxidx_series))

    q_ref, idx_ref = _reference_forward(series, params)
    assert q_series.shape == (B, FEAT_O, T)
    assert maxidx_series.shape == (B, T, GROUP)
    assert jnp.array_equal(maxidx_series, idx_ref.astype(jnp.int32))
    # hi/lo bf16 codebook split reconstructs the f32 rows to ~2^-16 relative.
    assert jnp.allclose(q_series, q_ref, atol=2e-4, rtol=2e-4)

    print("KERNEL_OK")
</pallas_src>

<mosaic_0001>
module attributes {stable_mosaic.version = 11 : i64} {
  func.func @_vq_kernel(%arg0: i32, %arg1: i32, %arg2: memref<1x512x128xbf16, #tpu.memory_space<vmem>>, %arg3: memref<1024x512xbf16, #tpu.memory_space<vmem>>, %arg4: memref<1024x1xf32, #tpu.memory_space<vmem>>, %arg5: memref<640x1024xbf16, #tpu.memory_space<vmem>>, %arg6: memref<640x1xf32, #tpu.memory_space<vmem>>, %arg7: memref<512x320xbf16, #tpu.memory_space<vmem>>, %arg8: memref<512x320xbf16, #tpu.memory_space<vmem>>, %arg9: memref<1x512x128xf32, #tpu.memory_space<vmem>>, %arg10: memref<1x2x128xi32, #tpu.memory_space<vmem>>) attributes {dimension_semantics = [#tpu.dimension_semantics<parallel>, #tpu.dimension_semantics<parallel>], iteration_bounds = array<i64: 2, 1>, scalar_prefetch = 0 : i64, scratch_operands = 0 : i64, tpu.core_type = #tpu.core_type<tc>, window_params = [{transform_indices = @transform_0, window_bounds = array<i64: 1, 512, 128>}, {pipeline_mode = #tpu.pipeline_mode<synchronous>, transform_indices = @transform_1, window_bounds = array<i64: 1024, 512>}, {pipeline_mode = #tpu.pipeline_mode<synchronous>, transform_indices = @transform_2, window_bounds = array<i64: 1024, 1>}, {pipeline_mode = #tpu.pipeline_mode<synchronous>, transform_indices = @transform_3, window_bounds = array<i64: 640, 1024>}, {pipeline_mode = #tpu.pipeline_mode<synchronous>, transform_indices = @transform_4, window_bounds = array<i64: 640, 1>}, {pipeline_mode = #tpu.pipeline_mode<synchronous>, transform_indices = @transform_5, window_bounds = array<i64: 512, 320>}, {pipeline_mode = #tpu.pipeline_mode<synchronous>, transform_indices = @transform_6, window_bounds = array<i64: 512, 320>}, {transform_indices = @transform_7, window_bounds = array<i64: 1, 512, 128>}, {transform_indices = @transform_8, window_bounds = array<i64: 1, 2, 128>}]} {
    %c0 = arith.constant 0 : index
    %c0_0 = arith.constant 0 : index
    %c0_1 = arith.constant 0 : index
    %0 = vector.load %arg2[%c0, %c0_0, %c0_1] : memref<1x512x128xbf16, #tpu.memory_space<vmem>>, vector<1x512x128xbf16>
    %1 = vector.shape_cast %0 : vector<1x512x128xbf16> to vector<512x128xbf16>
    %c0_2 = arith.constant 0 : index
    %c0_3 = arith.constant 0 : index
    %2 = vector.load %arg3[%c0_2, %c0_3] : memref<1024x512xbf16, #tpu.memory_space<vmem>>, vector<1024x512xbf16>
    %cst = arith.constant dense<0.000000e+00> : vector<1024x128xf32>
    %3 = tpu.matmul %2, %1, %cst {dimension_numbers = #tpu.dot_dimension_numbers<[1], [0], [0], [1], [0, 0, 1, 1], [], []>} : vector<1024x512xbf16>, vector<512x128xbf16>, vector<1024x128xf32> -> vector<1024x128xf32>
    %c0_4 = arith.constant 0 : index
    %c0_5 = arith.constant 0 : index
    %4 = vector.load %arg4[%c0_4, %c0_5] : memref<1024x1xf32, #tpu.memory_space<vmem>>, vector<1024x1xf32>
    %5 = vector.broadcast %4 : vector<1024x1xf32> to vector<1024x128xf32>
    %6 = arith.addf %3, %5 : vector<1024x128xf32>
    %cst_6 = arith.constant 0.000000e+00 : f32
    %7 = vector.broadcast %cst_6 : f32 to vector<1024x128xf32>
    %8 = arith.maximumf %6, %7 : vector<1024x128xf32>
    %c0_7 = arith.constant 0 : index
    %c0_8 = arith.constant 0 : index
    %9 = vector.load %arg5[%c0_7, %c0_8] : memref<640x1024xbf16, #tpu.memory_space<vmem>>, vector<640x1024xbf16>
    %10 = arith.truncf %8 : vector<1024x128xf32> to vector<1024x128xbf16>
    %cst_9 = arith.constant dense<0.000000e+00> : vector<640x128xf32>
    %11 = tpu.matmul %9, %10, %cst_9 {dimension_numbers = #tpu.dot_dimension_numbers<[1], [0], [0], [1], [0, 0, 1, 1], [], []>} : vector<640x1024xbf16>, vector<1024x128xbf16>, vector<640x128xf32> -> vector<640x128xf32>
    %c0_10 = arith.constant 0 : index
    %c0_11 = arith.constant 0 : index
    %12 = vector.load %arg6[%c0_10, %c0_11] : memref<640x1xf32, #tpu.memory_space<vmem>>, vector<640x1xf32>
    %13 = vector.broadcast %12 : vector<640x1xf32> to vector<640x128xf32>
    %14 = arith.addf %11, %13 : vector<640x128xf32>
    %15 = tpu.iota {dimensions = array<i32: 0>} : vector<320x128xi32>
    %16 = vector.extract_strided_slice %14 {offsets = [0, 0], sizes = [320, 128], strides = [1, 1]} : vector<640x128xf32> to vector<320x128xf32>
    %cst_12 = arith.constant dense<0xFF800000> : vector<128xf32>
    %17 = vector.multi_reduction <maximumf>, %16, %cst_12 [0] : vector<320x128xf32> to vector<128xf32>
    %18 = vector.shape_cast %17 : vector<128xf32> to vector<1x128xf32>
    %19 = vector.broadcast %18 : vector<1x128xf32> to vector<320x128xf32>
    %20 = arith.cmpf oeq, %16, %19 : vector<320x128xf32>
    %c320_i32 = arith.constant 320 : i32
    %21 = vector.broadcast %c320_i32 : i32 to vector<320x128xi32>
    %22 = arith.select %20, %15, %21 : vector<320x128xi1>, vector<320x128xi32>
    %cst_13 = arith.constant dense<2147483647> : vector<128xi32>
    %23 = vector.multi_reduction <minsi>, %22, %cst_13 [0] : vector<320x128xi32> to vector<128xi32>
    %24 = vector.shape_cast %23 : vector<128xi32> to vector<1x128xi32>
    %25 = vector.broadcast %24 : vector<1x128xi32> to vector<320x128xi32>
    %26 = arith.cmpi eq, %15, %25 : vector<320x128xi32>
    %27 = arith.extui %26 : vector<320x128xi1> to vector<320x128xi32>
    %28 = arith.sitofp %27 : vector<320x128xi32> to vector<320x128xf32>
    %29 = arith.truncf %28 : vector<320x128xf32> to vector<320x128xbf16>
    %c0_14 = arith.constant 0 : index
    %c0_15 = arith.constant 0 : index
    %30 = vector.load %arg7[%c0_14, %c0_15] : memref<512x320xbf16, #tpu.memory_space<vmem>>, vector<256x320xbf16>
    %c0_16 = arith.constant 0 : index
    %c0_17 = arith.constant 0 : index
    %31 = vector.load %arg8[%c0_16, %c0_17] : memref<512x320xbf16, #tpu.memory_space<vmem>>, vector<256x320xbf16>
    %cst_18 = arith.constant dense<0.000000e+00> : vector<256x128xf32>
    %32 = tpu.matmul %30, %29, %cst_18 {dimension_numbers = #tpu.dot_dimension_numbers<[1], [0], [0], [1], [0, 0, 1, 1], [], []>} : vector<256x320xbf16>, vector<320x128xbf16>, vector<256x128xf32> -> vector<256x128xf32>
    %cst_19 = arith.constant dense<0.000000e+00> : vector<256x128xf32>
    %33 = tpu.matmul %31, %29, %cst_19 {dimension_numbers = #tpu.dot_dimension_numbers<[1], [0], [0], [1], [0, 0, 1, 1], [], []>} : vector<256x320xbf16>, vector<320x128xbf16>, vector<256x128xf32> -> vector<256x128xf32>
    %34 = arith.addf %32, %33 : vector<256x128xf32>
    %c0_20 = arith.constant 0 : index
    %c0_21 = arith.constant 0 : index
    %c0_22 = arith.constant 0 : index
    %35 = vector.load %arg9[%c0_20, %c0_21, %c0_22] : memref<1x512x128xf32, #tpu.memory_space<vmem>>, vector<1x256x128xf32>
    %36 = vector.shape_cast %35 : vector<1x256x128xf32> to vector<256x128xf32>
    %37 = vector.shape_cast %34 : vector<256x128xf32> to vector<1x256x128xf32>
    tpu.vector_store %arg9[%c0_20, %c0_21, %c0_22], %37 {strides = array<i32>} : memref<1x512x128xf32, #tpu.memory_space<vmem>>, vector<1x256x128xf32>,
    %c0_23 = arith.constant 0 : index
    %c0_24 = arith.constant 0 : index
    %c0_25 = arith.constant 0 : index
    %38 = vector.load %arg10[%c0_23, %c0_24, %c0_25] : memref<1x2x128xi32, #tpu.memory_space<vmem>>, vector<1x1x128xi32>
    %39 = vector.shape_cast %38 : vector<1x1x128xi32> to vector<1x128xi32>
    %40 = vector.shape_cast %24 : vector<1x128xi32> to vector<1x1x128xi32>
    tpu.vector_store %arg10[%c0_23, %c0_24, %c0_25], %40 {strides = array<i32>} : memref<1x2x128xi32, #tpu.memory_space<vmem>>, vector<1x1x128xi32>,
    %41 = vector.extract_strided_slice %14 {offsets = [320, 0], sizes = [320, 128], strides = [1, 1]} : vector<640x128xf32> to vector<320x128xf32>
    %cst_26 = arith.constant dense<0xFF800000> : vector<128xf32>
    %42 = vector.multi_reduction <maximumf>, %41, %cst_26 [0] : vector<320x128xf32> to vector<128xf32>
    %43 = vector.shape_cast %42 : vector<128xf32> to vector<1x128xf32>
    %44 = vector.broadcast %43 : vector<1x128xf32> to vector<320x128xf32>
    %45 = arith.cmpf oeq, %41, %44 : vector<320x128xf32>
    %c320_i32_27 = arith.constant 320 : i32
    %46 = vector.broadcast %c320_i32_27 : i32 to vector<320x128xi32>
    %47 = arith.select %45, %15, %46 : vector<320x128xi1>, vector<320x128xi32>
    %cst_28 = arith.constant dense<2147483647> : vector<128xi32>
    %48 = vector.multi_reduction <minsi>, %47, %cst_28 [0] : vector<320x128xi32> to vector<128xi32>
    %49 = vector.shape_cast %48 : vector<128xi32> to vector<1x128xi32>
    %50 = vector.broadcast %49 : vector<1x128xi32> to vector<320x128xi32>
    %51 = arith.cmpi eq, %15, %50 : vector<320x128xi32>
    %52 = arith.extui %51 : vector<320x128xi1> to vector<320x128xi32>
    %53 = arith.sitofp %52 : vector<320x128xi32> to vector<320x128xf32>
    %54 = arith.truncf %53 : vector<320x128xf32> to vector<320x128xbf16>
    %c256 = arith.constant 256 : index
    %c0_29 = arith.constant 0 : index
    %55 = vector.load %arg7[%c256, %c0_29] : memref<512x320xbf16, #tpu.memory_space<vmem>>, vector<256x320xbf16>
    %c256_30 = arith.constant 256 : index
    %c0_31 = arith.constant 0 : index
    %56 = vector.load %arg8[%c256_30, %c0_31] : memref<512x320xbf16, #tpu.memory_space<vmem>>, vector<256x320xbf16>
    %cst_32 = arith.constant dense<0.000000e+00> : vector<256x128xf32>
    %57 = tpu.matmul %55, %54, %cst_32 {dimension_numbers = #tpu.dot_dimension_numbers<[1], [0], [0], [1], [0, 0, 1, 1], [], []>} : vector<256x320xbf16>, vector<320x128xbf16>, vector<256x128xf32> -> vector<256x128xf32>
    %cst_33 = arith.constant dense<0.000000e+00> : vector<256x128xf32>
    %58 = tpu.matmul %56, %54, %cst_33 {dimension_numbers = #tpu.dot_dimension_numbers<[1], [0], [0], [1], [0, 0, 1, 1], [], []>} : vector<256x320xbf16>, vector<320x128xbf16>, vector<256x128xf32> -> vector<256x128xf32>
    %59 = arith.addf %57, %58 : vector<256x128xf32>
    %c0_34 = arith.constant 0 : index
    %c256_35 = arith.constant 256 : index
    %c0_36 = arith.constant 0 : index
    %60 = vector.load %arg9[%c0_34, %c256_35, %c0_36] : memref<1x512x128xf32, #tpu.memory_space<vmem>>, vector<1x256x128xf32>
    %61 = vector.shape_cast %60 : vector<1x256x128xf32> to vector<256x128xf32>
    %62 = vector.shape_cast %59 : vector<256x128xf32> to vector<1x256x128xf32>
    tpu.vector_store %arg9[%c0_34, %c256_35, %c0_36], %62 {strides = array<i32>} : memref<1x512x128xf32, #tpu.memory_space<vmem>>, vector<1x256x128xf32>,
    %c0_37 = arith.constant 0 : index
    %c1 = arith.constant 1 : index
    %c0_38 = arith.constant 0 : index
    %63 = vector.load %arg10[%c0_37, %c1, %c0_38] : memref<1x2x128xi32, #tpu.memory_space<vmem>>, vector<1x1x128xi32>
    %64 = vector.shape_cast %63 : vector<1x1x128xi32> to vector<1x128xi32>
    %65 = vector.shape_cast %49 : vector<1x128xi32> to vector<1x1x128xi32>
    tpu.vector_store %arg10[%c0_37, %c1, %c0_38], %65 {strides = array<i32>} : memref<1x2x128xi32, #tpu.memory_space<vmem>>, vector<1x1x128xi32>,
    return
  }
  func.func @transform_0(%arg0: i32, %arg1: i32) -> (i32, i32, i32) {
    %c0_i32 = arith.constant 0 : i32
    %c0_i32_0 = arith.constant 0 : i32
    return %arg0, %c0_i32, %arg1 : i32, i32, i32
  }
  func.func @transform_1(%arg0: i32, %arg1: i32) -> (i32, i32) {
    %c0_i32 = arith.constant 0 : i32
    %c0_i32_0 = arith.constant 0 : i32
    %c0_i32_1 = arith.constant 0 : i32
    return %c0_i32, %c0_i32_0 : i32, i32
  }
  func.func @transform_2(%arg0: i32, %arg1: i32) -> (i32, i32) {
    %c0_i32 = arith.constant 0 : i32
    %c0_i32_0 = arith.constant 0 : i32
    %c0_i32_1 = arith.constant 0 : i32
    return %c0_i32, %c0_i32_0 : i32, i32
  }
  func.func @transform_3(%arg0: i32, %arg1: i32) -> (i32, i32) {
    %c0_i32 = arith.constant 0 : i32
    %c0_i32_0 = arith.constant 0 : i32
    %c0_i32_1 = arith.constant 0 : i32
    return %c0_i32, %c0_i32_0 : i32, i32
  }
  func.func @transform_4(%arg0: i32, %arg1: i32) -> (i32, i32) {
    %c0_i32 = arith.constant 0 : i32
    %c0_i32_0 = arith.constant 0 : i32
    %c0_i32_1 = arith.constant 0 : i32
    return %c0_i32, %c0_i32_0 : i32, i32
  }
  func.func @transform_5(%arg0: i32, %arg1: i32) -> (i32, i32) {
    %c0_i32 = arith.constant 0 : i32
    %c0_i32_0 = arith.constant 0 : i32
    %c0_i32_1 = arith.constant 0 : i32
    return %c0_i32, %c0_i32_0 : i32, i32
  }
  func.func @transform_6(%arg0: i32, %arg1: i32) -> (i32, i32) {
    %c0_i32 = arith.constant 0 : i32
    %c0_i32_0 = arith.constant 0 : i32
    %c0_i32_1 = arith.constant 0 : i32
    return %c0_i32, %c0_i32_0 : i32, i32
  }
  func.func @transform_7(%arg0: i32, %arg1: i32) -> (i32, i32, i32) {
    %c0_i32 = arith.constant 0 : i32
    %c0_i32_0 = arith.constant 0 : i32
    return %arg0, %c0_i32, %arg1 : i32, i32, i32
  }
  func.func @transform_8(%arg0: i32, %arg1: i32) -> (i32, i32, i32) {
    %c0_i32 = arith.constant 0 : i32
    %c0_i32_0 = arith.constant 0 : i32
    return %arg0, %c0_i32, %arg1 : i32, i32, i32
  }
}

</mosaic_0001>

<llo_original>
// kernel: tpu_custom_call.1
$region0: #{tpu_custom_call.1}
  #allocation0 [shape = 'u32[]', space=smem, size = 0x4, offset = 0x4, fixed_abs, tag = 'smem constant byte address 0x4 - core index']
  #allocation1 [shape = 'u32[144,128]{1,0:T(1,128)}', space=vmem, size = 0x12000, scoped, tag = 'internal scratch']
  %s0 = inlined_call_operand.vmem [shape: bf16[2,512,128], index: 0, kind: input, shape index: {}]
  %s1 = inlined_call_operand.hbm [shape: bf16[1024,512], index: 1, kind: input, shape index: {}]
  %s2 = inlined_call_operand.vmem [shape: f32[1024,1], index: 2, kind: input, shape index: {}]
  %s3 = inlined_call_operand.vmem [shape: bf16[640,1024], index: 3, kind: input, shape index: {}]
  %s4 = inlined_call_operand.vmem [shape: f32[640,1], index: 4, kind: input, shape index: {}]
  %s5 = inlined_call_operand.vmem [shape: bf16[512,320], index: 5, kind: input, shape index: {}]
  %s6 = inlined_call_operand.vmem [shape: bf16[512,320], index: 6, kind: input, shape index: {}]
  %s7 = inlined_call_operand.hbm [shape: f32[2,512,128], index: 7, kind: output, shape index: {0}]
  %s8 = inlined_call_operand.hbm [shape: s32[2,2,128], index: 8, kind: output, shape index: {1}]
  %9 = xla_tuple %s7, %s8
  %s10 = sld [smem:[#allocation0]]
  $region73: #{tpu_custom_call.1} parent=0
    _
  %s12 = ssub.s32 1, %s10
  %s13 = scalar_select 0, %s12, %s10
  $region1: #{tpu_custom_call.1} parent=0
    #allocation2 [shape = 'u8[1048576]{0}', space=vmem, size = 0x100000, scoped, tag = 'input window, operand 1, single buffered']
    #allocation3 [shape = 's32[2]{0}', space=sflag, size = 0x8, scoped, tag = 'scoped memory for tpu_custom_call.1']
    #allocation4 [shape = 's32[2]{0}', space=sflag, size = 0x8, scoped, tag = 'scoped memory for tpu_custom_call.1']
    #allocation5 [shape = 'u8[524288]{0}', space=vmem, size = 0x80000, scoped, tag = 'output window, operand 0']
    #allocation6 [shape = 'u8[2048]{0}', space=vmem, size = 0x800, scoped, tag = 'output window, operand 1']
    #allocation7 [shape = 's32[2]{0}', space=sflag, size = 0x8, scoped, tag = 'scoped memory for tpu_custom_call.1']
    %14 = vsyncpa [#allocation3], 0
    %15 = vsyncpa [#allocation4], 0
    %s16 = scalar_lea.sflag [#allocation4], 1
    %17 = vsyncpa %s16, 0
    %18 = vsyncpa [#allocation7], 0
    %s19 = scalar_lea.sflag [#allocation7], 1
    %20 = vsyncpa %s19, 0
    loop: start=0, step=1, limit=4
    $region2: #{tpu_custom_call.1} parent=1 // loop_pre_header
      _
    $region3: #{tpu_custom_call.1} parent=1 // loop_header
      %s22 = sphi 0, %s26
      %p23 = scmp.ge.s32.totalorder %s22, 4
      %s29 = sphi 0, %s41
      %s30 = sphi 0, %s37
      %s31 = sphi 0, %s29
      %s32 = sphi 0, %s30
      %s33 = sphi 0, %s31
      %s34 = sphi 0, %s32
      %s46 = sphi 0, %s48
      %s49 = sphi 0, %s46
      %s50 = sphi 0, %s49
      %s66 = sphi 0, %s50
      %s70 = sphi 0, %s70
      %s72 = sphi 0, %s70
      %s73 = sphi 0, %s72
      %s87 = sphi 0, %s73
      %s91 = sphi 0, %s91
      %s93 = sphi 0, %s91
      %s94 = sphi 0, %s93
      %s108 = sphi 0, %s94
      %s112 = sphi 0, %s112
      %s114 = sphi 0, %s112
      %s115 = sphi 0, %s114
      %s129 = sphi 0, %s115
      %s133 = sphi 0, %s133
      %s135 = sphi 0, %s133
      %s136 = sphi 0, %s135
      %s150 = sphi 0, %s136
      %s154 = sphi 0, %s154
      %s156 = sphi 0, %s154
      %s157 = sphi 0, %s156
      %s171 = sphi 0, %s157
      %s175 = sphi 0, %s175
      %s177 = sphi 0, %s175
      %s178 = sphi 0, %s177
      %s192 = sphi 0, %s178
      %s200 = sphi 0, %s202
      %s203 = sphi 0, %s200
      %s204 = sphi 0, %s203
      %s220 = sphi 0, %s204
      %s228 = sphi 0, %s230
      %s231 = sphi 0, %s228
      %s232 = sphi 0, %s231
      %s248 = sphi 0, %s232
    $region4: #{tpu_custom_call.1} parent=1 // loop_header_branch
      %25 = sbr.rel (%p23) target = $region8
    $region5: #{tpu_custom_call.1} parent=1 // loop_body
      %s27 = ssub.s32 %s22, 1
      %s28 = ssub.s32 %s22, 2
      %s35 = sadd.s32 1, %s30
      %p36 = scmp.ge.s32.totalorder %s35, 1
      %s37 = scalar_select %p36, 0, %s35
      %s38 = sadd.s32 1, %s29
      %s39 = scalar_select %p36, %s38, %s29
      %p40 = scmp.ge.s32.totalorder %s39, 2
      %s41 = scalar_select %p40, 0, %s39
      %s42 = ssub.s32 %s29, %s41
      %s43 = ssub.s32 %s30, %s37
      %s44 = sor.u32 %s42, %s43
      %p45 = scmp.eq.s32.totalorder %s44, 0
      %s47 = sadd.s32 %s46, 1
      %s48 = scalar_select %p45, %s46, %s47
      %p51 = pneg %p45
      %p52 = scmp.eq.s32.totalorder %s22, 1
      %p53 = por %p51, %p52
      %p54 = scmp.ne.s32.totalorder %s46, %s49
      %p55 = scmp.eq.s32.totalorder %s22, 0
      %p56 = por %p54, %p55
      %p57 = scmp.ne.s32.totalorder %s46, %s49
      %p58 = scmp.eq.s32.totalorder %s27, 1
      %p59 = por %p57, %p58
      %p60 = scmp.ne.s32.totalorder %s49, %s50
      %p61 = scmp.eq.s32.totalorder %s27, 0
      %p62 = por %p60, %p61
      %p63 = scmp.ne.s32.totalorder %s49, %s50
      %p64 = scmp.eq.s32.totalorder %s28, 1
      %p65 = por %p63, %p64
      %p67 = scmp.ne.s32.totalorder %s50, %s66
      %p68 = scmp.eq.s32.totalorder %s28, 0
      %p69 = por %p67, %p68
      %s71 = sadd.s32 %s70, 1
      %p74 = scmp.eq.s32.totalorder %s22, 1
      %p75 = scmp.ne.s32.totalorder %s70, %s72
      %p76 = scmp.eq.s32.totalorder %s22, 0
      %p77 = por %p75, %p76
      %p78 = scmp.ne.s32.totalorder %s70, %s72
      %p79 = scmp.eq.s32.totalorder %s27, 1
      %p80 = por %p78, %p79
      %p81 = scmp.ne.s32.totalorder %s72, %s73
      %p82 = scmp.eq.s32.totalorder %s27, 0
      %p83 = por %p81, %p82
      %p84 = scmp.ne.s32.totalorder %s72, %s73
      %p85 = scmp.eq.s32.totalorder %s28, 1
      %p86 = por %p84, %p85
      %p88 = scmp.ne.s32.totalorder %s73, %s87
      %p89 = scmp.eq.s32.totalorder %s28, 0
      %p90 = por %p88, %p89
      %s92 = sadd.s32 %s91, 1
      %p95 = scmp.eq.s32.totalorder %s22, 1
      %p96 = scmp.ne.s32.totalorder %s91, %s93
      %p97 = scmp.eq.s32.totalorder %s22, 0
      %p98 = por %p96, %p97
      %p99 = scmp.ne.s32.totalorder %s91, %s93
      %p100 = scmp.eq.s32.totalorder %s27, 1
      %p101 = por %p99, %p100
      %p102 = scmp.ne.s32.totalorder %s93, %s94
      %p103 = scmp.eq.s32.totalorder %s27, 0
      %p104 = por %p102, %p103
      %p105 = scmp.ne.s32.totalorder %s93, %s94
      %p106 = scmp.eq.s32.totalorder %s28, 1
      %p107 = por %p105, %p106
      %p109 = scmp.ne.s32.totalorder %s94, %s108
      %p110 = scmp.eq.s32.totalorder %s28, 0
      %p111 = por %p109, %p110
      %s113 = sadd.s32 %s112, 1
      %p116 = scmp.eq.s32.totalorder %s22, 1
      %p117 = scmp.ne.s32.totalorder %s112, %s114
      %p118 = scmp.eq.s32.totalorder %s22, 0
      %p119 = por %p117, %p118
      %p120 = scmp.ne.s32.totalorder %s112, %s114
      %p121 = scmp.eq.s32.totalorder %s27, 1
      %p122 = por %p120, %p121
      %p123 = scmp.ne.s32.totalorder %s114, %s115
      %p124 = scmp.eq.s32.totalorder %s27, 0
      %p125 = por %p123, %p124
      %p126 = scmp.ne.s32.totalorder %s114, %s115
      %p127 = scmp.eq.s32.totalorder %s28, 1
      %p128 = por %p126, %p127
      %p130 = scmp.ne.s32.totalorder %s115, %s129
      %p131 = scmp.eq.s32.totalorder %s28, 0
      %p132 = por %p130, %p131
      %s134 = sadd.s32 %s133, 1
      %p137 = scmp.eq.s32.totalorder %s22, 1
      %p138 = scmp.ne.s32.totalorder %s133, %s135
      %p139 = scmp.eq.s32.totalorder %s22, 0
      %p140 = por %p138, %p139
      %p141 = scmp.ne.s32.totalorder %s133, %s135
      %p142 = scmp.eq.s32.totalorder %s27, 1
      %p143 = por %p141, %p142
      %p144 = scmp.ne.s32.totalorder %s135, %s136
      %p145 = scmp.eq.s32.totalorder %s27, 0
      %p146 = por %p144, %p145
      %p147 = scmp.ne.s32.totalorder %s135, %s136
      %p148 = scmp.eq.s32.totalorder %s28, 1
      %p149 = por %p147, %p148
      %p151 = scmp.ne.s32.totalorder %s136, %s150
      %p152 = scmp.eq.s32.totalorder %s28, 0
      %p153 = por %p151, %p152
      %s155 = sadd.s32 %s154, 1
      %p158 = scmp.eq.s32.totalorder %s22, 1
      %p159 = scmp.ne.s32.totalorder %s154, %s156
      %p160 = scmp.eq.s32.totalorder %s22, 0
      %p161 = por %p159, %p160
      %p162 = scmp.ne.s32.totalorder %s154, %s156
      %p163 = scmp.eq.s32.totalorder %s27, 1
      %p164 = por %p162, %p163
      %p165 = scmp.ne.s32.totalorder %s156, %s157
      %p166 = scmp.eq.s32.totalorder %s27, 0
      %p167 = por %p165, %p166
      %p168 = scmp.ne.s32.totalorder %s156, %s157
      %p169 = scmp.eq.s32.totalorder %s28, 1
      %p170 = por %p168, %p169
      %p172 = scmp.ne.s32.totalorder %s157, %s171
      %p173 = scmp.eq.s32.totalorder %s28, 0
      %p174 = por %p172, %p173
      %s176 = sadd.s32 %s175, 1
      %p179 = scmp.eq.s32.totalorder %s22, 1
      %p180 = scmp.ne.s32.totalorder %s175, %s177
      %p181 = scmp.eq.s32.totalorder %s22, 0
      %p182 = por %p180, %p181
      %p183 = scmp.ne.s32.totalorder %s175, %s177
      %p184 = scmp.eq.s32.totalorder %s27, 1
      %p185 = por %p183, %p184
      %p186 = scmp.ne.s32.totalorder %s177, %s178
      %p187 = scmp.eq.s32.totalorder %s27, 0
      %p188 = por %p186, %p187
      %p189 = scmp.ne.s32.totalorder %s177, %s178
      %p190 = scmp.eq.s32.totalorder %s28, 1
      %p191 = por %p189, %p190
      %p193 = scmp.ne.s32.totalorder %s178, %s192
      %p194 = scmp.eq.s32.totalorder %s28, 0
      %p195 = por %p193, %p194
      %s196 = ssub.s32 %s29, %s41
      %s197 = ssub.s32 %s30, %s37
      %s198 = sor.u32 %s196, %s197
      %p199 = scmp.eq.s32.totalorder %s198, 0
      %s201 = sadd.s32 %s200, 1
      %s202 = scalar_select %p199, %s200, %s201
      %p205 = pneg %p199
      %p206 = scmp.eq.s32.totalorder %s22, 1
      %p207 = por %p205, %p206
      %p208 = scmp.ne.s32.totalorder %s200, %s203
      %p209 = scmp.eq.s32.totalorder %s22, 0
      %p210 = por %p208, %p209
      %p211 = scmp.ne.s32.totalorder %s200, %s203
      %p212 = scmp.eq.s32.totalorder %s27, 1
      %p213 = por %p211, %p212
      %p214 = scmp.ne.s32.totalorder %s203, %s204
      %p215 = scmp.eq.s32.totalorder %s27, 0
      %p216 = por %p214, %p215
      %p217 = scmp.ne.s32.totalorder %s203, %s204
      %p218 = scmp.eq.s32.totalorder %s28, 1
      %p219 = por %p217, %p218
      %p221 = scmp.ne.s32.totalorder %s204, %s220
      %p222 = scmp.eq.s32.totalorder %s28, 0
      %p223 = por %p221, %p222
      %s224 = ssub.s32 %s29, %s41
      %s225 = ssub.s32 %s30, %s37
      %s226 = sor.u32 %s224, %s225
      %p227 = scmp.eq.s32.totalorder %s226, 0
      %s229 = sadd.s32 %s228, 1
      %s230 = scalar_select %p227, %s228, %s229
      %p233 = pneg %p227
      %p234 = scmp.eq.s32.totalorder %s22, 1
      %p235 = por %p233, %p234
      %p236 = scmp.ne.s32.totalorder %s228, %s231
      %p237 = scmp.eq.s32.totalorder %s22, 0
      %p238 = por %p236, %p237
      %p239 = scmp.ne.s32.totalorder %s228, %s231
      %p240 = scmp.eq.s32.totalorder %s27, 1
      %p241 = por %p239, %p240
      %p242 = scmp.ne.s32.totalorder %s231, %s232
      %p243 = scmp.eq.s32.totalorder %s27, 0
      %p244 = por %p242, %p243
      %p245 = scmp.ne.s32.totalorder %s231, %s232
      %p246 = scmp.eq.s32.totalorder %s28, 1
      %p247 = por %p245, %p246
      %p249 = scmp.ne.s32.totalorder %s232, %s248
      %p250 = scmp.eq.s32.totalorder %s28, 0
      %p251 = por %p249, %p250
      %p252 = scmp.le.s32.totalorder 1, %s22
      %p253 = scmp.lt.s32.totalorder %s22, 3
      %p254 = pnand %p252, %p253
      %p255 = pneg %p254
      // Predicated region
      $region9: #{tpu_custom_call.1} parent=5 // pred_check
        _
      $region10: #{tpu_custom_call.1} parent=5 // pred_check_branch
        %257 = sbr.rel (%p254) target = $region12
      $region11: #{tpu_custom_call.1} parent=5 // pred_region
        %s258 = ssub.s32 %s22, 1
        // Predicated region
        $region13: #{tpu_custom_call.1} parent=11 // pred_check
          %p259 = pneg %p83
        $region14: #{tpu_custom_call.1} parent=11 // pred_check_branch
          %261 = sbr.rel (%p259) target = $region16
        $region15: #{tpu_custom_call.1} parent=11 // pred_region
          %s263 = ssub.s32 32768, 32768
          %264 = vsyncadd [#allocation3], %s263
          %s265 = sshll.u32 [#allocation2], 4
          %s266 = int_to_ptr.vmem [resolvable:$true] %s265
          %271 = dma.hbm_to_vmem [thread:$0]  %s1, 32768, %s266, [#allocation3], 256, 256, 16
        $region16: #{tpu_custom_call.1} parent=11 // pred_fallthru
          _
        // Predicated region
        $region17: #{tpu_custom_call.1} parent=11 // pred_check
          %p272 = pneg %p104
        $region18: #{tpu_custom_call.1} parent=11 // pred_check_branch
          %274 = sbr.rel (%p272) target = $region20
        $region19: #{tpu_custom_call.1} parent=11 // pred_region
          _
        $region20: #{tpu_custom_call.1} parent=11 // pred_fallthru
          _
        // Predicated region
        $region21: #{tpu_custom_call.1} parent=11 // pred_check
          %p275 = pneg %p125
        $region22: #{tpu_custom_call.1} parent=11 // pred_check_branch
          %277 = sbr.rel (%p275) target = $region24
        $region23: #{tpu_custom_call.1} parent=11 // pred_region
          _
        $region24: #{tpu_custom_call.1} parent=11 // pred_fallthru
          _
        // Predicated region
        $region25: #{tpu_custom_call.1} parent=11 // pred_check
          %p278 = pneg %p146
        $region26: #{tpu_custom_call.1} parent=11 // pred_check_branch
          %280 = sbr.rel (%p278) target = $region28
        $region27: #{tpu_custom_call.1} parent=11 // pred_region
          _
        $region28: #{tpu_custom_call.1} parent=11 // pred_fallthru
          _
        // Predicated region
        $region29: #{tpu_custom_call.1} parent=11 // pred_check
          %p281 = pneg %p167
        $region30: #{tpu_custom_call.1} parent=11 // pred_check_branch
          %283 = sbr.rel (%p281) target = $region32
        $region31: #{tpu_custom_call.1} parent=11 // pred_region
          _
        $region32: #{tpu_custom_call.1} parent=11 // pred_fallthru
          _
        // Predicated region
        $region33: #{tpu_custom_call.1} parent=11 // pred_check
          %p284 = pneg %p188
        $region34: #{tpu_custom_call.1} parent=11 // pred_check_branch
          %286 = sbr.rel (%p284) target = $region36
        $region35: #{tpu_custom_call.1} parent=11 // pred_region
          _
        $region36: #{tpu_custom_call.1} parent=11 // pred_fallthru
          _
      $region12: #{tpu_custom_call.1} parent=5 // pred_fallthru
        _
      %p287 = scmp.lt.s32.totalorder %s22, 2
      // Predicated region
      $region37: #{tpu_custom_call.1} parent=5 // pred_check
        %p288 = pneg %p287
      $region38: #{tpu_custom_call.1} parent=5 // pred_check_branch
        %290 = sbr.rel (%p288) target = $region40
      $region39: #{tpu_custom_call.1} parent=5 // pred_region
        // Predicated region
        $region41: #{tpu_custom_call.1} parent=39 // pred_check
          %p291 = pneg %p56
        $region42: #{tpu_custom_call.1} parent=39 // pred_check_branch
          %293 = sbr.rel (%p291) target = $region44
        $region43: #{tpu_custom_call.1} parent=39 // pred_region
          %p294 = scmp.lt.s32.totalorder %s29, 1
          %s295 = scalar_select %p294, %s29, 1
          %p296 = scmp.lt.s32.totalorder %s30, 0
          %s297 = scalar_select %p296, %s30, 0
          %s298 = smul.addr %s295, 64
          %s299 = sadd.s32 %s297, %s298
          %s300 = smul.addr %s299, 4
          %s301 = scalar_lea.vmem %s0, %s300
        $region44: #{tpu_custom_call.1} parent=39 // pred_fallthru
          _
      $region40: #{tpu_custom_call.1} parent=5 // pred_fallthru
        _
      %p302 = scmp.le.s32.totalorder 1, %s22
      %p303 = scmp.lt.s32.totalorder %s22, 3
      %p304 = pnand %p302, %p303
      %p305 = pneg %p304
      // Predicated region
      $region45: #{tpu_custom_call.1} parent=5 // pred_check
        _
      $region46: #{tpu_custom_call.1} parent=5 // pred_check_branch
        %307 = sbr.rel (%p304) target = $region48
      $region47: #{tpu_custom_call.1} parent=5 // pred_region
        %s308 = ssub.s32 %s22, 1
        // Predicated region
        $region49: #{tpu_custom_call.1} parent=47 // pred_check
          %p309 = pneg %p83
        $region50: #{tpu_custom_call.1} parent=47 // pred_check_branch
          %311 = sbr.rel (%p309) target = $region52
        $region51: #{tpu_custom_call.1} parent=47 // pred_region
          %312 = dma.done [#allocation3], 32768
        $region52: #{tpu_custom_call.1} parent=47 // pred_fallthru
          _
        %p313 = scmp.lt.s32.totalorder %s31, 1
        %s314 = scalar_select %p313, %s31, 1
        %p315 = scmp.lt.s32.totalorder %s32, 0
        %s316 = scalar_select %p315, %s32, 0
        %s317 = smul.addr %s314, 64
        %s318 = sadd.s32 %s316, %s317
        %s319 = smul.addr %s318, 4
        %s320 = scalar_lea.vmem %s0, %s319
        %p321 = pneg %p62
        %p322 = pneg %p59
        %p323 = pneg %p83
        %p324 = pneg %p80
        %p325 = pneg %p104
        %p326 = pneg %p101
        %p327 = pneg %p125
        %p328 = pneg %p122
        %p329 = pneg %p146
        %p330 = pneg %p143
        %p331 = pneg %p167
        %p332 = pneg %p164
        %p333 = pneg %p188
        %p334 = pneg %p185
        %p335 = pneg %p216
        %p336 = pneg %p213
        %s337 = sand.u32 %s203, 1
        %s338 = scalar_lea.sflag [#allocation4], %s337
        %s339 = sand.u32 %s203, 1
        %s340 = smul.addr %s339, 512
        %s341 = scalar_lea.vmem [#allocation5], %s340
        %p342 = pneg %p244
        %p343 = pneg %p241
        %s344 = sand.u32 %s231, 1
        %s345 = scalar_lea.sflag [#allocation7], %s344
        %s346 = sand.u32 %s231, 1
        %s347 = smul.addr %s346, 2
        %s348 = scalar_lea.vmem [#allocation6], %s347
        %p349 = scmp.lt.s32.totalorder %s31, 1
        %s350 = scalar_select %p349, %s31, 1
        %p351 = scmp.lt.s32.totalorder %s32, 0
        %s352 = scalar_select %p351, %s32, 0
        %s353 = smul.addr %s350, 64
        %s354 = sadd.s32 %s352, %s353
        %s355 = smul.addr %s354, 4
        %s356 = scalar_lea.vmem %s0, %s355
        %v358 = vld [vmem:[%s356] sm:$0xf]
        %v359 = vld [vmem:[%s356 + $0x4] sm:$0xf]
        %v360 = vld [vmem:[%s356 + $0x8] sm:$0xf]
        %v361 = vld [vmem:[%s356 + $0xc] sm:$0xf]
        %v362 = vld [vmem:[%s356 + $0x10] sm:$0xf]
        %v363 = vld [vmem:[%s356 + $0x14] sm:$0xf]
        %v364 = vld [vmem:[%s356 + $0x18] sm:$0xf]
        %v365 = vld [vmem:[%s356 + $0x1c] sm:$0xf]
        %v366 = vld [vmem:[%s356 + $0x20] sm:$0xf]
        %v367 = vld [vmem:[%s356 + $0x24] sm:$0xf]
        %v368 = vld [vmem:[%s356 + $0x28] sm:$0xf]
        %v369 = vld [vmem:[%s356 + $0x2c] sm:$0xf]
        %v370 = vld [vmem:[%s356 + $0x30] sm:$0xf]
        %v371 = vld [vmem:[%s356 + $0x34] sm:$0xf]
        %v372 = vld [vmem:[%s356 + $0x38] sm:$0xf]
        %v373 = vld [vmem:[%s356 + $0x3c] sm:$0xf]
        %v374 = vld [vmem:[%s356 + $0x40] sm:$0xf]
        %v375 = vld [vmem:[%s356 + $0x44] sm:$0xf]
        %v376 = vld [vmem:[%s356 + $0x48] sm:$0xf]
        %v377 = vld [vmem:[%s356 + $0x4c] sm:$0xf]
        %v378 = vld [vmem:[%s356 + $0x50] sm:$0xf]
        %v379 = vld [vmem:[%s356 + $0x54] sm:$0xf]
        %v380 = vld [vmem:[%s356 + $0x58] sm:$0xf]
        %v381 = vld [vmem:[%s356 + $0x5c] sm:$0xf]
        %v382 = vld [vmem:[%s356 + $0x60] sm:$0xf]
        %v383 = vld [vmem:[%s356 + $0x64] sm:$0xf]
        %v384 = vld [vmem:[%s356 + $0x68] sm:$0xf]
        %v385 = vld [vmem:[%s356 + $0x6c] sm:$0xf]
        %v386 = vld [vmem:[%s356 + $0x70] sm:$0xf]
        %v387 = vld [vmem:[%s356 + $0x74] sm:$0xf]
        %v388 = vld [vmem:[%s356 + $0x78] sm:$0xf]
        %v389 = vld [vmem:[%s356 + $0x7c] sm:$0xf]
        %v390 = vld [vmem:[%s356 + $0x80] sm:$0xf]
        %v391 = vld [vmem:[%s356 + $0x84] sm:$0xf]
        %v392 = vld [vmem:[%s356 + $0x88] sm:$0xf]
        %v393 = vld [vmem:[%s356 + $0x8c] sm:$0xf]
        %v394 = vld [vmem:[%s356 + $0x90] sm:$0xf]
        %v395 = vld [vmem:[%s356 + $0x94] sm:$0xf]
        %v396 = vld [vmem:[%s356 + $0x98] sm:$0xf]
        %v397 = vld [vmem:[%s356 + $0x9c] sm:$0xf]
        %v398 = vld [vmem:[%s356 + $0xa0] sm:$0xf]
        %v399 = vld [vmem:[%s356 + $0xa4] sm:$0xf]
        %v400 = vld [vmem:[%s356 + $0xa8] sm:$0xf]
        %v401 = vld [vmem:[%s356 + $0xac] sm:$0xf]
        %v402 = vld [vmem:[%s356 + $0xb0] sm:$0xf]
        %v403 = vld [vmem:[%s356 + $0xb4] sm:$0xf]
        %v404 = vld [vmem:[%s356 + $0xb8] sm:$0xf]
        %v405 = vld [vmem:[%s356 + $0xbc] sm:$0xf]
        %v406 = vld [vmem:[%s356 + $0xc0] sm:$0xf]
        %v407 = vld [vmem:[%s356 + $0xc4] sm:$0xf]
        %v408 = vld [vmem:[%s356 + $0xc8] sm:$0xf]
        %v409 = vld [vmem:[%s356 + $0xcc] sm:$0xf]
        %v410 = vld [vmem:[%s356 + $0xd0] sm:$0xf]
        %v411 = vld [vmem:[%s356 + $0xd4] sm:$0xf]
        %v412 = vld [vmem:[%s356 + $0xd8] sm:$0xf]
        %v413 = vld [vmem:[%s356 + $0xdc] sm:$0xf]
        %v414 = vld [vmem:[%s356 + $0xe0] sm:$0xf]
        %v415 = vld [vmem:[%s356 + $0xe4] sm:$0xf]
        %v416 = vld [vmem:[%s356 + $0xe8] sm:$0xf]
        %v417 = vld [vmem:[%s356 + $0xec] sm:$0xf]
        %v418 = vld [vmem:[%s356 + $0xf0] sm:$0xf]
        %v419 = vld [vmem:[%s356 + $0xf4] sm:$0xf]
        %v420 = vld [vmem:[%s356 + $0xf8] sm:$0xf]
        %v421 = vld [vmem:[%s356 + $0xfc] sm:$0xf]
        %v422 = vld [vmem:[#allocation2] sm:$0xff]
        %v423 = vld [vmem:[#allocation2 + $0x8] sm:$0xff]
        %v424 = vld [vmem:[#allocation2 + $0x10] sm:$0xff]
        %v425 = vld [vmem:[#allocation2 + $0x18] sm:$0xff]
        %v426 = vld [vmem:[#allocation2 + $0x20] sm:$0xff]
        %v427 = vld [vmem:[#allocation2 + $0x28] sm:$0xff]
        %v428 = vld [vmem:[#allocation2 + $0x30] sm:$0xff]
        %v429 = vld [vmem:[#allocation2 + $0x38] sm:$0xff]
        %v430 = vld [vmem:[#allocation2 + $0x40] sm:$0xff]
        %v431 = vld [vmem:[#allocation2 + $0x48] sm:$0xff]
        %v432 = vld [vmem:[#allocation2 + $0x50] sm:$0xff]
        %v433 = vld [vmem:[#allocation2 + $0x58] sm:$0xff]
        %v434 = vld [vmem:[#allocation2 + $0x60] sm:$0xff]
        %v435 = vld [vmem:[#allocation2 + $0x68] sm:$0xff]
        %v436 = vld [vmem:[#allocation2 + $0x70] sm:$0xff]
        %v437 = vld [vmem:[#allocation2 + $0x78] sm:$0xff]
        %v438 = vld [vmem:[#allocation2 + $0x80] sm:$0xff]
        %v439 = vld [vmem:[#allocation2 + $0x88] sm:$0xff]
        %v440 = vld [vmem:[#allocation2 + $0x90] sm:$0xff]
        %v441 = vld [vmem:[#allocation2 + $0x98] sm:$0xff]
        %v442 = vld [vmem:[#allocation2 + $0xa0] sm:$0xff]
        %v443 = vld [vmem:[#allocation2 + $0xa8] sm:$0xff]
        %v444 = vld [vmem:[#allocation2 + $0xb0] sm:$0xff]
        %v445 = vld [vmem:[#allocation2 + $0xb8] sm:$0xff]
        %v446 = vld [vmem:[#allocation2 + $0xc0] sm:$0xff]
        %v447 = vld [vmem:[#allocation2 + $0xc8] sm:$0xff]
        %v448 = vld [vmem:[#allocation2 + $0xd0] sm:$0xff]
        %v449 = vld [vmem:[#allocation2 + $0xd8] sm:$0xff]
        %v450 = vld [vmem:[#allocation2 + $0xe0] sm:$0xff]
        %v451 = vld [vmem:[#allocation2 + $0xe8] sm:$0xff]
        %v452 = vld [vmem:[#allocation2 + $0xf0] sm:$0xff]
        %v453 = vld [vmem:[#allocation2 + $0xf8] sm:$0xff]
        %v454 = vld [vmem:[#allocation2 + $0x100] sm:$0xff]
        %v455 = vld [vmem:[#allocation2 + $0x108] sm:$0xff]
        %v456 = vld [vmem:[#allocation2 + $0x110] sm:$0xff]
        %v457 = vld [vmem:[#allocation2 + $0x118] sm:$0xff]
        %v458 = vld [vmem:[#allocation2 + $0x120] sm:$0xff]
        %v459 = vld [vmem:[#allocation2 + $0x128] sm:$0xff]
        %v460 = vld [vmem:[#allocation2 + $0x130] sm:$0xff]
        %v461 = vld [vmem:[#allocation2 + $0x138] sm:$0xff]
        %v462 = vld [vmem:[#allocation2 + $0x140] sm:$0xff]
        %v463 = vld [vmem:[#allocation2 + $0x148] sm:$0xff]
        %v464 = vld [vmem:[#allocation2 + $0x150] sm:$0xff]
        %v465 = vld [vmem:[#allocation2 + $0x158] sm:$0xff]
        %v466 = vld [vmem:[#allocation2 + $0x160] sm:$0xff]
        %v467 = vld [vmem:[#allocation2 + $0x168] sm:$0xff]
        %v468 = vld [vmem:[#allocation2 + $0x170] sm:$0xff]
        %v469 = vld [vmem:[#allocation2 + $0x178] sm:$0xff]
        %v470 = vld [vmem:[#allocation2 + $0x180] sm:$0xff]
        %v471 = vld [vmem:[#allocation2 + $0x188] sm:$0xff]
        %v472 = vld [vmem:[#allocation2 + $0x190] sm:$0xff]
        %v473 = vld [vmem:[#allocation2 + $0x198] sm:$0xff]
        %v474 = vld [vmem:[#allocation2 + $0x1a0] sm:$0xff]
        %v475 = vld [vmem:[#allocation2 + $0x1a8] sm:$0xff]
        %v476 = vld [vmem:[#allocation2 + $0x1b0] sm:$0xff]
        %v477 = vld [vmem:[#allocation2 + $0x1b8] sm:$0xff]
        %v478 = vld [vmem:[#allocation2 + $0x1c0] sm:$0xff]
        %v479 = vld [vmem:[#allocation2 + $0x1c8] sm:$0xff]
        %v480 = vld [vmem:[#allocation2 + $0x1d0] sm:$0xff]
        %v481 = vld [vmem:[#allocation2 + $0x1d8] sm:$0xff]
        %v482 = vld [vmem:[#allocation2 + $0x1e0] sm:$0xff]
        %v483 = vld [vmem:[#allocation2 + $0x1e8] sm:$0xff]
        %v484 = vld [vmem:[#allocation2 + $0x1f0] sm:$0xff]
        %v485 = vld [vmem:[#allocation2 + $0x1f8] sm:$0xff]
        %v486 = vld [vmem:[#allocation2 + $0x200] sm:$0xff]
        %v487 = vld [vmem:[#allocation2 + $0x208] sm:$0xff]
        %v488 = vld [vmem:[#allocation2 + $0x210] sm:$0xff]
        %v489 = vld [vmem:[#allocation2 + $0x218] sm:$0xff]
        %v490 = vld [vmem:[#allocation2 + $0x220] sm:$0xff]
        %v491 = vld [vmem:[#allocation2 + $0x228] sm:$0xff]
        %v492 = vld [vmem:[#allocation2 + $0x230] sm:$0xff]
        %v493 = vld [vmem:[#allocation2 + $0x238] sm:$0xff]
        %v494 = vld [vmem:[#allocation2 + $0x240] sm:$0xff]
        %v495 = vld [vmem:[#allocation2 + $0x248] sm:$0xff]
        %v496 = vld [vmem:[#allocation2 + $0x250] sm:$0xff]
        %v497 = vld [vmem:[#allocation2 + $0x258] sm:$0xff]
        %v498 = vld [vmem:[#allocation2 + $0x260] sm:$0xff]
        %v499 = vld [vmem:[#allocation2 + $0x268] sm:$0xff]
        %v500 = vld [vmem:[#allocation2 + $0x270] sm:$0xff]
        %v501 = vld [vmem:[#allocation2 + $0x278] sm:$0xff]
        %v502 = vld [vmem:[#allocation2 + $0x280] sm:$0xff]
        %v503 = vld [vmem:[#allocation2 + $0x288] sm:$0xff]
        %v504 = vld [vmem:[#allocation2 + $0x290] sm:$0xff]
        %v505 = vld [vmem:[#allocation2 + $0x298] sm:$0xff]
        %v506 = vld [vmem:[#allocation2 + $0x2a0] sm:$0xff]
        %v507 = vld [vmem:[#allocation2 + $0x2a8] sm:$0xff]
        %v508 = vld [vmem:[#allocation2 + $0x2b0] sm:$0xff]
        %v509 = vld [vmem:[#allocation2 + $0x2b8] sm:$0xff]
        %v510 = vld [vmem:[#allocation2 + $0x2c0] sm:$0xff]
        %v511 = vld [vmem:[#allocation2 + $0x2c8] sm:$0xff]
        %v512 = vld [vmem:[#allocation2 + $0x2d0] sm:$0xff]
        %v513 = vld [vmem:[#allocation2 + $0x2d8] sm:$0xff]
        %v514 = vld [vmem:[#allocation2 + $0x2e0] sm:$0xff]
        %v515 = vld [vmem:[#allocation2 + $0x2e8] sm:$0xff]
        %v516 = vld [vmem:[#allocation2 + $0x2f0] sm:$0xff]
        %v517 = vld [vmem:[#allocation2 + $0x2f8] sm:$0xff]
        %v518 = vld [vmem:[#allocation2 + $0x300] sm:$0xff]
        %v519 = vld [vmem:[#allocation2 + $0x308] sm:$0xff]
        %v520 = vld [vmem:[#allocation2 + $0x310] sm:$0xff]
        %v521 = vld [vmem:[#allocation2 + $0x318] sm:$0xff]
        %v522 = vld [vmem:[#allocation2 + $0x320] sm:$0xff]
        %v523 = vld [vmem:[#allocation2 + $0x328] sm:$0xff]
        %v524 = vld [vmem:[#allocation2 + $0x330] sm:$0xff]
        %v525 = vld [vmem:[#allocation2 + $0x338] sm:$0xff]
        %v526 = vld [vmem:[#allocation2 + $0x340] sm:$0xff]
        %v527 = vld [vmem:[#allocation2 + $0x348] sm:$0xff]
        %v528 = vld [vmem:[#allocation2 + $0x350] sm:$0xff]
        %v529 = vld [vmem:[#allocation2 + $0x358] sm:$0xff]
        %v530 = vld [vmem:[#allocation2 + $0x360] sm:$0xff]
        %v531 = vld [vmem:[#allocation2 + $0x368] sm:$0xff]
        %v532 = vld [vmem:[#allocation2 + $0x370] sm:$0xff]
        %v533 = vld [vmem:[#allocation2 + $0x378] sm:$0xff]
        %v534 = vld [vmem:[#allocation2 + $0x380] sm:$0xff]
        %v535 = vld [vmem:[#allocation2 + $0x388] sm:$0xff]
        %v536 = vld [vmem:[#allocation2 + $0x390] sm:$0xff]
        %v537 = vld [vmem:[#allocation2 + $0x398] sm:$0xff]
        %v538 = vld [vmem:[#allocation2 + $0x3a0] sm:$0xff]
        %v539 = vld [vmem:[#allocation2 + $0x3a8] sm:$0xff]
        %v540 = vld [vmem:[#allocation2 + $0x3b0] sm:$0xff]
        %v541 = vld [vmem:[#allocation2 + $0x3b8] sm:$0xff]
        %v542 = vld [vmem:[#allocation2 + $0x3c0] sm:$0xff]
        %v543 = vld [vmem:[#allocation2 + $0x3c8] sm:$0xff]
        %v544 = vld [vmem:[#allocation2 + $0x3d0] sm:$0xff]
        %v545 = vld [vmem:[#allocation2 + $0x3d8] sm:$0xff]
        %v546 = vld [vmem:[#allocation2 + $0x3e0] sm:$0xff]
        %v547 = vld [vmem:[#allocation2 + $0x3e8] sm:$0xff]
        %v548 = vld [vmem:[#allocation2 + $0x3f0] sm:$0xff]
        %v549 = vld [vmem:[#allocation2 + $0x3f8] sm:$0xff]
        %v550 = vld [vmem:[#allocation2 + $0x400] sm:$0xff]
        %v551 = vld [vmem:[#allocation2 + $0x408] sm:$0xff]
        %v552 = vld [vmem:[#allocation2 + $0x410] sm:$0xff]
        %v553 = vld [vmem:[#allocation2 + $0x418] sm:$0xff]
        %v554 = vld [vmem:[#allocation2 + $0x420] sm:$0xff]
        %v555 = vld [vmem:[#allocation2 + $0x428] sm:$0xff]
        %v556 = vld [vmem:[#allocation2 + $0x430] sm:$0xff]
        %v557 = vld [vmem:[#allocation2 + $0x438] sm:$0xff]
        %v558 = vld [vmem:[#allocation2 + $0x440] sm:$0xff]
        %v559 = vld [vmem:[#allocation2 + $0x448] sm:$0xff]
        %v560 = vld [vmem:[#allocation2 + $0x450] sm:$0xff]
        %v561 = vld [vmem:[#allocation2 + $0x458] sm:$0xff]
        %v562 = vld [vmem:[#allocation2 + $0x460] sm:$0xff]
        %v563 = vld [vmem:[#allocation2 + $0x468] sm:$0xff]
        %v564 = vld [vmem:[#allocation2 + $0x470] sm:$0xff]
        %v565 = vld [vmem:[#allocation2 + $0x478] sm:$0xff]
        %v566 = vld [vmem:[#allocation2 + $0x480] sm:$0xff]
        %v567 = vld [vmem:[#allocation2 + $0x488] sm:$0xff]
        %v568 = vld [vmem:[#allocation2 + $0x490] sm:$0xff]
        %v569 = vld [vmem:[#allocation2 + $0x498] sm:$0xff]
        %v570 = vld [vmem:[#allocation2 + $0x4a0] sm:$0xff]
        %v571 = vld [vmem:[#allocation2 + $0x4a8] sm:$0xff]
        %v572 = vld [vmem:[#allocation2 + $0x4b0] sm:$0xff]
        %v573 = vld [vmem:[#allocation2 + $0x4b8] sm:$0xff]
        %v574 = vld [vmem:[#allocation2 + $0x4c0] sm:$0xff]
        %v575 = vld [vmem:[#allocation2 + $0x4c8] sm:$0xff]
        %v576 = vld [vmem:[#allocation2 + $0x4d0] sm:$0xff]
        %v577 = vld [vmem:[#allocation2 + $0x4d8] sm:$0xff]
        %v578 = vld [vmem:[#allocation2 + $0x4e0] sm:$0xff]
        %v579 = vld [vmem:[#allocation2 + $0x4e8] sm:$0xff]
        %v580 = vld [vmem:[#allocation2 + $0x4f0] sm:$0xff]
        %v581 = vld [vmem:[#allocation2 + $0x4f8] sm:$0xff]
        %v582 = vld [vmem:[#allocation2 + $0x500] sm:$0xff]
        %v583 = vld [vmem:[#allocation2 + $0x508] sm:$0xff]
        %v584 = vld [vmem:[#allocation2 + $0x510] sm:$0xff]
        %v585 = vld [vmem:[#allocation2 + $0x518] sm:$0xff]
        %v586 = vld [vmem:[#allocation2 + $0x520] sm:$0xff]
        %v587 = vld [vmem:[#allocation2 + $0x528] sm:$0xff]
        %v588 = vld [vmem:[#allocation2 + $0x530] sm:$0xff]
        %v589 = vld [vmem:[#allocation2 + $0x538] sm:$0xff]
        %v590 = vld [vmem:[#allocation2 + $0x540] sm:$0xff]
        %v591 = vld [vmem:[#allocation2 + $0x548] sm:$0xff]
        %v592 = vld [vmem:[#allocation2 + $0x550] sm:$0xff]
        %v593 = vld [vmem:[#allocation2 + $0x558] sm:$0xff]
        %v594 = vld [vmem:[#allocation2 + $0x560] sm:$0xff]
        %v595 = vld [vmem:[#allocation2 + $0x568] sm:$0xff]
        %v596 = vld [vmem:[#allocation2 + $0x570] sm:$0xff]
        %v597 = vld [vmem:[#allocation2 + $0x578] sm:$0xff]
        %v598 = vld [vmem:[#allocation2 + $0x580] sm:$0xff]
        %v599 = vld [vmem:[#allocation2 + $0x588] sm:$0xff]
        %v600 = vld [vmem:[#allocation2 + $0x590] sm:$0xff]
        %v601 = vld [vmem:[#allocation2 + $0x598] sm:$0xff]
        %v602 = vld [vmem:[#allocation2 + $0x5a0] sm:$0xff]
        %v603 = vld [vmem:[#allocation2 + $0x5a8] sm:$0xff]
        %v604 = vld [vmem:[#allocation2 + $0x5b0] sm:$0xff]
        %v605 = vld [vmem:[#allocation2 + $0x5b8] sm:$0xff]
        %v606 = vld [vmem:[#allocation2 + $0x5c0] sm:$0xff]
        %v607 = vld [vmem:[#allocation2 + $0x5c8] sm:$0xff]
        %v608 = vld [vmem:[#allocation2 + $0x5d0] sm:$0xff]
        %v609 = vld [vmem:[#allocation2 + $0x5d8] sm:$0xff]
        %v610 = vld [vmem:[#allocation2 + $0x5e0] sm:$0xff]
        %v611 = vld [vmem:[#allocation2 + $0x5e8] sm:$0xff]
        %v612 = vld [vmem:[#allocation2 + $0x5f0] sm:$0xff]
        %v613 = vld [vmem:[#allocation2 + $0x5f8] sm:$0xff]
        %v614 = vld [vmem:[#allocation2 + $0x600] sm:$0xff]
        %v615 = vld [vmem:[#allocation2 + $0x608] sm:$0xff]
        %v616 = vld [vmem:[#allocation2 + $0x610] sm:$0xff]
        %v617 = vld [vmem:[#allocation2 + $0x618] sm:$0xff]
        %v618 = vld [vmem:[#allocation2 + $0x620] sm:$0xff]
        %v619 = vld [vmem:[#allocation2 + $0x628] sm:$0xff]
        %v620 = vld [vmem:[#allocation2 + $0x630] sm:$0xff]
        %v621 = vld [vmem:[#allocation2 + $0x638] sm:$0xff]
        %v622 = vld [vmem:[#allocation2 + $0x640] sm:$0xff]
        %v623 = vld [vmem:[#allocation2 + $0x648] sm:$0xff]
        %v624 = vld [vmem:[#allocation2 + $0x650] sm:$0xff]
        %v625 = vld [vmem:[#allocation2 + $0x658] sm:$0xff]
        %v626 = vld [vmem:[#allocation2 + $0x660] sm:$0xff]
        %v627 = vld [vmem:[#allocation2 + $0x668] sm:$0xff]
        %v628 = vld [vmem:[#allocation2 + $0x670] sm:$0xff]
        %v629 = vld [vmem:[#allocation2 + $0x678] sm:$0xff]
        %v630 = vld [vmem:[#allocation2 + $0x680] sm:$0xff]
        %v631 = vld [vmem:[#allocation2 + $0x688] sm:$0xff]
        %v632 = vld [vmem:[#allocation2 + $0x690] sm:$0xff]
        %v633 = vld [vmem:[#allocation2 + $0x698] sm:$0xff]
        %v634 = vld [vmem:[#allocation2 + $0x6a0] sm:$0xff]
        %v635 = vld [vmem:[#allocation2 + $0x6a8] sm:$0xff]
        %v636 = vld [vmem:[#allocation2 + $0x6b0] sm:$0xff]
        %v637 = vld [vmem:[#allocation2 + $0x6b8] sm:$0xff]
        %v638 = vld [vmem:[#allocation2 + $0x6c0] sm:$0xff]
        %v639 = vld [vmem:[#allocation2 + $0x6c8] sm:$0xff]
        %v640 = vld [vmem:[#allocation2 + $0x6d0] sm:$0xff]
        %v641 = vld [vmem:[#allocation2 + $0x6d8] sm:$0xff]
        %v642 = vld [vmem:[#allocation2 + $0x6e0] sm:$0xff]
        %v643 = vld [vmem:[#allocation2 + $0x6e8] sm:$0xff]
        %v644 = vld [vmem:[#allocation2 + $0x6f0] sm:$0xff]
        %v645 = vld [vmem:[#allocation2 + $0x6f8] sm:$0xff]
        %v646 = vld [vmem:[#allocation2 + $0x700] sm:$0xff]
        %v647 = vld [vmem:[#allocation2 + $0x708] sm:$0xff]
        %v648 = vld [vmem:[#allocation2 + $0x710] sm:$0xff]
        %v649 = vld [vmem:[#allocation2 + $0x718] sm:$0xff]
        %v650 = vld [vmem:[#allocation2 + $0x720] sm:$0xff]
        %v651 = vld [vmem:[#allocation2 + $0x728] sm:$0xff]
        %v652 = vld [vmem:[#allocation2 + $0x730] sm:$0xff]
        %v653 = vld [vmem:[#allocation2 + $0x738] sm:$0xff]
        %v654 = vld [vmem:[#allocation2 + $0x740] sm:$0xff]
        %v655 = vld [vmem:[#allocation2 + $0x748] sm:$0xff]
        %v656 = vld [vmem:[#allocation2 + $0x750] sm:$0xff]
        %v657 = vld [vmem:[#allocation2 + $0x758] sm:$0xff]
        %v658 = vld [vmem:[#allocation2 + $0x760] sm:$0xff]
        %v659 = vld [vmem:[#allocation2 + $0x768] sm:$0xff]
        %v660 = vld [vmem:[#allocation2 + $0x770] sm:$0xff]
        %v661 = vld [vmem:[#allocation2 + $0x778] sm:$0xff]
        %v662 = vld [vmem:[#allocation2 + $0x780] sm:$0xff]
        %v663 = vld [vmem:[#allocation2 + $0x788] sm:$0xff]
        %v664 = vld [vmem:[#allocation2 + $0x790] sm:$0xff]
        %v665 = vld [vmem:[#allocation2 + $0x798] sm:$0xff]
        %v666 = vld [vmem:[#allocation2 + $0x7a0] sm:$0xff]
        %v667 = vld [vmem:[#allocation2 + $0x7a8] sm:$0xff]
        %v668 = vld [vmem:[#allocation2 + $0x7b0] sm:$0xff]
        %v669 = vld [vmem:[#allocation2 + $0x7b8] sm:$0xff]
        %v670 = vld [vmem:[#allocation2 + $0x7c0] sm:$0xff]
        %v671 = vld [vmem:[#allocation2 + $0x7c8] sm:$0xff]
        %v672 = vld [vmem:[#allocation2 + $0x7d0] sm:$0xff]
        %v673 = vld [vmem:[#allocation2 + $0x7d8] sm:$0xff]
        %v674 = vld [vmem:[#allocation2 + $0x7e0] sm:$0xff]
        %v675 = vld [vmem:[#allocation2 + $0x7e8] sm:$0xff]
        %v676 = vld [vmem:[#allocation2 + $0x7f0] sm:$0xff]
        %v677 = vld [vmem:[#allocation2 + $0x7f8] sm:$0xff]
        %v678 = vld [vmem:[%s2] sm:$0xff]
        %v679 = vld [vmem:[%s2 + $0x8] sm:$0xff]
        %v680 = vld [vmem:[%s2 + $0x10] sm:$0xff]
        %v681 = vld [vmem:[%s2 + $0x18] sm:$0xff]
        %v682 = vld [vmem:[%s2 + $0x20] sm:$0xff]
        %v683 = vld [vmem:[%s2 + $0x28] sm:$0xff]
        %v684 = vld [vmem:[%s2 + $0x30] sm:$0xff]
        %v685 = vld [vmem:[%s2 + $0x38] sm:$0xff]
        %v686 = vld [vmem:[%s2 + $0x40] sm:$0xff]
        %v687 = vld [vmem:[%s2 + $0x48] sm:$0xff]
        %v688 = vld [vmem:[%s2 + $0x50] sm:$0xff]
        %v689 = vld [vmem:[%s2 + $0x58] sm:$0xff]
        %v690 = vld [vmem:[%s2 + $0x60] sm:$0xff]
        %v691 = vld [vmem:[%s2 + $0x68] sm:$0xff]
        %v692 = vld [vmem:[%s2 + $0x70] sm:$0xff]
        %v693 = vld [vmem:[%s2 + $0x78] sm:$0xff]
        %v694 = vld [vmem:[%s2 + $0x80] sm:$0xff]
        %v695 = vld [vmem:[%s2 + $0x88] sm:$0xff]
        %v696 = vld [vmem:[%s2 + $0x90] sm:$0xff]
        %v697 = vld [vmem:[%s2 + $0x98] sm:$0xff]
        %v698 = vld [vmem:[%s2 + $0xa0] sm:$0xff]
        %v699 = vld [vmem:[%s2 + $0xa8] sm:$0xff]
        %v700 = vld [vmem:[%s2 + $0xb0] sm:$0xff]
        %v701 = vld [vmem:[%s2 + $0xb8] sm:$0xff]
        %v702 = vld [vmem:[%s2 + $0xc0] sm:$0xff]
        %v703 = vld [vmem:[%s2 + $0xc8] sm:$0xff]
        %v704 = vld [vmem:[%s2 + $0xd0] sm:$0xff]
        %v705 = vld [vmem:[%s2 + $0xd8] sm:$0xff]
        %v706 = vld [vmem:[%s2 + $0xe0] sm:$0xff]
        %v707 = vld [vmem:[%s2 + $0xe8] sm:$0xff]
        %v708 = vld [vmem:[%s2 + $0xf0] sm:$0xff]
        %v709 = vld [vmem:[%s2 + $0xf8] sm:$0xff]
        %v710 = vld [vmem:[%s2 + $0x100] sm:$0xff]
        %v711 = vld [vmem:[%s2 + $0x108] sm:$0xff]
        %v712 = vld [vmem:[%s2 + $0x110] sm:$0xff]
        %v713 = vld [vmem:[%s2 + $0x118] sm:$0xff]
        %v714 = vld [vmem:[%s2 + $0x120] sm:$0xff]
        %v715 = vld [vmem:[%s2 + $0x128] sm:$0xff]
        %v716 = vld [vmem:[%s2 + $0x130] sm:$0xff]
        %v717 = vld [vmem:[%s2 + $0x138] sm:$0xff]
        %v718 = vld [vmem:[%s2 + $0x140] sm:$0xff]
        %v719 = vld [vmem:[%s2 + $0x148] sm:$0xff]
        %v720 = vld [vmem:[%s2 + $0x150] sm:$0xff]
        %v721 = vld [vmem:[%s2 + $0x158] sm:$0xff]
        %v722 = vld [vmem:[%s2 + $0x160] sm:$0xff]
        %v723 = vld [vmem:[%s2 + $0x168] sm:$0xff]
        %v724 = vld [vmem:[%s2 + $0x170] sm:$0xff]
        %v725 = vld [vmem:[%s2 + $0x178] sm:$0xff]
        %v726 = vld [vmem:[%s2 + $0x180] sm:$0xff]
        %v727 = vld [vmem:[%s2 + $0x188] sm:$0xff]
        %v728 = vld [vmem:[%s2 + $0x190] sm:$0xff]
        %v729 = vld [vmem:[%s2 + $0x198] sm:$0xff]
        %v730 = vld [vmem:[%s2 + $0x1a0] sm:$0xff]
        %v731 = vld [vmem:[%s2 + $0x1a8] sm:$0xff]
        %v732 = vld [vmem:[%s2 + $0x1b0] sm:$0xff]
        %v733 = vld [vmem:[%s2 + $0x1b8] sm:$0xff]
        %v734 = vld [vmem:[%s2 + $0x1c0] sm:$0xff]
        %v735 = vld [vmem:[%s2 + $0x1c8] sm:$0xff]
        %v736 = vld [vmem:[%s2 + $0x1d0] sm:$0xff]
        %v737 = vld [vmem:[%s2 + $0x1d8] sm:$0xff]
        %v738 = vld [vmem:[%s2 + $0x1e0] sm:$0xff]
        %v739 = vld [vmem:[%s2 + $0x1e8] sm:$0xff]
        %v740 = vld [vmem:[%s2 + $0x1f0] sm:$0xff]
        %v741 = vld [vmem:[%s2 + $0x1f8] sm:$0xff]
        %v742 = vld [vmem:[%s2 + $0x200] sm:$0xff]
        %v743 = vld [vmem:[%s2 + $0x208] sm:$0xff]
        %v744 = vld [vmem:[%s2 + $0x210] sm:$0xff]
        %v745 = vld [vmem:[%s2 + $0x218] sm:$0xff]
        %v746 = vld [vmem:[%s2 + $0x220] sm:$0xff]
        %v747 = vld [vmem:[%s2 + $0x228] sm:$0xff]
        %v748 = vld [vmem:[%s2 + $0x230] sm:$0xff]
        %v749 = vld [vmem:[%s2 + $0x238] sm:$0xff]
        %v750 = vld [vmem:[%s2 + $0x240] sm:$0xff]
        %v751 = vld [vmem:[%s2 + $0x248] sm:$0xff]
        %v752 = vld [vmem:[%s2 + $0x250] sm:$0xff]
        %v753 = vld [vmem:[%s2 + $0x258] sm:$0xff]
        %v754 = vld [vmem:[%s2 + $0x260] sm:$0xff]
        %v755 = vld [vmem:[%s2 + $0x268] sm:$0xff]
        %v756 = vld [vmem:[%s2 + $0x270] sm:$0xff]
        %v757 = vld [vmem:[%s2 + $0x278] sm:$0xff]
        %v758 = vld [vmem:[%s2 + $0x280] sm:$0xff]
        %v759 = vld [vmem:[%s2 + $0x288] sm:$0xff]
        %v760 = vld [vmem:[%s2 + $0x290] sm:$0xff]
        %v761 = vld [vmem:[%s2 + $0x298] sm:$0xff]
        %v762 = vld [vmem:[%s2 + $0x2a0] sm:$0xff]
        %v763 = vld [vmem:[%s2 + $0x2a8] sm:$0xff]
        %v764 = vld [vmem:[%s2 + $0x2b0] sm:$0xff]
        %v765 = vld [vmem:[%s2 + $0x2b8] sm:$0xff]
        %v766 = vld [vmem:[%s2 + $0x2c0] sm:$0xff]
        %v767 = vld [vmem:[%s2 + $0x2c8] sm:$0xff]
        %v768 = vld [vmem:[%s2 + $0x2d0] sm:$0xff]
        %v769 = vld [vmem:[%s2 + $0x2d8] sm:$0xff]
        %v770 = vld [vmem:[%s2 + $0x2e0] sm:$0xff]
        %v771 = vld [vmem:[%s2 + $0x2e8] sm:$0xff]
        %v772 = vld [vmem:[%s2 + $0x2f0] sm:$0xff]
        %v773 = vld [vmem:[%s2 + $0x2f8] sm:$0xff]
        %v774 = vld [vmem:[%s2 + $0x300] sm:$0xff]
        %v775 = vld [vmem:[%s2 + $0x308] sm:$0xff]
        %v776 = vld [vmem:[%s2 + $0x310] sm:$0xff]
        %v777 = vld [vmem:[%s2 + $0x318] sm:$0xff]
        %v778 = vld [vmem:[%s2 + $0x320] sm:$0xff]
        %v779 = vld [vmem:[%s2 + $0x328] sm:$0xff]
        %v780 = vld [vmem:[%s2 + $0x330] sm:$0xff]
        %v781 = vld [vmem:[%s2 + $0x338] sm:$0xff]
        %v782 = vld [vmem:[%s2 + $0x340] sm:$0xff]
        %v783 = vld [vmem:[%s2 + $0x348] sm:$0xff]
        %v784 = vld [vmem:[%s2 + $0x350] sm:$0xff]
        %v785 = vld [vmem:[%s2 + $0x358] sm:$0xff]
        %v786 = vld [vmem:[%s2 + $0x360] sm:$0xff]
        %v787 = vld [vmem:[%s2 + $0x368] sm:$0xff]
        %v788 = vld [vmem:[%s2 + $0x370] sm:$0xff]
        %v789 = vld [vmem:[%s2 + $0x378] sm:$0xff]
        %v790 = vld [vmem:[%s2 + $0x380] sm:$0xff]
        %v791 = vld [vmem:[%s2 + $0x388] sm:$0xff]
        %v792 = vld [vmem:[%s2 + $0x390] sm:$0xff]
        %v793 = vld [vmem:[%s2 + $0x398] sm:$0xff]
        %v794 = vld [vmem:[%s2 + $0x3a0] sm:$0xff]
        %v795 = vld [vmem:[%s2 + $0x3a8] sm:$0xff]
        %v796 = vld [vmem:[%s2 + $0x3b0] sm:$0xff]
        %v797 = vld [vmem:[%s2 + $0x3b8] sm:$0xff]
        %v798 = vld [vmem:[%s2 + $0x3c0] sm:$0xff]
        %v799 = vld [vmem:[%s2 + $0x3c8] sm:$0xff]
        %v800 = vld [vmem:[%s2 + $0x3d0] sm:$0xff]
        %v801 = vld [vmem:[%s2 + $0x3d8] sm:$0xff]
        %v802 = vld [vmem:[%s2 + $0x3e0] sm:$0xff]
        %v803 = vld [vmem:[%s2 + $0x3e8] sm:$0xff]
        %v804 = vld [vmem:[%s2 + $0x3f0] sm:$0xff]
        %v805 = vld [vmem:[%s2 + $0x3f8] sm:$0xff]
        %807 = vset.pattern.permute.xlu0 0
        %808 = vperm.xlu0 %807, %v678
        %v809 = vpop.permute.xlu0 %808
        %812 = vset.pattern.permute.xlu0 0
        %813 = vperm.xlu0 %812, %v679
        %v814 = vpop.permute.xlu0 %813
        %817 = vset.pattern.permute.xlu0 0
        %818 = vperm.xlu0 %817, %v680
        %v819 = vpop.permute.xlu0 %818
        %822 = vset.pattern.permute.xlu0 0
        %823 = vperm.xlu0 %822, %v681
        %v824 = vpop.permute.xlu0 %823
        %827 = vset.pattern.permute.xlu0 0
        %828 = vperm.xlu0 %827, %v682
        %v829 = vpop.permute.xlu0 %828
        %832 = vset.pattern.permute.xlu0 0
        %833 = vperm.xlu0 %832, %v683
        %v834 = vpop.permute.xlu0 %833
        %837 = vset.pattern.permute.xlu0 0
        %838 = vperm.xlu0 %837, %v684
        %v839 = vpop.permute.xlu0 %838
        %842 = vset.pattern.permute.xlu0 0
        %843 = vperm.xlu0 %842, %v685
        %v844 = vpop.permute.xlu0 %843
        %847 = vset.pattern.permute.xlu0 0
        %848 = vperm.xlu0 %847, %v686
        %v849 = vpop.permute.xlu0 %848
        %852 = vset.pattern.permute.xlu0 0
        %853 = vperm.xlu0 %852, %v687
        %v854 = vpop.permute.xlu0 %853
        %857 = vset.pattern.permute.xlu0 0
        %858 = vperm.xlu0 %857, %v688
        %v859 = vpop.permute.xlu0 %858
        %862 = vset.pattern.permute.xlu0 0
        %863 = vperm.xlu0 %862, %v689
        %v864 = vpop.permute.xlu0 %863
        %867 = vset.pattern.permute.xlu0 0
        %868 = vperm.xlu0 %867, %v690
        %v869 = vpop.permute.xlu0 %868
        %872 = vset.pattern.permute.xlu0 0
        %873 = vperm.xlu0 %872, %v691
        %v874 = vpop.permute.xlu0 %873
        %877 = vset.pattern.permute.xlu0 0
        %878 = vperm.xlu0 %877, %v692
        %v879 = vpop.permute.xlu0 %878
        %882 = vset.pattern.permute.xlu0 0
        %883 = vperm.xlu0 %882, %v693
        %v884 = vpop.permute.xlu0 %883
        %887 = vset.pattern.permute.xlu0 0
        %888 = vperm.xlu0 %887, %v694
        %v889 = vpop.permute.xlu0 %888
        %892 = vset.pattern.permute.xlu0 0
        %893 = vperm.xlu0 %892, %v695
        %v894 = vpop.permute.xlu0 %893
        %897 = vset.pattern.permute.xlu0 0
        %898 = vperm.xlu0 %897, %v696
        %v899 = vpop.permute.xlu0 %898
        %902 = vset.pattern.permute.xlu0 0
        %903 = vperm.xlu0 %902, %v697
        %v904 = vpop.permute.xlu0 %903
        %907 = vset.pattern.permute.xlu0 0
        %908 = vperm.xlu0 %907, %v698
        %v909 = vpop.permute.xlu0 %908
        %912 = vset.pattern.permute.xlu0 0
        %913 = vperm.xlu0 %912, %v699
        %v914 = vpop.permute.xlu0 %913
        %917 = vset.pattern.permute.xlu0 0
        %918 = vperm.xlu0 %917, %v700
        %v919 = vpop.permute.xlu0 %918
        %922 = vset.pattern.permute.xlu0 0
        %923 = vperm.xlu0 %922, %v701
        %v924 = vpop.permute.xlu0 %923
        %927 = vset.pattern.permute.xlu0 0
        %928 = vperm.xlu0 %927, %v702
        %v929 = vpop.permute.xlu0 %928
        %932 = vset.pattern.permute.xlu0 0
        %933 = vperm.xlu0 %932, %v703
        %v934 = vpop.permute.xlu0 %933
        %937 = vset.pattern.permute.xlu0 0
        %938 = vperm.xlu0 %937, %v704
        %v939 = vpop.permute.xlu0 %938
        %942 = vset.pattern.permute.xlu0 0
        %943 = vperm.xlu0 %942, %v705
        %v944 = vpop.permute.xlu0 %943
        %947 = vset.pattern.permute.xlu0 0
        %948 = vperm.xlu0 %947, %v706
        %v949 = vpop.permute.xlu0 %948
        %952 = vset.pattern.permute.xlu0 0
        %953 = vperm.xlu0 %952, %v707
        %v954 = vpop.permute.xlu0 %953
        %957 = vset.pattern.permute.xlu0 0
        %958 = vperm.xlu0 %957, %v708
        %v959 = vpop.permute.xlu0 %958
        %962 = vset.pattern.permute.xlu0 0
        %963 = vperm.xlu0 %962, %v709
        %v964 = vpop.permute.xlu0 %963
        %967 = vset.pattern.permute.xlu0 0
        %968 = vperm.xlu0 %967, %v710
        %v969 = vpop.permute.xlu0 %968
        %972 = vset.pattern.permute.xlu0 0
        %973 = vperm.xlu0 %972, %v711
        %v974 = vpop.permute.xlu0 %973
        %977 = vset.pattern.permute.xlu0 0
        %978 = vperm.xlu0 %977, %v712
        %v979 = vpop.permute.xlu0 %978
        %982 = vset.pattern.permute.xlu0 0
        %983 = vperm.xlu0 %982, %v713
        %v984 = vpop.permute.xlu0 %983
        %987 = vset.pattern.permute.xlu0 0
        %988 = vperm.xlu0 %987, %v714
        %v989 = vpop.permute.xlu0 %988
        %992 = vset.pattern.permute.xlu0 0
        %993 = vperm.xlu0 %992, %v715
        %v994 = vpop.permute.xlu0 %993
        %997 = vset.pattern.permute.xlu0 0
        %998 = vperm.xlu0 %997, %v716
        %v999 = vpop.permute.xlu0 %998
        %1002 = vset.pattern.permute.xlu0 0
        %1003 = vperm.xlu0 %1002, %v717
        %v1004 = vpop.permute.xlu0 %1003
        %1007 = vset.pattern.permute.xlu0 0
        %1008 = vperm.xlu0 %1007, %v718
        %v1009 = vpop.permute.xlu0 %1008
        %1012 = vset.pattern.permute.xlu0 0
        %1013 = vperm.xlu0 %1012, %v719
        %v1014 = vpop.permute.xlu0 %1013
        %1017 = vset.pattern.permute.xlu0 0
        %1018 = vperm.xlu0 %1017, %v720
        %v1019 = vpop.permute.xlu0 %1018
        %1022 = vset.pattern.permute.xlu0 0
        %1023 = vperm.xlu0 %1022, %v721
        %v1024 = vpop.permute.xlu0 %1023
        %1027 = vset.pattern.permute.xlu0 0
        %1028 = vperm.xlu0 %1027, %v722
        %v1029 = vpop.permute.xlu0 %1028
        %1032 = vset.pattern.permute.xlu0 0
        %1033 = vperm.xlu0 %1032, %v723
        %v1034 = vpop.permute.xlu0 %1033
        %1037 = vset.pattern.permute.xlu0 0
        %1038 = vperm.xlu0 %1037, %v724
        %v1039 = vpop.permute.xlu0 %1038
        %1042 = vset.pattern.permute.xlu0 0
        %1043 = vperm.xlu0 %1042, %v725
        %v1044 = vpop.permute.xlu0 %1043
        %1047 = vset.pattern.permute.xlu0 0
        %1048 = vperm.xlu0 %1047, %v726
        %v1049 = vpop.permute.xlu0 %1048
        %1052 = vset.pattern.permute.xlu0 0
        %1053 = vperm.xlu0 %1052, %v727
        %v1054 = vpop.permute.xlu0 %1053
        %1057 = vset.pattern.permute.xlu0 0
        %1058 = vperm.xlu0 %1057, %v728
        %v1059 = vpop.permute.xlu0 %1058
        %1062 = vset.pattern.permute.xlu0 0
        %1063 = vperm.xlu0 %1062, %v729
        %v1064 = vpop.permute.xlu0 %1063
        %1067 = vset.pattern.permute.xlu0 0
        %1068 = vperm.xlu0 %1067, %v730
        %v1069 = vpop.permute.xlu0 %1068
        %1072 = vset.pattern.permute.xlu0 0
        %1073 = vperm.xlu0 %1072, %v731
        %v1074 = vpop.permute.xlu0 %1073
        %1077 = vset.pattern.permute.xlu0 0
        %1078 = vperm.xlu0 %1077, %v732
        %v1079 = vpop.permute.xlu0 %1078
        %1082 = vset.pattern.permute.xlu0 0
        %1083 = vperm.xlu0 %1082, %v733
        %v1084 = vpop.permute.xlu0 %1083
        %1087 = vset.pattern.permute.xlu0 0
        %1088 = vperm.xlu0 %1087, %v734
        %v1089 = vpop.permute.xlu0 %1088
        %1092 = vset.pattern.permute.xlu0 0
        %1093 = vperm.xlu0 %1092, %v735
        %v1094 = vpop.permute.xlu0 %1093
        %1097 = vset.pattern.permute.xlu0 0
        %1098 = vperm.xlu0 %1097, %v736
        %v1099 = vpop.permute.xlu0 %1098
        %1102 = vset.pattern.permute.xlu0 0
        %1103 = vperm.xlu0 %1102, %v737
        %v1104 = vpop.permute.xlu0 %1103
        %1107 = vset.pattern.permute.xlu0 0
        %1108 = vperm.xlu0 %1107, %v738
        %v1109 = vpop.permute.xlu0 %1108
        %1112 = vset.pattern.permute.xlu0 0
        %1113 = vperm.xlu0 %1112, %v739
        %v1114 = vpop.permute.xlu0 %1113
        %1117 = vset.pattern.permute.xlu0 0
        %1118 = vperm.xlu0 %1117, %v740
        %v1119 = vpop.permute.xlu0 %1118
        %1122 = vset.pattern.permute.xlu0 0
        %1123 = vperm.xlu0 %1122, %v741
        %v1124 = vpop.permute.xlu0 %1123
        %1127 = vset.pattern.permute.xlu0 0
        %1128 = vperm.xlu0 %1127, %v742
        %v1129 = vpop.permute.xlu0 %1128
        %1132 = vset.pattern.permute.xlu0 0
        %1133 = vperm.xlu0 %1132, %v743
        %v1134 = vpop.permute.xlu0 %1133
        %1137 = vset.pattern.permute.xlu0 0
        %1138 = vperm.xlu0 %1137, %v744
        %v1139 = vpop.permute.xlu0 %1138
        %1142 = vset.pattern.permute.xlu0 0
        %1143 = vperm.xlu0 %1142, %v745
        %v1144 = vpop.permute.xlu0 %1143
        %1147 = vset.pattern.permute.xlu0 0
        %1148 = vperm.xlu0 %1147, %v746
        %v1149 = vpop.permute.xlu0 %1148
        %1152 = vset.pattern.permute.xlu0 0
        %1153 = vperm.xlu0 %1152, %v747
        %v1154 = vpop.permute.xlu0 %1153
        %1157 = vset.pattern.permute.xlu0 0
        %1158 = vperm.xlu0 %1157, %v748
        %v1159 = vpop.permute.xlu0 %1158
        %1162 = vset.pattern.permute.xlu0 0
        %1163 = vperm.xlu0 %1162, %v749
        %v1164 = vpop.permute.xlu0 %1163
        %1167 = vset.pattern.permute.xlu0 0
        %1168 = vperm.xlu0 %1167, %v750
        %v1169 = vpop.permute.xlu0 %1168
        %1172 = vset.pattern.permute.xlu0 0
        %1173 = vperm.xlu0 %1172, %v751
        %v1174 = vpop.permute.xlu0 %1173
        %1177 = vset.pattern.permute.xlu0 0
        %1178 = vperm.xlu0 %1177, %v752
        %v1179 = vpop.permute.xlu0 %1178
        %1182 = vset.pattern.permute.xlu0 0
        %1183 = vperm.xlu0 %1182, %v753
        %v1184 = vpop.permute.xlu0 %1183
        %1187 = vset.pattern.permute.xlu0 0
        %1188 = vperm.xlu0 %1187, %v754
        %v1189 = vpop.permute.xlu0 %1188
        %1192 = vset.pattern.permute.xlu0 0
        %1193 = vperm.xlu0 %1192, %v755
        %v1194 = vpop.permute.xlu0 %1193
        %1197 = vset.pattern.permute.xlu0 0
        %1198 = vperm.xlu0 %1197, %v756
        %v1199 = vpop.permute.xlu0 %1198
        %1202 = vset.pattern.permute.xlu0 0
        %1203 = vperm.xlu0 %1202, %v757
        %v1204 = vpop.permute.xlu0 %1203
        %1207 = vset.pattern.permute.xlu0 0
        %1208 = vperm.xlu0 %1207, %v758
        %v1209 = vpop.permute.xlu0 %1208
        %1212 = vset.pattern.permute.xlu0 0
        %1213 = vperm.xlu0 %1212, %v759
        %v1214 = vpop.permute.xlu0 %1213
        %1217 = vset.pattern.permute.xlu0 0
        %1218 = vperm.xlu0 %1217, %v760
        %v1219 = vpop.permute.xlu0 %1218
        %1222 = vset.pattern.permute.xlu0 0
        %1223 = vperm.xlu0 %1222, %v761
        %v1224 = vpop.permute.xlu0 %1223
        %1227 = vset.pattern.permute.xlu0 0
        %1228 = vperm.xlu0 %1227, %v762
        %v1229 = vpop.permute.xlu0 %1228
        %1232 = vset.pattern.permute.xlu0 0
        %1233 = vperm.xlu0 %1232, %v763
        %v1234 = vpop.permute.xlu0 %1233
        %1237 = vset.pattern.permute.xlu0 0
        %1238 = vperm.xlu0 %1237, %v764
        %v1239 = vpop.permute.xlu0 %1238
        %1242 = vset.pattern.permute.xlu0 0
        %1243 = vperm.xlu0 %1242, %v765
        %v1244 = vpop.permute.xlu0 %1243
        %1247 = vset.pattern.permute.xlu0 0
        %1248 = vperm.xlu0 %1247, %v766
        %v1249 = vpop.permute.xlu0 %1248
        %1252 = vset.pattern.permute.xlu0 0
        %1253 = vperm.xlu0 %1252, %v767
        %v1254 = vpop.permute.xlu0 %1253
        %1257 = vset.pattern.permute.xlu0 0
        %1258 = vperm.xlu0 %1257, %v768
        %v1259 = vpop.permute.xlu0 %1258
        %1262 = vset.pattern.permute.xlu0 0
        %1263 = vperm.xlu0 %1262, %v769
        %v1264 = vpop.permute.xlu0 %1263
        %1267 = vset.pattern.permute.xlu0 0
        %1268 = vperm.xlu0 %1267, %v770
        %v1269 = vpop.permute.xlu0 %1268
        %1272 = vset.pattern.permute.xlu0 0
        %1273 = vperm.xlu0 %1272, %v771
        %v1274 = vpop.permute.xlu0 %1273
        %1277 = vset.pattern.permute.xlu0 0
        %1278 = vperm.xlu0 %1277, %v772
        %v1279 = vpop.permute.xlu0 %1278
        %1282 = vset.pattern.permute.xlu0 0
        %1283 = vperm.xlu0 %1282, %v773
        %v1284 = vpop.permute.xlu0 %1283
        %1287 = vset.pattern.permute.xlu0 0
        %1288 = vperm.xlu0 %1287, %v774
        %v1289 = vpop.permute.xlu0 %1288
        %1292 = vset.pattern.permute.xlu0 0
        %1293 = vperm.xlu0 %1292, %v775
        %v1294 = vpop.permute.xlu0 %1293
        %1297 = vset.pattern.permute.xlu0 0
        %1298 = vperm.xlu0 %1297, %v776
        %v1299 = vpop.permute.xlu0 %1298
        %1302 = vset.pattern.permute.xlu0 0
        %1303 = vperm.xlu0 %1302, %v777
        %v1304 = vpop.permute.xlu0 %1303
        %1307 = vset.pattern.permute.xlu0 0
        %1308 = vperm.xlu0 %1307, %v778
        %v1309 = vpop.permute.xlu0 %1308
        %1312 = vset.pattern.permute.xlu0 0
        %1313 = vperm.xlu0 %1312, %v779
        %v1314 = vpop.permute.xlu0 %1313
        %1317 = vset.pattern.permute.xlu0 0
        %1318 = vperm.xlu0 %1317, %v780
        %v1319 = vpop.permute.xlu0 %1318
        %1322 = vset.pattern.permute.xlu0 0
        %1323 = vperm.xlu0 %1322, %v781
        %v1324 = vpop.permute.xlu0 %1323
        %1327 = vset.pattern.permute.xlu0 0
        %1328 = vperm.xlu0 %1327, %v782
        %v1329 = vpop.permute.xlu0 %1328
        %1332 = vset.pattern.permute.xlu0 0
        %1333 = vperm.xlu0 %1332, %v783
        %v1334 = vpop.permute.xlu0 %1333
        %1337 = vset.pattern.permute.xlu0 0
        %1338 = vperm.xlu0 %1337, %v784
        %v1339 = vpop.permute.xlu0 %1338
        %1342 = vset.pattern.permute.xlu0 0
        %1343 = vperm.xlu0 %1342, %v785
        %v1344 = vpop.permute.xlu0 %1343
        %1347 = vset.pattern.permute.xlu0 0
        %1348 = vperm.xlu0 %1347, %v786
        %v1349 = vpop.permute.xlu0 %1348
        %1352 = vset.pattern.permute.xlu0 0
        %1353 = vperm.xlu0 %1352, %v787
        %v1354 = vpop.permute.xlu0 %1353
        %1357 = vset.pattern.permute.xlu0 0
        %1358 = vperm.xlu0 %1357, %v788
        %v1359 = vpop.permute.xlu0 %1358
        %1362 = vset.pattern.permute.xlu0 0
        %1363 = vperm.xlu0 %1362, %v789
        %v1364 = vpop.permute.xlu0 %1363
        %1367 = vset.pattern.permute.xlu0 0
        %1368 = vperm.xlu0 %1367, %v790
        %v1369 = vpop.permute.xlu0 %1368
        %1372 = vset.pattern.permute.xlu0 0
        %1373 = vperm.xlu0 %1372, %v791
        %v1374 = vpop.permute.xlu0 %1373
        %1377 = vset.pattern.permute.xlu0 0
        %1378 = vperm.xlu0 %1377, %v792
        %v1379 = vpop.permute.xlu0 %1378
        %1382 = vset.pattern.permute.xlu0 0
        %1383 = vperm.xlu0 %1382, %v793
        %v1384 = vpop.permute.xlu0 %1383
        %1387 = vset.pattern.permute.xlu0 0
        %1388 = vperm.xlu0 %1387, %v794
        %v1389 = vpop.permute.xlu0 %1388
        %1392 = vset.pattern.permute.xlu0 0
        %1393 = vperm.xlu0 %1392, %v795
        %v1394 = vpop.permute.xlu0 %1393
        %1397 = vset.pattern.permute.xlu0 0
        %1398 = vperm.xlu0 %1397, %v796
        %v1399 = vpop.permute.xlu0 %1398
        %1402 = vset.pattern.permute.xlu0 0
        %1403 = vperm.xlu0 %1402, %v797
        %v1404 = vpop.permute.xlu0 %1403
        %1407 = vset.pattern.permute.xlu0 0
        %1408 = vperm.xlu0 %1407, %v798
        %v1409 = vpop.permute.xlu0 %1408
        %1412 = vset.pattern.permute.xlu0 0
        %1413 = vperm.xlu0 %1412, %v799
        %v1414 = vpop.permute.xlu0 %1413
        %1417 = vset.pattern.permute.xlu0 0
        %1418 = vperm.xlu0 %1417, %v800
        %v1419 = vpop.permute.xlu0 %1418
        %1422 = vset.pattern.permute.xlu0 0
        %1423 = vperm.xlu0 %1422, %v801
        %v1424 = vpop.permute.xlu0 %1423
        %1427 = vset.pattern.permute.xlu0 0
        %1428 = vperm.xlu0 %1427, %v802
        %v1429 = vpop.permute.xlu0 %1428
        %1432 = vset.pattern.permute.xlu0 0
        %1433 = vperm.xlu0 %1432, %v803
        %v1434 = vpop.permute.xlu0 %1433
        %1437 = vset.pattern.permute.xlu0 0
        %1438 = vperm.xlu0 %1437, %v804
        %v1439 = vpop.permute.xlu0 %1438
        %1442 = vset.pattern.permute.xlu0 0
        %1443 = vperm.xlu0 %1442, %v805
        %v1444 = vpop.permute.xlu0 %1443
        %v1702 = vunpack.c.l.b16 %v422
        %v1703 = vunpack.c.h.b16 %v422
        %v1704 = vunpack.c.l.b16 %v423
        %v1705 = vunpack.c.h.b16 %v423
        %v1706 = vunpack.c.l.b16 %v424
        %v1707 = vunpack.c.h.b16 %v424
        %v1708 = vunpack.c.l.b16 %v425
        %v1709 = vunpack.c.h.b16 %v425
        %v1710 = vunpack.c.l.b16 %v426
        %v1711 = vunpack.c.h.b16 %v426
        %v1712 = vunpack.c.l.b16 %v427
        %v1713 = vunpack.c.h.b16 %v427
        %v1714 = vunpack.c.l.b16 %v428
        %v1715 = vunpack.c.h.b16 %v428
        %v1716 = vunpack.c.l.b16 %v429
        %v1717 = vunpack.c.h.b16 %v429
        %v1718 = vunpack.c.l.b16 %v430
        %v1719 = vunpack.c.h.b16 %v430
        %v1720 = vunpack.c.l.b16 %v431
        %v1721 = vunpack.c.h.b16 %v431
        %v1722 = vunpack.c.l.b16 %v432
        %v1723 = vunpack.c.h.b16 %v432
        %v1724 = vunpack.c.l.b16 %v433
        %v1725 = vunpack.c.h.b16 %v433
        %v1726 = vunpack.c.l.b16 %v434
        %v1727 = vunpack.c.h.b16 %v434
        %v1728 = vunpack.c.l.b16 %v435
        %v1729 = vunpack.c.h.b16 %v435
        %v1730 = vunpack.c.l.b16 %v436
        %v1731 = vunpack.c.h.b16 %v436
        %v1732 = vunpack.c.l.b16 %v437
        %v1733 = vunpack.c.h.b16 %v437
        %v1734 = vunpack.c.l.b16 %v438
        %v1735 = vunpack.c.h.b16 %v438
        %v1736 = vunpack.c.l.b16 %v439
        %v1737 = vunpack.c.h.b16 %v439
        %v1738 = vunpack.c.l.b16 %v440
        %v1739 = vunpack.c.h.b16 %v440
        %v1740 = vunpack.c.l.b16 %v441
        %v1741 = vunpack.c.h.b16 %v441
        %v1742 = vunpack.c.l.b16 %v442
        %v1743 = vunpack.c.h.b16 %v442
        %v1744 = vunpack.c.l.b16 %v443
        %v1745 = vunpack.c.h.b16 %v443
        %v1746 = vunpack.c.l.b16 %v444
        %v1747 = vunpack.c.h.b16 %v444
        %v1748 = vunpack.c.l.b16 %v445
        %v1749 = vunpack.c.h.b16 %v445
        %v1750 = vunpack.c.l.b16 %v446
        %v1751 = vunpack.c.h.b16 %v446
        %v1752 = vunpack.c.l.b16 %v447
        %v1753 = vunpack.c.h.b16 %v447
        %v1754 = vunpack.c.l.b16 %v448
        %v1755 = vunpack.c.h.b16 %v448
        %v1756 = vunpack.c.l.b16 %v449
        %v1757 = vunpack.c.h.b16 %v449
        %v1758 = vunpack.c.l.b16 %v450
        %v1759 = vunpack.c.h.b16 %v450
        %v1760 = vunpack.c.l.b16 %v451
        %v1761 = vunpack.c.h.b16 %v451
        %v1762 = vunpack.c.l.b16 %v452
        %v1763 = vunpack.c.h.b16 %v452
        %v1764 = vunpack.c.l.b16 %v453
        %v1765 = vunpack.c.h.b16 %v453
        %v1766 = vunpack.c.l.b16 %v454
        %v1767 = vunpack.c.h.b16 %v454
        %v1768 = vunpack.c.l.b16 %v455
        %v1769 = vunpack.c.h.b16 %v455
        %v1770 = vunpack.c.l.b16 %v456
        %v1771 = vunpack.c.h.b16 %v456
        %v1772 = vunpack.c.l.b16 %v457
        %v1773 = vunpack.c.h.b16 %v457
        %v1774 = vunpack.c.l.b16 %v458
        %v1775 = vunpack.c.h.b16 %v458
        %v1776 = vunpack.c.l.b16 %v459
        %v1777 = vunpack.c.h.b16 %v459
        %v1778 = vunpack.c.l.b16 %v460
        %v1779 = vunpack.c.h.b16 %v460
        %v1780 = vunpack.c.l.b16 %v461
        %v1781 = vunpack.c.h.b16 %v461
        %v1782 = vunpack.c.l.b16 %v462
        %v1783 = vunpack.c.h.b16 %v462
        %v1784 = vunpack.c.l.b16 %v463
        %v1785 = vunpack.c.h.b16 %v463
        %v1786 = vunpack.c.l.b16 %v464
        %v1787 = vunpack.c.h.b16 %v464
        %v1788 = vunpack.c.l.b16 %v465
        %v1789 = vunpack.c.h.b16 %v465
        %v1790 = vunpack.c.l.b16 %v466
        %v1791 = vunpack.c.h.b16 %v466
        %v1792 = vunpack.c.l.b16 %v467
        %v1793 = vunpack.c.h.b16 %v467
        %v1794 = vunpack.c.l.b16 %v468
        %v1795 = vunpack.c.h.b16 %v468
        %v1796 = vunpack.c.l.b16 %v469
        %v1797 = vunpack.c.h.b16 %v469
        %v1798 = vunpack.c.l.b16 %v470
        %v1799 = vunpack.c.h.b16 %v470
        %v1800 = vunpack.c.l.b16 %v471
        %v1801 = vunpack.c.h.b16 %v471
        %v1802 = vunpack.c.l.b16 %v472
        %v1803 = vunpack.c.h.b16 %v472
        %v1804 = vunpack.c.l.b16 %v473
        %v1805 = vunpack.c.h.b16 %v473
        %v1806 = vunpack.c.l.b16 %v474
        %v1807 = vunpack.c.h.b16 %v474
        %v1808 = vunpack.c.l.b16 %v475
        %v1809 = vunpack.c.h.b16 %v475
        %v1810 = vunpack.c.l.b16 %v476
        %v1811 = vunpack.c.h.b16 %v476
        %v1812 = vunpack.c.l.b16 %v477
        %v1813 = vunpack.c.h.b16 %v477
        %v1814 = vunpack.c.l.b16 %v478
        %v1815 = vunpack.c.h.b16 %v478
        %v1816 = vunpack.c.l.b16 %v479
        %v1817 = vunpack.c.h.b16 %v479
        %v1818 = vunpack.c.l.b16 %v480
        %v1819 = vunpack.c.h.b16 %v480
        %v1820 = vunpack.c.l.b16 %v481
        %v1821 = vunpack.c.h.b16 %v481
        %v1822 = vunpack.c.l.b16 %v482
        %v1823 = vunpack.c.h.b16 %v482
        %v1824 = vunpack.c.l.b16 %v483
        %v1825 = vunpack.c.h.b16 %v483
        %v1826 = vunpack.c.l.b16 %v484
        %v1827 = vunpack.c.h.b16 %v484
        %v1828 = vunpack.c.l.b16 %v485
        %v1829 = vunpack.c.h.b16 %v485
        %v1830 = vunpack.c.l.b16 %v486
        %v1831 = vunpack.c.h.b16 %v486
        %v1832 = vunpack.c.l.b16 %v487
        %v1833 = vunpack.c.h.b16 %v487
        %v1834 = vunpack.c.l.b16 %v488
        %v1835 = vunpack.c.h.b16 %v488
        %v1836 = vunpack.c.l.b16 %v489
        %v1837 = vunpack.c.h.b16 %v489
        %v1838 = vunpack.c.l.b16 %v490
        %v1839 = vunpack.c.h.b16 %v490
        %v1840 = vunpack.c.l.b16 %v491
        %v1841 = vunpack.c.h.b16 %v491
        %v1842 = vunpack.c.l.b16 %v492
        %v1843 = vunpack.c.h.b16 %v492
        %v1844 = vunpack.c.l.b16 %v493
        %v1845 = vunpack.c.h.b16 %v493
        %v1846 = vunpack.c.l.b16 %v494
        %v1847 = vunpack.c.h.b16 %v494
        %v1848 = vunpack.c.l.b16 %v495
        %v1849 = vunpack.c.h.b16 %v495
        %v1850 = vunpack.c.l.b16 %v496
        %v1851 = vunpack.c.h.b16 %v496
        %v1852 = vunpack.c.l.b16 %v497
        %v1853 = vunpack.c.h.b16 %v497
        %v1854 = vunpack.c.l.b16 %v498
        %v1855 = vunpack.c.h.b16 %v498
        %v1856 = vunpack.c.l.b16 %v499
        %v1857 = vunpack.c.h.b16 %v499
        %v1858 = vunpack.c.l.b16 %v500
        %v1859 = vunpack.c.h.b16 %v500
        %v1860 = vunpack.c.l.b16 %v501
        %v1861 = vunpack.c.h.b16 %v501
        %v1862 = vunpack.c.l.b16 %v502
        %v1863 = vunpack.c.h.b16 %v502
        %v1864 = vunpack.c.l.b16 %v503
        %v1865 = vunpack.c.h.b16 %v503
        %v1866 = vunpack.c.l.b16 %v504
        %v1867 = vunpack.c.h.b16 %v504
        %v1868 = vunpack.c.l.b16 %v505
        %v1869 = vunpack.c.h.b16 %v505
        %v1870 = vunpack.c.l.b16 %v506
        %v1871 = vunpack.c.h.b16 %v506
        %v1872 = vunpack.c.l.b16 %v507
        %v1873 = vunpack.c.h.b16 %v507
        %v1874 = vunpack.c.l.b16 %v508
        %v1875 = vunpack.c.h.b16 %v508
        %v1876 = vunpack.c.l.b16 %v509
        %v1877 = vunpack.c.h.b16 %v509
        %v1878 = vunpack.c.l.b16 %v510
        %v1879 = vunpack.c.h.b16 %v510
        %v1880 = vunpack.c.l.b16 %v511
        %v1881 = vunpack.c.h.b16 %v511
        %v1882 = vunpack.c.l.b16 %v512
        %v1883 = vunpack.c.h.b16 %v512
        %v1884 = vunpack.c.l.b16 %v513
        %v1885 = vunpack.c.h.b16 %v513
        %v1886 = vunpack.c.l.b16 %v514
        %v1887 = vunpack.c.h.b16 %v514
        %v1888 = vunpack.c.l.b16 %v515
        %v1889 = vunpack.c.h.b16 %v515
        %v1890 = vunpack.c.l.b16 %v516
        %v1891 = vunpack.c.h.b16 %v516
        %v1892 = vunpack.c.l.b16 %v517
        %v1893 = vunpack.c.h.b16 %v517
        %v1894 = vunpack.c.l.b16 %v518
        %v1895 = vunpack.c.h.b16 %v518
        %v1896 = vunpack.c.l.b16 %v519
        %v1897 = vunpack.c.h.b16 %v519
        %v1898 = vunpack.c.l.b16 %v520
        %v1899 = vunpack.c.h.b16 %v520
        %v1900 = vunpack.c.l.b16 %v521
        %v1901 = vunpack.c.h.b16 %v521
        %v1902 = vunpack.c.l.b16 %v522
        %v1903 = vunpack.c.h.b16 %v522
        %v1904 = vunpack.c.l.b16 %v523
        %v1905 = vunpack.c.h.b16 %v523
        %v1906 = vunpack.c.l.b16 %v524
        %v1907 = vunpack.c.h.b16 %v524
        %v1908 = vunpack.c.l.b16 %v525
        %v1909 = vunpack.c.h.b16 %v525
        %v1910 = vunpack.c.l.b16 %v526
        %v1911 = vunpack.c.h.b16 %v526
        %v1912 = vunpack.c.l.b16 %v527
        %v1913 = vunpack.c.h.b16 %v527
        %v1914 = vunpack.c.l.b16 %v528
        %v1915 = vunpack.c.h.b16 %v528
        %v1916 = vunpack.c.l.b16 %v529
        %v1917 = vunpack.c.h.b16 %v529
        %v1918 = vunpack.c.l.b16 %v530
        %v1919 = vunpack.c.h.b16 %v530
        %v1920 = vunpack.c.l.b16 %v531
        %v1921 = vunpack.c.h.b16 %v531
        %v1922 = vunpack.c.l.b16 %v532
        %v1923 = vunpack.c.h.b16 %v532
        %v1924 = vunpack.c.l.b16 %v533
        %v1925 = vunpack.c.h.b16 %v533
        %v1926 = vunpack.c.l.b16 %v534
        %v1927 = vunpack.c.h.b16 %v534
        %v1928 = vunpack.c.l.b16 %v535
        %v1929 = vunpack.c.h.b16 %v535
        %v1930 = vunpack.c.l.b16 %v536
        %v1931 = vunpack.c.h.b16 %v536
        %v1932 = vunpack.c.l.b16 %v537
        %v1933 = vunpack.c.h.b16 %v537
        %v1934 = vunpack.c.l.b16 %v538
        %v1935 = vunpack.c.h.b16 %v538
        %v1936 = vunpack.c.l.b16 %v539
        %v1937 = vunpack.c.h.b16 %v539
        %v1938 = vunpack.c.l.b16 %v540
        %v1939 = vunpack.c.h.b16 %v540
        %v1940 = vunpack.c.l.b16 %v541
        %v1941 = vunpack.c.h.b16 %v541
        %v1942 = vunpack.c.l.b16 %v542
        %v1943 = vunpack.c.h.b16 %v542
        %v1944 = vunpack.c.l.b16 %v543
        %v1945 = vunpack.c.h.b16 %v543
        %v1946 = vunpack.c.l.b16 %v544
        %v1947 = vunpack.c.h.b16 %v544
        %v1948 = vunpack.c.l.b16 %v545
        %v1949 = vunpack.c.h.b16 %v545
        %v1950 = vunpack.c.l.b16 %v546
        %v1951 = vunpack.c.h.b16 %v546
        %v1952 = vunpack.c.l.b16 %v547
        %v1953 = vunpack.c.h.b16 %v547
        %v1954 = vunpack.c.l.b16 %v548
        %v1955 = vunpack.c.h.b16 %v548
        %v1956 = vunpack.c.l.b16 %v549
        %v1957 = vunpack.c.h.b16 %v549
        %v1958 = vunpack.c.l.b16 %v550
        %v1959 = vunpack.c.h.b16 %v550
        %v1960 = vunpack.c.l.b16 %v551
        %v1961 = vunpack.c.h.b16 %v551
        %v1962 = vunpack.c.l.b16 %v552
        %v1963 = vunpack.c.h.b16 %v552
        %v1964 = vunpack.c.l.b16 %v553
        %v1965 = vunpack.c.h.b16 %v553
        %v1966 = vunpack.c.l.b16 %v554
        %v1967 = vunpack.c.h.b16 %v554
        %v1968 = vunpack.c.l.b16 %v555
        %v1969 = vunpack.c.h.b16 %v555
        %v1970 = vunpack.c.l.b16 %v556
        %v1971 = vunpack.c.h.b16 %v556
        %v1972 = vunpack.c.l.b16 %v557
        %v1973 = vunpack.c.h.b16 %v557
        %v1974 = vunpack.c.l.b16 %v558
        %v1975 = vunpack.c.h.b16 %v558
        %v1976 = vunpack.c.l.b16 %v559
        %v1977 = vunpack.c.h.b16 %v559
        %v1978 = vunpack.c.l.b16 %v560
        %v1979 = vunpack.c.h.b16 %v560
        %v1980 = vunpack.c.l.b16 %v561
        %v1981 = vunpack.c.h.b16 %v561
        %v1982 = vunpack.c.l.b16 %v562
        %v1983 = vunpack.c.h.b16 %v562
        %v1984 = vunpack.c.l.b16 %v563
        %v1985 = vunpack.c.h.b16 %v563
        %v1986 = vunpack.c.l.b16 %v564
        %v1987 = vunpack.c.h.b16 %v564
        %v1988 = vunpack.c.l.b16 %v565
        %v1989 = vunpack.c.h.b16 %v565
        %v1990 = vunpack.c.l.b16 %v566
        %v1991 = vunpack.c.h.b16 %v566
        %v1992 = vunpack.c.l.b16 %v567
        %v1993 = vunpack.c.h.b16 %v567
        %v1994 = vunpack.c.l.b16 %v568
        %v1995 = vunpack.c.h.b16 %v568
        %v1996 = vunpack.c.l.b16 %v569
        %v1997 = vunpack.c.h.b16 %v569
        %v1998 = vunpack.c.l.b16 %v570
        %v1999 = vunpack.c.h.b16 %v570
        %v2000 = vunpack.c.l.b16 %v571
        %v2001 = vunpack.c.h.b16 %v571
        %v2002 = vunpack.c.l.b16 %v572
        %v2003 = vunpack.c.h.b16 %v572
        %v2004 = vunpack.c.l.b16 %v573
        %v2005 = vunpack.c.h.b16 %v573
        %v2006 = vunpack.c.l.b16 %v574
        %v2007 = vunpack.c.h.b16 %v574
        %v2008 = vunpack.c.l.b16 %v575
        %v2009 = vunpack.c.h.b16 %v575
        %v2010 = vunpack.c.l.b16 %v576
        %v2011 = vunpack.c.h.b16 %v576
        %v2012 = vunpack.c.l.b16 %v577
        %v2013 = vunpack.c.h.b16 %v577
        %v2014 = vunpack.c.l.b16 %v578
        %v2015 = vunpack.c.h.b16 %v578
        %v2016 = vunpack.c.l.b16 %v579
        %v2017 = vunpack.c.h.b16 %v579
        %v2018 = vunpack.c.l.b16 %v580
        %v2019 = vunpack.c.h.b16 %v580
        %v2020 = vunpack.c.l.b16 %v581
        %v2021 = vunpack.c.h.b16 %v581
        %v2022 = vunpack.c.l.b16 %v582
        %v2023 = vunpack.c.h.b16 %v582
        %v2024 = vunpack.c.l.b16 %v583
        %v2025 = vunpack.c.h.b16 %v583
        %v2026 = vunpack.c.l.b16 %v584
        %v2027 = vunpack.c.h.b16 %v584
        %v2028 = vunpack.c.l.b16 %v585
        %v2029 = vunpack.c.h.b16 %v585
        %v2030 = vunpack.c.l.b16 %v586
        %v2031 = vunpack.c.h.b16 %v586
        %v2032 = vunpack.c.l.b16 %v587
        %v2033 = vunpack.c.h.b16 %v587
        %v2034 = vunpack.c.l.b16 %v588
        %v2035 = vunpack.c.h.b16 %v588
        %v2036 = vunpack.c.l.b16 %v589
        %v2037 = vunpack.c.h.b16 %v589
        %v2038 = vunpack.c.l.b16 %v590
        %v2039 = vunpack.c.h.b16 %v590
        %v2040 = vunpack.c.l.b16 %v591
        %v2041 = vunpack.c.h.b16 %v591
        %v2042 = vunpack.c.l.b16 %v592
        %v2043 = vunpack.c.h.b16 %v592
        %v2044 = vunpack.c.l.b16 %v593
        %v2045 = vunpack.c.h.b16 %v593
        %v2046 = vunpack.c.l.b16 %v594
        %v2047 = vunpack.c.h.b16 %v594
        %v2048 = vunpack.c.l.b16 %v595
        %v2049 = vunpack.c.h.b16 %v595
        %v2050 = vunpack.c.l.b16 %v596
        %v2051 = vunpack.c.h.b16 %v596
        %v2052 = vunpack.c.l.b16 %v597
        %v2053 = vunpack.c.h.b16 %v597
        %v2054 = vunpack.c.l.b16 %v598
        %v2055 = vunpack.c.h.b16 %v598
        %v2056 = vunpack.c.l.b16 %v599
        %v2057 = vunpack.c.h.b16 %v599
        %v2058 = vunpack.c.l.b16 %v600
        %v2059 = vunpack.c.h.b16 %v600
        %v2060 = vunpack.c.l.b16 %v601
        %v2061 = vunpack.c.h.b16 %v601
        %v2062 = vunpack.c.l.b16 %v602
        %v2063 = vunpack.c.h.b16 %v602
        %v2064 = vunpack.c.l.b16 %v603
        %v2065 = vunpack.c.h.b16 %v603
        %v2066 = vunpack.c.l.b16 %v604
        %v2067 = vunpack.c.h.b16 %v604
        %v2068 = vunpack.c.l.b16 %v605
        %v2069 = vunpack.c.h.b16 %v605
        %v2070 = vunpack.c.l.b16 %v606
        %v2071 = vunpack.c.h.b16 %v606
        %v2072 = vunpack.c.l.b16 %v607
        %v2073 = vunpack.c.h.b16 %v607
        %v2074 = vunpack.c.l.b16 %v608
        %v2075 = vunpack.c.h.b16 %v608
        %v2076 = vunpack.c.l.b16 %v609
        %v2077 = vunpack.c.h.b16 %v609
        %v2078 = vunpack.c.l.b16 %v610
        %v2079 = vunpack.c.h.b16 %v610
        %v2080 = vunpack.c.l.b16 %v611
        %v2081 = vunpack.c.h.b16 %v611
        %v2082 = vunpack.c.l.b16 %v612
        %v2083 = vunpack.c.h.b16 %v612
        %v2084 = vunpack.c.l.b16 %v613
        %v2085 = vunpack.c.h.b16 %v613
        %v2086 = vunpack.c.l.b16 %v614
        %v2087 = vunpack.c.h.b16 %v614
        %v2088 = vunpack.c.l.b16 %v615
        %v2089 = vunpack.c.h.b16 %v615
        %v2090 = vunpack.c.l.b16 %v616
        %v2091 = vunpack.c.h.b16 %v616
        %v2092 = vunpack.c.l.b16 %v617
        %v2093 = vunpack.c.h.b16 %v617
        %v2094 = vunpack.c.l.b16 %v618
        %v2095 = vunpack.c.h.b16 %v618
        %v2096 = vunpack.c.l.b16 %v619
        %v2097 = vunpack.c.h.b16 %v619
        %v2098 = vunpack.c.l.b16 %v620
        %v2099 = vunpack.c.h.b16 %v620
        %v2100 = vunpack.c.l.b16 %v621
        %v2101 = vunpack.c.h.b16 %v621
        %v2102 = vunpack.c.l.b16 %v622
        %v2103 = vunpack.c.h.b16 %v622
        %v2104 = vunpack.c.l.b16 %v623
        %v2105 = vunpack.c.h.b16 %v623
        %v2106 = vunpack.c.l.b16 %v624
        %v2107 = vunpack.c.h.b16 %v624
        %v2108 = vunpack.c.l.b16 %v625
        %v2109 = vunpack.c.h.b16 %v625
        %v2110 = vunpack.c.l.b16 %v626
        %v2111 = vunpack.c.h.b16 %v626
        %v2112 = vunpack.c.l.b16 %v627
        %v2113 = vunpack.c.h.b16 %v627
        %v2114 = vunpack.c.l.b16 %v628
        %v2115 = vunpack.c.h.b16 %v628
        %v2116 = vunpack.c.l.b16 %v629
        %v2117 = vunpack.c.h.b16 %v629
        %v2118 = vunpack.c.l.b16 %v630
        %v2119 = vunpack.c.h.b16 %v630
        %v2120 = vunpack.c.l.b16 %v631
        %v2121 = vunpack.c.h.b16 %v631
        %v2122 = vunpack.c.l.b16 %v632
        %v2123 = vunpack.c.h.b16 %v632
        %v2124 = vunpack.c.l.b16 %v633
        %v2125 = vunpack.c.h.b16 %v633
        %v2126 = vunpack.c.l.b16 %v634
        %v2127 = vunpack.c.h.b16 %v634
        %v2128 = vunpack.c.l.b16 %v635
        %v2129 = vunpack.c.h.b16 %v635
        %v2130 = vunpack.c.l.b16 %v636
        %v2131 = vunpack.c.h.b16 %v636
        %v2132 = vunpack.c.l.b16 %v637
        %v2133 = vunpack.c.h.b16 %v637
        %v2134 = vunpack.c.l.b16 %v638
        %v2135 = vunpack.c.h.b16 %v638
        %v2136 = vunpack.c.l.b16 %v639
        %v2137 = vunpack.c.h.b16 %v639
        %v2138 = vunpack.c.l.b16 %v640
        %v2139 = vunpack.c.h.b16 %v640
        %v2140 = vunpack.c.l.b16 %v641
        %v2141 = vunpack.c.h.b16 %v641
        %v2142 = vunpack.c.l.b16 %v642
        %v2143 = vunpack.c.h.b16 %v642
        %v2144 = vunpack.c.l.b16 %v643
        %v2145 = vunpack.c.h.b16 %v643
        %v2146 = vunpack.c.l.b16 %v644
        %v2147 = vunpack.c.h.b16 %v644
        %v2148 = vunpack.c.l.b16 %v645
        %v2149 = vunpack.c.h.b16 %v645
        %v2150 = vunpack.c.l.b16 %v646
        %v2151 = vunpack.c.h.b16 %v646
        %v2152 = vunpack.c.l.b16 %v647
        %v2153 = vunpack.c.h.b16 %v647
        %v2154 = vunpack.c.l.b16 %v648
        %v2155 = vunpack.c.h.b16 %v648
        %v2156 = vunpack.c.l.b16 %v649
        %v2157 = vunpack.c.h.b16 %v649
        %v2158 = vunpack.c.l.b16 %v650
        %v2159 = vunpack.c.h.b16 %v650
        %v2160 = vunpack.c.l.b16 %v651
        %v2161 = vunpack.c.h.b16 %v651
        %v2162 = vunpack.c.l.b16 %v652
        %v2163 = vunpack.c.h.b16 %v652
        %v2164 = vunpack.c.l.b16 %v653
        %v2165 = vunpack.c.h.b16 %v653
        %v2166 = vunpack.c.l.b16 %v654
        %v2167 = vunpack.c.h.b16 %v654
        %v2168 = vunpack.c.l.b16 %v655
        %v2169 = vunpack.c.h.b16 %v655
        %v2170 = vunpack.c.l.b16 %v656
        %v2171 = vunpack.c.h.b16 %v656
        %v2172 = vunpack.c.l.b16 %v657
        %v2173 = vunpack.c.h.b16 %v657
        %v2174 = vunpack.c.l.b16 %v658
        %v2175 = vunpack.c.h.b16 %v658
        %v2176 = vunpack.c.l.b16 %v659
        %v2177 = vunpack.c.h.b16 %v659
        %v2178 = vunpack.c.l.b16 %v660
        %v2179 = vunpack.c.h.b16 %v660
        %v2180 = vunpack.c.l.b16 %v661
        %v2181 = vunpack.c.h.b16 %v661
        %v2182 = vunpack.c.l.b16 %v662
        %v2183 = vunpack.c.h.b16 %v662
        %v2184 = vunpack.c.l.b16 %v663
        %v2185 = vunpack.c.h.b16 %v663
        %v2186 = vunpack.c.l.b16 %v664
        %v2187 = vunpack.c.h.b16 %v664
        %v2188 = vunpack.c.l.b16 %v665
        %v2189 = vunpack.c.h.b16 %v665
        %v2190 = vunpack.c.l.b16 %v666
        %v2191 = vunpack.c.h.b16 %v666
        %v2192 = vunpack.c.l.b16 %v667
        %v2193 = vunpack.c.h.b16 %v667
        %v2194 = vunpack.c.l.b16 %v668
        %v2195 = vunpack.c.h.b16 %v668
        %v2196 = vunpack.c.l.b16 %v669
        %v2197 = vunpack.c.h.b16 %v669
        %v2198 = vunpack.c.l.b16 %v670
        %v2199 = vunpack.c.h.b16 %v670
        %v2200 = vunpack.c.l.b16 %v671
        %v2201 = vunpack.c.h.b16 %v671
        %v2202 = vunpack.c.l.b16 %v672
        %v2203 = vunpack.c.h.b16 %v672
        %v2204 = vunpack.c.l.b16 %v673
        %v2205 = vunpack.c.h.b16 %v673
        %v2206 = vunpack.c.l.b16 %v674
        %v2207 = vunpack.c.h.b16 %v674
        %v2208 = vunpack.c.l.b16 %v675
        %v2209 = vunpack.c.h.b16 %v675
        %v2210 = vunpack.c.l.b16 %v676
        %v2211 = vunpack.c.h.b16 %v676
        %v2212 = vunpack.c.l.b16 %v677
        %v2213 = vunpack.c.h.b16 %v677
        %v2214 = vpack.c.b16 %v1706, %v1702
        %v2215 = vpack.c.b16 %v1707, %v1703
        %v2216 = vpack.c.b16 %v1708, %v1704
        %v2217 = vpack.c.b16 %v1709, %v1705
        %v2218 = vpack.c.b16 %v1714, %v1710
        %v2219 = vpack.c.b16 %v1715, %v1711
        %v2220 = vpack.c.b16 %v1716, %v1712
        %v2221 = vpack.c.b16 %v1717, %v1713
        %v2222 = vpack.c.b16 %v1722, %v1718
        %v2223 = vpack.c.b16 %v1723, %v1719
        %v2224 = vpack.c.b16 %v1724, %v1720
        %v2225 = vpack.c.b16 %v1725, %v1721
        %v2226 = vpack.c.b16 %v1730, %v1726
        %v2227 = vpack.c.b16 %v1731, %v1727
        %v2228 = vpack.c.b16 %v1732, %v1728
        %v2229 = vpack.c.b16 %v1733, %v1729
        %v2230 = vpack.c.b16 %v1738, %v1734
        %v2231 = vpack.c.b16 %v1739, %v1735
        %v2232 = vpack.c.b16 %v1740, %v1736
        %v2233 = vpack.c.b16 %v1741, %v1737
        %v2234 = vpack.c.b16 %v1746, %v1742
        %v2235 = vpack.c.b16 %v1747, %v1743
        %v2236 = vpack.c.b16 %v1748, %v1744
        %v2237 = vpack.c.b16 %v1749, %v1745
        %v2238 = vpack.c.b16 %v1754, %v1750
        %v2239 = vpack.c.b16 %v1755, %v1751
        %v2240 = vpack.c.b16 %v1756, %v1752
        %v2241 = vpack.c.b16 %v1757, %v1753
        %v2242 = vpack.c.b16 %v1762, %v1758
        %v2243 = vpack.c.b16 %v1763, %v1759
        %v2244 = vpack.c.b16 %v1764, %v1760
        %v2245 = vpack.c.b16 %v1765, %v1761
        %v2246 = vpack.c.b16 %v1770, %v1766
        %v2247 = vpack.c.b16 %v1771, %v1767
        %v2248 = vpack.c.b16 %v1772, %v1768
        %v2249 = vpack.c.b16 %v1773, %v1769
        %v2250 = vpack.c.b16 %v1778, %v1774
        %v2251 = vpack.c.b16 %v1779, %v1775
        %v2252 = vpack.c.b16 %v1780, %v1776
        %v2253 = vpack.c.b16 %v1781, %v1777
        %v2254 = vpack.c.b16 %v1786, %v1782
        %v2255 = vpack.c.b16 %v1787, %v1783
        %v2256 = vpack.c.b16 %v1788, %v1784
        %v2257 = vpack.c.b16 %v1789, %v1785
        %v2258 = vpack.c.b16 %v1794, %v1790
        %v2259 = vpack.c.b16 %v1795, %v1791
        %v2260 = vpack.c.b16 %v1796, %v1792
        %v2261 = vpack.c.b16 %v1797, %v1793
        %v2262 = vpack.c.b16 %v1802, %v1798
        %v2263 = vpack.c.b16 %v1803, %v1799
        %v2264 = vpack.c.b16 %v1804, %v1800
        %v2265 = vpack.c.b16 %v1805, %v1801
        %v2266 = vpack.c.b16 %v1810, %v1806
        %v2267 = vpack.c.b16 %v1811, %v1807
        %v2268 = vpack.c.b16 %v1812, %v1808
        %v2269 = vpack.c.b16 %v1813, %v1809
        %v2270 = vpack.c.b16 %v1818, %v1814
        %v2271 = vpack.c.b16 %v1819, %v1815
        %v2272 = vpack.c.b16 %v1820, %v1816
        %v2273 = vpack.c.b16 %v1821, %v1817
        %v2274 = vpack.c.b16 %v1826, %v1822
        %v2275 = vpack.c.b16 %v1827, %v1823
        %v2276 = vpack.c.b16 %v1828, %v1824
        %v2277 = vpack.c.b16 %v1829, %v1825
        %v2278 = vpack.c.b16 %v1834, %v1830
        %v2279 = vpack.c.b16 %v1835, %v1831
        %v2280 = vpack.c.b16 %v1836, %v1832
        %v2281 = vpack.c.b16 %v1837, %v1833
        %v2282 = vpack.c.b16 %v1842, %v1838
        %v2283 = vpack.c.b16 %v1843, %v1839
        %v2284 = vpack.c.b16 %v1844, %v1840
        %v2285 = vpack.c.b16 %v1845, %v1841
        %v2286 = vpack.c.b16 %v1850, %v1846
        %v2287 = vpack.c.b16 %v1851, %v1847
        %v2288 = vpack.c.b16 %v1852, %v1848
        %v2289 = vpack.c.b16 %v1853, %v1849
        %v2290 = vpack.c.b16 %v1858, %v1854
        %v2291 = vpack.c.b16 %v1859, %v1855
        %v2292 = vpack.c.b16 %v1860, %v1856
        %v2293 = vpack.c.b16 %v1861, %v1857
        %v2294 = vpack.c.b16 %v1866, %v1862
        %v2295 = vpack.c.b16 %v1867, %v1863
        %v2296 = vpack.c.b16 %v1868, %v1864
        %v2297 = vpack.c.b16 %v1869, %v1865
        %v2298 = vpack.c.b16 %v1874, %v1870
        %v2299 = vpack.c.b16 %v1875, %v1871
        %v2300 = vpack.c.b16 %v1876, %v1872
        %v2301 = vpack.c.b16 %v1877, %v1873
        %v2302 = vpack.c.b16 %v1882, %v1878
        %v2303 = vpack.c.b16 %v1883, %v1879
        %v2304 = vpack.c.b16 %v1884, %v1880
        %v2305 = vpack.c.b16 %v1885, %v1881
        %v2306 = vpack.c.b16 %v1890, %v1886
        %v2307 = vpack.c.b16 %v1891, %v1887
        %v2308 = vpack.c.b16 %v1892, %v1888
        %v2309 = vpack.c.b16 %v1893, %v1889
        %v2310 = vpack.c.b16 %v1898, %v1894
        %v2311 = vpack.c.b16 %v1899, %v1895
        %v2312 = vpack.c.b16 %v1900, %v1896
        %v2313 = vpack.c.b16 %v1901, %v1897
        %v2314 = vpack.c.b16 %v1906, %v1902
        %v2315 = vpack.c.b16 %v1907, %v1903
        %v2316 = vpack.c.b16 %v1908, %v1904
        %v2317 = vpack.c.b16 %v1909, %v1905
        %v2318 = vpack.c.b16 %v1914, %v1910
        %v2319 = vpack.c.b16 %v1915, %v1911
        %v2320 = vpack.c.b16 %v1916, %v1912
        %v2321 = vpack.c.b16 %v1917, %v1913
        %v2322 = vpack.c.b16 %v1922, %v1918
        %v2323 = vpack.c.b16 %v1923, %v1919
        %v2324 = vpack.c.b16 %v1924, %v1920
        %v2325 = vpack.c.b16 %v1925, %v1921
        %v2326 = vpack.c.b16 %v1930, %v1926
        %v2327 = vpack.c.b16 %v1931, %v1927
        %v2328 = vpack.c.b16 %v1932, %v1928
        %v2329 = vpack.c.b16 %v1933, %v1929
        %v2330 = vpack.c.b16 %v1938, %v1934
        %v2331 = vpack.c.b16 %v1939, %v1935
        %v2332 = vpack.c.b16 %v1940, %v1936
        %v2333 = vpack.c.b16 %v1941, %v1937
        %v2334 = vpack.c.b16 %v1946, %v1942
        %v2335 = vpack.c.b16 %v1947, %v1943
        %v2336 = vpack.c.b16 %v1948, %v1944
        %v2337 = vpack.c.b16 %v1949, %v1945
        %v2338 = vpack.c.b16 %v1954, %v1950
        %v2339 = vpack.c.b16 %v1955, %v1951
        %v2340 = vpack.c.b16 %v1956, %v1952
        %v2341 = vpack.c.b16 %v1957, %v1953
        %v2342 = vpack.c.b16 %v1962, %v1958
        %v2343 = vpack.c.b16 %v1963, %v1959
        %v2344 = vpack.c.b16 %v1964, %v1960
        %v2345 = vpack.c.b16 %v1965, %v1961
        %v2346 = vpack.c.b16 %v1970, %v1966
        %v2347 = vpack.c.b16 %v1971, %v1967
        %v2348 = vpack.c.b16 %v1972, %v1968
        %v2349 = vpack.c.b16 %v1973, %v1969
        %v2350 = vpack.c.b16 %v1978, %v1974
        %v2351 = vpack.c.b16 %v1979, %v1975
        %v2352 = vpack.c.b16 %v1980, %v1976
        %v2353 = vpack.c.b16 %v1981, %v1977
        %v2354 = vpack.c.b16 %v1986, %v1982
        %v2355 = vpack.c.b16 %v1987, %v1983
        %v2356 = vpack.c.b16 %v1988, %v1984
        %v2357 = vpack.c.b16 %v1989, %v1985
        %v2358 = vpack.c.b16 %v1994, %v1990
        %v2359 = vpack.c.b16 %v1995, %v1991
        %v2360 = vpack.c.b16 %v1996, %v1992
        %v2361 = vpack.c.b16 %v1997, %v1993
        %v2362 = vpack.c.b16 %v2002, %v1998
        %v2363 = vpack.c.b16 %v2003, %v1999
        %v2364 = vpack.c.b16 %v2004, %v2000
        %v2365 = vpack.c.b16 %v2005, %v2001
        %v2366 = vpack.c.b16 %v2010, %v2006
        %v2367 = vpack.c.b16 %v2011, %v2007
        %v2368 = vpack.c.b16 %v2012, %v2008
        %v2369 = vpack.c.b16 %v2013, %v2009
        %v2370 = vpack.c.b16 %v2018, %v2014
        %v2371 = vpack.c.b16 %v2019, %v2015
        %v2372 = vpack.c.b16 %v2020, %v2016
        %v2373 = vpack.c.b16 %v2021, %v2017
        %v2374 = vpack.c.b16 %v2026, %v2022
        %v2375 = vpack.c.b16 %v2027, %v2023
        %v2376 = vpack.c.b16 %v2028, %v2024
        %v2377 = vpack.c.b16 %v2029, %v2025
        %v2378 = vpack.c.b16 %v2034, %v2030
        %v2379 = vpack.c.b16 %v2035, %v2031
        %v2380 = vpack.c.b16 %v2036, %v2032
        %v2381 = vpack.c.b16 %v2037, %v2033
        %v2382 = vpack.c.b16 %v2042, %v2038
        %v2383 = vpack.c.b16 %v2043, %v2039
        %v2384 = vpack.c.b16 %v2044, %v2040
        %v2385 = vpack.c.b16 %v2045, %v2041
        %v2386 = vpack.c.b16 %v2050, %v2046
        %v2387 = vpack.c.b16 %v2051, %v2047
        %v2388 = vpack.c.b16 %v2052, %v2048
        %v2389 = vpack.c.b16 %v2053, %v2049
        %v2390 = vpack.c.b16 %v2058, %v2054
        %v2391 = vpack.c.b16 %v2059, %v2055
        %v2392 = vpack.c.b16 %v2060, %v2056
        %v2393 = vpack.c.b16 %v2061, %v2057
        %v2394 = vpack.c.b16 %v2066, %v2062
        %v2395 = vpack.c.b16 %v2067, %v2063
        %v2396 = vpack.c.b16 %v2068, %v2064
        %v2397 = vpack.c.b16 %v2069, %v2065
        %v2398 = vpack.c.b16 %v2074, %v2070
        %v2399 = vpack.c.b16 %v2075, %v2071
        %v2400 = vpack.c.b16 %v2076, %v2072
        %v2401 = vpack.c.b16 %v2077, %v2073
        %v2402 = vpack.c.b16 %v2082, %v2078
        %v2403 = vpack.c.b16 %v2083, %v2079
        %v2404 = vpack.c.b16 %v2084, %v2080
        %v2405 = vpack.c.b16 %v2085, %v2081
        %v2406 = vpack.c.b16 %v2090, %v2086
        %v2407 = vpack.c.b16 %v2091, %v2087
        %v2408 = vpack.c.b16 %v2092, %v2088
        %v2409 = vpack.c.b16 %v2093, %v2089
        %v2410 = vpack.c.b16 %v2098, %v2094
        %v2411 = vpack.c.b16 %v2099, %v2095
        %v2412 = vpack.c.b16 %v2100, %v2096
        %v2413 = vpack.c.b16 %v2101, %v2097
        %v2414 = vpack.c.b16 %v2106, %v2102
        %v2415 = vpack.c.b16 %v2107, %v2103
        %v2416 = vpack.c.b16 %v2108, %v2104
        %v2417 = vpack.c.b16 %v2109, %v2105
        %v2418 = vpack.c.b16 %v2114, %v2110
        %v2419 = vpack.c.b16 %v2115, %v2111
        %v2420 = vpack.c.b16 %v2116, %v2112
        %v2421 = vpack.c.b16 %v2117, %v2113
        %v2422 = vpack.c.b16 %v2122, %v2118
        %v2423 = vpack.c.b16 %v2123, %v2119
        %v2424 = vpack.c.b16 %v2124, %v2120
        %v2425 = vpack.c.b16 %v2125, %v2121
        %v2426 = vpack.c.b16 %v2130, %v2126
        %v2427 = vpack.c.b16 %v2131, %v2127
        %v2428 = vpack.c.b16 %v2132, %v2128
        %v2429 = vpack.c.b16 %v2133, %v2129
        %v2430 = vpack.c.b16 %v2138, %v2134
        %v2431 = vpack.c.b16 %v2139, %v2135
        %v2432 = vpack.c.b16 %v2140, %v2136
        %v2433 = vpack.c.b16 %v2141, %v2137
        %v2434 = vpack.c.b16 %v2146, %v2142
        %v2435 = vpack.c.b16 %v2147, %v2143
        %v2436 = vpack.c.b16 %v2148, %v2144
        %v2437 = vpack.c.b16 %v2149, %v2145
        %v2438 = vpack.c.b16 %v2154, %v2150
        %v2439 = vpack.c.b16 %v2155, %v2151
        %v2440 = vpack.c.b16 %v2156, %v2152
        %v2441 = vpack.c.b16 %v2157, %v2153
        %v2442 = vpack.c.b16 %v2162, %v2158
        %v2443 = vpack.c.b16 %v2163, %v2159
        %v2444 = vpack.c.b16 %v2164, %v2160
        %v2445 = vpack.c.b16 %v2165, %v2161
        %v2446 = vpack.c.b16 %v2170, %v2166
        %v2447 = vpack.c.b16 %v2171, %v2167
        %v2448 = vpack.c.b16 %v2172, %v2168
        %v2449 = vpack.c.b16 %v2173, %v2169
        %v2450 = vpack.c.b16 %v2178, %v2174
        %v2451 = vpack.c.b16 %v2179, %v2175
        %v2452 = vpack.c.b16 %v2180, %v2176
        %v2453 = vpack.c.b16 %v2181, %v2177
        %v2454 = vpack.c.b16 %v2186, %v2182
        %v2455 = vpack.c.b16 %v2187, %v2183
        %v2456 = vpack.c.b16 %v2188, %v2184
        %v2457 = vpack.c.b16 %v2189, %v2185
        %v2458 = vpack.c.b16 %v2194, %v2190
        %v2459 = vpack.c.b16 %v2195, %v2191
        %v2460 = vpack.c.b16 %v2196, %v2192
        %v2461 = vpack.c.b16 %v2197, %v2193
        %v2462 = vpack.c.b16 %v2202, %v2198
        %v2463 = vpack.c.b16 %v2203, %v2199
        %v2464 = vpack.c.b16 %v2204, %v2200
        %v2465 = vpack.c.b16 %v2205, %v2201
        %v2466 = vpack.c.b16 %v2210, %v2206
        %v2467 = vpack.c.b16 %v2211, %v2207
        %v2468 = vpack.c.b16 %v2212, %v2208
        %v2469 = vpack.c.b16 %v2213, %v2209
        %v2790 = vunpack.c.l.b16 %v358
        %v2791 = vunpack.c.l.b16 %v359
        %v2792 = vunpack.c.l.b16 %v360
        %v2793 = vunpack.c.l.b16 %v361
        %v2794 = vunpack.c.l.b16 %v362
        %v2795 = vunpack.c.l.b16 %v363
        %v2796 = vunpack.c.l.b16 %v364
        %v2797 = vunpack.c.l.b16 %v365
        %v2798 = vunpack.c.l.b16 %v366
        %v2799 = vunpack.c.l.b16 %v367
        %v2800 = vunpack.c.l.b16 %v368
        %v2801 = vunpack.c.l.b16 %v369
        %v2802 = vunpack.c.l.b16 %v370
        %v2803 = vunpack.c.l.b16 %v371
        %v2804 = vunpack.c.l.b16 %v372
        %v2805 = vunpack.c.l.b16 %v373
        %v2806 = vunpack.c.l.b16 %v374
        %v2807 = vunpack.c.l.b16 %v375
        %v2808 = vunpack.c.l.b16 %v376
        %v2809 = vunpack.c.l.b16 %v377
        %v2810 = vunpack.c.l.b16 %v378
        %v2811 = vunpack.c.l.b16 %v379
        %v2812 = vunpack.c.l.b16 %v380
        %v2813 = vunpack.c.l.b16 %v381
        %v2814 = vunpack.c.l.b16 %v382
        %v2815 = vunpack.c.l.b16 %v383
        %v2816 = vunpack.c.l.b16 %v384
        %v2817 = vunpack.c.l.b16 %v385
        %v2818 = vunpack.c.l.b16 %v386
        %v2819 = vunpack.c.l.b16 %v387
        %v2820 = vunpack.c.l.b16 %v388
        %v2821 = vunpack.c.l.b16 %v389
        %v2822 = vunpack.c.l.b16 %v390
        %v2823 = vunpack.c.l.b16 %v391
        %v2824 = vunpack.c.l.b16 %v392
        %v2825 = vunpack.c.l.b16 %v393
        %v2826 = vunpack.c.l.b16 %v394
        %v2827 = vunpack.c.l.b16 %v395
        %v2828 = vunpack.c.l.b16 %v396
        %v2829 = vunpack.c.l.b16 %v397
        %v2830 = vunpack.c.l.b16 %v398
        %v2831 = vunpack.c.l.b16 %v399
        %v2832 = vunpack.c.l.b16 %v400
        %v2833 = vunpack.c.l.b16 %v401
        %v2834 = vunpack.c.l.b16 %v402
        %v2835 = vunpack.c.l.b16 %v403
        %v2836 = vunpack.c.l.b16 %v404
        %v2837 = vunpack.c.l.b16 %v405
        %v2838 = vunpack.c.l.b16 %v406
        %v2839 = vunpack.c.l.b16 %v407
        %v2840 = vunpack.c.l.b16 %v408
        %v2841 = vunpack.c.l.b16 %v409
        %v2842 = vunpack.c.l.b16 %v410
        %v2843 = vunpack.c.l.b16 %v411
        %v2844 = vunpack.c.l.b16 %v412
        %v2845 = vunpack.c.l.b16 %v413
        %v2846 = vunpack.c.l.b16 %v414
        %v2847 = vunpack.c.l.b16 %v415
        %v2848 = vunpack.c.l.b16 %v416
        %v2849 = vunpack.c.l.b16 %v417
        %v2850 = vunpack.c.l.b16 %v418
        %v2851 = vunpack.c.l.b16 %v419
        %v2852 = vunpack.c.l.b16 %v420
        %v2853 = vunpack.c.l.b16 %v421
        %v2854 = vpack.c.b16 %v2791, %v2790
        %v2855 = vpack.c.b16 %v2793, %v2792
        %v2856 = vpack.c.b16 %v2795, %v2794
        %v2857 = vpack.c.b16 %v2797, %v2796
        %v2858 = vpack.c.b16 %v2799, %v2798
        %v2859 = vpack.c.b16 %v2801, %v2800
        %v2860 = vpack.c.b16 %v2803, %v2802
        %v2861 = vpack.c.b16 %v2805, %v2804
        %v2862 = vpack.c.b16 %v2807, %v2806
        %v2863 = vpack.c.b16 %v2809, %v2808
        %v2864 = vpack.c.b16 %v2811, %v2810
        %v2865 = vpack.c.b16 %v2813, %v2812
        %v2866 = vpack.c.b16 %v2815, %v2814
        %v2867 = vpack.c.b16 %v2817, %v2816
        %v2868 = vpack.c.b16 %v2819, %v2818
        %v2869 = vpack.c.b16 %v2821, %v2820
        %v2870 = vpack.c.b16 %v2823, %v2822
        %v2871 = vpack.c.b16 %v2825, %v2824
        %v2872 = vpack.c.b16 %v2827, %v2826
        %v2873 = vpack.c.b16 %v2829, %v2828
        %v2874 = vpack.c.b16 %v2831, %v2830
        %v2875 = vpack.c.b16 %v2833, %v2832
        %v2876 = vpack.c.b16 %v2835, %v2834
        %v2877 = vpack.c.b16 %v2837, %v2836
        %v2878 = vpack.c.b16 %v2839, %v2838
        %v2879 = vpack.c.b16 %v2841, %v2840
        %v2880 = vpack.c.b16 %v2843, %v2842
        %v2881 = vpack.c.b16 %v2845, %v2844
        %v2882 = vpack.c.b16 %v2847, %v2846
        %v2883 = vpack.c.b16 %v2849, %v2848
        %v2884 = vpack.c.b16 %v2851, %v2850
        %v2885 = vpack.c.b16 %v2853, %v2852
        %2918 = vmatprep.subr.bf16.mxu0 0
        %2919 = vmatpush1.bf16.msra.mxu0 %v2854
        %2920 = vmatprep.subr.bf16.mxu0 0
        %2921 = vmatpush1.bf16.msra.mxu0 %v2855
        %2922 = vmatprep.subr.bf16.mxu0 0
        %2923 = vmatpush1.bf16.msra.mxu0 %v2856
        %2924 = vmatprep.subr.bf16.mxu0 0
        %2925 = vmatpush1.bf16.msra.mxu0 %v2857
        %2926 = vmatprep.subr.bf16.mxu0 0
        %2927 = vmatpush1.bf16.msra.mxu0 %v2858
        %2928 = vmatprep.subr.bf16.mxu0 0
        %2929 = vmatpush1.bf16.msra.mxu0 %v2859
        %2930 = vmatprep.subr.bf16.mxu0 0
        %2931 = vmatpush1.bf16.msra.mxu0 %v2860
        %2932 = vmatprep.subr.bf16.mxu0 0
        %2933 = vmatpush1.bf16.msra.mxu0 %v2861
        %2934 = vmatprep.subr.bf16.mxu0 0
        %2935 = vmatpush1.bf16.msra.mxu0 %v2862
        %2936 = vmatprep.subr.bf16.mxu0 0
        %2937 = vmatpush1.bf16.msra.mxu0 %v2863
        %2938 = vmatprep.subr.bf16.mxu0 0
        %2939 = vmatpush1.bf16.msra.mxu0 %v2864
        %2940 = vmatprep.subr.bf16.mxu0 0
        %2941 = vmatpush1.bf16.msra.mxu0 %v2865
        %2942 = vmatprep.subr.bf16.mxu0 0
        %2943 = vmatpush1.bf16.msra.mxu0 %v2866
        %2944 = vmatprep.subr.bf16.mxu0 0
        %2945 = vmatpush1.bf16.msra.mxu0 %v2867
        %2946 = vmatprep.subr.bf16.mxu0 0
        %2947 = vmatpush1.bf16.msra.mxu0 %v2868
        %2948 = vmatprep.subr.bf16.mxu0 0
        %2949 = vmatpush1.bf16.msra.mxu0 %v2869
        %2950 = vmatprep.mubr.bf16.mxu0 %v2215
        %2951 = vmatmul.mubr.bf16.gmra.mrb[0].mxu0 %v2214
        %v2952 = vpop.f32.mrb[0].mxu0
        %v2953 = vadd.f32 %v809, %v2952
        %v2954 = vpop.f32.mrb[0].mxu0
        %v2955 = vpop.f32.mrb[0].mxu0
        %v2956 = vadd.f32 %v814, %v2955
        %v2957 = vpop.f32.mrb[0].mxu0
        %2958 = vmatprep.mubr.bf16.mxu0 %v2219
        %2959 = vmatmul.mubr.bf16.gmra.mrb[0].mxu0 %v2218
        %v2960 = vpop.f32.mrb[0].mxu0
        %v2961 = vadd.f32 %v819, %v2960
        %v2962 = vpop.f32.mrb[0].mxu0
        %v2963 = vpop.f32.mrb[0].mxu0
        %v2964 = vadd.f32 %v824, %v2963
        %v2965 = vpop.f32.mrb[0].mxu0
        %2966 = vmatprep.mubr.bf16.mxu0 %v2223
        %2967 = vmatmul.mubr.bf16.gmra.mrb[0].mxu0 %v2222
        %v2968 = vpop.f32.mrb[0].mxu0
        %v2969 = vadd.f32 %v829, %v2968
        %v2970 = vpop.f32.mrb[0].mxu0
        %v2971 = vpop.f32.mrb[0].mxu0
        %v2972 = vadd.f32 %v834, %v2971
        %v2973 = vpop.f32.mrb[0].mxu0
        %2974 = vmatprep.mubr.bf16.mxu0 %v2227
        %2975 = vmatmul.mubr.bf16.gmra.mrb[0].mxu0 %v2226
        %v2976 = vpop.f32.mrb[0].mxu0
        %v2977 = vadd.f32 %v839, %v2976
        %v2978 = vpop.f32.mrb[0].mxu0
        %v2979 = vpop.f32.mrb[0].mxu0
        %v2980 = vadd.f32 %v844, %v2979
        %v2981 = vpop.f32.mrb[0].mxu0
        %2982 = vmatprep.mubr.bf16.mxu0 %v2231
        %2983 = vmatmul.mubr.bf16.gmra.mrb[0].mxu0 %v2230
        %v2984 = vpop.f32.mrb[0].mxu0
        %v2985 = vadd.f32 %v849, %v2984
        %v2986 = vpop.f32.mrb[0].mxu0
        %v2987 = vpop.f32.mrb[0].mxu0
        %v2988 = vadd.f32 %v854, %v2987
        %v2989 = vpop.f32.mrb[0].mxu0
        %2990 = vmatprep.mubr.bf16.mxu0 %v2235
        %2991 = vmatmul.mubr.bf16.gmra.mrb[0].mxu0 %v2234
        %v2992 = vpop.f32.mrb[0].mxu0
        %v2993 = vadd.f32 %v859, %v2992
        %v2994 = vpop.f32.mrb[0].mxu0
        %v2995 = vpop.f32.mrb[0].mxu0
        %v2996 = vadd.f32 %v864, %v2995
        %v2997 = vpop.f32.mrb[0].mxu0
        %2998 = vmatprep.mubr.bf16.mxu0 %v2239
        %2999 = vmatmul.mubr.bf16.gmra.mrb[0].mxu0 %v2238
        %v3000 = vpop.f32.mrb[0].mxu0
        %v3001 = vadd.f32 %v869, %v3000
        %v3002 = vpop.f32.mrb[0].mxu0
        %v3003 = vpop.f32.mrb[0].mxu0
        %v3004 = vadd.f32 %v874, %v3003
        %v3005 = vpop.f32.mrb[0].mxu0
        %3006 = vmatprep.mubr.bf16.mxu0 %v2243
        %3007 = vmatmul.mubr.bf16.gmra.mrb[0].mxu0 %v2242
        %v3008 = vpop.f32.mrb[0].mxu0
        %v3009 = vadd.f32 %v879, %v3008
        %v3010 = vpop.f32.mrb[0].mxu0
        %v3011 = vpop.f32.mrb[0].mxu0
        %v3012 = vadd.f32 %v884, %v3011
        %v3013 = vpop.f32.mrb[0].mxu0
        %3014 = vmatprep.mubr.bf16.mxu0 %v2247
        %3015 = vmatmul.mubr.bf16.gmra.mrb[0].mxu0 %v2246
        %v3016 = vpop.f32.mrb[0].mxu0
        %v3017 = vadd.f32 %v889, %v3016
        %v3018 = vpop.f32.mrb[0].mxu0
        %v3019 = vpop.f32.mrb[0].mxu0
        %v3020 = vadd.f32 %v894, %v3019
        %v3021 = vpop.f32.mrb[0].mxu0
        %3022 = vmatprep.mubr.bf16.mxu0 %v2251
        %3023 = vmatmul.mubr.bf16.gmra.mrb[0].mxu0 %v2250
        %v3024 = vpop.f32.mrb[0].mxu0
        %v3025 = vadd.f32 %v899, %v3024
        %v3026 = vpop.f32.mrb[0].mxu0
        %v3027 = vpop.f32.mrb[0].mxu0
        %v3028 = vadd.f32 %v904, %v3027
        %v3029 = vpop.f32.mrb[0].mxu0
        %3030 = vmatprep.mubr.bf16.mxu0 %v2255
        %3031 = vmatmul.mubr.bf16.gmra.mrb[0].mxu0 %v2254
        %v3032 = vpop.f32.mrb[0].mxu0
        %v3033 = vadd.f32 %v909, %v3032
        %v3034 = vpop.f32.mrb[0].mxu0
        %v3035 = vpop.f32.mrb[0].mxu0
        %v3036 = vadd.f32 %v914, %v3035
        %v3037 = vpop.f32.mrb[0].mxu0
        %3038 = vmatprep.mubr.bf16.mxu0 %v2259
        %3039 = vmatmul.mubr.bf16.gmra.mrb[0].mxu0 %v2258
        %v3040 = vpop.f32.mrb[0].mxu0
        %v3041 = vadd.f32 %v919, %v3040
        %v3042 = vpop.f32.mrb[0].mxu0
        %v3043 = vpop.f32.mrb[0].mxu0
        %v3044 = vadd.f32 %v924, %v3043
        %v3045 = vpop.f32.mrb[0].mxu0
        %3046 = vmatprep.mubr.bf16.mxu0 %v2263
        %3047 = vmatmul.mubr.bf16.gmra.mrb[0].mxu0 %v2262
        %v3048 = vpop.f32.mrb[0].mxu0
        %v3049 = vadd.f32 %v929, %v3048
        %v3050 = vpop.f32.mrb[0].mxu0
        %v3051 = vpop.f32.mrb[0].mxu0
        %v3052 = vadd.f32 %v934, %v3051
        %v3053 = vpop.f32.mrb[0].mxu0
        %3054 = vmatprep.mubr.bf16.mxu0 %v2267
        %3055 = vmatmul.mubr.bf16.gmra.mrb[0].mxu0 %v2266
        %v3056 = vpop.f32.mrb[0].mxu0
        %v3057 = vadd.f32 %v939, %v3056
        %v3058 = vpop.f32.mrb[0].mxu0
        %v3059 = vpop.f32.mrb[0].mxu0
        %v3060 = vadd.f32 %v944, %v3059
        %v3061 = vpop.f32.mrb[0].mxu0
        %3062 = vmatprep.mubr.bf16.mxu0 %v2271
        %3063 = vmatmul.mubr.bf16.gmra.mrb[0].mxu0 %v2270
        %v3064 = vpop.f32.mrb[0].mxu0
        %v3065 = vadd.f32 %v949, %v3064
        %v3066 = vpop.f32.mrb[0].mxu0
        %v3067 = vpop.f32.mrb[0].mxu0
        %v3068 = vadd.f32 %v954, %v3067
        %v3069 = vpop.f32.mrb[0].mxu0
        %3070 = vmatprep.mubr.bf16.mxu0 %v2275
        %3071 = vmatmul.mubr.bf16.gmra.mrb[0].mxu0 %v2274
        %v3072 = vpop.f32.mrb[0].mxu0
        %v3073 = vadd.f32 %v959, %v3072
        %v3074 = vpop.f32.mrb[0].mxu0
        %v3075 = vpop.f32.mrb[0].mxu0
        %v3076 = vadd.f32 %v964, %v3075
        %v3077 = vpop.f32.mrb[0].mxu0
        %3078 = vmatprep.mubr.bf16.mxu0 %v2279
        %3079 = vmatmul.mubr.bf16.gmra.mrb[0].mxu0 %v2278
        %v3080 = vpop.f32.mrb[0].mxu0
        %v3081 = vadd.f32 %v969, %v3080
        %v3082 = vpop.f32.mrb[0].mxu0
        %v3083 = vpop.f32.mrb[0].mxu0
        %v3084 = vadd.f32 %v974, %v3083
        %v3085 = vpop.f32.mrb[0].mxu0
        %3086 = vmatprep.mubr.bf16.mxu0 %v2283
        %3087 = vmatmul.mubr.bf16.gmra.mrb[0].mxu0 %v2282
        %v3088 = vpop.f32.mrb[0].mxu0
        %v3089 = vadd.f32 %v979, %v3088
        %v3090 = vpop.f32.mrb[0].mxu0
        %v3091 = vpop.f32.mrb[0].mxu0
        %v3092 = vadd.f32 %v984, %v3091
        %v3093 = vpop.f32.mrb[0].mxu0
        %3094 = vmatprep.mubr.bf16.mxu0 %v2287
        %3095 = vmatmul.mubr.bf16.gmra.mrb[0].mxu0 %v2286
        %v3096 = vpop.f32.mrb[0].mxu0
        %v3097 = vadd.f32 %v989, %v3096
        %v3098 = vpop.f32.mrb[0].mxu0
        %v3099 = vpop.f32.mrb[0].mxu0
        %v3100 = vadd.f32 %v994, %v3099
        %v3101 = vpop.f32.mrb[0].mxu0
        %3102 = vmatprep.mubr.bf16.mxu0 %v2291
        %3103 = vmatmul.mubr.bf16.gmra.mrb[0].mxu0 %v2290
        %v3104 = vpop.f32.mrb[0].mxu0
        %v3105 = vadd.f32 %v999, %v3104
        %v3106 = vpop.f32.mrb[0].mxu0
        %v3107 = vpop.f32.mrb[0].mxu0
        %v3108 = vadd.f32 %v1004, %v3107
        %v3109 = vpop.f32.mrb[0].mxu0
        %3110 = vmatprep.mubr.bf16.mxu0 %v2295
        %3111 = vmatmul.mubr.bf16.gmra.mrb[0].mxu0 %v2294
        %v3112 = vpop.f32.mrb[0].mxu0
        %v3113 = vadd.f32 %v1009, %v3112
        %v3114 = vpop.f32.mrb[0].mxu0
        %v3115 = vpop.f32.mrb[0].mxu0
        %v3116 = vadd.f32 %v1014, %v3115
        %v3117 = vpop.f32.mrb[0].mxu0
        %3118 = vmatprep.mubr.bf16.mxu0 %v2299
        %3119 = vmatmul.mubr.bf16.gmra.mrb[0].mxu0 %v2298
        %v3120 = vpop.f32.mrb[0].mxu0
        %v3121 = vadd.f32 %v1019, %v3120
        %v3122 = vpop.f32.mrb[0].mxu0
        %v3123 = vpop.f32.mrb[0].mxu0
        %v3124 = vadd.f32 %v1024, %v3123
        %v3125 = vpop.f32.mrb[0].mxu0
        %3126 = vmatprep.mubr.bf16.mxu0 %v2303
        %3127 = vmatmul.mubr.bf16.gmra.mrb[0].mxu0 %v2302
        %v3128 = vpop.f32.mrb[0].mxu0
        %v3129 = vadd.f32 %v1029, %v3128
        %v3130 = vpop.f32.mrb[0].mxu0
        %v3131 = vpop.f32.mrb[0].mxu0
        %v3132 = vadd.f32 %v1034, %v3131
        %v3133 = vpop.f32.mrb[0].mxu0
        %3134 = vmatprep.mubr.bf16.mxu0 %v2307
        %3135 = vmatmul.mubr.bf16.gmra.mrb[0].mxu0 %v2306
        %v3136 = vpop.f32.mrb[0].mxu0
        %v3137 = vadd.f32 %v1039, %v3136
        %v3138 = vpop.f32.mrb[0].mxu0
        %v3139 = vpop.f32.mrb[0].mxu0
        %v3140 = vadd.f32 %v1044, %v3139
        %v3141 = vpop.f32.mrb[0].mxu0
        %3142 = vmatprep.mubr.bf16.mxu0 %v2311
        %3143 = vmatmul.mubr.bf16.gmra.mrb[0].mxu0 %v2310
        %v3144 = vpop.f32.mrb[0].mxu0
        %v3145 = vadd.f32 %v1049, %v3144
        %v3146 = vpop.f32.mrb[0].mxu0
        %v3147 = vpop.f32.mrb[0].mxu0
        %v3148 = vadd.f32 %v1054, %v3147
        %v3149 = vpop.f32.mrb[0].mxu0
        %3150 = vmatprep.mubr.bf16.mxu0 %v2315
        %3151 = vmatmul.mubr.bf16.gmra.mrb[0].mxu0 %v2314
        %v3152 = vpop.f32.mrb[0].mxu0
        %v3153 = vadd.f32 %v1059, %v3152
        %v3154 = vpop.f32.mrb[0].mxu0
        %v3155 = vpop.f32.mrb[0].mxu0
        %v3156 = vadd.f32 %v1064, %v3155
        %v3157 = vpop.f32.mrb[0].mxu0
        %3158 = vmatprep.mubr.bf16.mxu0 %v2319
        %3159 = vmatmul.mubr.bf16.gmra.mrb[0].mxu0 %v2318
        %v3160 = vpop.f32.mrb[0].mxu0
        %v3161 = vadd.f32 %v1069, %v3160
        %v3162 = vpop.f32.mrb[0].mxu0
        %v3163 = vpop.f32.mrb[0].mxu0
        %v3164 = vadd.f32 %v1074, %v3163
        %v3165 = vpop.f32.mrb[0].mxu0
        %3166 = vmatprep.mubr.bf16.mxu0 %v2323
        %3167 = vmatmul.mubr.bf16.gmra.mrb[0].mxu0 %v2322
        %v3168 = vpop.f32.mrb[0].mxu0
        %v3169 = vadd.f32 %v1079, %v3168
        %v3170 = vpop.f32.mrb[0].mxu0
        %v3171 = vpop.f32.mrb[0].mxu0
        %v3172 = vadd.f32 %v1084, %v3171
        %v3173 = vpop.f32.mrb[0].mxu0
        %3174 = vmatprep.mubr.bf16.mxu0 %v2327
        %3175 = vmatmul.mubr.bf16.gmra.mrb[0].mxu0 %v2326
        %v3176 = vpop.f32.mrb[0].mxu0
        %v3177 = vadd.f32 %v1089, %v3176
        %v3178 = vpop.f32.mrb[0].mxu0
        %v3179 = vpop.f32.mrb[0].mxu0
        %v3180 = vadd.f32 %v1094, %v3179
        %v3181 = vpop.f32.mrb[0].mxu0
        %3182 = vmatprep.mubr.bf16.mxu0 %v2331
        %3183 = vmatmul.mubr.bf16.gmra.mrb[0].mxu0 %v2330
        %v3184 = vpop.f32.mrb[0].mxu0
        %v3185 = vadd.f32 %v1099, %v3184
        %v3186 = vpop.f32.mrb[0].mxu0
        %v3187 = vpop.f32.mrb[0].mxu0
        %v3188 = vadd.f32 %v1104, %v3187
        %v3189 = vpop.f32.mrb[0].mxu0
        %3190 = vmatprep.mubr.bf16.mxu0 %v2335
        %3191 = vmatmul.mubr.bf16.gmra.mrb[0].mxu0 %v2334
        %v3192 = vpop.f32.mrb[0].mxu0
        %v3193 = vadd.f32 %v1109, %v3192
        %v3194 = vpop.f32.mrb[0].mxu0
        %v3195 = vpop.f32.mrb[0].mxu0
        %v3196 = vadd.f32 %v1114, %v3195
        %v3197 = vpop.f32.mrb[0].mxu0
        %3198 = vmatprep.mubr.bf16.mxu0 %v2339
        %3199 = vmatmul.mubr.bf16.gmra.mrb[0].mxu0 %v2338
        %v3200 = vpop.f32.mrb[0].mxu0
        %v3201 = vadd.f32 %v1119, %v3200
        %v3202 = vpop.f32.mrb[0].mxu0
        %v3203 = vpop.f32.mrb[0].mxu0
        %v3204 = vadd.f32 %v1124, %v3203
        %v3205 = vpop.f32.mrb[0].mxu0
        %3206 = vmatprep.mubr.bf16.mxu0 %v2343
        %3207 = vmatmul.mubr.bf16.gmra.mrb[0].mxu0 %v2342
        %v3208 = vpop.f32.mrb[0].mxu0
        %v3209 = vadd.f32 %v1129, %v3208
        %v3210 = vpop.f32.mrb[0].mxu0
        %v3211 = vpop.f32.mrb[0].mxu0
        %v3212 = vadd.f32 %v1134, %v3211
        %v3213 = vpop.f32.mrb[0].mxu0
        %3214 = vmatprep.mubr.bf16.mxu0 %v2347
        %3215 = vmatmul.mubr.bf16.gmra.mrb[0].mxu0 %v2346
        %v3216 = vpop.f32.mrb[0].mxu0
        %v3217 = vadd.f32 %v1139, %v3216
        %v3218 = vpop.f32.mrb[0].mxu0
        %v3219 = vpop.f32.mrb[0].mxu0
        %v3220 = vadd.f32 %v1144, %v3219
        %v3221 = vpop.f32.mrb[0].mxu0
        %3222 = vmatprep.mubr.bf16.mxu0 %v2351
        %3223 = vmatmul.mubr.bf16.gmra.mrb[0].mxu0 %v2350
        %v3224 = vpop.f32.mrb[0].mxu0
        %v3225 = vadd.f32 %v1149, %v3224
        %v3226 = vpop.f32.mrb[0].mxu0
        %v3227 = vpop.f32.mrb[0].mxu0
        %v3228 = vadd.f32 %v1154, %v3227
        %v3229 = vpop.f32.mrb[0].mxu0
        %3230 = vmatprep.mubr.bf16.mxu0 %v2355
        %3231 = vmatmul.mubr.bf16.gmra.mrb[0].mxu0 %v2354
        %v3232 = vpop.f32.mrb[0].mxu0
        %v3233 = vadd.f32 %v1159, %v3232
        %v3234 = vpop.f32.mrb[0].mxu0
        %v3235 = vpop.f32.mrb[0].mxu0
        %v3236 = vadd.f32 %v1164, %v3235
        %v3237 = vpop.f32.mrb[0].mxu0
        %3238 = vmatprep.mubr.bf16.mxu0 %v2359
        %3239 = vmatmul.mubr.bf16.gmra.mrb[0].mxu0 %v2358
        %v3240 = vpop.f32.mrb[0].mxu0
        %v3241 = vadd.f32 %v1169, %v3240
        %v3242 = vpop.f32.mrb[0].mxu0
        %v3243 = vpop.f32.mrb[0].mxu0
        %v3244 = vadd.f32 %v1174, %v3243
        %v3245 = vpop.f32.mrb[0].mxu0
        %3246 = vmatprep.mubr.bf16.mxu0 %v2363
        %3247 = vmatmul.mubr.bf16.gmra.mrb[0].mxu0 %v2362
        %v3248 = vpop.f32.mrb[0].mxu0
        %v3249 = vadd.f32 %v1179, %v3248
        %v3250 = vpop.f32.mrb[0].mxu0
        %v3251 = vpop.f32.mrb[0].mxu0
        %v3252 = vadd.f32 %v1184, %v3251
        %v3253 = vpop.f32.mrb[0].mxu0
        %3254 = vmatprep.mubr.bf16.mxu0 %v2367
        %3255 = vmatmul.mubr.bf16.gmra.mrb[0].mxu0 %v2366
        %v3256 = vpop.f32.mrb[0].mxu0
        %v3257 = vadd.f32 %v1189, %v3256
        %v3258 = vpop.f32.mrb[0].mxu0
        %v3259 = vpop.f32.mrb[0].mxu0
        %v3260 = vadd.f32 %v1194, %v3259
        %v3261 = vpop.f32.mrb[0].mxu0
        %3262 = vmatprep.mubr.bf16.mxu0 %v2371
        %3263 = vmatmul.mubr.bf16.gmra.mrb[0].mxu0 %v2370
        %v3264 = vpop.f32.mrb[0].mxu0
        %v3265 = vadd.f32 %v1199, %v3264
        %v3266 = vpop.f32.mrb[0].mxu0
        %v3267 = vpop.f32.mrb[0].mxu0
        %v3268 = vadd.f32 %v1204, %v3267
        %v3269 = vpop.f32.mrb[0].mxu0
        %3270 = vmatprep.mubr.bf16.mxu0 %v2375
        %3271 = vmatmul.mubr.bf16.gmra.mrb[0].mxu0 %v2374
        %v3272 = vpop.f32.mrb[0].mxu0
        %v3273 = vadd.f32 %v1209, %v3272
        %v3274 = vpop.f32.mrb[0].mxu0
        %v3275 = vpop.f32.mrb[0].mxu0
        %v3276 = vadd.f32 %v1214, %v3275
        %v3277 = vpop.f32.mrb[0].mxu0
        %3278 = vmatprep.mubr.bf16.mxu0 %v2379
        %3279 = vmatmul.mubr.bf16.gmra.mrb[0].mxu0 %v2378
        %v3280 = vpop.f32.mrb[0].mxu0
        %v3281 = vadd.f32 %v1219, %v3280
        %v3282 = vpop.f32.mrb[0].mxu0
        %v3283 = vpop.f32.mrb[0].mxu0
        %v3284 = vadd.f32 %v1224, %v3283
        %v3285 = vpop.f32.mrb[0].mxu0
        %3286 = vmatprep.mubr.bf16.mxu0 %v2383
        %3287 = vmatmul.mubr.bf16.gmra.mrb[0].mxu0 %v2382
        %v3288 = vpop.f32.mrb[0].mxu0
        %v3289 = vadd.f32 %v1229, %v3288
        %v3290 = vpop.f32.mrb[0].mxu0
        %v3291 = vpop.f32.mrb[0].mxu0
        %v3292 = vadd.f32 %v1234, %v3291
        %v3293 = vpop.f32.mrb[0].mxu0
        %3294 = vmatprep.mubr.bf16.mxu0 %v2387
        %3295 = vmatmul.mubr.bf16.gmra.mrb[0].mxu0 %v2386
        %v3296 = vpop.f32.mrb[0].mxu0
        %v3297 = vadd.f32 %v1239, %v3296
        %v3298 = vpop.f32.mrb[0].mxu0
        %v3299 = vpop.f32.mrb[0].mxu0
        %v3300 = vadd.f32 %v1244, %v3299
        %v3301 = vpop.f32.mrb[0].mxu0
        %3302 = vmatprep.mubr.bf16.mxu0 %v2391
        %3303 = vmatmul.mubr.bf16.gmra.mrb[0].mxu0 %v2390
        %v3304 = vpop.f32.mrb[0].mxu0
        %v3305 = vadd.f32 %v1249, %v3304
        %v3306 = vpop.f32.mrb[0].mxu0
        %v3307 = vpop.f32.mrb[0].mxu0
        %v3308 = vadd.f32 %v1254, %v3307
        %v3309 = vpop.f32.mrb[0].mxu0
        %3310 = vmatprep.mubr.bf16.mxu0 %v2395
        %3311 = vmatmul.mubr.bf16.gmra.mrb[0].mxu0 %v2394
        %v3312 = vpop.f32.mrb[0].mxu0
        %v3313 = vadd.f32 %v1259, %v3312
        %v3314 = vpop.f32.mrb[0].mxu0
        %v3315 = vpop.f32.mrb[0].mxu0
        %v3316 = vadd.f32 %v1264, %v3315
        %v3317 = vpop.f32.mrb[0].mxu0
        %3318 = vmatprep.mubr.bf16.mxu0 %v2399
        %3319 = vmatmul.mubr.bf16.gmra.mrb[0].mxu0 %v2398
        %v3320 = vpop.f32.mrb[0].mxu0
        %v3321 = vadd.f32 %v1269, %v3320
        %v3322 = vpop.f32.mrb[0].mxu0
        %v3323 = vpop.f32.mrb[0].mxu0
        %v3324 = vadd.f32 %v1274, %v3323
        %v3325 = vpop.f32.mrb[0].mxu0
        %3326 = vmatprep.mubr.bf16.mxu0 %v2403
        %3327 = vmatmul.mubr.bf16.gmra.mrb[0].mxu0 %v2402
        %v3328 = vpop.f32.mrb[0].mxu0
        %v3329 = vadd.f32 %v1279, %v3328
        %v3330 = vpop.f32.mrb[0].mxu0
        %v3331 = vpop.f32.mrb[0].mxu0
        %v3332 = vadd.f32 %v1284, %v3331
        %v3333 = vpop.f32.mrb[0].mxu0
        %3334 = vmatprep.mubr.bf16.mxu0 %v2407
        %3335 = vmatmul.mubr.bf16.gmra.mrb[0].mxu0 %v2406
        %v3336 = vpop.f32.mrb[0].mxu0
        %v3337 = vadd.f32 %v1289, %v3336
        %v3338 = vpop.f32.mrb[0].mxu0
        %v3339 = vpop.f32.mrb[0].mxu0
        %v3340 = vadd.f32 %v1294, %v3339
        %v3341 = vpop.f32.mrb[0].mxu0
        %3342 = vmatprep.mubr.bf16.mxu0 %v2411
        %3343 = vmatmul.mubr.bf16.gmra.mrb[0].mxu0 %v2410
        %v3344 = vpop.f32.mrb[0].mxu0
        %v3345 = vadd.f32 %v1299, %v3344
        %v3346 = vpop.f32.mrb[0].mxu0
        %v3347 = vpop.f32.mrb[0].mxu0
        %v3348 = vadd.f32 %v1304, %v3347
        %v3349 = vpop.f32.mrb[0].mxu0
        %3350 = vmatprep.mubr.bf16.mxu0 %v2415
        %3351 = vmatmul.mubr.bf16.gmra.mrb[0].mxu0 %v2414
        %v3352 = vpop.f32.mrb[0].mxu0
        %v3353 = vadd.f32 %v1309, %v3352
        %v3354 = vpop.f32.mrb[0].mxu0
        %v3355 = vpop.f32.mrb[0].mxu0
        %v3356 = vadd.f32 %v1314, %v3355
        %v3357 = vpop.f32.mrb[0].mxu0
        %3358 = vmatprep.mubr.bf16.mxu0 %v2419
        %3359 = vmatmul.mubr.bf16.gmra.mrb[0].mxu0 %v2418
        %v3360 = vpop.f32.mrb[0].mxu0
        %v3361 = vadd.f32 %v1319, %v3360
        %v3362 = vpop.f32.mrb[0].mxu0
        %v3363 = vpop.f32.mrb[0].mxu0
        %v3364 = vadd.f32 %v1324, %v3363
        %v3365 = vpop.f32.mrb[0].mxu0
        %3366 = vmatprep.mubr.bf16.mxu0 %v2423
        %3367 = vmatmul.mubr.bf16.gmra.mrb[0].mxu0 %v2422
        %v3368 = vpop.f32.mrb[0].mxu0
        %v3369 = vadd.f32 %v1329, %v3368
        %v3370 = vpop.f32.mrb[0].mxu0
        %v3371 = vpop.f32.mrb[0].mxu0
        %v3372 = vadd.f32 %v1334, %v3371
        %v3373 = vpop.f32.mrb[0].mxu0
        %3374 = vmatprep.mubr.bf16.mxu0 %v2427
        %3375 = vmatmul.mubr.bf16.gmra.mrb[0].mxu0 %v2426
        %v3376 = vpop.f32.mrb[0].mxu0
        %v3377 = vadd.f32 %v1339, %v3376
        %v3378 = vpop.f32.mrb[0].mxu0
        %v3379 = vpop.f32.mrb[0].mxu0
        %v3380 = vadd.f32 %v1344, %v3379
        %v3381 = vpop.f32.mrb[0].mxu0
        %3382 = vmatprep.mubr.bf16.mxu0 %v2431
        %3383 = vmatmul.mubr.bf16.gmra.mrb[0].mxu0 %v2430
        %v3384 = vpop.f32.mrb[0].mxu0
        %v3385 = vadd.f32 %v1349, %v3384
        %v3386 = vpop.f32.mrb[0].mxu0
        %v3387 = vpop.f32.mrb[0].mxu0
        %v3388 = vadd.f32 %v1354, %v3387
        %v3389 = vpop.f32.mrb[0].mxu0
        %3390 = vmatprep.mubr.bf16.mxu0 %v2435
        %3391 = vmatmul.mubr.bf16.gmra.mrb[0].mxu0 %v2434
        %v3392 = vpop.f32.mrb[0].mxu0
        %v3393 = vadd.f32 %v1359, %v3392
        %v3394 = vpop.f32.mrb[0].mxu0
        %v3395 = vpop.f32.mrb[0].mxu0
        %v3396 = vadd.f32 %v1364, %v3395
        %v3397 = vpop.f32.mrb[0].mxu0
        %3398 = vmatprep.mubr.bf16.mxu0 %v2439
        %3399 = vmatmul.mubr.bf16.gmra.mrb[0].mxu0 %v2438
        %v3400 = vpop.f32.mrb[0].mxu0
        %v3401 = vadd.f32 %v1369, %v3400
        %v3402 = vpop.f32.mrb[0].mxu0
        %v3403 = vpop.f32.mrb[0].mxu0
        %v3404 = vadd.f32 %v1374, %v3403
        %v3405 = vpop.f32.mrb[0].mxu0
        %3406 = vmatprep.mubr.bf16.mxu0 %v2443
        %3407 = vmatmul.mubr.bf16.gmra.mrb[0].mxu0 %v2442
        %v3408 = vpop.f32.mrb[0].mxu0
        %v3409 = vadd.f32 %v1379, %v3408
        %v3410 = vpop.f32.mrb[0].mxu0
        %v3411 = vpop.f32.mrb[0].mxu0
        %v3412 = vadd.f32 %v1384, %v3411
        %v3413 = vpop.f32.mrb[0].mxu0
        %3414 = vmatprep.mubr.bf16.mxu0 %v2447
        %3415 = vmatmul.mubr.bf16.gmra.mrb[0].mxu0 %v2446
        %v3416 = vpop.f32.mrb[0].mxu0
        %v3417 = vadd.f32 %v1389, %v3416
        %v3418 = vpop.f32.mrb[0].mxu0
        %v3419 = vpop.f32.mrb[0].mxu0
        %v3420 = vadd.f32 %v1394, %v3419
        %v3421 = vpop.f32.mrb[0].mxu0
        %3422 = vmatprep.mubr.bf16.mxu0 %v2451
        %3423 = vmatmul.mubr.bf16.gmra.mrb[0].mxu0 %v2450
        %v3424 = vpop.f32.mrb[0].mxu0
        %v3425 = vadd.f32 %v1399, %v3424
        %v3426 = vpop.f32.mrb[0].mxu0
        %v3427 = vpop.f32.mrb[0].mxu0
        %v3428 = vadd.f32 %v1404, %v3427
        %v3429 = vpop.f32.mrb[0].mxu0
        %3430 = vmatprep.mubr.bf16.mxu0 %v2455
        %3431 = vmatmul.mubr.bf16.gmra.mrb[0].mxu0 %v2454
        %v3432 = vpop.f32.mrb[0].mxu0
        %v3433 = vadd.f32 %v1409, %v3432
        %v3434 = vpop.f32.mrb[0].mxu0
        %v3435 = vpop.f32.mrb[0].mxu0
        %v3436 = vadd.f32 %v1414, %v3435
        %v3437 = vpop.f32.mrb[0].mxu0
        %3438 = vmatprep.mubr.bf16.mxu0 %v2459
        %3439 = vmatmul.mubr.bf16.gmra.mrb[0].mxu0 %v2458
        %v3440 = vpop.f32.mrb[0].mxu0
        %v3441 = vadd.f32 %v1419, %v3440
        %v3442 = vpop.f32.mrb[0].mxu0
        %v3443 = vpop.f32.mrb[0].mxu0
        %v3444 = vadd.f32 %v1424, %v3443
        %v3445 = vpop.f32.mrb[0].mxu0
        %3446 = vmatprep.mubr.bf16.mxu0 %v2463
        %3447 = vmatmul.mubr.bf16.gmra.mrb[0].mxu0 %v2462
        %v3448 = vpop.f32.mrb[0].mxu0
        %v3449 = vadd.f32 %v1429, %v3448
        %v3450 = vpop.f32.mrb[0].mxu0
        %v3451 = vpop.f32.mrb[0].mxu0
        %v3452 = vadd.f32 %v1434, %v3451
        %v3453 = vpop.f32.mrb[0].mxu0
        %3454 = vmatprep.mubr.bf16.mxu0 %v2467
        %3455 = vmatmul.mubr.bf16.gmra.mrb[0].mxu0 %v2466
        %v3456 = vpop.f32.mrb[0].mxu0
        %v3457 = vadd.f32 %v1439, %v3456
        %v3458 = vpop.f32.mrb[0].mxu0
        %v3459 = vpop.f32.mrb[0].mxu0
        %v3460 = vadd.f32 %v1444, %v3459
        %v3461 = vpop.f32.mrb[0].mxu0
        %3462 = vdwg.mxu0
        %3463 = vmatprep.subr.bf16.mxu0 0
        %3464 = vmatpush1.bf16.msra.mxu0 %v2870
        %3465 = vmatprep.subr.bf16.mxu0 0
        %3466 = vmatpush1.bf16.msra.mxu0 %v2871
        %3467 = vmatprep.subr.bf16.mxu0 0
        %3468 = vmatpush1.bf16.msra.mxu0 %v2872
        %3469 = vmatprep.subr.bf16.mxu0 0
        %3470 = vmatpush1.bf16.msra.mxu0 %v2873
        %3471 = vmatprep.subr.bf16.mxu0 0
        %3472 = vmatpush1.bf16.msra.mxu0 %v2874
        %3473 = vmatprep.subr.bf16.mxu0 0
        %3474 = vmatpush1.bf16.msra.mxu0 %v2875
        %3475 = vmatprep.subr.bf16.mxu0 0
        %3476 = vmatpush1.bf16.msra.mxu0 %v2876
        %3477 = vmatprep.subr.bf16.mxu0 0
        %3478 = vmatpush1.bf16.msra.mxu0 %v2877
        %3479 = vmatprep.subr.bf16.mxu0 0
        %3480 = vmatpush1.bf16.msra.mxu0 %v2878
        %3481 = vmatprep.subr.bf16.mxu0 0
        %3482 = vmatpush1.bf16.msra.mxu0 %v2879
        %3483 = vmatprep.subr.bf16.mxu0 0
        %3484 = vmatpush1.bf16.msra.mxu0 %v2880
        %3485 = vmatprep.subr.bf16.mxu0 0
        %3486 = vmatpush1.bf16.msra.mxu0 %v2881
        %3487 = vmatprep.subr.bf16.mxu0 0
        %3488 = vmatpush1.bf16.msra.mxu0 %v2882
        %3489 = vmatprep.subr.bf16.mxu0 0
        %3490 = vmatpush1.bf16.msra.mxu0 %v2883
        %3491 = vmatprep.subr.bf16.mxu0 0
        %3492 = vmatpush1.bf16.msra.mxu0 %v2884
        %3493 = vmatprep.subr.bf16.mxu0 0
        %3494 = vmatpush1.bf16.msra.mxu0 %v2885
        %3495 = vmatprep.mubr.bf16.mxu0 %v2217
        %3496 = vmatmul.mubr.bf16.gmra.mrb[0].mxu0 %v2216
        %v3497 = vpop.f32.mrb[0].mxu0
        %v3498 = vadd.f32 %v2953, %v3497
        %v3499 = vpop.f32.mrb[0].mxu0
        %v3500 = vpop.f32.mrb[0].mxu0
        %v3501 = vadd.f32 %v2956, %v3500
        %v3502 = vpop.f32.mrb[0].mxu0
        %3503 = vmatprep.mubr.bf16.mxu0 %v2221
        %3504 = vmatmul.mubr.bf16.gmra.mrb[0].mxu0 %v2220
        %v3505 = vpop.f32.mrb[0].mxu0
        %v3506 = vadd.f32 %v2961, %v3505
        %v3507 = vpop.f32.mrb[0].mxu0
        %v3508 = vpop.f32.mrb[0].mxu0
        %v3509 = vadd.f32 %v2964, %v3508
        %v3510 = vpop.f32.mrb[0].mxu0
        %3511 = vmatprep.mubr.bf16.mxu0 %v2225
        %3512 = vmatmul.mubr.bf16.gmra.mrb[0].mxu0 %v2224
        %v3513 = vpop.f32.mrb[0].mxu0
        %v3514 = vadd.f32 %v2969, %v3513
        %v3515 = vpop.f32.mrb[0].mxu0
        %v3516 = vpop.f32.mrb[0].mxu0
        %v3517 = vadd.f32 %v2972, %v3516
        %v3518 = vpop.f32.mrb[0].mxu0
        %3519 = vmatprep.mubr.bf16.mxu0 %v2229
        %3520 = vmatmul.mubr.bf16.gmra.mrb[0].mxu0 %v2228
        %v3521 = vpop.f32.mrb[0].mxu0
        %v3522 = vadd.f32 %v2977, %v3521
        %v3523 = vpop.f32.mrb[0].mxu0
        %v3524 = vpop.f32.mrb[0].mxu0
        %v3525 = vadd.f32 %v2980, %v3524
        %v3526 = vpop.f32.mrb[0].mxu0
        %3527 = vmatprep.mubr.bf16.mxu0 %v2233
        %3528 = vmatmul.mubr.bf16.gmra.mrb[0].mxu0 %v2232
        %v3529 = vpop.f32.mrb[0].mxu0
        %v3530 = vadd.f32 %v2985, %v3529
        %v3531 = vpop.f32.mrb[0].mxu0
        %v3532 = vpop.f32.mrb[0].mxu0
        %v3533 = vadd.f32 %v2988, %v3532
        %v3534 = vpop.f32.mrb[0].mxu0
        %3535 = vmatprep.mubr.bf16.mxu0 %v2237
        %3536 = vmatmul.mubr.bf16.gmra.mrb[0].mxu0 %v2236
        %v3537 = vpop.f32.mrb[0].mxu0
        %v3538 = vadd.f32 %v2993, %v3537
        %v3539 = vpop.f32.mrb[0].mxu0
        %v3540 = vpop.f32.mrb[0].mxu0
        %v3541 = vadd.f32 %v2996, %v3540
        %v3542 = vpop.f32.mrb[0].mxu0
        %3543 = vmatprep.mubr.bf16.mxu0 %v2241
        %3544 = vmatmul.mubr.bf16.gmra.mrb[0].mxu0 %v2240
        %v3545 = vpop.f32.mrb[0].mxu0
        %v3546 = vadd.f32 %v3001, %v3545
        %v3547 = vpop.f32.mrb[0].mxu0
        %v3548 = vpop.f32.mrb[0].mxu0
        %v3549 = vadd.f32 %v3004, %v3548
        %v3550 = vpop.f32.mrb[0].mxu0
        %3551 = vmatprep.mubr.bf16.mxu0 %v2245
        %3552 = vmatmul.mubr.bf16.gmra.mrb[0].mxu0 %v2244
        %v3553 = vpop.f32.mrb[0].mxu0
        %v3554 = vadd.f32 %v3009, %v3553
        %v3555 = vpop.f32.mrb[0].mxu0
        %v3556 = vpop.f32.mrb[0].mxu0
        %v3557 = vadd.f32 %v3012, %v3556
        %v3558 = vpop.f32.mrb[0].mxu0
        %3559 = vmatprep.mubr.bf16.mxu0 %v2249
        %3560 = vmatmul.mubr.bf16.gmra.mrb[0].mxu0 %v2248
        %v3561 = vpop.f32.mrb[0].mxu0
        %v3562 = vadd.f32 %v3017, %v3561
        %v3563 = vpop.f32.mrb[0].mxu0
        %v3564 = vpop.f32.mrb[0].mxu0
        %v3565 = vadd.f32 %v3020, %v3564
        %v3566 = vpop.f32.mrb[0].mxu0
        %3567 = vmatprep.mubr.bf16.mxu0 %v2253
        %3568 = vmatmul.mubr.bf16.gmra.mrb[0].mxu0 %v2252
        %v3569 = vpop.f32.mrb[0].mxu0
        %v3570 = vadd.f32 %v3025, %v3569
        %v3571 = vpop.f32.mrb[0].mxu0
        %v3572 = vpop.f32.mrb[0].mxu0
        %v3573 = vadd.f32 %v3028, %v3572
        %v3574 = vpop.f32.mrb[0].mxu0
        %3575 = vmatprep.mubr.bf16.mxu0 %v2257
        %3576 = vmatmul.mubr.bf16.gmra.mrb[0].mxu0 %v2256
        %v3577 = vpop.f32.mrb[0].mxu0
        %v3578 = vadd.f32 %v3033, %v3577
        %v3579 = vpop.f32.mrb[0].mxu0
        %v3580 = vpop.f32.mrb[0].mxu0
        %v3581 = vadd.f32 %v3036, %v3580
        %v3582 = vpop.f32.mrb[0].mxu0
        %3583 = vmatprep.mubr.bf16.mxu0 %v2261
        %3584 = vmatmul.mubr.bf16.gmra.mrb[0].mxu0 %v2260
        %v3585 = vpop.f32.mrb[0].mxu0
        %v3586 = vadd.f32 %v3041, %v3585
        %v3587 = vpop.f32.mrb[0].mxu0
        %v3588 = vpop.f32.mrb[0].mxu0
        %v3589 = vadd.f32 %v3044, %v3588
        %v3590 = vpop.f32.mrb[0].mxu0
        %3591 = vmatprep.mubr.bf16.mxu0 %v2265
        %3592 = vmatmul.mubr.bf16.gmra.mrb[0].mxu0 %v2264
        %v3593 = vpop.f32.mrb[0].mxu0
        %v3594 = vadd.f32 %v3049, %v3593
        %v3595 = vpop.f32.mrb[0].mxu0
        %v3596 = vpop.f32.mrb[0].mxu0
        %v3597 = vadd.f32 %v3052, %v3596
        %v3598 = vpop.f32.mrb[0].mxu0
        %3599 = vmatprep.mubr.bf16.mxu0 %v2269
        %3600 = vmatmul.mubr.bf16.gmra.mrb[0].mxu0 %v2268
        %v3601 = vpop.f32.mrb[0].mxu0
        %v3602 = vadd.f32 %v3057, %v3601
        %v3603 = vpop.f32.mrb[0].mxu0
        %v3604 = vpop.f32.mrb[0].mxu0
        %v3605 = vadd.f32 %v3060, %v3604
        %v3606 = vpop.f32.mrb[0].mxu0
        %3607 = vmatprep.mubr.bf16.mxu0 %v2273
        %3608 = vmatmul.mubr.bf16.gmra.mrb[0].mxu0 %v2272
        %v3609 = vpop.f32.mrb[0].mxu0
        %v3610 = vadd.f32 %v3065, %v3609
        %v3611 = vpop.f32.mrb[0].mxu0
        %v3612 = vpop.f32.mrb[0].mxu0
        %v3613 = vadd.f32 %v3068, %v3612
        %v3614 = vpop.f32.mrb[0].mxu0
        %3615 = vmatprep.mubr.bf16.mxu0 %v2277
        %3616 = vmatmul.mubr.bf16.gmra.mrb[0].mxu0 %v2276
        %v3617 = vpop.f32.mrb[0].mxu0
        %v3618 = vadd.f32 %v3073, %v3617
        %v3619 = vpop.f32.mrb[0].mxu0
        %v3620 = vpop.f32.mrb[0].mxu0
        %v3621 = vadd.f32 %v3076, %v3620
        %v3622 = vpop.f32.mrb[0].mxu0
        %3623 = vmatprep.mubr.bf16.mxu0 %v2281
        %3624 = vmatmul.mubr.bf16.gmra.mrb[0].mxu0 %v2280
        %v3625 = vpop.f32.mrb[0].mxu0
        %v3626 = vadd.f32 %v3081, %v3625
        %v3627 = vpop.f32.mrb[0].mxu0
        %v3628 = vpop.f32.mrb[0].mxu0
        %v3629 = vadd.f32 %v3084, %v3628
        %v3630 = vpop.f32.mrb[0].mxu0
        %3631 = vmatprep.mubr.bf16.mxu0 %v2285
        %3632 = vmatmul.mubr.bf16.gmra.mrb[0].mxu0 %v2284
        %v3633 = vpop.f32.mrb[0].mxu0
        %v3634 = vadd.f32 %v3089, %v3633
        %v3635 = vpop.f32.mrb[0].mxu0
        %v3636 = vpop.f32.mrb[0].mxu0
        %v3637 = vadd.f32 %v3092, %v3636
        %v3638 = vpop.f32.mrb[0].mxu0
        %3639 = vmatprep.mubr.bf16.mxu0 %v2289
        %3640 = vmatmul.mubr.bf16.gmra.mrb[0].mxu0 %v2288
        %v3641 = vpop.f32.mrb[0].mxu0
        %v3642 = vadd.f32 %v3097, %v3641
        %v3643 = vpop.f32.mrb[0].mxu0
        %v3644 = vpop.f32.mrb[0].mxu0
        %v3645 = vadd.f32 %v3100, %v3644
        %v3646 = vpop.f32.mrb[0].mxu0
        %3647 = vmatprep.mubr.bf16.mxu0 %v2293
        %3648 = vmatmul.mubr.bf16.gmra.mrb[0].mxu0 %v2292
        %v3649 = vpop.f32.mrb[0].mxu0
        %v3650 = vadd.f32 %v3105, %v3649
        %v3651 = vpop.f32.mrb[0].mxu0
        %v3652 = vpop.f32.mrb[0].mxu0
        %v3653 = vadd.f32 %v3108, %v3652
        %v3654 = vpop.f32.mrb[0].mxu0
        %3655 = vmatprep.mubr.bf16.mxu0 %v2297
        %3656 = vmatmul.mubr.bf16.gmra.mrb[0].mxu0 %v2296
        %v3657 = vpop.f32.mrb[0].mxu0
        %v3658 = vadd.f32 %v3113, %v3657
        %v3659 = vpop.f32.mrb[0].mxu0
        %v3660 = vpop.f32.mrb[0].mxu0
        %v3661 = vadd.f32 %v3116, %v3660
        %v3662 = vpop.f32.mrb[0].mxu0
        %3663 = vmatprep.mubr.bf16.mxu0 %v2301
        %3664 = vmatmul.mubr.bf16.gmra.mrb[0].mxu0 %v2300
        %v3665 = vpop.f32.mrb[0].mxu0
        %v3666 = vadd.f32 %v3121, %v3665
        %v3667 = vpop.f32.mrb[0].mxu0
        %v3668 = vpop.f32.mrb[0].mxu0
        %v3669 = vadd.f32 %v3124, %v3668
        %v3670 = vpop.f32.mrb[0].mxu0
        %3671 = vmatprep.mubr.bf16.mxu0 %v2305
        %3672 = vmatmul.mubr.bf16.gmra.mrb[0].mxu0 %v2304
        %v3673 = vpop.f32.mrb[0].mxu0
        %v3674 = vadd.f32 %v3129, %v3673
        %v3675 = vpop.f32.mrb[0].mxu0
        %v3676 = vpop.f32.mrb[0].mxu0
        %v3677 = vadd.f32 %v3132, %v3676
        %v3678 = vpop.f32.mrb[0].mxu0
        %3679 = vmatprep.mubr.bf16.mxu0 %v2309
        %3680 = vmatmul.mubr.bf16.gmra.mrb[0].mxu0 %v2308
        %v3681 = vpop.f32.mrb[0].mxu0
        %v3682 = vadd.f32 %v3137, %v3681
        %v3683 = vpop.f32.mrb[0].mxu0
        %v3684 = vpop.f32.mrb[0].mxu0
        %v3685 = vadd.f32 %v3140, %v3684
        %v3686 = vpop.f32.mrb[0].mxu0
        %3687 = vmatprep.mubr.bf16.mxu0 %v2313
        %3688 = vmatmul.mubr.bf16.gmra.mrb[0].mxu0 %v2312
        %v3689 = vpop.f32.mrb[0].mxu0
        %v3690 = vadd.f32 %v3145, %v3689
        %v3691 = vpop.f32.mrb[0].mxu0
        %v3692 = vpop.f32.mrb[0].mxu0
        %v3693 = vadd.f32 %v3148, %v3692
        %v3694 = vpop.f32.mrb[0].mxu0
        %3695 = vmatprep.mubr.bf16.mxu0 %v2317
        %3696 = vmatmul.mubr.bf16.gmra.mrb[0].mxu0 %v2316
        %v3697 = vpop.f32.mrb[0].mxu0
        %v3698 = vadd.f32 %v3153, %v3697
        %v3699 = vpop.f32.mrb[0].mxu0
        %v3700 = vpop.f32.mrb[0].mxu0
        %v3701 = vadd.f32 %v3156, %v3700
        %v3702 = vpop.f32.mrb[0].mxu0
        %3703 = vmatprep.mubr.bf16.mxu0 %v2321
        %3704 = vmatmul.mubr.bf16.gmra.mrb[0].mxu0 %v2320
        %v3705 = vpop.f32.mrb[0].mxu0
        %v3706 = vadd.f32 %v3161, %v3705
        %v3707 = vpop.f32.mrb[0].mxu0
        %v3708 = vpop.f32.mrb[0].mxu0
        %v3709 = vadd.f32 %v3164, %v3708
        %v3710 = vpop.f32.mrb[0].mxu0
        %3711 = vmatprep.mubr.bf16.mxu0 %v2325
        %3712 = vmatmul.mubr.bf16.gmra.mrb[0].mxu0 %v2324
        %v3713 = vpop.f32.mrb[0].mxu0
        %v3714 = vadd.f32 %v3169, %v3713
        %v3715 = vpop.f32.mrb[0].mxu0
        %v3716 = vpop.f32.mrb[0].mxu0
        %v3717 = vadd.f32 %v3172, %v3716
        %v3718 = vpop.f32.mrb[0].mxu0
        %3719 = vmatprep.mubr.bf16.mxu0 %v2329
        %3720 = vmatmul.mubr.bf16.gmra.mrb[0].mxu0 %v2328
        %v3721 = vpop.f32.mrb[0].mxu0
        %v3722 = vadd.f32 %v3177, %v3721
        %v3723 = vpop.f32.mrb[0].mxu0
        %v3724 = vpop.f32.mrb[0].mxu0
        %v3725 = vadd.f32 %v3180, %v3724
        %v3726 = vpop.f32.mrb[0].mxu0
        %3727 = vmatprep.mubr.bf16.mxu0 %v2333
        %3728 = vmatmul.mubr.bf16.gmra.mrb[0].mxu0 %v2332
        %v3729 = vpop.f32.mrb[0].mxu0
        %v3730 = vadd.f32 %v3185, %v3729
        %v3731 = vpop.f32.mrb[0].mxu0
        %v3732 = vpop.f32.mrb[0].mxu0
        %v3733 = vadd.f32 %v3188, %v3732
        %v3734 = vpop.f32.mrb[0].mxu0
        %3735 = vmatprep.mubr.bf16.mxu0 %v2337
        %3736 = vmatmul.mubr.bf16.gmra.mrb[0].mxu0 %v2336
        %v3737 = vpop.f32.mrb[0].mxu0
        %v3738 = vadd.f32 %v3193, %v3737
        %v3739 = vpop.f32.mrb[0].mxu0
        %v3740 = vpop.f32.mrb[0].mxu0
        %v3741 = vadd.f32 %v3196, %v3740
        %v3742 = vpop.f32.mrb[0].mxu0
        %3743 = vmatprep.mubr.bf16.mxu0 %v2341
        %3744 = vmatmul.mubr.bf16.gmra.mrb[0].mxu0 %v2340
        %v3745 = vpop.f32.mrb[0].mxu0
        %v3746 = vadd.f32 %v3201, %v3745
        %v3747 = vpop.f32.mrb[0].mxu0
        %v3748 = vpop.f32.mrb[0].mxu0
        %v3749 = vadd.f32 %v3204, %v3748
        %v3750 = vpop.f32.mrb[0].mxu0
        %3751 = vmatprep.mubr.bf16.mxu0 %v2345
        %3752 = vmatmul.mubr.bf16.gmra.mrb[0].mxu0 %v2344
        %v3753 = vpop.f32.mrb[0].mxu0
        %v3754 = vadd.f32 %v3209, %v3753
        %v3755 = vpop.f32.mrb[0].mxu0
        %v3756 = vpop.f32.mrb[0].mxu0
        %v3757 = vadd.f32 %v3212, %v3756
        %v3758 = vpop.f32.mrb[0].mxu0
        %3759 = vmatprep.mubr.bf16.mxu0 %v2349
        %3760 = vmatmul.mubr.bf16.gmra.mrb[0].mxu0 %v2348
        %v3761 = vpop.f32.mrb[0].mxu0
        %v3762 = vadd.f32 %v3217, %v3761
        %v3763 = vpop.f32.mrb[0].mxu0
        %v3764 = vpop.f32.mrb[0].mxu0
        %v3765 = vadd.f32 %v3220, %v3764
        %v3766 = vpop.f32.mrb[0].mxu0
        %3767 = vmatprep.mubr.bf16.mxu0 %v2353
        %3768 = vmatmul.mubr.bf16.gmra.mrb[0].mxu0 %v2352
        %v3769 = vpop.f32.mrb[0].mxu0
        %v3770 = vadd.f32 %v3225, %v3769
        %v3771 = vpop.f32.mrb[0].mxu0
        %v3772 = vpop.f32.mrb[0].mxu0
        %v3773 = vadd.f32 %v3228, %v3772
        %v3774 = vpop.f32.mrb[0].mxu0
        %3775 = vmatprep.mubr.bf16.mxu0 %v2357
        %3776 = vmatmul.mubr.bf16.gmra.mrb[0].mxu0 %v2356
        %v3777 = vpop.f32.mrb[0].mxu0
        %v3778 = vadd.f32 %v3233, %v3777
        %v3779 = vpop.f32.mrb[0].mxu0
        %v3780 = vpop.f32.mrb[0].mxu0
        %v3781 = vadd.f32 %v3236, %v3780
        %v3782 = vpop.f32.mrb[0].mxu0
        %3783 = vmatprep.mubr.bf16.mxu0 %v2361
        %3784 = vmatmul.mubr.bf16.gmra.mrb[0].mxu0 %v2360
        %v3785 = vpop.f32.mrb[0].mxu0
        %v3786 = vadd.f32 %v3241, %v3785
        %v3787 = vpop.f32.mrb[0].mxu0
        %v3788 = vpop.f32.mrb[0].mxu0
        %v3789 = vadd.f32 %v3244, %v3788
        %v3790 = vpop.f32.mrb[0].mxu0
        %3791 = vmatprep.mubr.bf16.mxu0 %v2365
        %3792 = vmatmul.mubr.bf16.gmra.mrb[0].mxu0 %v2364
        %v3793 = vpop.f32.mrb[0].mxu0
        %v3794 = vadd.f32 %v3249, %v3793
        %v3795 = vpop.f32.mrb[0].mxu0
        %v3796 = vpop.f32.mrb[0].mxu0
        %v3797 = vadd.f32 %v3252, %v3796
        %v3798 = vpop.f32.mrb[0].mxu0
        %3799 = vmatprep.mubr.bf16.mxu0 %v2369
        %3800 = vmatmul.mubr.bf16.gmra.mrb[0].mxu0 %v2368
        %v3801 = vpop.f32.mrb[0].mxu0
        %v3802 = vadd.f32 %v3257, %v3801
        %v3803 = vpop.f32.mrb[0].mxu0
        %v3804 = vpop.f32.mrb[0].mxu0
        %v3805 = vadd.f32 %v3260, %v3804
        %v3806 = vpop.f32.mrb[0].mxu0
        %3807 = vmatprep.mubr.bf16.mxu0 %v2373
        %3808 = vmatmul.mubr.bf16.gmra.mrb[0].mxu0 %v2372
        %v3809 = vpop.f32.mrb[0].mxu0
        %v3810 = vadd.f32 %v3265, %v3809
        %v3811 = vpop.f32.mrb[0].mxu0
        %v3812 = vpop.f32.mrb[0].mxu0
        %v3813 = vadd.f32 %v3268, %v3812
        %v3814 = vpop.f32.mrb[0].mxu0
        %3815 = vmatprep.mubr.bf16.mxu0 %v2377
        %3816 = vmatmul.mubr.bf16.gmra.mrb[0].mxu0 %v2376
        %v3817 = vpop.f32.mrb[0].mxu0
        %v3818 = vadd.f32 %v3273, %v3817
        %v3819 = vpop.f32.mrb[0].mxu0
        %v3820 = vpop.f32.mrb[0].mxu0
        %v3821 = vadd.f32 %v3276, %v3820
        %v3822 = vpop.f32.mrb[0].mxu0
        %3823 = vmatprep.mubr.bf16.mxu0 %v2381
        %3824 = vmatmul.mubr.bf16.gmra.mrb[0].mxu0 %v2380
        %v3825 = vpop.f32.mrb[0].mxu0
        %v3826 = vadd.f32 %v3281, %v3825
        %v3827 = vpop.f32.mrb[0].mxu0
        %v3828 = vpop.f32.mrb[0].mxu0
        %v3829 = vadd.f32 %v3284, %v3828
        %v3830 = vpop.f32.mrb[0].mxu0
        %3831 = vmatprep.mubr.bf16.mxu0 %v2385
        %3832 = vmatmul.mubr.bf16.gmra.mrb[0].mxu0 %v2384
        %v3833 = vpop.f32.mrb[0].mxu0
        %v3834 = vadd.f32 %v3289, %v3833
        %v3835 = vpop.f32.mrb[0].mxu0
        %v3836 = vpop.f32.mrb[0].mxu0
        %v3837 = vadd.f32 %v3292, %v3836
        %v3838 = vpop.f32.mrb[0].mxu0
        %3839 = vmatprep.mubr.bf16.mxu0 %v2389
        %3840 = vmatmul.mubr.bf16.gmra.mrb[0].mxu0 %v2388
        %v3841 = vpop.f32.mrb[0].mxu0
        %v3842 = vadd.f32 %v3297, %v3841
        %v3843 = vpop.f32.mrb[0].mxu0
        %v3844 = vpop.f32.mrb[0].mxu0
        %v3845 = vadd.f32 %v3300, %v3844
        %v3846 = vpop.f32.mrb[0].mxu0
        %3847 = vmatprep.mubr.bf16.mxu0 %v2393
        %3848 = vmatmul.mubr.bf16.gmra.mrb[0].mxu0 %v2392
        %v3849 = vpop.f32.mrb[0].mxu0
        %v3850 = vadd.f32 %v3305, %v3849
        %v3851 = vpop.f32.mrb[0].mxu0
        %v3852 = vpop.f32.mrb[0].mxu0
        %v3853 = vadd.f32 %v3308, %v3852
        %v3854 = vpop.f32.mrb[0].mxu0
        %3855 = vmatprep.mubr.bf16.mxu0 %v2397
        %3856 = vmatmul.mubr.bf16.gmra.mrb[0].mxu0 %v2396
        %v3857 = vpop.f32.mrb[0].mxu0
        %v3858 = vadd.f32 %v3313, %v3857
        %v3859 = vpop.f32.mrb[0].mxu0
        %v3860 = vpop.f32.mrb[0].mxu0
        %v3861 = vadd.f32 %v3316, %v3860
        %v3862 = vpop.f32.mrb[0].mxu0
        %3863 = vmatprep.mubr.bf16.mxu0 %v2401
        %3864 = vmatmul.mubr.bf16.gmra.mrb[0].mxu0 %v2400
        %v3865 = vpop.f32.mrb[0].mxu0
        %v3866 = vadd.f32 %v3321, %v3865
        %v3867 = vpop.f32.mrb[0].mxu0
        %v3868 = vpop.f32.mrb[0].mxu0
        %v3869 = vadd.f32 %v3324, %v3868
        %v3870 = vpop.f32.mrb[0].mxu0
        %3871 = vmatprep.mubr.bf16.mxu0 %v2405
        %3872 = vmatmul.mubr.bf16.gmra.mrb[0].mxu0 %v2404
        %v3873 = vpop.f32.mrb[0].mxu0
        %v3874 = vadd.f32 %v3329, %v3873
        %v3875 = vpop.f32.mrb[0].mxu0
        %v3876 = vpop.f32.mrb[0].mxu0
        %v3877 = vadd.f32 %v3332, %v3876
        %v3878 = vpop.f32.mrb[0].mxu0
        %3879 = vmatprep.mubr.bf16.mxu0 %v2409
        %3880 = vmatmul.mubr.bf16.gmra.mrb[0].mxu0 %v2408
        %v3881 = vpop.f32.mrb[0].mxu0
        %v3882 = vadd.f32 %v3337, %v3881
        %v3883 = vpop.f32.mrb[0].mxu0
        %v3884 = vpop.f32.mrb[0].mxu0
        %v3885 = vadd.f32 %v3340, %v3884
        %v3886 = vpop.f32.mrb[0].mxu0
        %3887 = vmatprep.mubr.bf16.mxu0 %v2413
        %3888 = vmatmul.mubr.bf16.gmra.mrb[0].mxu0 %v2412
        %v3889 = vpop.f32.mrb[0].mxu0
        %v3890 = vadd.f32 %v3345, %v3889
        %v3891 = vpop.f32.mrb[0].mxu0
        %v3892 = vpop.f32.mrb[0].mxu0
        %v3893 = vadd.f32 %v3348, %v3892
        %v3894 = vpop.f32.mrb[0].mxu0
        %3895 = vmatprep.mubr.bf16.mxu0 %v2417
        %3896 = vmatmul.mubr.bf16.gmra.mrb[0].mxu0 %v2416
        %v3897 = vpop.f32.mrb[0].mxu0
        %v3898 = vadd.f32 %v3353, %v3897
        %v3899 = vpop.f32.mrb[0].mxu0
        %v3900 = vpop.f32.mrb[0].mxu0
        %v3901 = vadd.f32 %v3356, %v3900
        %v3902 = vpop.f32.mrb[0].mxu0
        %3903 = vmatprep.mubr.bf16.mxu0 %v2421
        %3904 = vmatmul.mubr.bf16.gmra.mrb[0].mxu0 %v2420
        %v3905 = vpop.f32.mrb[0].mxu0
        %v3906 = vadd.f32 %v3361, %v3905
        %v3907 = vpop.f32.mrb[0].mxu0
        %v3908 = vpop.f32.mrb[0].mxu0
        %v3909 = vadd.f32 %v3364, %v3908
        %v3910 = vpop.f32.mrb[0].mxu0
        %3911 = vmatprep.mubr.bf16.mxu0 %v2425
        %3912 = vmatmul.mubr.bf16.gmra.mrb[0].mxu0 %v2424
        %v3913 = vpop.f32.mrb[0].mxu0
        %v3914 = vadd.f32 %v3369, %v3913
        %v3915 = vpop.f32.mrb[0].mxu0
        %v3916 = vpop.f32.mrb[0].mxu0
        %v3917 = vadd.f32 %v3372, %v3916
        %v3918 = vpop.f32.mrb[0].mxu0
        %3919 = vmatprep.mubr.bf16.mxu0 %v2429
        %3920 = vmatmul.mubr.bf16.gmra.mrb[0].mxu0 %v2428
        %v3921 = vpop.f32.mrb[0].mxu0
        %v3922 = vadd.f32 %v3377, %v3921
        %v3923 = vpop.f32.mrb[0].mxu0
        %v3924 = vpop.f32.mrb[0].mxu0
        %v3925 = vadd.f32 %v3380, %v3924
        %v3926 = vpop.f32.mrb[0].mxu0
        %3927 = vmatprep.mubr.bf16.mxu0 %v2433
        %3928 = vmatmul.mubr.bf16.gmra.mrb[0].mxu0 %v2432
        %v3929 = vpop.f32.mrb[0].mxu0
        %v3930 = vadd.f32 %v3385, %v3929
        %v3931 = vpop.f32.mrb[0].mxu0
        %v3932 = vpop.f32.mrb[0].mxu0
        %v3933 = vadd.f32 %v3388, %v3932
        %v3934 = vpop.f32.mrb[0].mxu0
        %3935 = vmatprep.mubr.bf16.mxu0 %v2437
        %3936 = vmatmul.mubr.bf16.gmra.mrb[0].mxu0 %v2436
        %v3937 = vpop.f32.mrb[0].mxu0
        %v3938 = vadd.f32 %v3393, %v3937
        %v3939 = vpop.f32.mrb[0].mxu0
        %v3940 = vpop.f32.mrb[0].mxu0
        %v3941 = vadd.f32 %v3396, %v3940
        %v3942 = vpop.f32.mrb[0].mxu0
        %3943 = vmatprep.mubr.bf16.mxu0 %v2441
        %3944 = vmatmul.mubr.bf16.gmra.mrb[0].mxu0 %v2440
        %v3945 = vpop.f32.mrb[0].mxu0
        %v3946 = vadd.f32 %v3401, %v3945
        %v3947 = vpop.f32.mrb[0].mxu0
        %v3948 = vpop.f32.mrb[0].mxu0
        %v3949 = vadd.f32 %v3404, %v3948
        %v3950 = vpop.f32.mrb[0].mxu0
        %3951 = vmatprep.mubr.bf16.mxu0 %v2445
        %3952 = vmatmul.mubr.bf16.gmra.mrb[0].mxu0 %v2444
        %v3953 = vpop.f32.mrb[0].mxu0
        %v3954 = vadd.f32 %v3409, %v3953
        %v3955 = vpop.f32.mrb[0].mxu0
        %v3956 = vpop.f32.mrb[0].mxu0
        %v3957 = vadd.f32 %v3412, %v3956
        %v3958 = vpop.f32.mrb[0].mxu0
        %3959 = vmatprep.mubr.bf16.mxu0 %v2449
        %3960 = vmatmul.mubr.bf16.gmra.mrb[0].mxu0 %v2448
        %v3961 = vpop.f32.mrb[0].mxu0
        %v3962 = vadd.f32 %v3417, %v3961
        %v3963 = vpop.f32.mrb[0].mxu0
        %v3964 = vpop.f32.mrb[0].mxu0
        %v3965 = vadd.f32 %v3420, %v3964
        %v3966 = vpop.f32.mrb[0].mxu0
        %3967 = vmatprep.mubr.bf16.mxu0 %v2453
        %3968 = vmatmul.mubr.bf16.gmra.mrb[0].mxu0 %v2452
        %v3969 = vpop.f32.mrb[0].mxu0
        %v3970 = vadd.f32 %v3425, %v3969
        %v3971 = vpop.f32.mrb[0].mxu0
        %v3972 = vpop.f32.mrb[0].mxu0
        %v3973 = vadd.f32 %v3428, %v3972
        %v3974 = vpop.f32.mrb[0].mxu0
        %3975 = vmatprep.mubr.bf16.mxu0 %v2457
        %3976 = vmatmul.mubr.bf16.gmra.mrb[0].mxu0 %v2456
        %v3977 = vpop.f32.mrb[0].mxu0
        %v3978 = vadd.f32 %v3433, %v3977
        %v3979 = vpop.f32.mrb[0].mxu0
        %v3980 = vpop.f32.mrb[0].mxu0
        %v3981 = vadd.f32 %v3436, %v3980
        %v3982 = vpop.f32.mrb[0].mxu0
        %3983 = vmatprep.mubr.bf16.mxu0 %v2461
        %3984 = vmatmul.mubr.bf16.gmra.mrb[0].mxu0 %v2460
        %v3985 = vpop.f32.mrb[0].mxu0
        %v3986 = vadd.f32 %v3441, %v3985
        %v3987 = vpop.f32.mrb[0].mxu0
        %v3988 = vpop.f32.mrb[0].mxu0
        %v3989 = vadd.f32 %v3444, %v3988
        %v3990 = vpop.f32.mrb[0].mxu0
        %3991 = vmatprep.mubr.bf16.mxu0 %v2465
        %3992 = vmatmul.mubr.bf16.gmra.mrb[0].mxu0 %v2464
        %v3993 = vpop.f32.mrb[0].mxu0
        %v3994 = vadd.f32 %v3449, %v3993
        %v3995 = vpop.f32.mrb[0].mxu0
        %v3996 = vpop.f32.mrb[0].mxu0
        %v3997 = vadd.f32 %v3452, %v3996
        %v3998 = vpop.f32.mrb[0].mxu0
        %3999 = vmatprep.mubr.bf16.mxu0 %v2469
        %4000 = vmatmul.mubr.bf16.gmra.mrb[0].mxu0 %v2468
        %v4001 = vpop.f32.mrb[0].mxu0
        %v4002 = vadd.f32 %v3457, %v4001
        %v4003 = vpop.f32.mrb[0].mxu0
        %v4004 = vpop.f32.mrb[0].mxu0
        %v4005 = vadd.f32 %v3460, %v4004
        %v4006 = vpop.f32.mrb[0].mxu0
        %4007 = vdwg.mxu0
        %v4008 = vmax.f32 %v3498, 0.0
        %v4009 = vmax.f32 %v3501, 0.0
        %v4010 = vmax.f32 %v3506, 0.0
        %v4011 = vmax.f32 %v3509, 0.0
        %v4012 = vmax.f32 %v3514, 0.0
        %v4013 = vmax.f32 %v3517, 0.0
        %v4014 = vmax.f32 %v3522, 0.0
        %v4015 = vmax.f32 %v3525, 0.0
        %v4016 = vmax.f32 %v3530, 0.0
        %v4017 = vmax.f32 %v3533, 0.0
        %v4018 = vmax.f32 %v3538, 0.0
        %v4019 = vmax.f32 %v3541, 0.0
        %v4020 = vmax.f32 %v3546, 0.0
        %v4021 = vmax.f32 %v3549, 0.0
        %v4022 = vmax.f32 %v3554, 0.0
        %v4023 = vmax.f32 %v3557, 0.0
        %v4024 = vmax.f32 %v3562, 0.0
        %v4025 = vmax.f32 %v3565, 0.0
        %v4026 = vmax.f32 %v3570, 0.0
        %v4027 = vmax.f32 %v3573, 0.0
        %v4028 = vmax.f32 %v3578, 0.0
        %v4029 = vmax.f32 %v3581, 0.0
        %v4030 = vmax.f32 %v3586, 0.0
        %v4031 = vmax.f32 %v3589, 0.0
        %v4032 = vmax.f32 %v3594, 0.0
        %v4033 = vmax.f32 %v3597, 0.0
        %v4034 = vmax.f32 %v3602, 0.0
        %v4035 = vmax.f32 %v3605, 0.0
        %v4036 = vmax.f32 %v3610, 0.0
        %v4037 = vmax.f32 %v3613, 0.0
        %v4038 = vmax.f32 %v3618, 0.0
        %v4039 = vmax.f32 %v3621, 0.0
        %v4040 = vmax.f32 %v3626, 0.0
        %v4041 = vmax.f32 %v3629, 0.0
        %v4042 = vmax.f32 %v3634, 0.0
        %v4043 = vmax.f32 %v3637, 0.0
        %v4044 = vmax.f32 %v3642, 0.0
        %v4045 = vmax.f32 %v3645, 0.0
        %v4046 = vmax.f32 %v3650, 0.0
        %v4047 = vmax.f32 %v3653, 0.0
        %v4048 = vmax.f32 %v3658, 0.0
        %v4049 = vmax.f32 %v3661, 0.0
        %v4050 = vmax.f32 %v3666, 0.0
        %v4051 = vmax.f32 %v3669, 0.0
        %v4052 = vmax.f32 %v3674, 0.0
        %v4053 = vmax.f32 %v3677, 0.0
        %v4054 = vmax.f32 %v3682, 0.0
        %v4055 = vmax.f32 %v3685, 0.0
        %v4056 = vmax.f32 %v3690, 0.0
        %v4057 = vmax.f32 %v3693, 0.0
        %v4058 = vmax.f32 %v3698, 0.0
        %v4059 = vmax.f32 %v3701, 0.0
        %v4060 = vmax.f32 %v3706, 0.0
        %v4061 = vmax.f32 %v3709, 0.0
        %v4062 = vmax.f32 %v3714, 0.0
        %v4063 = vmax.f32 %v3717, 0.0
        %v4064 = vmax.f32 %v3722, 0.0
        %v4065 = vmax.f32 %v3725, 0.0
        %v4066 = vmax.f32 %v3730, 0.0
        %v4067 = vmax.f32 %v3733, 0.0
        %v4068 = vmax.f32 %v3738, 0.0
        %v4069 = vmax.f32 %v3741, 0.0
        %v4070 = vmax.f32 %v3746, 0.0
        %v4071 = vmax.f32 %v3749, 0.0
        %v4072 = vmax.f32 %v3754, 0.0
        %v4073 = vmax.f32 %v3757, 0.0
        %v4074 = vmax.f32 %v3762, 0.0
        %v4075 = vmax.f32 %v3765, 0.0
        %v4076 = vmax.f32 %v3770, 0.0
        %v4077 = vmax.f32 %v3773, 0.0
        %v4078 = vmax.f32 %v3778, 0.0
        %v4079 = vmax.f32 %v3781, 0.0
        %v4080 = vmax.f32 %v3786, 0.0
        %v4081 = vmax.f32 %v3789, 0.0
        %v4082 = vmax.f32 %v3794, 0.0
        %v4083 = vmax.f32 %v3797, 0.0
        %v4084 = vmax.f32 %v3802, 0.0
        %v4085 = vmax.f32 %v3805, 0.0
        %v4086 = vmax.f32 %v3810, 0.0
        %v4087 = vmax.f32 %v3813, 0.0
        %v4088 = vmax.f32 %v3818, 0.0
        %v4089 = vmax.f32 %v3821, 0.0
        %v4090 = vmax.f32 %v3826, 0.0
        %v4091 = vmax.f32 %v3829, 0.0
        %v4092 = vmax.f32 %v3834, 0.0
        %v4093 = vmax.f32 %v3837, 0.0
        %v4094 = vmax.f32 %v3842, 0.0
        %v4095 = vmax.f32 %v3845, 0.0
        %v4096 = vmax.f32 %v3850, 0.0
        %v4097 = vmax.f32 %v3853, 0.0
        %v4098 = vmax.f32 %v3858, 0.0
        %v4099 = vmax.f32 %v3861, 0.0
        %v4100 = vmax.f32 %v3866, 0.0
        %v4101 = vmax.f32 %v3869, 0.0
        %v4102 = vmax.f32 %v3874, 0.0
        %v4103 = vmax.f32 %v3877, 0.0
        %v4104 = vmax.f32 %v3882, 0.0
        %v4105 = vmax.f32 %v3885, 0.0
        %v4106 = vmax.f32 %v3890, 0.0
        %v4107 = vmax.f32 %v3893, 0.0
        %v4108 = vmax.f32 %v3898, 0.0
        %v4109 = vmax.f32 %v3901, 0.0
        %v4110 = vmax.f32 %v3906, 0.0
        %v4111 = vmax.f32 %v3909, 0.0
        %v4112 = vmax.f32 %v3914, 0.0
        %v4113 = vmax.f32 %v3917, 0.0
        %v4114 = vmax.f32 %v3922, 0.0
        %v4115 = vmax.f32 %v3925, 0.0
        %v4116 = vmax.f32 %v3930, 0.0
        %v4117 = vmax.f32 %v3933, 0.0
        %v4118 = vmax.f32 %v3938, 0.0
        %v4119 = vmax.f32 %v3941, 0.0
        %v4120 = vmax.f32 %v3946, 0.0
        %v4121 = vmax.f32 %v3949, 0.0
        %v4122 = vmax.f32 %v3954, 0.0
        %v4123 = vmax.f32 %v3957, 0.0
        %v4124 = vmax.f32 %v3962, 0.0
        %v4125 = vmax.f32 %v3965, 0.0
        %v4126 = vmax.f32 %v3970, 0.0
        %v4127 = vmax.f32 %v3973, 0.0
        %v4128 = vmax.f32 %v3978, 0.0
        %v4129 = vmax.f32 %v3981, 0.0
        %v4130 = vmax.f32 %v3986, 0.0
        %v4131 = vmax.f32 %v3989, 0.0
        %v4132 = vmax.f32 %v3994, 0.0
        %v4133 = vmax.f32 %v3997, 0.0
        %v4134 = vmax.f32 %v4002, 0.0
        %v4135 = vmax.f32 %v4005, 0.0
        %v4136 = vld [vmem:[%s3] sm:$0xff]
        %v4137 = vld [vmem:[%s3 + $0x8] sm:$0xff]
        %v4138 = vld [vmem:[%s3 + $0x10] sm:$0xff]
        %v4139 = vld [vmem:[%s3 + $0x18] sm:$0xff]
        %v4140 = vld [vmem:[%s3 + $0x20] sm:$0xff]
        %v4141 = vld [vmem:[%s3 + $0x28] sm:$0xff]
        %v4142 = vld [vmem:[%s3 + $0x30] sm:$0xff]
        %v4143 = vld [vmem:[%s3 + $0x38] sm:$0xff]
        %v4144 = vld [vmem:[%s3 + $0x40] sm:$0xff]
        %v4145 = vld [vmem:[%s3 + $0x48] sm:$0xff]
        %v4146 = vld [vmem:[%s3 + $0x50] sm:$0xff]
        %v4147 = vld [vmem:[%s3 + $0x58] sm:$0xff]
        %v4148 = vld [vmem:[%s3 + $0x60] sm:$0xff]
        %v4149 = vld [vmem:[%s3 + $0x68] sm:$0xff]
        %v4150 = vld [vmem:[%s3 + $0x70] sm:$0xff]
        %v4151 = vld [vmem:[%s3 + $0x78] sm:$0xff]
        %v4152 = vld [vmem:[%s3 + $0x80] sm:$0xff]
        %v4153 = vld [vmem:[%s3 + $0x88] sm:$0xff]
        %v4154 = vld [vmem:[%s3 + $0x90] sm:$0xff]
        %v4155 = vld [vmem:[%s3 + $0x98] sm:$0xff]
        %v4156 = vld [vmem:[%s3 + $0xa0] sm:$0xff]
        %v4157 = vld [vmem:[%s3 + $0xa8] sm:$0xff]
        %v4158 = vld [vmem:[%s3 + $0xb0] sm:$0xff]
        %v4159 = vld [vmem:[%s3 + $0xb8] sm:$0xff]
        %v4160 = vld [vmem:[%s3 + $0xc0] sm:$0xff]
        %v4161 = vld [vmem:[%s3 + $0xc8] sm:$0xff]
        %v4162 = vld [vmem:[%s3 + $0xd0] sm:$0xff]
        %v4163 = vld [vmem:[%s3 + $0xd8] sm:$0xff]
        %v4164 = vld [vmem:[%s3 + $0xe0] sm:$0xff]
        %v4165 = vld [vmem:[%s3 + $0xe8] sm:$0xff]
        %v4166 = vld [vmem:[%s3 + $0xf0] sm:$0xff]
        %v4167 = vld [vmem:[%s3 + $0xf8] sm:$0xff]
        %v4168 = vld [vmem:[%s3 + $0x100] sm:$0xff]
        %v4169 = vld [vmem:[%s3 + $0x108] sm:$0xff]
        %v4170 = vld [vmem:[%s3 + $0x110] sm:$0xff]
        %v4171 = vld [vmem:[%s3 + $0x118] sm:$0xff]
        %v4172 = vld [vmem:[%s3 + $0x120] sm:$0xff]
        %v4173 = vld [vmem:[%s3 + $0x128] sm:$0xff]
        %v4174 = vld [vmem:[%s3 + $0x130] sm:$0xff]
        %v4175 = vld [vmem:[%s3 + $0x138] sm:$0xff]
        %v4176 = vld [vmem:[%s3 + $0x140] sm:$0xff]
        %v4177 = vld [vmem:[%s3 + $0x148] sm:$0xff]
        %v4178 = vld [vmem:[%s3 + $0x150] sm:$0xff]
        %v4179 = vld [vmem:[%s3 + $0x158] sm:$0xff]
        %v4180 = vld [vmem:[%s3 + $0x160] sm:$0xff]
        %v4181 = vld [vmem:[%s3 + $0x168] sm:$0xff]
        %v4182 = vld [vmem:[%s3 + $0x170] sm:$0xff]
        %v4183 = vld [vmem:[%s3 + $0x178] sm:$0xff]
        %v4184 = vld [vmem:[%s3 + $0x180] sm:$0xff]
        %v4185 = vld [vmem:[%s3 + $0x188] sm:$0xff]
        %v4186 = vld [vmem:[%s3 + $0x190] sm:$0xff]
        %v4187 = vld [vmem:[%s3 + $0x198] sm:$0xff]
        %v4188 = vld [vmem:[%s3 + $0x1a0] sm:$0xff]
        %v4189 = vld [vmem:[%s3 + $0x1a8] sm:$0xff]
        %v4190 = vld [vmem:[%s3 + $0x1b0] sm:$0xff]
        %v4191 = vld [vmem:[%s3 + $0x1b8] sm:$0xff]
        %v4192 = vld [vmem:[%s3 + $0x1c0] sm:$0xff]
        %v4193 = vld [vmem:[%s3 + $0x1c8] sm:$0xff]
        %v4194 = vld [vmem:[%s3 + $0x1d0] sm:$0xff]
        %v4195 = vld [vmem:[%s3 + $0x1d8] sm:$0xff]
        %v4196 = vld [vmem:[%s3 + $0x1e0] sm:$0xff]
        %v4197 = vld [vmem:[%s3 + $0x1e8] sm:$0xff]
        %v4198 = vld [vmem:[%s3 + $0x1f0] sm:$0xff]
        %v4199 = vld [vmem:[%s3 + $0x1f8] sm:$0xff]
        %v4200 = vld [vmem:[%s3 + $0x200] sm:$0xff]
        %v4201 = vld [vmem:[%s3 + $0x208] sm:$0xff]
        %v4202 = vld [vmem:[%s3 + $0x210] sm:$0xff]
        %v4203 = vld [vmem:[%s3 + $0x218] sm:$0xff]
        %v4204 = vld [vmem:[%s3 + $0x220] sm:$0xff]
        %v4205 = vld [vmem:[%s3 + $0x228] sm:$0xff]
        %v4206 = vld [vmem:[%s3 + $0x230] sm:$0xff]
        %v4207 = vld [vmem:[%s3 + $0x238] sm:$0xff]
        %v4208 = vld [vmem:[%s3 + $0x240] sm:$0xff]
        %v4209 = vld [vmem:[%s3 + $0x248] sm:$0xff]
        %v4210 = vld [vmem:[%s3 + $0x250] sm:$0xff]
        %v4211 = vld [vmem:[%s3 + $0x258] sm:$0xff]
        %v4212 = vld [vmem:[%s3 + $0x260] sm:$0xff]
        %v4213 = vld [vmem:[%s3 + $0x268] sm:$0xff]
        %v4214 = vld [vmem:[%s3 + $0x270] sm:$0xff]
        %v4215 = vld [vmem:[%s3 + $0x278] sm:$0xff]
        %v4216 = vld [vmem:[%s3 + $0x280] sm:$0xff]
        %v4217 = vld [vmem:[%s3 + $0x288] sm:$0xff]
        %v4218 = vld [vmem:[%s3 + $0x290] sm:$0xff]
        %v4219 = vld [vmem:[%s3 + $0x298] sm:$0xff]
        %v4220 = vld [vmem:[%s3 + $0x2a0] sm:$0xff]
        %v4221 = vld [vmem:[%s3 + $0x2a8] sm:$0xff]
        %v4222 = vld [vmem:[%s3 + $0x2b0] sm:$0xff]
        %v4223 = vld [vmem:[%s3 + $0x2b8] sm:$0xff]
        %v4224 = vld [vmem:[%s3 + $0x2c0] sm:$0xff]
        %v4225 = vld [vmem:[%s3 + $0x2c8] sm:$0xff]
        %v4226 = vld [vmem:[%s3 + $0x2d0] sm:$0xff]
        %v4227 = vld [vmem:[%s3 + $0x2d8] sm:$0xff]
        %v4228 = vld [vmem:[%s3 + $0x2e0] sm:$0xff]
        %v4229 = vld [vmem:[%s3 + $0x2e8] sm:$0xff]
        %v4230 = vld [vmem:[%s3 + $0x2f0] sm:$0xff]
        %v4231 = vld [vmem:[%s3 + $0x2f8] sm:$0xff]
        %v4232 = vld [vmem:[%s3 + $0x300] sm:$0xff]
        %v4233 = vld [vmem:[%s3 + $0x308] sm:$0xff]
        %v4234 = vld [vmem:[%s3 + $0x310] sm:$0xff]
        %v4235 = vld [vmem:[%s3 + $0x318] sm:$0xff]
        %v4236 = vld [vmem:[%s3 + $0x320] sm:$0xff]
        %v4237 = vld [vmem:[%s3 + $0x328] sm:$0xff]
        %v4238 = vld [vmem:[%s3 + $0x330] sm:$0xff]
        %v4239 = vld [vmem:[%s3 + $0x338] sm:$0xff]
        %v4240 = vld [vmem:[%s3 + $0x340] sm:$0xff]
        %v4241 = vld [vmem:[%s3 + $0x348] sm:$0xff]
        %v4242 = vld [vmem:[%s3 + $0x350] sm:$0xff]
        %v4243 = vld [vmem:[%s3 + $0x358] sm:$0xff]
        %v4244 = vld [vmem:[%s3 + $0x360] sm:$0xff]
        %v4245 = vld [vmem:[%s3 + $0x368] sm:$0xff]
        %v4246 = vld [vmem:[%s3 + $0x370] sm:$0xff]
        %v4247 = vld [vmem:[%s3 + $0x378] sm:$0xff]
        %v4248 = vld [vmem:[%s3 + $0x380] sm:$0xff]
        %v4249 = vld [vmem:[%s3 + $0x388] sm:$0xff]
        %v4250 = vld [vmem:[%s3 + $0x390] sm:$0xff]
        %v4251 = vld [vmem:[%s3 + $0x398] sm:$0xff]
        %v4252 = vld [vmem:[%s3 + $0x3a0] sm:$0xff]
        %v4253 = vld [vmem:[%s3 + $0x3a8] sm:$0xff]
        %v4254 = vld [vmem:[%s3 + $0x3b0] sm:$0xff]
        %v4255 = vld [vmem:[%s3 + $0x3b8] sm:$0xff]
        %v4256 = vld [vmem:[%s3 + $0x3c0] sm:$0xff]
        %v4257 = vld [vmem:[%s3 + $0x3c8] sm:$0xff]
        %v4258 = vld [vmem:[%s3 + $0x3d0] sm:$0xff]
        %v4259 = vld [vmem:[%s3 + $0x3d8] sm:$0xff]
        %v4260 = vld [vmem:[%s3 + $0x3e0] sm:$0xff]
        %v4261 = vld [vmem:[%s3 + $0x3e8] sm:$0xff]
        %v4262 = vld [vmem:[%s3 + $0x3f0] sm:$0xff]
        %v4263 = vld [vmem:[%s3 + $0x3f8] sm:$0xff]
        %v4264 = vld [vmem:[%s3 + $0x400] sm:$0xff]
        %v4265 = vld [vmem:[%s3 + $0x408] sm:$0xff]
        %v4266 = vld [vmem:[%s3 + $0x410] sm:$0xff]
        %v4267 = vld [vmem:[%s3 + $0x418] sm:$0xff]
        %v4268 = vld [vmem:[%s3 + $0x420] sm:$0xff]
        %v4269 = vld [vmem:[%s3 + $0x428] sm:$0xff]
        %v4270 = vld [vmem:[%s3 + $0x430] sm:$0xff]
        %v4271 = vld [vmem:[%s3 + $0x438] sm:$0xff]
        %v4272 = vld [vmem:[%s3 + $0x440] sm:$0xff]
        %v4273 = vld [vmem:[%s3 + $0x448] sm:$0xff]
        %v4274 = vld [vmem:[%s3 + $0x450] sm:$0xff]
        %v4275 = vld [vmem:[%s3 + $0x458] sm:$0xff]
        %v4276 = vld [vmem:[%s3 + $0x460] sm:$0xff]
        %v4277 = vld [vmem:[%s3 + $0x468] sm:$0xff]
        %v4278 = vld [vmem:[%s3 + $0x470] sm:$0xff]
        %v4279 = vld [vmem:[%s3 + $0x478] sm:$0xff]
        %v4280 = vld [vmem:[%s3 + $0x480] sm:$0xff]
        %v4281 = vld [vmem:[%s3 + $0x488] sm:$0xff]
        %v4282 = vld [vmem:[%s3 + $0x490] sm:$0xff]
        %v4283 = vld [vmem:[%s3 + $0x498] sm:$0xff]
        %v4284 = vld [vmem:[%s3 + $0x4a0] sm:$0xff]
        %v4285 = vld [vmem:[%s3 + $0x4a8] sm:$0xff]
        %v4286 = vld [vmem:[%s3 + $0x4b0] sm:$0xff]
        %v4287 = vld [vmem:[%s3 + $0x4b8] sm:$0xff]
        %v4288 = vld [vmem:[%s3 + $0x4c0] sm:$0xff]
        %v4289 = vld [vmem:[%s3 + $0x4c8] sm:$0xff]
        %v4290 = vld [vmem:[%s3 + $0x4d0] sm:$0xff]
        %v4291 = vld [vmem:[%s3 + $0x4d8] sm:$0xff]
        %v4292 = vld [vmem:[%s3 + $0x4e0] sm:$0xff]
        %v4293 = vld [vmem:[%s3 + $0x4e8] sm:$0xff]
        %v4294 = vld [vmem:[%s3 + $0x4f0] sm:$0xff]
        %v4295 = vld [vmem:[%s3 + $0x4f8] sm:$0xff]
        %v4296 = vld [vmem:[%s3 + $0x500] sm:$0xff]
        %v4297 = vld [vmem:[%s3 + $0x508] sm:$0xff]
        %v4298 = vld [vmem:[%s3 + $0x510] sm:$0xff]
        %v4299 = vld [vmem:[%s3 + $0x518] sm:$0xff]
        %v4300 = vld [vmem:[%s3 + $0x520] sm:$0xff]
        %v4301 = vld [vmem:[%s3 + $0x528] sm:$0xff]
        %v4302 = vld [vmem:[%s3 + $0x530] sm:$0xff]
        %v4303 = vld [vmem:[%s3 + $0x538] sm:$0xff]
        %v4304 = vld [vmem:[%s3 + $0x540] sm:$0xff]
        %v4305 = vld [vmem:[%s3 + $0x548] sm:$0xff]
        %v4306 = vld [vmem:[%s3 + $0x550] sm:$0xff]
        %v4307 = vld [vmem:[%s3 + $0x558] sm:$0xff]
        %v4308 = vld [vmem:[%s3 + $0x560] sm:$0xff]
        %v4309 = vld [vmem:[%s3 + $0x568] sm:$0xff]
        %v4310 = vld [vmem:[%s3 + $0x570] sm:$0xff]
        %v4311 = vld [vmem:[%s3 + $0x578] sm:$0xff]
        %v4312 = vld [vmem:[%s3 + $0x580] sm:$0xff]
        %v4313 = vld [vmem:[%s3 + $0x588] sm:$0xff]
        %v4314 = vld [vmem:[%s3 + $0x590] sm:$0xff]
        %v4315 = vld [vmem:[%s3 + $0x598] sm:$0xff]
        %v4316 = vld [vmem:[%s3 + $0x5a0] sm:$0xff]
        %v4317 = vld [vmem:[%s3 + $0x5a8] sm:$0xff]
        %v4318 = vld [vmem:[%s3 + $0x5b0] sm:$0xff]
        %v4319 = vld [vmem:[%s3 + $0x5b8] sm:$0xff]
        %v4320 = vld [vmem:[%s3 + $0x5c0] sm:$0xff]
        %v4321 = vld [vmem:[%s3 + $0x5c8] sm:$0xff]
        %v4322 = vld [vmem:[%s3 + $0x5d0] sm:$0xff]
        %v4323 = vld [vmem:[%s3 + $0x5d8] sm:$0xff]
        %v4324 = vld [vmem:[%s3 + $0x5e0] sm:$0xff]
        %v4325 = vld [vmem:[%s3 + $0x5e8] sm:$0xff]
        %v4326 = vld [vmem:[%s3 + $0x5f0] sm:$0xff]
        %v4327 = vld [vmem:[%s3 + $0x5f8] sm:$0xff]
        %v4328 = vld [vmem:[%s3 + $0x600] sm:$0xff]
        %v4329 = vld [vmem:[%s3 + $0x608] sm:$0xff]
        %v4330 = vld [vmem:[%s3 + $0x610] sm:$0xff]
        %v4331 = vld [vmem:[%s3 + $0x618] sm:$0xff]
        %v4332 = vld [vmem:[%s3 + $0x620] sm:$0xff]
        %v4333 = vld [vmem:[%s3 + $0x628] sm:$0xff]
        %v4334 = vld [vmem:[%s3 + $0x630] sm:$0xff]
        %v4335 = vld [vmem:[%s3 + $0x638] sm:$0xff]
        %v4336 = vld [vmem:[%s3 + $0x640] sm:$0xff]
        %v4337 = vld [vmem:[%s3 + $0x648] sm:$0xff]
        %v4338 = vld [vmem:[%s3 + $0x650] sm:$0xff]
        %v4339 = vld [vmem:[%s3 + $0x658] sm:$0xff]
        %v4340 = vld [vmem:[%s3 + $0x660] sm:$0xff]
        %v4341 = vld [vmem:[%s3 + $0x668] sm:$0xff]
        %v4342 = vld [vmem:[%s3 + $0x670] sm:$0xff]
        %v4343 = vld [vmem:[%s3 + $0x678] sm:$0xff]
        %v4344 = vld [vmem:[%s3 + $0x680] sm:$0xff]
        %v4345 = vld [vmem:[%s3 + $0x688] sm:$0xff]
        %v4346 = vld [vmem:[%s3 + $0x690] sm:$0xff]
        %v4347 = vld [vmem:[%s3 + $0x698] sm:$0xff]
        %v4348 = vld [vmem:[%s3 + $0x6a0] sm:$0xff]
        %v4349 = vld [vmem:[%s3 + $0x6a8] sm:$0xff]
        %v4350 = vld [vmem:[%s3 + $0x6b0] sm:$0xff]
        %v4351 = vld [vmem:[%s3 + $0x6b8] sm:$0xff]
        %v4352 = vld [vmem:[%s3 + $0x6c0] sm:$0xff]
        %v4353 = vld [vmem:[%s3 + $0x6c8] sm:$0xff]
        %v4354 = vld [vmem:[%s3 + $0x6d0] sm:$0xff]
        %v4355 = vld [vmem:[%s3 + $0x6d8] sm:$0xff]
        %v4356 = vld [vmem:[%s3 + $0x6e0] sm:$0xff]
        %v4357 = vld [vmem:[%s3 + $0x6e8] sm:$0xff]
        %v4358 = vld [vmem:[%s3 + $0x6f0] sm:$0xff]
        %v4359 = vld [vmem:[%s3 + $0x6f8] sm:$0xff]
        %v4360 = vld [vmem:[%s3 + $0x700] sm:$0xff]
        %v4361 = vld [vmem:[%s3 + $0x708] sm:$0xff]
        %v4362 = vld [vmem:[%s3 + $0x710] sm:$0xff]
        %v4363 = vld [vmem:[%s3 + $0x718] sm:$0xff]
        %v4364 = vld [vmem:[%s3 + $0x720] sm:$0xff]
        %v4365 = vld [vmem:[%s3 + $0x728] sm:$0xff]
        %v4366 = vld [vmem:[%s3 + $0x730] sm:$0xff]
        %v4367 = vld [vmem:[%s3 + $0x738] sm:$0xff]
        %v4368 = vld [vmem:[%s3 + $0x740] sm:$0xff]
        %v4369 = vld [vmem:[%s3 + $0x748] sm:$0xff]
        %v4370 = vld [vmem:[%s3 + $0x750] sm:$0xff]
        %v4371 = vld [vmem:[%s3 + $0x758] sm:$0xff]
        %v4372 = vld [vmem:[%s3 + $0x760] sm:$0xff]
        %v4373 = vld [vmem:[%s3 + $0x768] sm:$0xff]
        %v4374 = vld [vmem:[%s3 + $0x770] sm:$0xff]
        %v4375 = vld [vmem:[%s3 + $0x778] sm:$0xff]
        %v4376 = vld [vmem:[%s3 + $0x780] sm:$0xff]
        %v4377 = vld [vmem:[%s3 + $0x788] sm:$0xff]
        %v4378 = vld [vmem:[%s3 + $0x790] sm:$0xff]
        %v4379 = vld [vmem:[%s3 + $0x798] sm:$0xff]
        %v4380 = vld [vmem:[%s3 + $0x7a0] sm:$0xff]
        %v4381 = vld [vmem:[%s3 + $0x7a8] sm:$0xff]
        %v4382 = vld [vmem:[%s3 + $0x7b0] sm:$0xff]
        %v4383 = vld [vmem:[%s3 + $0x7b8] sm:$0xff]
        %v4384 = vld [vmem:[%s3 + $0x7c0] sm:$0xff]
        %v4385 = vld [vmem:[%s3 + $0x7c8] sm:$0xff]
        %v4386 = vld [vmem:[%s3 + $0x7d0] sm:$0xff]
        %v4387 = vld [vmem:[%s3 + $0x7d8] sm:$0xff]
        %v4388 = vld [vmem:[%s3 + $0x7e0] sm:$0xff]
        %v4389 = vld [vmem:[%s3 + $0x7e8] sm:$0xff]
        %v4390 = vld [vmem:[%s3 + $0x7f0] sm:$0xff]
        %v4391 = vld [vmem:[%s3 + $0x7f8] sm:$0xff]
        %v4392 = vld [vmem:[%s3 + $0x800] sm:$0xff]
        %v4393 = vld [vmem:[%s3 + $0x808] sm:$0xff]
        %v4394 = vld [vmem:[%s3 + $0x810] sm:$0xff]
        %v4395 = vld [vmem:[%s3 + $0x818] sm:$0xff]
        %v4396 = vld [vmem:[%s3 + $0x820] sm:$0xff]
        %v4397 = vld [vmem:[%s3 + $0x828] sm:$0xff]
        %v4398 = vld [vmem:[%s3 + $0x830] sm:$0xff]
        %v4399 = vld [vmem:[%s3 + $0x838] sm:$0xff]
        %v4400 = vld [vmem:[%s3 + $0x840] sm:$0xff]
        %v4401 = vld [vmem:[%s3 + $0x848] sm:$0xff]
        %v4402 = vld [vmem:[%s3 + $0x850] sm:$0xff]
        %v4403 = vld [vmem:[%s3 + $0x858] sm:$0xff]
        %v4404 = vld [vmem:[%s3 + $0x860] sm:$0xff]
        %v4405 = vld [vmem:[%s3 + $0x868] sm:$0xff]
        %v4406 = vld [vmem:[%s3 + $0x870] sm:$0xff]
        %v4407 = vld [vmem:[%s3 + $0x878] sm:$0xff]
        %v4408 = vld [vmem:[%s3 + $0x880] sm:$0xff]
        %v4409 = vld [vmem:[%s3 + $0x888] sm:$0xff]
        %v4410 = vld [vmem:[%s3 + $0x890] sm:$0xff]
        %v4411 = vld [vmem:[%s3 + $0x898] sm:$0xff]
        %v4412 = vld [vmem:[%s3 + $0x8a0] sm:$0xff]
        %v4413 = vld [vmem:[%s3 + $0x8a8] sm:$0xff]
        %v4414 = vld [vmem:[%s3 + $0x8b0] sm:$0xff]
        %v4415 = vld [vmem:[%s3 + $0x8b8] sm:$0xff]
        %v4416 = vld [vmem:[%s3 + $0x8c0] sm:$0xff]
        %v4417 = vld [vmem:[%s3 + $0x8c8] sm:$0xff]
        %v4418 = vld [vmem:[%s3 + $0x8d0] sm:$0xff]
        %v4419 = vld [vmem:[%s3 + $0x8d8] sm:$0xff]
        %v4420 = vld [vmem:[%s3 + $0x8e0] sm:$0xff]
        %v4421 = vld [vmem:[%s3 + $0x8e8] sm:$0xff]
        %v4422 = vld [vmem:[%s3 + $0x8f0] sm:$0xff]
        %v4423 = vld [vmem:[%s3 + $0x8f8] sm:$0xff]
        %v4424 = vld [vmem:[%s3 + $0x900] sm:$0xff]
        %v4425 = vld [vmem:[%s3 + $0x908] sm:$0xff]
        %v4426 = vld [vmem:[%s3 + $0x910] sm:$0xff]
        %v4427 = vld [vmem:[%s3 + $0x918] sm:$0xff]
        %v4428 = vld [vmem:[%s3 + $0x920] sm:$0xff]
        %v4429 = vld [vmem:[%s3 + $0x928] sm:$0xff]
        %v4430 = vld [vmem:[%s3 + $0x930] sm:$0xff]
        %v4431 = vld [vmem:[%s3 + $0x938] sm:$0xff]
        %v4432 = vld [vmem:[%s3 + $0x940] sm:$0xff]
        %v4433 = vld [vmem:[%s3 + $0x948] sm:$0xff]
        %v4434 = vld [vmem:[%s3 + $0x950] sm:$0xff]
        %v4435 = vld [vmem:[%s3 + $0x958] sm:$0xff]
        %v4436 = vld [vmem:[%s3 + $0x960] sm:$0xff]
        %v4437 = vld [vmem:[%s3 + $0x968] sm:$0xff]
        %v4438 = vld [vmem:[%s3 + $0x970] sm:$0xff]
        %v4439 = vld [vmem:[%s3 + $0x978] sm:$0xff]
        %v4440 = vld [vmem:[%s3 + $0x980] sm:$0xff]
        %v4441 = vld [vmem:[%s3 + $0x988] sm:$0xff]
        %v4442 = vld [vmem:[%s3 + $0x990] sm:$0xff]
        %v4443 = vld [vmem:[%s3 + $0x998] sm:$0xff]
        %v4444 = vld [vmem:[%s3 + $0x9a0] sm:$0xff]
        %v4445 = vld [vmem:[%s3 + $0x9a8] sm:$0xff]
        %v4446 = vld [vmem:[%s3 + $0x9b0] sm:$0xff]
        %v4447 = vld [vmem:[%s3 + $0x9b8] sm:$0xff]
        %v4448 = vld [vmem:[%s3 + $0x9c0] sm:$0xff]
        %v4449 = vld [vmem:[%s3 + $0x9c8] sm:$0xff]
        %v4450 = vld [vmem:[%s3 + $0x9d0] sm:$0xff]
        %v4451 = vld [vmem:[%s3 + $0x9d8] sm:$0xff]
        %v4452 = vld [vmem:[%s3 + $0x9e0] sm:$0xff]
        %v4453 = vld [vmem:[%s3 + $0x9e8] sm:$0xff]
        %v4454 = vld [vmem:[%s3 + $0x9f0] sm:$0xff]
        %v4455 = vld [vmem:[%s3 + $0x9f8] sm:$0xff]
        %v4456 = vpack.c.bf16 %v4009, %v4008
        %v4457 = vpack.c.bf16 %v4011, %v4010
        %v4458 = vpack.c.bf16 %v4013, %v4012
        %v4459 = vpack.c.bf16 %v4015, %v4014
        %v4460 = vpack.c.bf16 %v4017, %v4016
        %v4461 = vpack.c.bf16 %v4019, %v4018
        %v4462 = vpack.c.bf16 %v4021, %v4020
        %v4463 = vpack.c.bf16 %v4023, %v4022
        %v4464 = vpack.c.bf16 %v4025, %v4024
        %v4465 = vpack.c.bf16 %v4027, %v4026
        %v4466 = vpack.c.bf16 %v4029, %v4028
        %v4467 = vpack.c.bf16 %v4031, %v4030
        %v4468 = vpack.c.bf16 %v4033, %v4032
        %v4469 = vpack.c.bf16 %v4035, %v4034
        %v4470 = vpack.c.bf16 %v4037, %v4036
        %v4471 = vpack.c.bf16 %v4039, %v4038
        %v4472 = vpack.c.bf16 %v4041, %v4040
        %v4473 = vpack.c.bf16 %v4043, %v4042
        %v4474 = vpack.c.bf16 %v4045, %v4044
        %v4475 = vpack.c.bf16 %v4047, %v4046
        %v4476 = vpack.c.bf16 %v4049, %v4048
        %v4477 = vpack.c.bf16 %v4051, %v4050
        %v4478 = vpack.c.bf16 %v4053, %v4052
        %v4479 = vpack.c.bf16 %v4055, %v4054
        %v4480 = vpack.c.bf16 %v4057, %v4056
        %v4481 = vpack.c.bf16 %v4059, %v4058
        %v4482 = vpack.c.bf16 %v4061, %v4060
        %v4483 = vpack.c.bf16 %v4063, %v4062
        %v4484 = vpack.c.bf16 %v4065, %v4064
        %v4485 = vpack.c.bf16 %v4067, %v4066
        %v4486 = vpack.c.bf16 %v4069, %v4068
        %v4487 = vpack.c.bf16 %v4071, %v4070
        %v4488 = vpack.c.bf16 %v4073, %v4072
        %v4489 = vpack.c.bf16 %v4075, %v4074
        %v4490 = vpack.c.bf16 %v4077, %v4076
        %v4491 = vpack.c.bf16 %v4079, %v4078
        %v4492 = vpack.c.bf16 %v4081, %v4080
        %v4493 = vpack.c.bf16 %v4083, %v4082
        %v4494 = vpack.c.bf16 %v4085, %v4084
        %v4495 = vpack.c.bf16 %v4087, %v4086
        %v4496 = vpack.c.bf16 %v4089, %v4088
        %v4497 = vpack.c.bf16 %v4091, %v4090
        %v4498 = vpack.c.bf16 %v4093, %v4092
        %v4499 = vpack.c.bf16 %v4095, %v4094
        %v4500 = vpack.c.bf16 %v4097, %v4096
        %v4501 = vpack.c.bf16 %v4099, %v4098
        %v4502 = vpack.c.bf16 %v4101, %v4100
        %v4503 = vpack.c.bf16 %v4103, %v4102
        %v4504 = vpack.c.bf16 %v4105, %v4104
        %v4505 = vpack.c.bf16 %v4107, %v4106
        %v4506 = vpack.c.bf16 %v4109, %v4108
        %v4507 = vpack.c.bf16 %v4111, %v4110
        %v4508 = vpack.c.bf16 %v4113, %v4112
        %v4509 = vpack.c.bf16 %v4115, %v4114
        %v4510 = vpack.c.bf16 %v4117, %v4116
        %v4511 = vpack.c.bf16 %v4119, %v4118
        %v4512 = vpack.c.bf16 %v4121, %v4120
        %v4513 = vpack.c.bf16 %v4123, %v4122
        %v4514 = vpack.c.bf16 %v4125, %v4124
        %v4515 = vpack.c.bf16 %v4127, %v4126
        %v4516 = vpack.c.bf16 %v4129, %v4128
        %v4517 = vpack.c.bf16 %v4131, %v4130
        %v4518 = vpack.c.bf16 %v4133, %v4132
        %v4519 = vpack.c.bf16 %v4135, %v4134
        %v4520 = vld [vmem:[%s4] sm:$0xff]
        %v4521 = vld [vmem:[%s4 + $0x8] sm:$0xff]
        %v4522 = vld [vmem:[%s4 + $0x10] sm:$0xff]
        %v4523 = vld [vmem:[%s4 + $0x18] sm:$0xff]
        %v4524 = vld [vmem:[%s4 + $0x20] sm:$0xff]
        %v4525 = vld [vmem:[%s4 + $0x28] sm:$0xff]
        %v4526 = vld [vmem:[%s4 + $0x30] sm:$0xff]
        %v4527 = vld [vmem:[%s4 + $0x38] sm:$0xff]
        %v4528 = vld [vmem:[%s4 + $0x40] sm:$0xff]
        %v4529 = vld [vmem:[%s4 + $0x48] sm:$0xff]
        %v4530 = vld [vmem:[%s4 + $0x50] sm:$0xff]
        %v4531 = vld [vmem:[%s4 + $0x58] sm:$0xff]
        %v4532 = vld [vmem:[%s4 + $0x60] sm:$0xff]
        %v4533 = vld [vmem:[%s4 + $0x68] sm:$0xff]
        %v4534 = vld [vmem:[%s4 + $0x70] sm:$0xff]
        %v4535 = vld [vmem:[%s4 + $0x78] sm:$0xff]
        %v4536 = vld [vmem:[%s4 + $0x80] sm:$0xff]
        %v4537 = vld [vmem:[%s4 + $0x88] sm:$0xff]
        %v4538 = vld [vmem:[%s4 + $0x90] sm:$0xff]
        %v4539 = vld [vmem:[%s4 + $0x98] sm:$0xff]
        %v4540 = vld [vmem:[%s4 + $0xa0] sm:$0xff]
        %v4541 = vld [vmem:[%s4 + $0xa8] sm:$0xff]
        %v4542 = vld [vmem:[%s4 + $0xb0] sm:$0xff]
        %v4543 = vld [vmem:[%s4 + $0xb8] sm:$0xff]
        %v4544 = vld [vmem:[%s4 + $0xc0] sm:$0xff]
        %v4545 = vld [vmem:[%s4 + $0xc8] sm:$0xff]
        %v4546 = vld [vmem:[%s4 + $0xd0] sm:$0xff]
        %v4547 = vld [vmem:[%s4 + $0xd8] sm:$0xff]
        %v4548 = vld [vmem:[%s4 + $0xe0] sm:$0xff]
        %v4549 = vld [vmem:[%s4 + $0xe8] sm:$0xff]
        %v4550 = vld [vmem:[%s4 + $0xf0] sm:$0xff]
        %v4551 = vld [vmem:[%s4 + $0xf8] sm:$0xff]
        %v4552 = vld [vmem:[%s4 + $0x100] sm:$0xff]
        %v4553 = vld [vmem:[%s4 + $0x108] sm:$0xff]
        %v4554 = vld [vmem:[%s4 + $0x110] sm:$0xff]
        %v4555 = vld [vmem:[%s4 + $0x118] sm:$0xff]
        %v4556 = vld [vmem:[%s4 + $0x120] sm:$0xff]
        %v4557 = vld [vmem:[%s4 + $0x128] sm:$0xff]
        %v4558 = vld [vmem:[%s4 + $0x130] sm:$0xff]
        %v4559 = vld [vmem:[%s4 + $0x138] sm:$0xff]
        %v4560 = vld [vmem:[%s4 + $0x140] sm:$0xff]
        %v4561 = vld [vmem:[%s4 + $0x148] sm:$0xff]
        %v4562 = vld [vmem:[%s4 + $0x150] sm:$0xff]
        %v4563 = vld [vmem:[%s4 + $0x158] sm:$0xff]
        %v4564 = vld [vmem:[%s4 + $0x160] sm:$0xff]
        %v4565 = vld [vmem:[%s4 + $0x168] sm:$0xff]
        %v4566 = vld [vmem:[%s4 + $0x170] sm:$0xff]
        %v4567 = vld [vmem:[%s4 + $0x178] sm:$0xff]
        %v4568 = vld [vmem:[%s4 + $0x180] sm:$0xff]
        %v4569 = vld [vmem:[%s4 + $0x188] sm:$0xff]
        %v4570 = vld [vmem:[%s4 + $0x190] sm:$0xff]
        %v4571 = vld [vmem:[%s4 + $0x198] sm:$0xff]
        %v4572 = vld [vmem:[%s4 + $0x1a0] sm:$0xff]
        %v4573 = vld [vmem:[%s4 + $0x1a8] sm:$0xff]
        %v4574 = vld [vmem:[%s4 + $0x1b0] sm:$0xff]
        %v4575 = vld [vmem:[%s4 + $0x1b8] sm:$0xff]
        %v4576 = vld [vmem:[%s4 + $0x1c0] sm:$0xff]
        %v4577 = vld [vmem:[%s4 + $0x1c8] sm:$0xff]
        %v4578 = vld [vmem:[%s4 + $0x1d0] sm:$0xff]
        %v4579 = vld [vmem:[%s4 + $0x1d8] sm:$0xff]
        %v4580 = vld [vmem:[%s4 + $0x1e0] sm:$0xff]
        %v4581 = vld [vmem:[%s4 + $0x1e8] sm:$0xff]
        %v4582 = vld [vmem:[%s4 + $0x1f0] sm:$0xff]
        %v4583 = vld [vmem:[%s4 + $0x1f8] sm:$0xff]
        %v4584 = vld [vmem:[%s4 + $0x200] sm:$0xff]
        %v4585 = vld [vmem:[%s4 + $0x208] sm:$0xff]
        %v4586 = vld [vmem:[%s4 + $0x210] sm:$0xff]
        %v4587 = vld [vmem:[%s4 + $0x218] sm:$0xff]
        %v4588 = vld [vmem:[%s4 + $0x220] sm:$0xff]
        %v4589 = vld [vmem:[%s4 + $0x228] sm:$0xff]
        %v4590 = vld [vmem:[%s4 + $0x230] sm:$0xff]
        %v4591 = vld [vmem:[%s4 + $0x238] sm:$0xff]
        %v4592 = vld [vmem:[%s4 + $0x240] sm:$0xff]
        %v4593 = vld [vmem:[%s4 + $0x248] sm:$0xff]
        %v4594 = vld [vmem:[%s4 + $0x250] sm:$0xff]
        %v4595 = vld [vmem:[%s4 + $0x258] sm:$0xff]
        %v4596 = vld [vmem:[%s4 + $0x260] sm:$0xff]
        %v4597 = vld [vmem:[%s4 + $0x268] sm:$0xff]
        %v4598 = vld [vmem:[%s4 + $0x270] sm:$0xff]
        %v4599 = vld [vmem:[%s4 + $0x278] sm:$0xff]
        %4601 = vset.pattern.permute.xlu0 0
        %4602 = vperm.xlu0 %4601, %v4520
        %v4603 = vpop.permute.xlu0 %4602
        %4606 = vset.pattern.permute.xlu0 0
        %4607 = vperm.xlu0 %4606, %v4521
        %v4608 = vpop.permute.xlu0 %4607
        %4611 = vset.pattern.permute.xlu0 0
        %4612 = vperm.xlu0 %4611, %v4522
        %v4613 = vpop.permute.xlu0 %4612
        %4616 = vset.pattern.permute.xlu0 0
        %4617 = vperm.xlu0 %4616, %v4523
        %v4618 = vpop.permute.xlu0 %4617
        %4621 = vset.pattern.permute.xlu0 0
        %4622 = vperm.xlu0 %4621, %v4524
        %v4623 = vpop.permute.xlu0 %4622
        %4626 = vset.pattern.permute.xlu0 0
        %4627 = vperm.xlu0 %4626, %v4525
        %v4628 = vpop.permute.xlu0 %4627
        %4631 = vset.pattern.permute.xlu0 0
        %4632 = vperm.xlu0 %4631, %v4526
        %v4633 = vpop.permute.xlu0 %4632
        %4636 = vset.pattern.permute.xlu0 0
        %4637 = vperm.xlu0 %4636, %v4527
        %v4638 = vpop.permute.xlu0 %4637
        %4641 = vset.pattern.permute.xlu0 0
        %4642 = vperm.xlu0 %4641, %v4528
        %v4643 = vpop.permute.xlu0 %4642
        %4646 = vset.pattern.permute.xlu0 0
        %4647 = vperm.xlu0 %4646, %v4529
        %v4648 = vpop.permute.xlu0 %4647
        %4651 = vset.pattern.permute.xlu0 0
        %4652 = vperm.xlu0 %4651, %v4530
        %v4653 = vpop.permute.xlu0 %4652
        %4656 = vset.pattern.permute.xlu0 0
        %4657 = vperm.xlu0 %4656, %v4531
        %v4658 = vpop.permute.xlu0 %4657
        %4661 = vset.pattern.permute.xlu0 0
        %4662 = vperm.xlu0 %4661, %v4532
        %v4663 = vpop.permute.xlu0 %4662
        %4666 = vset.pattern.permute.xlu0 0
        %4667 = vperm.xlu0 %4666, %v4533
        %v4668 = vpop.permute.xlu0 %4667
        %4671 = vset.pattern.permute.xlu0 0
        %4672 = vperm.xlu0 %4671, %v4534
        %v4673 = vpop.permute.xlu0 %4672
        %4676 = vset.pattern.permute.xlu0 0
        %4677 = vperm.xlu0 %4676, %v4535
        %v4678 = vpop.permute.xlu0 %4677
        %4681 = vset.pattern.permute.xlu0 0
        %4682 = vperm.xlu0 %4681, %v4536
        %v4683 = vpop.permute.xlu0 %4682
        %4686 = vset.pattern.permute.xlu0 0
        %4687 = vperm.xlu0 %4686, %v4537
        %v4688 = vpop.permute.xlu0 %4687
        %4691 = vset.pattern.permute.xlu0 0
        %4692 = vperm.xlu0 %4691, %v4538
        %v4693 = vpop.permute.xlu0 %4692
        %4696 = vset.pattern.permute.xlu0 0
        %4697 = vperm.xlu0 %4696, %v4539
        %v4698 = vpop.permute.xlu0 %4697
        %4701 = vset.pattern.permute.xlu0 0
        %4702 = vperm.xlu0 %4701, %v4540
        %v4703 = vpop.permute.xlu0 %4702
        %4706 = vset.pattern.permute.xlu0 0
        %4707 = vperm.xlu0 %4706, %v4541
        %v4708 = vpop.permute.xlu0 %4707
        %4711 = vset.pattern.permute.xlu0 0
        %4712 = vperm.xlu0 %4711, %v4542
        %v4713 = vpop.permute.xlu0 %4712
        %4716 = vset.pattern.permute.xlu0 0
        %4717 = vperm.xlu0 %4716, %v4543
        %v4718 = vpop.permute.xlu0 %4717
        %4721 = vset.pattern.permute.xlu0 0
        %4722 = vperm.xlu0 %4721, %v4544
        %v4723 = vpop.permute.xlu0 %4722
        %4726 = vset.pattern.permute.xlu0 0
        %4727 = vperm.xlu0 %4726, %v4545
        %v4728 = vpop.permute.xlu0 %4727
        %4731 = vset.pattern.permute.xlu0 0
        %4732 = vperm.xlu0 %4731, %v4546
        %v4733 = vpop.permute.xlu0 %4732
        %4736 = vset.pattern.permute.xlu0 0
        %4737 = vperm.xlu0 %4736, %v4547
        %v4738 = vpop.permute.xlu0 %4737
        %4741 = vset.pattern.permute.xlu0 0
        %4742 = vperm.xlu0 %4741, %v4548
        %v4743 = vpop.permute.xlu0 %4742
        %4746 = vset.pattern.permute.xlu0 0
        %4747 = vperm.xlu0 %4746, %v4549
        %v4748 = vpop.permute.xlu0 %4747
        %4751 = vset.pattern.permute.xlu0 0
        %4752 = vperm.xlu0 %4751, %v4550
        %v4753 = vpop.permute.xlu0 %4752
        %4756 = vset.pattern.permute.xlu0 0
        %4757 = vperm.xlu0 %4756, %v4551
        %v4758 = vpop.permute.xlu0 %4757
        %4761 = vset.pattern.permute.xlu0 0
        %4762 = vperm.xlu0 %4761, %v4552
        %v4763 = vpop.permute.xlu0 %4762
        %4766 = vset.pattern.permute.xlu0 0
        %4767 = vperm.xlu0 %4766, %v4553
        %v4768 = vpop.permute.xlu0 %4767
        %4771 = vset.pattern.permute.xlu0 0
        %4772 = vperm.xlu0 %4771, %v4554
        %v4773 = vpop.permute.xlu0 %4772
        %4776 = vset.pattern.permute.xlu0 0
        %4777 = vperm.xlu0 %4776, %v4555
        %v4778 = vpop.permute.xlu0 %4777
        %4781 = vset.pattern.permute.xlu0 0
        %4782 = vperm.xlu0 %4781, %v4556
        %v4783 = vpop.permute.xlu0 %4782
        %4786 = vset.pattern.permute.xlu0 0
        %4787 = vperm.xlu0 %4786, %v4557
        %v4788 = vpop.permute.xlu0 %4787
        %4791 = vset.pattern.permute.xlu0 0
        %4792 = vperm.xlu0 %4791, %v4558
        %v4793 = vpop.permute.xlu0 %4792
        %4796 = vset.pattern.permute.xlu0 0
        %4797 = vperm.xlu0 %4796, %v4559
        %v4798 = vpop.permute.xlu0 %4797
        %4801 = vset.pattern.permute.xlu0 0
        %4802 = vperm.xlu0 %4801, %v4560
        %v4803 = vpop.permute.xlu0 %4802
        %4806 = vset.pattern.permute.xlu0 0
        %4807 = vperm.xlu0 %4806, %v4561
        %v4808 = vpop.permute.xlu0 %4807
        %4811 = vset.pattern.permute.xlu0 0
        %4812 = vperm.xlu0 %4811, %v4562
        %v4813 = vpop.permute.xlu0 %4812
        %4816 = vset.pattern.permute.xlu0 0
        %4817 = vperm.xlu0 %4816, %v4563
        %v4818 = vpop.permute.xlu0 %4817
        %4821 = vset.pattern.permute.xlu0 0
        %4822 = vperm.xlu0 %4821, %v4564
        %v4823 = vpop.permute.xlu0 %4822
        %4826 = vset.pattern.permute.xlu0 0
        %4827 = vperm.xlu0 %4826, %v4565
        %v4828 = vpop.permute.xlu0 %4827
        %4831 = vset.pattern.permute.xlu0 0
        %4832 = vperm.xlu0 %4831, %v4566
        %v4833 = vpop.permute.xlu0 %4832
        %4836 = vset.pattern.permute.xlu0 0
        %4837 = vperm.xlu0 %4836, %v4567
        %v4838 = vpop.permute.xlu0 %4837
        %4841 = vset.pattern.permute.xlu0 0
        %4842 = vperm.xlu0 %4841, %v4568
        %v4843 = vpop.permute.xlu0 %4842
        %4846 = vset.pattern.permute.xlu0 0
        %4847 = vperm.xlu0 %4846, %v4569
        %v4848 = vpop.permute.xlu0 %4847
        %4851 = vset.pattern.permute.xlu0 0
        %4852 = vperm.xlu0 %4851, %v4570
        %v4853 = vpop.permute.xlu0 %4852
        %4856 = vset.pattern.permute.xlu0 0
        %4857 = vperm.xlu0 %4856, %v4571
        %v4858 = vpop.permute.xlu0 %4857
        %4861 = vset.pattern.permute.xlu0 0
        %4862 = vperm.xlu0 %4861, %v4572
        %v4863 = vpop.permute.xlu0 %4862
        %4866 = vset.pattern.permute.xlu0 0
        %4867 = vperm.xlu0 %4866, %v4573
        %v4868 = vpop.permute.xlu0 %4867
        %4871 = vset.pattern.permute.xlu0 0
        %4872 = vperm.xlu0 %4871, %v4574
        %v4873 = vpop.permute.xlu0 %4872
        %4876 = vset.pattern.permute.xlu0 0
        %4877 = vperm.xlu0 %4876, %v4575
        %v4878 = vpop.permute.xlu0 %4877
        %4881 = vset.pattern.permute.xlu0 0
        %4882 = vperm.xlu0 %4881, %v4576
        %v4883 = vpop.permute.xlu0 %4882
        %4886 = vset.pattern.permute.xlu0 0
        %4887 = vperm.xlu0 %4886, %v4577
        %v4888 = vpop.permute.xlu0 %4887
        %4891 = vset.pattern.permute.xlu0 0
        %4892 = vperm.xlu0 %4891, %v4578
        %v4893 = vpop.permute.xlu0 %4892
        %4896 = vset.pattern.permute.xlu0 0
        %4897 = vperm.xlu0 %4896, %v4579
        %v4898 = vpop.permute.xlu0 %4897
        %4901 = vset.pattern.permute.xlu0 0
        %4902 = vperm.xlu0 %4901, %v4580
        %v4903 = vpop.permute.xlu0 %4902
        %4906 = vset.pattern.permute.xlu0 0
        %4907 = vperm.xlu0 %4906, %v4581
        %v4908 = vpop.permute.xlu0 %4907
        %4911 = vset.pattern.permute.xlu0 0
        %4912 = vperm.xlu0 %4911, %v4582
        %v4913 = vpop.permute.xlu0 %4912
        %4916 = vset.pattern.permute.xlu0 0
        %4917 = vperm.xlu0 %4916, %v4583
        %v4918 = vpop.permute.xlu0 %4917
        %4921 = vset.pattern.permute.xlu0 0
        %4922 = vperm.xlu0 %4921, %v4584
        %v4923 = vpop.permute.xlu0 %4922
        %4926 = vset.pattern.permute.xlu0 0
        %4927 = vperm.xlu0 %4926, %v4585
        %v4928 = vpop.permute.xlu0 %4927
        %4931 = vset.pattern.permute.xlu0 0
        %4932 = vperm.xlu0 %4931, %v4586
        %v4933 = vpop.permute.xlu0 %4932
        %4936 = vset.pattern.permute.xlu0 0
        %4937 = vperm.xlu0 %4936, %v4587
        %v4938 = vpop.permute.xlu0 %4937
        %4941 = vset.pattern.permute.xlu0 0
        %4942 = vperm.xlu0 %4941, %v4588
        %v4943 = vpop.permute.xlu0 %4942
        %4946 = vset.pattern.permute.xlu0 0
        %4947 = vperm.xlu0 %4946, %v4589
        %v4948 = vpop.permute.xlu0 %4947
        %4951 = vset.pattern.permute.xlu0 0
        %4952 = vperm.xlu0 %4951, %v4590
        %v4953 = vpop.permute.xlu0 %4952
        %4956 = vset.pattern.permute.xlu0 0
        %4957 = vperm.xlu0 %4956, %v4591
        %v4958 = vpop.permute.xlu0 %4957
        %4961 = vset.pattern.permute.xlu0 0
        %4962 = vperm.xlu0 %4961, %v4592
        %v4963 = vpop.permute.xlu0 %4962
        %4966 = vset.pattern.permute.xlu0 0
        %4967 = vperm.xlu0 %4966, %v4593
        %v4968 = vpop.permute.xlu0 %4967
        %4971 = vset.pattern.permute.xlu0 0
        %4972 = vperm.xlu0 %4971, %v4594
        %v4973 = vpop.permute.xlu0 %4972
        %4976 = vset.pattern.permute.xlu0 0
        %4977 = vperm.xlu0 %4976, %v4595
        %v4978 = vpop.permute.xlu0 %4977
        %4981 = vset.pattern.permute.xlu0 0
        %4982 = vperm.xlu0 %4981, %v4596
        %v4983 = vpop.permute.xlu0 %4982
        %4986 = vset.pattern.permute.xlu0 0
        %4987 = vperm.xlu0 %4986, %v4597
        %v4988 = vpop.permute.xlu0 %4987
        %4991 = vset.pattern.permute.xlu0 0
        %4992 = vperm.xlu0 %4991, %v4598
        %v4993 = vpop.permute.xlu0 %4992
        %4996 = vset.pattern.permute.xlu0 0
        %4997 = vperm.xlu0 %4996, %v4599
        %v4998 = vpop.permute.xlu0 %4997
        %v5320 = vunpack.c.l.b16 %v4136
        %v5321 = vunpack.c.h.b16 %v4136
        %v5322 = vunpack.c.l.b16 %v4137
        %v5323 = vunpack.c.h.b16 %v4137
        %v5324 = vunpack.c.l.b16 %v4138
        %v5325 = vunpack.c.h.b16 %v4138
        %v5326 = vunpack.c.l.b16 %v4139
        %v5327 = vunpack.c.h.b16 %v4139
        %v5328 = vunpack.c.l.b16 %v4140
        %v5329 = vunpack.c.h.b16 %v4140
        %v5330 = vunpack.c.l.b16 %v4141
        %v5331 = vunpack.c.h.b16 %v4141
        %v5332 = vunpack.c.l.b16 %v4142
        %v5333 = vunpack.c.h.b16 %v4142
        %v5334 = vunpack.c.l.b16 %v4143
        %v5335 = vunpack.c.h.b16 %v4143
        %v5336 = vunpack.c.l.b16 %v4144
        %v5337 = vunpack.c.h.b16 %v4144
        %v5338 = vunpack.c.l.b16 %v4145
        %v5339 = vunpack.c.h.b16 %v4145
        %v5340 = vunpack.c.l.b16 %v4146
        %v5341 = vunpack.c.h.b16 %v4146
        %v5342 = vunpack.c.l.b16 %v4147
        %v5343 = vunpack.c.h.b16 %v4147
        %v5344 = vunpack.c.l.b16 %v4148
        %v5345 = vunpack.c.h.b16 %v4148
        %v5346 = vunpack.c.l.b16 %v4149
        %v5347 = vunpack.c.h.b16 %v4149
        %v5348 = vunpack.c.l.b16 %v4150
        %v5349 = vunpack.c.h.b16 %v4150
        %v5350 = vunpack.c.l.b16 %v4151
        %v5351 = vunpack.c.h.b16 %v4151
        %v5352 = vunpack.c.l.b16 %v4152
        %v5353 = vunpack.c.h.b16 %v4152
        %v5354 = vunpack.c.l.b16 %v4153
        %v5355 = vunpack.c.h.b16 %v4153
        %v5356 = vunpack.c.l.b16 %v4154
        %v5357 = vunpack.c.h.b16 %v4154
        %v5358 = vunpack.c.l.b16 %v4155
        %v5359 = vunpack.c.h.b16 %v4155
        %v5360 = vunpack.c.l.b16 %v4156
        %v5361 = vunpack.c.h.b16 %v4156
        %v5362 = vunpack.c.l.b16 %v4157
        %v5363 = vunpack.c.h.b16 %v4157
        %v5364 = vunpack.c.l.b16 %v4158
        %v5365 = vunpack.c.h.b16 %v4158
        %v5366 = vunpack.c.l.b16 %v4159
        %v5367 = vunpack.c.h.b16 %v4159
        %v5368 = vunpack.c.l.b16 %v4160
        %v5369 = vunpack.c.h.b16 %v4160
        %v5370 = vunpack.c.l.b16 %v4161
        %v5371 = vunpack.c.h.b16 %v4161
        %v5372 = vunpack.c.l.b16 %v4162
        %v5373 = vunpack.c.h.b16 %v4162
        %v5374 = vunpack.c.l.b16 %v4163
        %v5375 = vunpack.c.h.b16 %v4163
        %v5376 = vunpack.c.l.b16 %v4164
        %v5377 = vunpack.c.h.b16 %v4164
        %v5378 = vunpack.c.l.b16 %v4165
        %v5379 = vunpack.c.h.b16 %v4165
        %v5380 = vunpack.c.l.b16 %v4166
        %v5381 = vunpack.c.h.b16 %v4166
        %v5382 = vunpack.c.l.b16 %v4167
        %v5383 = vunpack.c.h.b16 %v4167
        %v5384 = vunpack.c.l.b16 %v4168
        %v5385 = vunpack.c.h.b16 %v4168
        %v5386 = vunpack.c.l.b16 %v4169
        %v5387 = vunpack.c.h.b16 %v4169
        %v5388 = vunpack.c.l.b16 %v4170
        %v5389 = vunpack.c.h.b16 %v4170
        %v5390 = vunpack.c.l.b16 %v4171
        %v5391 = vunpack.c.h.b16 %v4171
        %v5392 = vunpack.c.l.b16 %v4172
        %v5393 = vunpack.c.h.b16 %v4172
        %v5394 = vunpack.c.l.b16 %v4173
        %v5395 = vunpack.c.h.b16 %v4173
        %v5396 = vunpack.c.l.b16 %v4174
        %v5397 = vunpack.c.h.b16 %v4174
        %v5398 = vunpack.c.l.b16 %v4175
        %v5399 = vunpack.c.h.b16 %v4175
        %v5400 = vunpack.c.l.b16 %v4176
        %v5401 = vunpack.c.h.b16 %v4176
        %v5402 = vunpack.c.l.b16 %v4177
        %v5403 = vunpack.c.h.b16 %v4177
        %v5404 = vunpack.c.l.b16 %v4178
        %v5405 = vunpack.c.h.b16 %v4178
        %v5406 = vunpack.c.l.b16 %v4179
        %v5407 = vunpack.c.h.b16 %v4179
        %v5408 = vunpack.c.l.b16 %v4180
        %v5409 = vunpack.c.h.b16 %v4180
        %v5410 = vunpack.c.l.b16 %v4181
        %v5411 = vunpack.c.h.b16 %v4181
        %v5412 = vunpack.c.l.b16 %v4182
        %v5413 = vunpack.c.h.b16 %v4182
        %v5414 = vunpack.c.l.b16 %v4183
        %v5415 = vunpack.c.h.b16 %v4183
        %v5416 = vunpack.c.l.b16 %v4184
        %v5417 = vunpack.c.h.b16 %v4184
        %v5418 = vunpack.c.l.b16 %v4185
        %v5419 = vunpack.c.h.b16 %v4185
        %v5420 = vunpack.c.l.b16 %v4186
        %v5421 = vunpack.c.h.b16 %v4186
        %v5422 = vunpack.c.l.b16 %v4187
        %v5423 = vunpack.c.h.b16 %v4187
        %v5424 = vunpack.c.l.b16 %v4188
        %v5425 = vunpack.c.h.b16 %v4188
        %v5426 = vunpack.c.l.b16 %v4189
        %v5427 = vunpack.c.h.b16 %v4189
        %v5428 = vunpack.c.l.b16 %v4190
        %v5429 = vunpack.c.h.b16 %v4190
        %v5430 = vunpack.c.l.b16 %v4191
        %v5431 = vunpack.c.h.b16 %v4191
        %v5432 = vunpack.c.l.b16 %v4192
        %v5433 = vunpack.c.h.b16 %v4192
        %v5434 = vunpack.c.l.b16 %v4193
        %v5435 = vunpack.c.h.b16 %v4193
        %v5436 = vunpack.c.l.b16 %v4194
        %v5437 = vunpack.c.h.b16 %v4194
        %v5438 = vunpack.c.l.b16 %v4195
        %v5439 = vunpack.c.h.b16 %v4195
        %v5440 = vunpack.c.l.b16 %v4196
        %v5441 = vunpack.c.h.b16 %v4196
        %v5442 = vunpack.c.l.b16 %v4197
        %v5443 = vunpack.c.h.b16 %v4197
        %v5444 = vunpack.c.l.b16 %v4198
        %v5445 = vunpack.c.h.b16 %v4198
        %v5446 = vunpack.c.l.b16 %v4199
        %v5447 = vunpack.c.h.b16 %v4199
        %v5448 = vunpack.c.l.b16 %v4200
        %v5449 = vunpack.c.h.b16 %v4200
        %v5450 = vunpack.c.l.b16 %v4201
        %v5451 = vunpack.c.h.b16 %v4201
        %v5452 = vunpack.c.l.b16 %v4202
        %v5453 = vunpack.c.h.b16 %v4202
        %v5454 = vunpack.c.l.b16 %v4203
        %v5455 = vunpack.c.h.b16 %v4203
        %v5456 = vunpack.c.l.b16 %v4204
        %v5457 = vunpack.c.h.b16 %v4204
        %v5458 = vunpack.c.l.b16 %v4205
        %v5459 = vunpack.c.h.b16 %v4205
        %v5460 = vunpack.c.l.b16 %v4206
        %v5461 = vunpack.c.h.b16 %v4206
        %v5462 = vunpack.c.l.b16 %v4207
        %v5463 = vunpack.c.h.b16 %v4207
        %v5464 = vunpack.c.l.b16 %v4208
        %v5465 = vunpack.c.h.b16 %v4208
        %v5466 = vunpack.c.l.b16 %v4209
        %v5467 = vunpack.c.h.b16 %v4209
        %v5468 = vunpack.c.l.b16 %v4210
        %v5469 = vunpack.c.h.b16 %v4210
        %v5470 = vunpack.c.l.b16 %v4211
        %v5471 = vunpack.c.h.b16 %v4211
        %v5472 = vunpack.c.l.b16 %v4212
        %v5473 = vunpack.c.h.b16 %v4212
        %v5474 = vunpack.c.l.b16 %v4213
        %v5475 = vunpack.c.h.b16 %v4213
        %v5476 = vunpack.c.l.b16 %v4214
        %v5477 = vunpack.c.h.b16 %v4214
        %v5478 = vunpack.c.l.b16 %v4215
        %v5479 = vunpack.c.h.b16 %v4215
        %v5480 = vunpack.c.l.b16 %v4216
        %v5481 = vunpack.c.h.b16 %v4216
        %v5482 = vunpack.c.l.b16 %v4217
        %v5483 = vunpack.c.h.b16 %v4217
        %v5484 = vunpack.c.l.b16 %v4218
        %v5485 = vunpack.c.h.b16 %v4218
        %v5486 = vunpack.c.l.b16 %v4219
        %v5487 = vunpack.c.h.b16 %v4219
        %v5488 = vunpack.c.l.b16 %v4220
        %v5489 = vunpack.c.h.b16 %v4220
        %v5490 = vunpack.c.l.b16 %v4221
        %v5491 = vunpack.c.h.b16 %v4221
        %v5492 = vunpack.c.l.b16 %v4222
        %v5493 = vunpack.c.h.b16 %v4222
        %v5494 = vunpack.c.l.b16 %v4223
        %v5495 = vunpack.c.h.b16 %v4223
        %v5496 = vunpack.c.l.b16 %v4224
        %v5497 = vunpack.c.h.b16 %v4224
        %v5498 = vunpack.c.l.b16 %v4225
        %v5499 = vunpack.c.h.b16 %v4225
        %v5500 = vunpack.c.l.b16 %v4226
        %v5501 = vunpack.c.h.b16 %v4226
        %v5502 = vunpack.c.l.b16 %v4227
        %v5503 = vunpack.c.h.b16 %v4227
        %v5504 = vunpack.c.l.b16 %v4228
        %v5505 = vunpack.c.h.b16 %v4228
        %v5506 = vunpack.c.l.b16 %v4229
        %v5507 = vunpack.c.h.b16 %v4229
        %v5508 = vunpack.c.l.b16 %v4230
        %v5509 = vunpack.c.h.b16 %v4230
        %v5510 = vunpack.c.l.b16 %v4231
        %v5511 = vunpack.c.h.b16 %v4231
        %v5512 = vunpack.c.l.b16 %v4232
        %v5513 = vunpack.c.h.b16 %v4232
        %v5514 = vunpack.c.l.b16 %v4233
        %v5515 = vunpack.c.h.b16 %v4233
        %v5516 = vunpack.c.l.b16 %v4234
        %v5517 = vunpack.c.h.b16 %v4234
        %v5518 = vunpack.c.l.b16 %v4235
        %v5519 = vunpack.c.h.b16 %v4235
        %v5520 = vunpack.c.l.b16 %v4236
        %v5521 = vunpack.c.h.b16 %v4236
        %v5522 = vunpack.c.l.b16 %v4237
        %v5523 = vunpack.c.h.b16 %v4237
        %v5524 = vunpack.c.l.b16 %v4238
        %v5525 = vunpack.c.h.b16 %v4238
        %v5526 = vunpack.c.l.b16 %v4239
        %v5527 = vunpack.c.h.b16 %v4239
        %v5528 = vunpack.c.l.b16 %v4240
        %v5529 = vunpack.c.h.b16 %v4240
        %v5530 = vunpack.c.l.b16 %v4241
        %v5531 = vunpack.c.h.b16 %v4241
        %v5532 = vunpack.c.l.b16 %v4242
        %v5533 = vunpack.c.h.b16 %v4242
        %v5534 = vunpack.c.l.b16 %v4243
        %v5535 = vunpack.c.h.b16 %v4243
        %v5536 = vunpack.c.l.b16 %v4244
        %v5537 = vunpack.c.h.b16 %v4244
        %v5538 = vunpack.c.l.b16 %v4245
        %v5539 = vunpack.c.h.b16 %v4245
        %v5540 = vunpack.c.l.b16 %v4246
        %v5541 = vunpack.c.h.b16 %v4246
        %v5542 = vunpack.c.l.b16 %v4247
        %v5543 = vunpack.c.h.b16 %v4247
        %v5544 = vunpack.c.l.b16 %v4248
        %v5545 = vunpack.c.h.b16 %v4248
        %v5546 = vunpack.c.l.b16 %v4249
        %v5547 = vunpack.c.h.b16 %v4249
        %v5548 = vunpack.c.l.b16 %v4250
        %v5549 = vunpack.c.h.b16 %v4250
        %v5550 = vunpack.c.l.b16 %v4251
        %v5551 = vunpack.c.h.b16 %v4251
        %v5552 = vunpack.c.l.b16 %v4252
        %v5553 = vunpack.c.h.b16 %v4252
        %v5554 = vunpack.c.l.b16 %v4253
        %v5555 = vunpack.c.h.b16 %v4253
        %v5556 = vunpack.c.l.b16 %v4254
        %v5557 = vunpack.c.h.b16 %v4254
        %v5558 = vunpack.c.l.b16 %v4255
        %v5559 = vunpack.c.h.b16 %v4255
        %v5560 = vunpack.c.l.b16 %v4256
        %v5561 = vunpack.c.h.b16 %v4256
        %v5562 = vunpack.c.l.b16 %v4257
        %v5563 = vunpack.c.h.b16 %v4257
        %v5564 = vunpack.c.l.b16 %v4258
        %v5565 = vunpack.c.h.b16 %v4258
        %v5566 = vunpack.c.l.b16 %v4259
        %v5567 = vunpack.c.h.b16 %v4259
        %v5568 = vunpack.c.l.b16 %v4260
        %v5569 = vunpack.c.h.b16 %v4260
        %v5570 = vunpack.c.l.b16 %v4261
        %v5571 = vunpack.c.h.b16 %v4261
        %v5572 = vunpack.c.l.b16 %v4262
        %v5573 = vunpack.c.h.b16 %v4262
        %v5574 = vunpack.c.l.b16 %v4263
        %v5575 = vunpack.c.h.b16 %v4263
        %v5576 = vunpack.c.l.b16 %v4264
        %v5577 = vunpack.c.h.b16 %v4264
        %v5578 = vunpack.c.l.b16 %v4265
        %v5579 = vunpack.c.h.b16 %v4265
        %v5580 = vunpack.c.l.b16 %v4266
        %v5581 = vunpack.c.h.b16 %v4266
        %v5582 = vunpack.c.l.b16 %v4267
        %v5583 = vunpack.c.h.b16 %v4267
        %v5584 = vunpack.c.l.b16 %v4268
        %v5585 = vunpack.c.h.b16 %v4268
        %v5586 = vunpack.c.l.b16 %v4269
        %v5587 = vunpack.c.h.b16 %v4269
        %v5588 = vunpack.c.l.b16 %v4270
        %v5589 = vunpack.c.h.b16 %v4270
        %v5590 = vunpack.c.l.b16 %v4271
        %v5591 = vunpack.c.h.b16 %v4271
        %v5592 = vunpack.c.l.b16 %v4272
        %v5593 = vunpack.c.h.b16 %v4272
        %v5594 = vunpack.c.l.b16 %v4273
        %v5595 = vunpack.c.h.b16 %v4273
        %v5596 = vunpack.c.l.b16 %v4274
        %v5597 = vunpack.c.h.b16 %v4274
        %v5598 = vunpack.c.l.b16 %v4275
        %v5599 = vunpack.c.h.b16 %v4275
        %v5600 = vunpack.c.l.b16 %v4276
        %v5601 = vunpack.c.h.b16 %v4276
        %v5602 = vunpack.c.l.b16 %v4277
        %v5603 = vunpack.c.h.b16 %v4277
        %v5604 = vunpack.c.l.b16 %v4278
        %v5605 = vunpack.c.h.b16 %v4278
        %v5606 = vunpack.c.l.b16 %v4279
        %v5607 = vunpack.c.h.b16 %v4279
        %v5608 = vunpack.c.l.b16 %v4280
        %v5609 = vunpack.c.h.b16 %v4280
        %v5610 = vunpack.c.l.b16 %v4281
        %v5611 = vunpack.c.h.b16 %v4281
        %v5612 = vunpack.c.l.b16 %v4282
        %v5613 = vunpack.c.h.b16 %v4282
        %v5614 = vunpack.c.l.b16 %v4283
        %v5615 = vunpack.c.h.b16 %v4283
        %v5616 = vunpack.c.l.b16 %v4284
        %v5617 = vunpack.c.h.b16 %v4284
        %v5618 = vunpack.c.l.b16 %v4285
        %v5619 = vunpack.c.h.b16 %v4285
        %v5620 = vunpack.c.l.b16 %v4286
        %v5621 = vunpack.c.h.b16 %v4286
        %v5622 = vunpack.c.l.b16 %v4287
        %v5623 = vunpack.c.h.b16 %v4287
        %v5624 = vunpack.c.l.b16 %v4288
        %v5625 = vunpack.c.h.b16 %v4288
        %v5626 = vunpack.c.l.b16 %v4289
        %v5627 = vunpack.c.h.b16 %v4289
        %v5628 = vunpack.c.l.b16 %v4290
        %v5629 = vunpack.c.h.b16 %v4290
        %v5630 = vunpack.c.l.b16 %v4291
        %v5631 = vunpack.c.h.b16 %v4291
        %v5632 = vunpack.c.l.b16 %v4292
        %v5633 = vunpack.c.h.b16 %v4292
        %v5634 = vunpack.c.l.b16 %v4293
        %v5635 = vunpack.c.h.b16 %v4293
        %v5636 = vunpack.c.l.b16 %v4294
        %v5637 = vunpack.c.h.b16 %v4294
        %v5638 = vunpack.c.l.b16 %v4295
        %v5639 = vunpack.c.h.b16 %v4295
        %v5640 = vunpack.c.l.b16 %v4296
        %v5641 = vunpack.c.h.b16 %v4296
        %v5642 = vunpack.c.l.b16 %v4297
        %v5643 = vunpack.c.h.b16 %v4297
        %v5644 = vunpack.c.l.b16 %v4298
        %v5645 = vunpack.c.h.b16 %v4298
        %v5646 = vunpack.c.l.b16 %v4299
        %v5647 = vunpack.c.h.b16 %v4299
        %v5648 = vunpack.c.l.b16 %v4300
        %v5649 = vunpack.c.h.b16 %v4300
        %v5650 = vunpack.c.l.b16 %v4301
        %v5651 = vunpack.c.h.b16 %v4301
        %v5652 = vunpack.c.l.b16 %v4302
        %v5653 = vunpack.c.h.b16 %v4302
        %v5654 = vunpack.c.l.b16 %v4303
        %v5655 = vunpack.c.h.b16 %v4303
        %v5656 = vunpack.c.l.b16 %v4304
        %v5657 = vunpack.c.h.b16 %v4304
        %v5658 = vunpack.c.l.b16 %v4305
        %v5659 = vunpack.c.h.b16 %v4305
        %v5660 = vunpack.c.l.b16 %v4306
        %v5661 = vunpack.c.h.b16 %v4306
        %v5662 = vunpack.c.l.b16 %v4307
        %v5663 = vunpack.c.h.b16 %v4307
        %v5664 = vunpack.c.l.b16 %v4308
        %v5665 = vunpack.c.h.b16 %v4308
        %v5666 = vunpack.c.l.b16 %v4309
        %v5667 = vunpack.c.h.b16 %v4309
        %v5668 = vunpack.c.l.b16 %v4310
        %v5669 = vunpack.c.h.b16 %v4310
        %v5670 = vunpack.c.l.b16 %v4311
        %v5671 = vunpack.c.h.b16 %v4311
        %v5672 = vunpack.c.l.b16 %v4312
        %v5673 = vunpack.c.h.b16 %v4312
        %v5674 = vunpack.c.l.b16 %v4313
        %v5675 = vunpack.c.h.b16 %v4313
        %v5676 = vunpack.c.l.b16 %v4314
        %v5677 = vunpack.c.h.b16 %v4314
        %v5678 = vunpack.c.l.b16 %v4315
        %v5679 = vunpack.c.h.b16 %v4315
        %v5680 = vunpack.c.l.b16 %v4316
        %v5681 = vunpack.c.h.b16 %v4316
        %v5682 = vunpack.c.l.b16 %v4317
        %v5683 = vunpack.c.h.b16 %v4317
        %v5684 = vunpack.c.l.b16 %v4318
        %v5685 = vunpack.c.h.b16 %v4318
        %v5686 = vunpack.c.l.b16 %v4319
        %v5687 = vunpack.c.h.b16 %v4319
        %v5688 = vunpack.c.l.b16 %v4320
        %v5689 = vunpack.c.h.b16 %v4320
        %v5690 = vunpack.c.l.b16 %v4321
        %v5691 = vunpack.c.h.b16 %v4321
        %v5692 = vunpack.c.l.b16 %v4322
        %v5693 = vunpack.c.h.b16 %v4322
        %v5694 = vunpack.c.l.b16 %v4323
        %v5695 = vunpack.c.h.b16 %v4323
        %v5696 = vunpack.c.l.b16 %v4324
        %v5697 = vunpack.c.h.b16 %v4324
        %v5698 = vunpack.c.l.b16 %v4325
        %v5699 = vunpack.c.h.b16 %v4325
        %v5700 = vunpack.c.l.b16 %v4326
        %v5701 = vunpack.c.h.b16 %v4326
        %v5702 = vunpack.c.l.b16 %v4327
        %v5703 = vunpack.c.h.b16 %v4327
        %v5704 = vunpack.c.l.b16 %v4328
        %v5705 = vunpack.c.h.b16 %v4328
        %v5706 = vunpack.c.l.b16 %v4329
        %v5707 = vunpack.c.h.b16 %v4329
        %v5708 = vunpack.c.l.b16 %v4330
        %v5709 = vunpack.c.h.b16 %v4330
        %v5710 = vunpack.c.l.b16 %v4331
        %v5711 = vunpack.c.h.b16 %v4331
        %v5712 = vunpack.c.l.b16 %v4332
        %v5713 = vunpack.c.h.b16 %v4332
        %v5714 = vunpack.c.l.b16 %v4333
        %v5715 = vunpack.c.h.b16 %v4333
        %v5716 = vunpack.c.l.b16 %v4334
        %v5717 = vunpack.c.h.b16 %v4334
        %v5718 = vunpack.c.l.b16 %v4335
        %v5719 = vunpack.c.h.b16 %v4335
        %v5720 = vunpack.c.l.b16 %v4336
        %v5721 = vunpack.c.h.b16 %v4336
        %v5722 = vunpack.c.l.b16 %v4337
        %v5723 = vunpack.c.h.b16 %v4337
        %v5724 = vunpack.c.l.b16 %v4338
        %v5725 = vunpack.c.h.b16 %v4338
        %v5726 = vunpack.c.l.b16 %v4339
        %v5727 = vunpack.c.h.b16 %v4339
        %v5728 = vunpack.c.l.b16 %v4340
        %v5729 = vunpack.c.h.b16 %v4340
        %v5730 = vunpack.c.l.b16 %v4341
        %v5731 = vunpack.c.h.b16 %v4341
        %v5732 = vunpack.c.l.b16 %v4342
        %v5733 = vunpack.c.h.b16 %v4342
        %v5734 = vunpack.c.l.b16 %v4343
        %v5735 = vunpack.c.h.b16 %v4343
        %v5736 = vunpack.c.l.b16 %v4344
        %v5737 = vunpack.c.h.b16 %v4344
        %v5738 = vunpack.c.l.b16 %v4345
        %v5739 = vunpack.c.h.b16 %v4345
        %v5740 = vunpack.c.l.b16 %v4346
        %v5741 = vunpack.c.h.b16 %v4346
        %v5742 = vunpack.c.l.b16 %v4347
        %v5743 = vunpack.c.h.b16 %v4347
        %v5744 = vunpack.c.l.b16 %v4348
        %v5745 = vunpack.c.h.b16 %v4348
        %v5746 = vunpack.c.l.b16 %v4349
        %v5747 = vunpack.c.h.b16 %v4349
        %v5748 = vunpack.c.l.b16 %v4350
        %v5749 = vunpack.c.h.b16 %v4350
        %v5750 = vunpack.c.l.b16 %v4351
        %v5751 = vunpack.c.h.b16 %v4351
        %v5752 = vunpack.c.l.b16 %v4352
        %v5753 = vunpack.c.h.b16 %v4352
        %v5754 = vunpack.c.l.b16 %v4353
        %v5755 = vunpack.c.h.b16 %v4353
        %v5756 = vunpack.c.l.b16 %v4354
        %v5757 = vunpack.c.h.b16 %v4354
        %v5758 = vunpack.c.l.b16 %v4355
        %v5759 = vunpack.c.h.b16 %v4355
        %v5760 = vunpack.c.l.b16 %v4356
        %v5761 = vunpack.c.h.b16 %v4356
        %v5762 = vunpack.c.l.b16 %v4357
        %v5763 = vunpack.c.h.b16 %v4357
        %v5764 = vunpack.c.l.b16 %v4358
        %v5765 = vunpack.c.h.b16 %v4358
        %v5766 = vunpack.c.l.b16 %v4359
        %v5767 = vunpack.c.h.b16 %v4359
        %v5768 = vunpack.c.l.b16 %v4360
        %v5769 = vunpack.c.h.b16 %v4360
        %v5770 = vunpack.c.l.b16 %v4361
        %v5771 = vunpack.c.h.b16 %v4361
        %v5772 = vunpack.c.l.b16 %v4362
        %v5773 = vunpack.c.h.b16 %v4362
        %v5774 = vunpack.c.l.b16 %v4363
        %v5775 = vunpack.c.h.b16 %v4363
        %v5776 = vunpack.c.l.b16 %v4364
        %v5777 = vunpack.c.h.b16 %v4364
        %v5778 = vunpack.c.l.b16 %v4365
        %v5779 = vunpack.c.h.b16 %v4365
        %v5780 = vunpack.c.l.b16 %v4366
        %v5781 = vunpack.c.h.b16 %v4366
        %v5782 = vunpack.c.l.b16 %v4367
        %v5783 = vunpack.c.h.b16 %v4367
        %v5784 = vunpack.c.l.b16 %v4368
        %v5785 = vunpack.c.h.b16 %v4368
        %v5786 = vunpack.c.l.b16 %v4369
        %v5787 = vunpack.c.h.b16 %v4369
        %v5788 = vunpack.c.l.b16 %v4370
        %v5789 = vunpack.c.h.b16 %v4370
        %v5790 = vunpack.c.l.b16 %v4371
        %v5791 = vunpack.c.h.b16 %v4371
        %v5792 = vunpack.c.l.b16 %v4372
        %v5793 = vunpack.c.h.b16 %v4372
        %v5794 = vunpack.c.l.b16 %v4373
        %v5795 = vunpack.c.h.b16 %v4373
        %v5796 = vunpack.c.l.b16 %v4374
        %v5797 = vunpack.c.h.b16 %v4374
        %v5798 = vunpack.c.l.b16 %v4375
        %v5799 = vunpack.c.h.b16 %v4375
        %v5800 = vunpack.c.l.b16 %v4376
        %v5801 = vunpack.c.h.b16 %v4376
        %v5802 = vunpack.c.l.b16 %v4377
        %v5803 = vunpack.c.h.b16 %v4377
        %v5804 = vunpack.c.l.b16 %v4378
        %v5805 = vunpack.c.h.b16 %v4378
        %v5806 = vunpack.c.l.b16 %v4379
        %v5807 = vunpack.c.h.b16 %v4379
        %v5808 = vunpack.c.l.b16 %v4380
        %v5809 = vunpack.c.h.b16 %v4380
        %v5810 = vunpack.c.l.b16 %v4381
        %v5811 = vunpack.c.h.b16 %v4381
        %v5812 = vunpack.c.l.b16 %v4382
        %v5813 = vunpack.c.h.b16 %v4382
        %v5814 = vunpack.c.l.b16 %v4383
        %v5815 = vunpack.c.h.b16 %v4383
        %v5816 = vunpack.c.l.b16 %v4384
        %v5817 = vunpack.c.h.b16 %v4384
        %v5818 = vunpack.c.l.b16 %v4385
        %v5819 = vunpack.c.h.b16 %v4385
        %v5820 = vunpack.c.l.b16 %v4386
        %v5821 = vunpack.c.h.b16 %v4386
        %v5822 = vunpack.c.l.b16 %v4387
        %v5823 = vunpack.c.h.b16 %v4387
        %v5824 = vunpack.c.l.b16 %v4388
        %v5825 = vunpack.c.h.b16 %v4388
        %v5826 = vunpack.c.l.b16 %v4389
        %v5827 = vunpack.c.h.b16 %v4389
        %v5828 = vunpack.c.l.b16 %v4390
        %v5829 = vunpack.c.h.b16 %v4390
        %v5830 = vunpack.c.l.b16 %v4391
        %v5831 = vunpack.c.h.b16 %v4391
        %v5832 = vunpack.c.l.b16 %v4392
        %v5833 = vunpack.c.h.b16 %v4392
        %v5834 = vunpack.c.l.b16 %v4393
        %v5835 = vunpack.c.h.b16 %v4393
        %v5836 = vunpack.c.l.b16 %v4394
        %v5837 = vunpack.c.h.b16 %v4394
        %v5838 = vunpack.c.l.b16 %v4395
        %v5839 = vunpack.c.h.b16 %v4395
        %v5840 = vunpack.c.l.b16 %v4396
        %v5841 = vunpack.c.h.b16 %v4396
        %v5842 = vunpack.c.l.b16 %v4397
        %v5843 = vunpack.c.h.b16 %v4397
        %v5844 = vunpack.c.l.b16 %v4398
        %v5845 = vunpack.c.h.b16 %v4398
        %v5846 = vunpack.c.l.b16 %v4399
        %v5847 = vunpack.c.h.b16 %v4399
        %v5848 = vunpack.c.l.b16 %v4400
        %v5849 = vunpack.c.h.b16 %v4400
        %v5850 = vunpack.c.l.b16 %v4401
        %v5851 = vunpack.c.h.b16 %v4401
        %v5852 = vunpack.c.l.b16 %v4402
        %v5853 = vunpack.c.h.b16 %v4402
        %v5854 = vunpack.c.l.b16 %v4403
        %v5855 = vunpack.c.h.b16 %v4403
        %v5856 = vunpack.c.l.b16 %v4404
        %v5857 = vunpack.c.h.b16 %v4404
        %v5858 = vunpack.c.l.b16 %v4405
        %v5859 = vunpack.c.h.b16 %v4405
        %v5860 = vunpack.c.l.b16 %v4406
        %v5861 = vunpack.c.h.b16 %v4406
        %v5862 = vunpack.c.l.b16 %v4407
        %v5863 = vunpack.c.h.b16 %v4407
        %v5864 = vunpack.c.l.b16 %v4408
        %v5865 = vunpack.c.h.b16 %v4408
        %v5866 = vunpack.c.l.b16 %v4409
        %v5867 = vunpack.c.h.b16 %v4409
        %v5868 = vunpack.c.l.b16 %v4410
        %v5869 = vunpack.c.h.b16 %v4410
        %v5870 = vunpack.c.l.b16 %v4411
        %v5871 = vunpack.c.h.b16 %v4411
        %v5872 = vunpack.c.l.b16 %v4412
        %v5873 = vunpack.c.h.b16 %v4412
        %v5874 = vunpack.c.l.b16 %v4413
        %v5875 = vunpack.c.h.b16 %v4413
        %v5876 = vunpack.c.l.b16 %v4414
        %v5877 = vunpack.c.h.b16 %v4414
        %v5878 = vunpack.c.l.b16 %v4415
        %v5879 = vunpack.c.h.b16 %v4415
        %v5880 = vunpack.c.l.b16 %v4416
        %v5881 = vunpack.c.h.b16 %v4416
        %v5882 = vunpack.c.l.b16 %v4417
        %v5883 = vunpack.c.h.b16 %v4417
        %v5884 = vunpack.c.l.b16 %v4418
        %v5885 = vunpack.c.h.b16 %v4418
        %v5886 = vunpack.c.l.b16 %v4419
        %v5887 = vunpack.c.h.b16 %v4419
        %v5888 = vunpack.c.l.b16 %v4420
        %v5889 = vunpack.c.h.b16 %v4420
        %v5890 = vunpack.c.l.b16 %v4421
        %v5891 = vunpack.c.h.b16 %v4421
        %v5892 = vunpack.c.l.b16 %v4422
        %v5893 = vunpack.c.h.b16 %v4422
        %v5894 = vunpack.c.l.b16 %v4423
        %v5895 = vunpack.c.h.b16 %v4423
        %v5896 = vunpack.c.l.b16 %v4424
        %v5897 = vunpack.c.h.b16 %v4424
        %v5898 = vunpack.c.l.b16 %v4425
        %v5899 = vunpack.c.h.b16 %v4425
        %v5900 = vunpack.c.l.b16 %v4426
        %v5901 = vunpack.c.h.b16 %v4426
        %v5902 = vunpack.c.l.b16 %v4427
        %v5903 = vunpack.c.h.b16 %v4427
        %v5904 = vunpack.c.l.b16 %v4428
        %v5905 = vunpack.c.h.b16 %v4428
        %v5906 = vunpack.c.l.b16 %v4429
        %v5907 = vunpack.c.h.b16 %v4429
        %v5908 = vunpack.c.l.b16 %v4430
        %v5909 = vunpack.c.h.b16 %v4430
        %v5910 = vunpack.c.l.b16 %v4431
        %v5911 = vunpack.c.h.b16 %v4431
        %v5912 = vunpack.c.l.b16 %v4432
        %v5913 = vunpack.c.h.b16 %v4432
        %v5914 = vunpack.c.l.b16 %v4433
        %v5915 = vunpack.c.h.b16 %v4433
        %v5916 = vunpack.c.l.b16 %v4434
        %v5917 = vunpack.c.h.b16 %v4434
        %v5918 = vunpack.c.l.b16 %v4435
        %v5919 = vunpack.c.h.b16 %v4435
        %v5920 = vunpack.c.l.b16 %v4436
        %v5921 = vunpack.c.h.b16 %v4436
        %v5922 = vunpack.c.l.b16 %v4437
        %v5923 = vunpack.c.h.b16 %v4437
        %v5924 = vunpack.c.l.b16 %v4438
        %v5925 = vunpack.c.h.b16 %v4438
        %v5926 = vunpack.c.l.b16 %v4439
        %v5927 = vunpack.c.h.b16 %v4439
        %v5928 = vunpack.c.l.b16 %v4440
        %v5929 = vunpack.c.h.b16 %v4440
        %v5930 = vunpack.c.l.b16 %v4441
        %v5931 = vunpack.c.h.b16 %v4441
        %v5932 = vunpack.c.l.b16 %v4442
        %v5933 = vunpack.c.h.b16 %v4442
        %v5934 = vunpack.c.l.b16 %v4443
        %v5935 = vunpack.c.h.b16 %v4443
        %v5936 = vunpack.c.l.b16 %v4444
        %v5937 = vunpack.c.h.b16 %v4444
        %v5938 = vunpack.c.l.b16 %v4445
        %v5939 = vunpack.c.h.b16 %v4445
        %v5940 = vunpack.c.l.b16 %v4446
        %v5941 = vunpack.c.h.b16 %v4446
        %v5942 = vunpack.c.l.b16 %v4447
        %v5943 = vunpack.c.h.b16 %v4447
        %v5944 = vunpack.c.l.b16 %v4448
        %v5945 = vunpack.c.h.b16 %v4448
        %v5946 = vunpack.c.l.b16 %v4449
        %v5947 = vunpack.c.h.b16 %v4449
        %v5948 = vunpack.c.l.b16 %v4450
        %v5949 = vunpack.c.h.b16 %v4450
        %v5950 = vunpack.c.l.b16 %v4451
        %v5951 = vunpack.c.h.b16 %v4451
        %v5952 = vunpack.c.l.b16 %v4452
        %v5953 = vunpack.c.h.b16 %v4452
        %v5954 = vunpack.c.l.b16 %v4453
        %v5955 = vunpack.c.h.b16 %v4453
        %v5956 = vunpack.c.l.b16 %v4454
        %v5957 = vunpack.c.h.b16 %v4454
        %v5958 = vunpack.c.l.b16 %v4455
        %v5959 = vunpack.c.h.b16 %v4455
        %v5960 = vpack.c.b16 %v5328, %v5320
        %v5961 = vpack.c.b16 %v5329, %v5321
        %v5962 = vpack.c.b16 %v5330, %v5322
        %v5963 = vpack.c.b16 %v5331, %v5323
        %v5964 = vpack.c.b16 %v5332, %v5324
        %v5965 = vpack.c.b16 %v5333, %v5325
        %v5966 = vpack.c.b16 %v5334, %v5326
        %v5967 = vpack.c.b16 %v5335, %v5327
        %v5968 = vpack.c.b16 %v5344, %v5336
        %v5969 = vpack.c.b16 %v5345, %v5337
        %v5970 = vpack.c.b16 %v5346, %v5338
        %v5971 = vpack.c.b16 %v5347, %v5339
        %v5972 = vpack.c.b16 %v5348, %v5340
        %v5973 = vpack.c.b16 %v5349, %v5341
        %v5974 = vpack.c.b16 %v5350, %v5342
        %v5975 = vpack.c.b16 %v5351, %v5343
        %v5976 = vpack.c.b16 %v5360, %v5352
        %v5977 = vpack.c.b16 %v5361, %v5353
        %v5978 = vpack.c.b16 %v5362, %v5354
        %v5979 = vpack.c.b16 %v5363, %v5355
        %v5980 = vpack.c.b16 %v5364, %v5356
        %v5981 = vpack.c.b16 %v5365, %v5357
        %v5982 = vpack.c.b16 %v5366, %v5358
        %v5983 = vpack.c.b16 %v5367, %v5359
        %v5984 = vpack.c.b16 %v5376, %v5368
        %v5985 = vpack.c.b16 %v5377, %v5369
        %v5986 = vpack.c.b16 %v5378, %v5370
        %v5987 = vpack.c.b16 %v5379, %v5371
        %v5988 = vpack.c.b16 %v5380, %v5372
        %v5989 = vpack.c.b16 %v5381, %v5373
        %v5990 = vpack.c.b16 %v5382, %v5374
        %v5991 = vpack.c.b16 %v5383, %v5375
        %v5992 = vpack.c.b16 %v5392, %v5384
        %v5993 = vpack.c.b16 %v5393, %v5385
        %v5994 = vpack.c.b16 %v5394, %v5386
        %v5995 = vpack.c.b16 %v5395, %v5387
        %v5996 = vpack.c.b16 %v5396, %v5388
        %v5997 = vpack.c.b16 %v5397, %v5389
        %v5998 = vpack.c.b16 %v5398, %v5390
        %v5999 = vpack.c.b16 %v5399, %v5391
        %v6000 = vpack.c.b16 %v5408, %v5400
        %v6001 = vpack.c.b16 %v5409, %v5401
        %v6002 = vpack.c.b16 %v5410, %v5402
        %v6003 = vpack.c.b16 %v5411, %v5403
        %v6004 = vpack.c.b16 %v5412, %v5404
        %v6005 = vpack.c.b16 %v5413, %v5405
        %v6006 = vpack.c.b16 %v5414, %v5406
        %v6007 = vpack.c.b16 %v5415, %v5407
        %v6008 = vpack.c.b16 %v5424, %v5416
        %v6009 = vpack.c.b16 %v5425, %v5417
        %v6010 = vpack.c.b16 %v5426, %v5418
        %v6011 = vpack.c.b16 %v5427, %v5419
        %v6012 = vpack.c.b16 %v5428, %v5420
        %v6013 = vpack.c.b16 %v5429, %v5421
        %v6014 = vpack.c.b16 %v5430, %v5422
        %v6015 = vpack.c.b16 %v5431, %v5423
        %v6016 = vpack.c.b16 %v5440, %v5432
        %v6017 = vpack.c.b16 %v5441, %v5433
        %v6018 = vpack.c.b16 %v5442, %v5434
        %v6019 = vpack.c.b16 %v5443, %v5435
        %v6020 = vpack.c.b16 %v5444, %v5436
        %v6021 = vpack.c.b16 %v5445, %v5437
        %v6022 = vpack.c.b16 %v5446, %v5438
        %v6023 = vpack.c.b16 %v5447, %v5439
        %v6024 = vpack.c.b16 %v5456, %v5448
        %v6025 = vpack.c.b16 %v5457, %v5449
        %v6026 = vpack.c.b16 %v5458, %v5450
        %v6027 = vpack.c.b16 %v5459, %v5451
        %v6028 = vpack.c.b16 %v5460, %v5452
        %v6029 = vpack.c.b16 %v5461, %v5453
        %v6030 = vpack.c.b16 %v5462, %v5454
        %v6031 = vpack.c.b16 %v5463, %v5455
        %v6032 = vpack.c.b16 %v5472, %v5464
        %v6033 = vpack.c.b16 %v5473, %v5465
        %v6034 = vpack.c.b16 %v5474, %v5466
        %v6035 = vpack.c.b16 %v5475, %v5467
        %v6036 = vpack.c.b16 %v5476, %v5468
        %v6037 = vpack.c.b16 %v5477, %v5469
        %v6038 = vpack.c.b16 %v5478, %v5470
        %v6039 = vpack.c.b16 %v5479, %v5471
        %v6040 = vpack.c.b16 %v5488, %v5480
        %v6041 = vpack.c.b16 %v5489, %v5481
        %v6042 = vpack.c.b16 %v5490, %v5482
        %v6043 = vpack.c.b16 %v5491, %v5483
        %v6044 = vpack.c.b16 %v5492, %v5484
        %v6045 = vpack.c.b16 %v5493, %v5485
        %v6046 = vpack.c.b16 %v5494, %v5486
        %v6047 = vpack.c.b16 %v5495, %v5487
        %v6048 = vpack.c.b16 %v5504, %v5496
        %v6049 = vpack.c.b16 %v5505, %v5497
        %v6050 = vpack.c.b16 %v5506, %v5498
        %v6051 = vpack.c.b16 %v5507, %v5499
        %v6052 = vpack.c.b16 %v5508, %v5500
        %v6053 = vpack.c.b16 %v5509, %v5501
        %v6054 = vpack.c.b16 %v5510, %v5502
        %v6055 = vpack.c.b16 %v5511, %v5503
        %v6056 = vpack.c.b16 %v5520, %v5512
        %v6057 = vpack.c.b16 %v5521, %v5513
        %v6058 = vpack.c.b16 %v5522, %v5514
        %v6059 = vpack.c.b16 %v5523, %v5515
        %v6060 = vpack.c.b16 %v5524, %v5516
        %v6061 = vpack.c.b16 %v5525, %v5517
        %v6062 = vpack.c.b16 %v5526, %v5518
        %v6063 = vpack.c.b16 %v5527, %v5519
        %v6064 = vpack.c.b16 %v5536, %v5528
        %v6065 = vpack.c.b16 %v5537, %v5529
        %v6066 = vpack.c.b16 %v5538, %v5530
        %v6067 = vpack.c.b16 %v5539, %v5531
        %v6068 = vpack.c.b16 %v5540, %v5532
        %v6069 = vpack.c.b16 %v5541, %v5533
        %v6070 = vpack.c.b16 %v5542, %v5534
        %v6071 = vpack.c.b16 %v5543, %v5535
        %v6072 = vpack.c.b16 %v5552, %v5544
        %v6073 = vpack.c.b16 %v5553, %v5545
        %v6074 = vpack.c.b16 %v5554, %v5546
        %v6075 = vpack.c.b16 %v5555, %v5547
        %v6076 = vpack.c.b16 %v5556, %v5548
        %v6077 = vpack.c.b16 %v5557, %v5549
        %v6078 = vpack.c.b16 %v5558, %v5550
        %v6079 = vpack.c.b16 %v5559, %v5551
        %v6080 = vpack.c.b16 %v5568, %v5560
        %v6081 = vpack.c.b16 %v5569, %v5561
        %v6082 = vpack.c.b16 %v5570, %v5562
        %v6083 = vpack.c.b16 %v5571, %v5563
        %v6084 = vpack.c.b16 %v5572, %v5564
        %v6085 = vpack.c.b16 %v5573, %v5565
        %v6086 = vpack.c.b16 %v5574, %v5566
        %v6087 = vpack.c.b16 %v5575, %v5567
        %v6088 = vpack.c.b16 %v5584, %v5576
        %v6089 = vpack.c.b16 %v5585, %v5577
        %v6090 = vpack.c.b16 %v5586, %v5578
        %v6091 = vpack.c.b16 %v5587, %v5579
        %v6092 = vpack.c.b16 %v5588, %v5580
        %v6093 = vpack.c.b16 %v5589, %v5581
        %v6094 = vpack.c.b16 %v5590, %v5582
        %v6095 = vpack.c.b16 %v5591, %v5583
        %v6096 = vpack.c.b16 %v5600, %v5592
        %v6097 = vpack.c.b16 %v5601, %v5593
        %v6098 = vpack.c.b16 %v5602, %v5594
        %v6099 = vpack.c.b16 %v5603, %v5595
        %v6100 = vpack.c.b16 %v5604, %v5596
        %v6101 = vpack.c.b16 %v5605, %v5597
        %v6102 = vpack.c.b16 %v5606, %v5598
        %v6103 = vpack.c.b16 %v5607, %v5599
        %v6104 = vpack.c.b16 %v5616, %v5608
        %v6105 = vpack.c.b16 %v5617, %v5609
        %v6106 = vpack.c.b16 %v5618, %v5610
        %v6107 = vpack.c.b16 %v5619, %v5611
        %v6108 = vpack.c.b16 %v5620, %v5612
        %v6109 = vpack.c.b16 %v5621, %v5613
        %v6110 = vpack.c.b16 %v5622, %v5614
        %v6111 = vpack.c.b16 %v5623, %v5615
        %v6112 = vpack.c.b16 %v5632, %v5624
        %v6113 = vpack.c.b16 %v5633, %v5625
        %v6114 = vpack.c.b16 %v5634, %v5626
        %v6115 = vpack.c.b16 %v5635, %v5627
        %v6116 = vpack.c.b16 %v5636, %v5628
        %v6117 = vpack.c.b16 %v5637, %v5629
        %v6118 = vpack.c.b16 %v5638, %v5630
        %v6119 = vpack.c.b16 %v5639, %v5631
        %v6120 = vpack.c.b16 %v5648, %v5640
        %v6121 = vpack.c.b16 %v5649, %v5641
        %v6122 = vpack.c.b16 %v5650, %v5642
        %v6123 = vpack.c.b16 %v5651, %v5643
        %v6124 = vpack.c.b16 %v5652, %v5644
        %v6125 = vpack.c.b16 %v5653, %v5645
        %v6126 = vpack.c.b16 %v5654, %v5646
        %v6127 = vpack.c.b16 %v5655, %v5647
        %v6128 = vpack.c.b16 %v5664, %v5656
        %v6129 = vpack.c.b16 %v5665, %v5657
        %v6130 = vpack.c.b16 %v5666, %v5658
        %v6131 = vpack.c.b16 %v5667, %v5659
        %v6132 = vpack.c.b16 %v5668, %v5660
        %v6133 = vpack.c.b16 %v5669, %v5661
        %v6134 = vpack.c.b16 %v5670, %v5662
        %v6135 = vpack.c.b16 %v5671, %v5663
        %v6136 = vpack.c.b16 %v5680, %v5672
        %v6137 = vpack.c.b16 %v5681, %v5673
        %v6138 = vpack.c.b16 %v5682, %v5674
        %v6139 = vpack.c.b16 %v5683, %v5675
        %v6140 = vpack.c.b16 %v5684, %v5676
        %v6141 = vpack.c.b16 %v5685, %v5677
        %v6142 = vpack.c.b16 %v5686, %v5678
        %v6143 = vpack.c.b16 %v5687, %v5679
        %v6144 = vpack.c.b16 %v5696, %v5688
        %v6145 = vpack.c.b16 %v5697, %v5689
        %v6146 = vpack.c.b16 %v5698, %v5690
        %v6147 = vpack.c.b16 %v5699, %v5691
        %v6148 = vpack.c.b16 %v5700, %v5692
        %v6149 = vpack.c.b16 %v5701, %v5693
        %v6150 = vpack.c.b16 %v5702, %v5694
        %v6151 = vpack.c.b16 %v5703, %v5695
        %v6152 = vpack.c.b16 %v5712, %v5704
        %v6153 = vpack.c.b16 %v5713, %v5705
        %v6154 = vpack.c.b16 %v5714, %v5706
        %v6155 = vpack.c.b16 %v5715, %v5707
        %v6156 = vpack.c.b16 %v5716, %v5708
        %v6157 = vpack.c.b16 %v5717, %v5709
        %v6158 = vpack.c.b16 %v5718, %v5710
        %v6159 = vpack.c.b16 %v5719, %v5711
        %v6160 = vpack.c.b16 %v5728, %v5720
        %v6161 = vpack.c.b16 %v5729, %v5721
        %v6162 = vpack.c.b16 %v5730, %v5722
        %v6163 = vpack.c.b16 %v5731, %v5723
        %v6164 = vpack.c.b16 %v5732, %v5724
        %v6165 = vpack.c.b16 %v5733, %v5725
        %v6166 = vpack.c.b16 %v5734, %v5726
        %v6167 = vpack.c.b16 %v5735, %v5727
        %v6168 = vpack.c.b16 %v5744, %v5736
        %v6169 = vpack.c.b16 %v5745, %v5737
        %v6170 = vpack.c.b16 %v5746, %v5738
        %v6171 = vpack.c.b16 %v5747, %v5739
        %v6172 = vpack.c.b16 %v5748, %v5740
        %v6173 = vpack.c.b16 %v5749, %v5741
        %v6174 = vpack.c.b16 %v5750, %v5742
        %v6175 = vpack.c.b16 %v5751, %v5743
        %v6176 = vpack.c.b16 %v5760, %v5752
        %v6177 = vpack.c.b16 %v5761, %v5753
        %v6178 = vpack.c.b16 %v5762, %v5754
        %v6179 = vpack.c.b16 %v5763, %v5755
        %v6180 = vpack.c.b16 %v5764, %v5756
        %v6181 = vpack.c.b16 %v5765, %v5757
        %v6182 = vpack.c.b16 %v5766, %v5758
        %v6183 = vpack.c.b16 %v5767, %v5759
        %v6184 = vpack.c.b16 %v5776, %v5768
        %v6185 = vpack.c.b16 %v5777, %v5769
        %v6186 = vpack.c.b16 %v5778, %v5770
        %v6187 = vpack.c.b16 %v5779, %v5771
        %v6188 = vpack.c.b16 %v5780, %v5772
        %v6189 = vpack.c.b16 %v5781, %v5773
        %v6190 = vpack.c.b16 %v5782, %v5774
        %v6191 = vpack.c.b16 %v5783, %v5775
        %v6192 = vpack.c.b16 %v5792, %v5784
        %v6193 = vpack.c.b16 %v5793, %v5785
        %v6194 = vpack.c.b16 %v5794, %v5786
        %v6195 = vpack.c.b16 %v5795, %v5787
        %v6196 = vpack.c.b16 %v5796, %v5788
        %v6197 = vpack.c.b16 %v5797, %v5789
        %v6198 = vpack.c.b16 %v5798, %v5790
        %v6199 = vpack.c.b16 %v5799, %v5791
        %v6200 = vpack.c.b16 %v5808, %v5800
        %v6201 = vpack.c.b16 %v5809, %v5801
        %v6202 = vpack.c.b16 %v5810, %v5802
        %v6203 = vpack.c.b16 %v5811, %v5803
        %v6204 = vpack.c.b16 %v5812, %v5804
        %v6205 = vpack.c.b16 %v5813, %v5805
        %v6206 = vpack.c.b16 %v5814, %v5806
        %v6207 = vpack.c.b16 %v5815, %v5807
        %v6208 = vpack.c.b16 %v5824, %v5816
        %v6209 = vpack.c.b16 %v5825, %v5817
        %v6210 = vpack.c.b16 %v5826, %v5818
        %v6211 = vpack.c.b16 %v5827, %v5819
        %v6212 = vpack.c.b16 %v5828, %v5820
        %v6213 = vpack.c.b16 %v5829, %v5821
        %v6214 = vpack.c.b16 %v5830, %v5822
        %v6215 = vpack.c.b16 %v5831, %v5823
        %v6216 = vpack.c.b16 %v5840, %v5832
        %v6217 = vpack.c.b16 %v5841, %v5833
        %v6218 = vpack.c.b16 %v5842, %v5834
        %v6219 = vpack.c.b16 %v5843, %v5835
        %v6220 = vpack.c.b16 %v5844, %v5836
        %v6221 = vpack.c.b16 %v5845, %v5837
        %v6222 = vpack.c.b16 %v5846, %v5838
        %v6223 = vpack.c.b16 %v5847, %v5839
        %v6224 = vpack.c.b16 %v5856, %v5848
        %v6225 = vpack.c.b16 %v5857, %v5849
        %v6226 = vpack.c.b16 %v5858, %v5850
        %v6227 = vpack.c.b16 %v5859, %v5851
        %v6228 = vpack.c.b16 %v5860, %v5852
        %v6229 = vpack.c.b16 %v5861, %v5853
        %v6230 = vpack.c.b16 %v5862, %v5854
        %v6231 = vpack.c.b16 %v5863, %v5855
        %v6232 = vpack.c.b16 %v5872, %v5864
        %v6233 = vpack.c.b16 %v5873, %v5865
        %v6234 = vpack.c.b16 %v5874, %v5866
        %v6235 = vpack.c.b16 %v5875, %v5867
        %v6236 = vpack.c.b16 %v5876, %v5868
        %v6237 = vpack.c.b16 %v5877, %v5869
        %v6238 = vpack.c.b16 %v5878, %v5870
        %v6239 = vpack.c.b16 %v5879, %v5871
        %v6240 = vpack.c.b16 %v5888, %v5880
        %v6241 = vpack.c.b16 %v5889, %v5881
        %v6242 = vpack.c.b16 %v5890, %v5882
        %v6243 = vpack.c.b16 %v5891, %v5883
        %v6244 = vpack.c.b16 %v5892, %v5884
        %v6245 = vpack.c.b16 %v5893, %v5885
        %v6246 = vpack.c.b16 %v5894, %v5886
        %v6247 = vpack.c.b16 %v5895, %v5887
        %v6248 = vpack.c.b16 %v5904, %v5896
        %v6249 = vpack.c.b16 %v5905, %v5897
        %v6250 = vpack.c.b16 %v5906, %v5898
        %v6251 = vpack.c.b16 %v5907, %v5899
        %v6252 = vpack.c.b16 %v5908, %v5900
        %v6253 = vpack.c.b16 %v5909, %v5901
        %v6254 = vpack.c.b16 %v5910, %v5902
        %v6255 = vpack.c.b16 %v5911, %v5903
        %v6256 = vpack.c.b16 %v5920, %v5912
        %v6257 = vpack.c.b16 %v5921, %v5913
        %v6258 = vpack.c.b16 %v5922, %v5914
        %v6259 = vpack.c.b16 %v5923, %v5915
        %v6260 = vpack.c.b16 %v5924, %v5916
        %v6261 = vpack.c.b16 %v5925, %v5917
        %v6262 = vpack.c.b16 %v5926, %v5918
        %v6263 = vpack.c.b16 %v5927, %v5919
        %v6264 = vpack.c.b16 %v5936, %v5928
        %v6265 = vpack.c.b16 %v5937, %v5929
        %v6266 = vpack.c.b16 %v5938, %v5930
        %v6267 = vpack.c.b16 %v5939, %v5931
        %v6268 = vpack.c.b16 %v5940, %v5932
        %v6269 = vpack.c.b16 %v5941, %v5933
        %v6270 = vpack.c.b16 %v5942, %v5934
        %v6271 = vpack.c.b16 %v5943, %v5935
        %v6272 = vpack.c.b16 %v5952, %v5944
        %v6273 = vpack.c.b16 %v5953, %v5945
        %v6274 = vpack.c.b16 %v5954, %v5946
        %v6275 = vpack.c.b16 %v5955, %v5947
        %v6276 = vpack.c.b16 %v5956, %v5948
        %v6277 = vpack.c.b16 %v5957, %v5949
        %v6278 = vpack.c.b16 %v5958, %v5950
        %v6279 = vpack.c.b16 %v5959, %v5951
        %6600 = vmatprep.subr.bf16.mxu0 0
        %6601 = vmatpush1.bf16.msra.mxu0 %v4456
        %6602 = vmatprep.subr.bf16.mxu0 0
        %6603 = vmatpush1.bf16.msra.mxu0 %v4457
        %6604 = vmatprep.subr.bf16.mxu0 0
        %6605 = vmatpush1.bf16.msra.mxu0 %v4458
        %6606 = vmatprep.subr.bf16.mxu0 0
        %6607 = vmatpush1.bf16.msra.mxu0 %v4459
        %6608 = vmatprep.subr.bf16.mxu0 0
        %6609 = vmatpush1.bf16.msra.mxu0 %v4460
        %6610 = vmatprep.subr.bf16.mxu0 0
        %6611 = vmatpush1.bf16.msra.mxu0 %v4461
        %6612 = vmatprep.subr.bf16.mxu0 0
        %6613 = vmatpush1.bf16.msra.mxu0 %v4462
        %6614 = vmatprep.subr.bf16.mxu0 0
        %6615 = vmatpush1.bf16.msra.mxu0 %v4463
        %6616 = vmatprep.subr.bf16.mxu0 0
        %6617 = vmatpush1.bf16.msra.mxu0 %v4464
        %6618 = vmatprep.subr.bf16.mxu0 0
        %6619 = vmatpush1.bf16.msra.mxu0 %v4465
        %6620 = vmatprep.subr.bf16.mxu0 0
        %6621 = vmatpush1.bf16.msra.mxu0 %v4466
        %6622 = vmatprep.subr.bf16.mxu0 0
        %6623 = vmatpush1.bf16.msra.mxu0 %v4467
        %6624 = vmatprep.subr.bf16.mxu0 0
        %6625 = vmatpush1.bf16.msra.mxu0 %v4468
        %6626 = vmatprep.subr.bf16.mxu0 0
        %6627 = vmatpush1.bf16.msra.mxu0 %v4469
        %6628 = vmatprep.subr.bf16.mxu0 0
        %6629 = vmatpush1.bf16.msra.mxu0 %v4470
        %6630 = vmatprep.subr.bf16.mxu0 0
        %6631 = vmatpush1.bf16.msra.mxu0 %v4471
        %6632 = vmatprep.mubr.bf16.mxu0 %v5961
        %6633 = vmatmul.mubr.bf16.gmra.mrb[0].mxu0 %v5960
        %v6634 = vpop.f32.mrb[0].mxu0
        %v6635 = vadd.f32 %v4603, %v6634
        %v6636 = vpop.f32.mrb[0].mxu0
        %v6637 = vpop.f32.mrb[0].mxu0
        %v6638 = vadd.f32 %v4608, %v6637
        %v6639 = vpop.f32.mrb[0].mxu0
        %6640 = vmatprep.mubr.bf16.mxu0 %v5969
        %6641 = vmatmul.mubr.bf16.gmra.mrb[0].mxu0 %v5968
        %v6642 = vpop.f32.mrb[0].mxu0
        %v6643 = vadd.f32 %v4613, %v6642
        %v6644 = vpop.f32.mrb[0].mxu0
        %v6645 = vpop.f32.mrb[0].mxu0
        %v6646 = vadd.f32 %v4618, %v6645
        %v6647 = vpop.f32.mrb[0].mxu0
        %6648 = vmatprep.mubr.bf16.mxu0 %v5977
        %6649 = vmatmul.mubr.bf16.gmra.mrb[0].mxu0 %v5976
        %v6650 = vpop.f32.mrb[0].mxu0
        %v6651 = vadd.f32 %v4623, %v6650
        %v6652 = vpop.f32.mrb[0].mxu0
        %v6653 = vpop.f32.mrb[0].mxu0
        %v6654 = vadd.f32 %v4628, %v6653
        %v6655 = vpop.f32.mrb[0].mxu0
        %6656 = vmatprep.mubr.bf16.mxu0 %v5985
        %6657 = vmatmul.mubr.bf16.gmra.mrb[0].mxu0 %v5984
        %v6658 = vpop.f32.mrb[0].mxu0
        %v6659 = vadd.f32 %v4633, %v6658
        %v6660 = vpop.f32.mrb[0].mxu0
        %v6661 = vpop.f32.mrb[0].mxu0
        %v6662 = vadd.f32 %v4638, %v6661
        %v6663 = vpop.f32.mrb[0].mxu0
        %6664 = vmatprep.mubr.bf16.mxu0 %v5993
        %6665 = vmatmul.mubr.bf16.gmra.mrb[0].mxu0 %v5992
        %v6666 = vpop.f32.mrb[0].mxu0
        %v6667 = vadd.f32 %v4643, %v6666
        %v6668 = vpop.f32.mrb[0].mxu0
        %v6669 = vpop.f32.mrb[0].mxu0
        %v6670 = vadd.f32 %v4648, %v6669
        %v6671 = vpop.f32.mrb[0].mxu0
        %6672 = vmatprep.mubr.bf16.mxu0 %v6001
        %6673 = vmatmul.mubr.bf16.gmra.mrb[0].mxu0 %v6000
        %v6674 = vpop.f32.mrb[0].mxu0
        %v6675 = vadd.f32 %v4653, %v6674
        %v6676 = vpop.f32.mrb[0].mxu0
        %v6677 = vpop.f32.mrb[0].mxu0
        %v6678 = vadd.f32 %v4658, %v6677
        %v6679 = vpop.f32.mrb[0].mxu0
        %6680 = vmatprep.mubr.bf16.mxu0 %v6009
        %6681 = vmatmul.mubr.bf16.gmra.mrb[0].mxu0 %v6008
        %v6682 = vpop.f32.mrb[0].mxu0
        %v6683 = vadd.f32 %v4663, %v6682
        %v6684 = vpop.f32.mrb[0].mxu0
        %v6685 = vpop.f32.mrb[0].mxu0
        %v6686 = vadd.f32 %v4668, %v6685
        %v6687 = vpop.f32.mrb[0].mxu0
        %6688 = vmatprep.mubr.bf16.mxu0 %v6017
        %6689 = vmatmul.mubr.bf16.gmra.mrb[0].mxu0 %v6016
        %v6690 = vpop.f32.mrb[0].mxu0
        %v6691 = vadd.f32 %v4673, %v6690
        %v6692 = vpop.f32.mrb[0].mxu0
        %v6693 = vpop.f32.mrb[0].mxu0
        %v6694 = vadd.f32 %v4678, %v6693
        %v6695 = vpop.f32.mrb[0].mxu0
        %6696 = vmatprep.mubr.bf16.mxu0 %v6025
        %6697 = vmatmul.mubr.bf16.gmra.mrb[0].mxu0 %v6024
        %v6698 = vpop.f32.mrb[0].mxu0
        %v6699 = vadd.f32 %v4683, %v6698
        %v6700 = vpop.f32.mrb[0].mxu0
        %v6701 = vpop.f32.mrb[0].mxu0
        %v6702 = vadd.f32 %v4688, %v6701
        %v6703 = vpop.f32.mrb[0].mxu0
        %6704 = vmatprep.mubr.bf16.mxu0 %v6033
        %6705 = vmatmul.mubr.bf16.gmra.mrb[0].mxu0 %v6032
        %v6706 = vpop.f32.mrb[0].mxu0
        %v6707 = vadd.f32 %v4693, %v6706
        %v6708 = vpop.f32.mrb[0].mxu0
        %v6709 = vpop.f32.mrb[0].mxu0
        %v6710 = vadd.f32 %v4698, %v6709
        %v6711 = vpop.f32.mrb[0].mxu0
        %6712 = vmatprep.mubr.bf16.mxu0 %v6041
        %6713 = vmatmul.mubr.bf16.gmra.mrb[0].mxu0 %v6040
        %v6714 = vpop.f32.mrb[0].mxu0
        %v6715 = vadd.f32 %v4703, %v6714
        %v6716 = vpop.f32.mrb[0].mxu0
        %v6717 = vpop.f32.mrb[0].mxu0
        %v6718 = vadd.f32 %v4708, %v6717
        %v6719 = vpop.f32.mrb[0].mxu0
        %6720 = vmatprep.mubr.bf16.mxu0 %v6049
        %6721 = vmatmul.mubr.bf16.gmra.mrb[0].mxu0 %v6048
        %v6722 = vpop.f32.mrb[0].mxu0
        %v6723 = vadd.f32 %v4713, %v6722
        %v6724 = vpop.f32.mrb[0].mxu0
        %v6725 = vpop.f32.mrb[0].mxu0
        %v6726 = vadd.f32 %v4718, %v6725
        %v6727 = vpop.f32.mrb[0].mxu0
        %6728 = vmatprep.mubr.bf16.mxu0 %v6057
        %6729 = vmatmul.mubr.bf16.gmra.mrb[0].mxu0 %v6056
        %v6730 = vpop.f32.mrb[0].mxu0
        %v6731 = vadd.f32 %v4723, %v6730
        %v6732 = vpop.f32.mrb[0].mxu0
        %v6733 = vpop.f32.mrb[0].mxu0
        %v6734 = vadd.f32 %v4728, %v6733
        %v6735 = vpop.f32.mrb[0].mxu0
        %6736 = vmatprep.mubr.bf16.mxu0 %v6065
        %6737 = vmatmul.mubr.bf16.gmra.mrb[0].mxu0 %v6064
        %v6738 = vpop.f32.mrb[0].mxu0
        %v6739 = vadd.f32 %v4733, %v6738
        %v6740 = vpop.f32.mrb[0].mxu0
        %v6741 = vpop.f32.mrb[0].mxu0
        %v6742 = vadd.f32 %v4738, %v6741
        %v6743 = vpop.f32.mrb[0].mxu0
        %6744 = vmatprep.mubr.bf16.mxu0 %v6073
        %6745 = vmatmul.mubr.bf16.gmra.mrb[0].mxu0 %v6072
        %v6746 = vpop.f32.mrb[0].mxu0
        %v6747 = vadd.f32 %v4743, %v6746
        %v6748 = vpop.f32.mrb[0].mxu0
        %v6749 = vpop.f32.mrb[0].mxu0
        %v6750 = vadd.f32 %v4748, %v6749
        %v6751 = vpop.f32.mrb[0].mxu0
        %6752 = vmatprep.mubr.bf16.mxu0 %v6081
        %6753 = vmatmul.mubr.bf16.gmra.mrb[0].mxu0 %v6080
        %v6754 = vpop.f32.mrb[0].mxu0
        %v6755 = vadd.f32 %v4753, %v6754
        %v6756 = vpop.f32.mrb[0].mxu0
        %v6757 = vpop.f32.mrb[0].mxu0
        %v6758 = vadd.f32 %v4758, %v6757
        %v6759 = vpop.f32.mrb[0].mxu0
        %6760 = vmatprep.mubr.bf16.mxu0 %v6089
        %6761 = vmatmul.mubr.bf16.gmra.mrb[0].mxu0 %v6088
        %v6762 = vpop.f32.mrb[0].mxu0
        %v6763 = vadd.f32 %v4763, %v6762
        %v6764 = vpop.f32.mrb[0].mxu0
        %v6765 = vpop.f32.mrb[0].mxu0
        %v6766 = vadd.f32 %v4768, %v6765
        %v6767 = vpop.f32.mrb[0].mxu0
        %6768 = vmatprep.mubr.bf16.mxu0 %v6097
        %6769 = vmatmul.mubr.bf16.gmra.mrb[0].mxu0 %v6096
        %v6770 = vpop.f32.mrb[0].mxu0
        %v6771 = vadd.f32 %v4773, %v6770
        %v6772 = vpop.f32.mrb[0].mxu0
        %v6773 = vpop.f32.mrb[0].mxu0
        %v6774 = vadd.f32 %v4778, %v6773
        %v6775 = vpop.f32.mrb[0].mxu0
        %6776 = vmatprep.mubr.bf16.mxu0 %v6105
        %6777 = vmatmul.mubr.bf16.gmra.mrb[0].mxu0 %v6104
        %v6778 = vpop.f32.mrb[0].mxu0
        %v6779 = vadd.f32 %v4783, %v6778
        %v6780 = vpop.f32.mrb[0].mxu0
        %v6781 = vpop.f32.mrb[0].mxu0
        %v6782 = vadd.f32 %v4788, %v6781
        %v6783 = vpop.f32.mrb[0].mxu0
        %6784 = vmatprep.mubr.bf16.mxu0 %v6113
        %6785 = vmatmul.mubr.bf16.gmra.mrb[0].mxu0 %v6112
        %v6786 = vpop.f32.mrb[0].mxu0
        %v6787 = vadd.f32 %v4793, %v6786
        %v6788 = vpop.f32.mrb[0].mxu0
        %v6789 = vpop.f32.mrb[0].mxu0
        %v6790 = vadd.f32 %v4798, %v6789
        %v6791 = vpop.f32.mrb[0].mxu0
        %6792 = vmatprep.mubr.bf16.mxu0 %v6121
        %6793 = vmatmul.mubr.bf16.gmra.mrb[0].mxu0 %v6120
        %v6794 = vpop.f32.mrb[0].mxu0
        %v6795 = vadd.f32 %v4803, %v6794
        %v6796 = vpop.f32.mrb[0].mxu0
        %v6797 = vpop.f32.mrb[0].mxu0
        %v6798 = vadd.f32 %v4808, %v6797
        %v6799 = vpop.f32.mrb[0].mxu0
        %6800 = vmatprep.mubr.bf16.mxu0 %v6129
        %6801 = vmatmul.mubr.bf16.gmra.mrb[0].mxu0 %v6128
        %v6802 = vpop.f32.mrb[0].mxu0
        %v6803 = vadd.f32 %v4813, %v6802
        %v6804 = vpop.f32.mrb[0].mxu0
        %v6805 = vpop.f32.mrb[0].mxu0
        %v6806 = vadd.f32 %v4818, %v6805
        %v6807 = vpop.f32.mrb[0].mxu0
        %6808 = vmatprep.mubr.bf16.mxu0 %v6137
        %6809 = vmatmul.mubr.bf16.gmra.mrb[0].mxu0 %v6136
        %v6810 = vpop.f32.mrb[0].mxu0
        %v6811 = vadd.f32 %v4823, %v6810
        %v6812 = vpop.f32.mrb[0].mxu0
        %v6813 = vpop.f32.mrb[0].mxu0
        %v6814 = vadd.f32 %v4828, %v6813
        %v6815 = vpop.f32.mrb[0].mxu0
        %6816 = vmatprep.mubr.bf16.mxu0 %v6145
        %6817 = vmatmul.mubr.bf16.gmra.mrb[0].mxu0 %v6144
        %v6818 = vpop.f32.mrb[0].mxu0
        %v6819 = vadd.f32 %v4833, %v6818
        %v6820 = vpop.f32.mrb[0].mxu0
        %v6821 = vpop.f32.mrb[0].mxu0
        %v6822 = vadd.f32 %v4838, %v6821
        %v6823 = vpop.f32.mrb[0].mxu0
        %6824 = vmatprep.mubr.bf16.mxu0 %v6153
        %6825 = vmatmul.mubr.bf16.gmra.mrb[0].mxu0 %v6152
        %v6826 = vpop.f32.mrb[0].mxu0
        %v6827 = vadd.f32 %v4843, %v6826
        %v6828 = vpop.f32.mrb[0].mxu0
        %v6829 = vpop.f32.mrb[0].mxu0
        %v6830 = vadd.f32 %v4848, %v6829
        %v6831 = vpop.f32.mrb[0].mxu0
        %6832 = vmatprep.mubr.bf16.mxu0 %v6161
        %6833 = vmatmul.mubr.bf16.gmra.mrb[0].mxu0 %v6160
        %v6834 = vpop.f32.mrb[0].mxu0
        %v6835 = vadd.f32 %v4853, %v6834
        %v6836 = vpop.f32.mrb[0].mxu0
        %v6837 = vpop.f32.mrb[0].mxu0
        %v6838 = vadd.f32 %v4858, %v6837
        %v6839 = vpop.f32.mrb[0].mxu0
        %6840 = vmatprep.mubr.bf16.mxu0 %v6169
        %6841 = vmatmul.mubr.bf16.gmra.mrb[0].mxu0 %v6168
        %v6842 = vpop.f32.mrb[0].mxu0
        %v6843 = vadd.f32 %v4863, %v6842
        %v6844 = vpop.f32.mrb[0].mxu0
        %v6845 = vpop.f32.mrb[0].mxu0
        %v6846 = vadd.f32 %v4868, %v6845
        %v6847 = vpop.f32.mrb[0].mxu0
        %6848 = vmatprep.mubr.bf16.mxu0 %v6177
        %6849 = vmatmul.mubr.bf16.gmra.mrb[0].mxu0 %v6176
        %v6850 = vpop.f32.mrb[0].mxu0
        %v6851 = vadd.f32 %v4873, %v6850
        %v6852 = vpop.f32.mrb[0].mxu0
        %v6853 = vpop.f32.mrb[0].mxu0
        %v6854 = vadd.f32 %v4878, %v6853
        %v6855 = vpop.f32.mrb[0].mxu0
        %6856 = vmatprep.mubr.bf16.mxu0 %v6185
        %6857 = vmatmul.mubr.bf16.gmra.mrb[0].mxu0 %v6184
        %v6858 = vpop.f32.mrb[0].mxu0
        %v6859 = vadd.f32 %v4883, %v6858
        %v6860 = vpop.f32.mrb[0].mxu0
        %v6861 = vpop.f32.mrb[0].mxu0
        %v6862 = vadd.f32 %v4888, %v6861
        %v6863 = vpop.f32.mrb[0].mxu0
        %6864 = vmatprep.mubr.bf16.mxu0 %v6193
        %6865 = vmatmul.mubr.bf16.gmra.mrb[0].mxu0 %v6192
        %v6866 = vpop.f32.mrb[0].mxu0
        %v6867 = vadd.f32 %v4893, %v6866
        %v6868 = vpop.f32.mrb[0].mxu0
        %v6869 = vpop.f32.mrb[0].mxu0
        %v6870 = vadd.f32 %v4898, %v6869
        %v6871 = vpop.f32.mrb[0].mxu0
        %6872 = vmatprep.mubr.bf16.mxu0 %v6201
        %6873 = vmatmul.mubr.bf16.gmra.mrb[0].mxu0 %v6200
        %v6874 = vpop.f32.mrb[0].mxu0
        %v6875 = vadd.f32 %v4903, %v6874
        %v6876 = vpop.f32.mrb[0].mxu0
        %v6877 = vpop.f32.mrb[0].mxu0
        %v6878 = vadd.f32 %v4908, %v6877
        %v6879 = vpop.f32.mrb[0].mxu0
        %6880 = vmatprep.mubr.bf16.mxu0 %v6209
        %6881 = vmatmul.mubr.bf16.gmra.mrb[0].mxu0 %v6208
        %v6882 = vpop.f32.mrb[0].mxu0
        %v6883 = vadd.f32 %v4913, %v6882
        %v6884 = vpop.f32.mrb[0].mxu0
        %v6885 = vpop.f32.mrb[0].mxu0
        %v6886 = vadd.f32 %v4918, %v6885
        %v6887 = vpop.f32.mrb[0].mxu0
        %6888 = vmatprep.mubr.bf16.mxu0 %v6217
        %6889 = vmatmul.mubr.bf16.gmra.mrb[0].mxu0 %v6216
        %v6890 = vpop.f32.mrb[0].mxu0
        %v6891 = vadd.f32 %v4923, %v6890
        %v6892 = vpop.f32.mrb[0].mxu0
        %v6893 = vpop.f32.mrb[0].mxu0
        %v6894 = vadd.f32 %v4928, %v6893
        %v6895 = vpop.f32.mrb[0].mxu0
        %6896 = vmatprep.mubr.bf16.mxu0 %v6225
        %6897 = vmatmul.mubr.bf16.gmra.mrb[0].mxu0 %v6224
        %v6898 = vpop.f32.mrb[0].mxu0
        %v6899 = vadd.f32 %v4933, %v6898
        %v6900 = vpop.f32.mrb[0].mxu0
        %v6901 = vpop.f32.mrb[0].mxu0
        %v6902 = vadd.f32 %v4938, %v6901
        %v6903 = vpop.f32.mrb[0].mxu0
        %6904 = vmatprep.mubr.bf16.mxu0 %v6233
        %6905 = vmatmul.mubr.bf16.gmra.mrb[0].mxu0 %v6232
        %v6906 = vpop.f32.mrb[0].mxu0
        %v6907 = vadd.f32 %v4943, %v6906
        %v6908 = vpop.f32.mrb[0].mxu0
        %v6909 = vpop.f32.mrb[0].mxu0
        %v6910 = vadd.f32 %v4948, %v6909
        %v6911 = vpop.f32.mrb[0].mxu0
        %6912 = vmatprep.mubr.bf16.mxu0 %v6241
        %6913 = vmatmul.mubr.bf16.gmra.mrb[0].mxu0 %v6240
        %v6914 = vpop.f32.mrb[0].mxu0
        %v6915 = vadd.f32 %v4953, %v6914
        %v6916 = vpop.f32.mrb[0].mxu0
        %v6917 = vpop.f32.mrb[0].mxu0
        %v6918 = vadd.f32 %v4958, %v6917
        %v6919 = vpop.f32.mrb[0].mxu0
        %6920 = vmatprep.mubr.bf16.mxu0 %v6249
        %6921 = vmatmul.mubr.bf16.gmra.mrb[0].mxu0 %v6248
        %v6922 = vpop.f32.mrb[0].mxu0
        %v6923 = vadd.f32 %v4963, %v6922
        %v6924 = vpop.f32.mrb[0].mxu0
        %v6925 = vpop.f32.mrb[0].mxu0
        %v6926 = vadd.f32 %v4968, %v6925
        %v6927 = vpop.f32.mrb[0].mxu0
        %6928 = vmatprep.mubr.bf16.mxu0 %v6257
        %6929 = vmatmul.mubr.bf16.gmra.mrb[0].mxu0 %v6256
        %v6930 = vpop.f32.mrb[0].mxu0
        %v6931 = vadd.f32 %v4973, %v6930
        %v6932 = vpop.f32.mrb[0].mxu0
        %v6933 = vpop.f32.mrb[0].mxu0
        %v6934 = vadd.f32 %v4978, %v6933
        %v6935 = vpop.f32.mrb[0].mxu0
        %6936 = vmatprep.mubr.bf16.mxu0 %v6265
        %6937 = vmatmul.mubr.bf16.gmra.mrb[0].mxu0 %v6264
        %v6938 = vpop.f32.mrb[0].mxu0
        %v6939 = vadd.f32 %v4983, %v6938
        %v6940 = vpop.f32.mrb[0].mxu0
        %v6941 = vpop.f32.mrb[0].mxu0
        %v6942 = vadd.f32 %v4988, %v6941
        %v6943 = vpop.f32.mrb[0].mxu0
        %6944 = vmatprep.mubr.bf16.mxu0 %v6273
        %6945 = vmatmul.mubr.bf16.gmra.mrb[0].mxu0 %v6272
        %v6946 = vpop.f32.mrb[0].mxu0
        %v6947 = vadd.f32 %v4993, %v6946
        %v6948 = vpop.f32.mrb[0].mxu0
        %v6949 = vpop.f32.mrb[0].mxu0
        %v6950 = vadd.f32 %v4998, %v6949
        %v6951 = vpop.f32.mrb[0].mxu0
        %6952 = vdwg.mxu0
        %6953 = vmatprep.subr.bf16.mxu0 0
        %6954 = vmatpush1.bf16.msra.mxu0 %v4472
        %6955 = vmatprep.subr.bf16.mxu0 0
        %6956 = vmatpush1.bf16.msra.mxu0 %v4473
        %6957 = vmatprep.subr.bf16.mxu0 0
        %6958 = vmatpush1.bf16.msra.mxu0 %v4474
        %6959 = vmatprep.subr.bf16.mxu0 0
        %6960 = vmatpush1.bf16.msra.mxu0 %v4475
        %6961 = vmatprep.subr.bf16.mxu0 0
        %6962 = vmatpush1.bf16.msra.mxu0 %v4476
        %6963 = vmatprep.subr.bf16.mxu0 0
        %6964 = vmatpush1.bf16.msra.mxu0 %v4477
        %6965 = vmatprep.subr.bf16.mxu0 0
        %6966 = vmatpush1.bf16.msra.mxu0 %v4478
        %6967 = vmatprep.subr.bf16.mxu0 0
        %6968 = vmatpush1.bf16.msra.mxu0 %v4479
        %6969 = vmatprep.subr.bf16.mxu0 0
        %6970 = vmatpush1.bf16.msra.mxu0 %v4480
        %6971 = vmatprep.subr.bf16.mxu0 0
        %6972 = vmatpush1.bf16.msra.mxu0 %v4481
        %6973 = vmatprep.subr.bf16.mxu0 0
        %6974 = vmatpush1.bf16.msra.mxu0 %v4482
        %6975 = vmatprep.subr.bf16.mxu0 0
        %6976 = vmatpush1.bf16.msra.mxu0 %v4483
        %6977 = vmatprep.subr.bf16.mxu0 0
        %6978 = vmatpush1.bf16.msra.mxu0 %v4484
        %6979 = vmatprep.subr.bf16.mxu0 0
        %6980 = vmatpush1.bf16.msra.mxu0 %v4485
        %6981 = vmatprep.subr.bf16.mxu0 0
        %6982 = vmatpush1.bf16.msra.mxu0 %v4486
        %6983 = vmatprep.subr.bf16.mxu0 0
        %6984 = vmatpush1.bf16.msra.mxu0 %v4487
        %6985 = vmatprep.mubr.bf16.mxu0 %v5963
        %6986 = vmatmul.mubr.bf16.gmra.mrb[0].mxu0 %v5962
        %v6987 = vpop.f32.mrb[0].mxu0
        %v6988 = vadd.f32 %v6635, %v6987
        %v6989 = vpop.f32.mrb[0].mxu0
        %v6990 = vpop.f32.mrb[0].mxu0
        %v6991 = vadd.f32 %v6638, %v6990
        %v6992 = vpop.f32.mrb[0].mxu0
        %6993 = vmatprep.mubr.bf16.mxu0 %v5971
        %6994 = vmatmul.mubr.bf16.gmra.mrb[0].mxu0 %v5970
        %v6995 = vpop.f32.mrb[0].mxu0
        %v6996 = vadd.f32 %v6643, %v6995
        %v6997 = vpop.f32.mrb[0].mxu0
        %v6998 = vpop.f32.mrb[0].mxu0
        %v6999 = vadd.f32 %v6646, %v6998
        %v7000 = vpop.f32.mrb[0].mxu0
        %7001 = vmatprep.mubr.bf16.mxu0 %v5979
        %7002 = vmatmul.mubr.bf16.gmra.mrb[0].mxu0 %v5978
        %v7003 = vpop.f32.mrb[0].mxu0
        %v7004 = vadd.f32 %v6651, %v7003
        %v7005 = vpop.f32.mrb[0].mxu0
        %v7006 = vpop.f32.mrb[0].mxu0
        %v7007 = vadd.f32 %v6654, %v7006
        %v7008 = vpop.f32.mrb[0].mxu0
        %7009 = vmatprep.mubr.bf16.mxu0 %v5987
        %7010 = vmatmul.mubr.bf16.gmra.mrb[0].mxu0 %v5986
        %v7011 = vpop.f32.mrb[0].mxu0
        %v7012 = vadd.f32 %v6659, %v7011
        %v7013 = vpop.f32.mrb[0].mxu0
        %v7014 = vpop.f32.mrb[0].mxu0
        %v7015 = vadd.f32 %v6662, %v7014
        %v7016 = vpop.f32.mrb[0].mxu0
        %7017 = vmatprep.mubr.bf16.mxu0 %v5995
        %7018 = vmatmul.mubr.bf16.gmra.mrb[0].mxu0 %v5994
        %v7019 = vpop.f32.mrb[0].mxu0
        %v7020 = vadd.f32 %v6667, %v7019
        %v7021 = vpop.f32.mrb[0].mxu0
        %v7022 = vpop.f32.mrb[0].mxu0
        %v7023 = vadd.f32 %v6670, %v7022
        %v7024 = vpop.f32.mrb[0].mxu0
        %7025 = vmatprep.mubr.bf16.mxu0 %v6003
        %7026 = vmatmul.mubr.bf16.gmra.mrb[0].mxu0 %v6002
        %v7027 = vpop.f32.mrb[0].mxu0
        %v7028 = vadd.f32 %v6675, %v7027
        %v7029 = vpop.f32.mrb[0].mxu0
        %v7030 = vpop.f32.mrb[0].mxu0
        %v7031 = vadd.f32 %v6678, %v7030
        %v7032 = vpop.f32.mrb[0].mxu0
        %7033 = vmatprep.mubr.bf16.mxu0 %v6011
        %7034 = vmatmul.mubr.bf16.gmra.mrb[0].mxu0 %v6010
        %v7035 = vpop.f32.mrb[0].mxu0
        %v7036 = vadd.f32 %v6683, %v7035
        %v7037 = vpop.f32.mrb[0].mxu0
        %v7038 = vpop.f32.mrb[0].mxu0
        %v7039 = vadd.f32 %v6686, %v7038
        %v7040 = vpop.f32.mrb[0].mxu0
        %7041 = vmatprep.mubr.bf16.mxu0 %v6019
        %7042 = vmatmul.mubr.bf16.gmra.mrb[0].mxu0 %v6018
        %v7043 = vpop.f32.mrb[0].mxu0
        %v7044 = vadd.f32 %v6691, %v7043
        %v7045 = vpop.f32.mrb[0].mxu0
        %v7046 = vpop.f32.mrb[0].mxu0
        %v7047 = vadd.f32 %v6694, %v7046
        %v7048 = vpop.f32.mrb[0].mxu0
        %7049 = vmatprep.mubr.bf16.mxu0 %v6027
        %7050 = vmatmul.mubr.bf16.gmra.mrb[0].mxu0 %v6026
        %v7051 = vpop.f32.mrb[0].mxu0
        %v7052 = vadd.f32 %v6699, %v7051
        %v7053 = vpop.f32.mrb[0].mxu0
        %v7054 = vpop.f32.mrb[0].mxu0
        %v7055 = vadd.f32 %v6702, %v7054
        %v7056 = vpop.f32.mrb[0].mxu0
        %7057 = vmatprep.mubr.bf16.mxu0 %v6035
        %7058 = vmatmul.mubr.bf16.gmra.mrb[0].mxu0 %v6034
        %v7059 = vpop.f32.mrb[0].mxu0
        %v7060 = vadd.f32 %v6707, %v7059
        %v7061 = vpop.f32.mrb[0].mxu0
        %v7062 = vpop.f32.mrb[0].mxu0
        %v7063 = vadd.f32 %v6710, %v7062
        %v7064 = vpop.f32.mrb[0].mxu0
        %7065 = vmatprep.mubr.bf16.mxu0 %v6043
        %7066 = vmatmul.mubr.bf16.gmra.mrb[0].mxu0 %v6042
        %v7067 = vpop.f32.mrb[0].mxu0
        %v7068 = vadd.f32 %v6715, %v7067
        %v7069 = vpop.f32.mrb[0].mxu0
        %v7070 = vpop.f32.mrb[0].mxu0
        %v7071 = vadd.f32 %v6718, %v7070
        %v7072 = vpop.f32.mrb[0].mxu0
        %7073 = vmatprep.mubr.bf16.mxu0 %v6051
        %7074 = vmatmul.mubr.bf16.gmra.mrb[0].mxu0 %v6050
        %v7075 = vpop.f32.mrb[0].mxu0
        %v7076 = vadd.f32 %v6723, %v7075
        %v7077 = vpop.f32.mrb[0].mxu0
        %v7078 = vpop.f32.mrb[0].mxu0
        %v7079 = vadd.f32 %v6726, %v7078
        %v7080 = vpop.f32.mrb[0].mxu0
        %7081 = vmatprep.mubr.bf16.mxu0 %v6059
        %7082 = vmatmul.mubr.bf16.gmra.mrb[0].mxu0 %v6058
        %v7083 = vpop.f32.mrb[0].mxu0
        %v7084 = vadd.f32 %v6731, %v7083
        %v7085 = vpop.f32.mrb[0].mxu0
        %v7086 = vpop.f32.mrb[0].mxu0
        %v7087 = vadd.f32 %v6734, %v7086
        %v7088 = vpop.f32.mrb[0].mxu0
        %7089 = vmatprep.mubr.bf16.mxu0 %v6067
        %7090 = vmatmul.mubr.bf16.gmra.mrb[0].mxu0 %v6066
        %v7091 = vpop.f32.mrb[0].mxu0
        %v7092 = vadd.f32 %v6739, %v7091
        %v7093 = vpop.f32.mrb[0].mxu0
        %v7094 = vpop.f32.mrb[0].mxu0
        %v7095 = vadd.f32 %v6742, %v7094
        %v7096 = vpop.f32.mrb[0].mxu0
        %7097 = vmatprep.mubr.bf16.mxu0 %v6075
        %7098 = vmatmul.mubr.bf16.gmra.mrb[0].mxu0 %v6074
        %v7099 = vpop.f32.mrb[0].mxu0
        %v7100 = vadd.f32 %v6747, %v7099
        %v7101 = vpop.f32.mrb[0].mxu0
        %v7102 = vpop.f32.mrb[0].mxu0
        %v7103 = vadd.f32 %v6750, %v7102
        %v7104 = vpop.f32.mrb[0].mxu0
        %7105 = vmatprep.mubr.bf16.mxu0 %v6083
        %7106 = vmatmul.mubr.bf16.gmra.mrb[0].mxu0 %v6082
        %v7107 = vpop.f32.mrb[0].mxu0
        %v7108 = vadd.f32 %v6755, %v7107
        %v7109 = vpop.f32.mrb[0].mxu0
        %v7110 = vpop.f32.mrb[0].mxu0
        %v7111 = vadd.f32 %v6758, %v7110
        %v7112 = vpop.f32.mrb[0].mxu0
        %7113 = vmatprep.mubr.bf16.mxu0 %v6091
        %7114 = vmatmul.mubr.bf16.gmra.mrb[0].mxu0 %v6090
        %v7115 = vpop.f32.mrb[0].mxu0
        %v7116 = vadd.f32 %v6763, %v7115
        %v7117 = vpop.f32.mrb[0].mxu0
        %v7118 = vpop.f32.mrb[0].mxu0
        %v7119 = vadd.f32 %v6766, %v7118
        %v7120 = vpop.f32.mrb[0].mxu0
        %7121 = vmatprep.mubr.bf16.mxu0 %v6099
        %7122 = vmatmul.mubr.bf16.gmra.mrb[0].mxu0 %v6098
        %v7123 = vpop.f32.mrb[0].mxu0
        %v7124 = vadd.f32 %v6771, %v7123
        %v7125 = vpop.f32.mrb[0].mxu0
        %v7126 = vpop.f32.mrb[0].mxu0
        %v7127 = vadd.f32 %v6774, %v7126
        %v7128 = vpop.f32.mrb[0].mxu0
        %7129 = vmatprep.mubr.bf16.mxu0 %v6107
        %7130 = vmatmul.mubr.bf16.gmra.mrb[0].mxu0 %v6106
        %v7131 = vpop.f32.mrb[0].mxu0
        %v7132 = vadd.f32 %v6779, %v7131
        %v7133 = vpop.f32.mrb[0].mxu0
        %v7134 = vpop.f32.mrb[0].mxu0
        %v7135 = vadd.f32 %v6782, %v7134
        %v7136 = vpop.f32.mrb[0].mxu0
        %7137 = vmatprep.mubr.bf16.mxu0 %v6115
        %7138 = vmatmul.mubr.bf16.gmra.mrb[0].mxu0 %v6114
        %v7139 = vpop.f32.mrb[0].mxu0
        %v7140 = vadd.f32 %v6787, %v7139
        %v7141 = vpop.f32.mrb[0].mxu0
        %v7142 = vpop.f32.mrb[0].mxu0
        %v7143 = vadd.f32 %v6790, %v7142
        %v7144 = vpop.f32.mrb[0].mxu0
        %7145 = vmatprep.mubr.bf16.mxu0 %v6123
        %7146 = vmatmul.mubr.bf16.gmra.mrb[0].mxu0 %v6122
        %v7147 = vpop.f32.mrb[0].mxu0
        %v7148 = vadd.f32 %v6795, %v7147
        %v7149 = vpop.f32.mrb[0].mxu0
        %v7150 = vpop.f32.mrb[0].mxu0
        %v7151 = vadd.f32 %v6798, %v7150
        %v7152 = vpop.f32.mrb[0].mxu0
        %7153 = vmatprep.mubr.bf16.mxu0 %v6131
        %7154 = vmatmul.mubr.bf16.gmra.mrb[0].mxu0 %v6130
        %v7155 = vpop.f32.mrb[0].mxu0
        %v7156 = vadd.f32 %v6803, %v7155
        %v7157 = vpop.f32.mrb[0].mxu0
        %v7158 = vpop.f32.mrb[0].mxu0
        %v7159 = vadd.f32 %v6806, %v7158
        %v7160 = vpop.f32.mrb[0].mxu0
        %7161 = vmatprep.mubr.bf16.mxu0 %v6139
        %7162 = vmatmul.mubr.bf16.gmra.mrb[0].mxu0 %v6138
        %v7163 = vpop.f32.mrb[0].mxu0
        %v7164 = vadd.f32 %v6811, %v7163
        %v7165 = vpop.f32.mrb[0].mxu0
        %v7166 = vpop.f32.mrb[0].mxu0
        %v7167 = vadd.f32 %v6814, %v7166
        %v7168 = vpop.f32.mrb[0].mxu0
        %7169 = vmatprep.mubr.bf16.mxu0 %v6147
        %7170 = vmatmul.mubr.bf16.gmra.mrb[0].mxu0 %v6146
        %v7171 = vpop.f32.mrb[0].mxu0
        %v7172 = vadd.f32 %v6819, %v7171
        %v7173 = vpop.f32.mrb[0].mxu0
        %v7174 = vpop.f32.mrb[0].mxu0
        %v7175 = vadd.f32 %v6822, %v7174
        %v7176 = vpop.f32.mrb[0].mxu0
        %7177 = vmatprep.mubr.bf16.mxu0 %v6155
        %7178 = vmatmul.mubr.bf16.gmra.mrb[0].mxu0 %v6154
        %v7179 = vpop.f32.mrb[0].mxu0
        %v7180 = vadd.f32 %v6827, %v7179
        %v7181 = vpop.f32.mrb[0].mxu0
        %v7182 = vpop.f32.mrb[0].mxu0
        %v7183 = vadd.f32 %v6830, %v7182
        %v7184 = vpop.f32.mrb[0].mxu0
        %7185 = vmatprep.mubr.bf16.mxu0 %v6163
        %7186 = vmatmul.mubr.bf16.gmra.mrb[0].mxu0 %v6162
        %v7187 = vpop.f32.mrb[0].mxu0
        %v7188 = vadd.f32 %v6835, %v7187
        %v7189 = vpop.f32.mrb[0].mxu0
        %v7190 = vpop.f32.mrb[0].mxu0
        %v7191 = vadd.f32 %v6838, %v7190
        %v7192 = vpop.f32.mrb[0].mxu0
        %7193 = vmatprep.mubr.bf16.mxu0 %v6171
        %7194 = vmatmul.mubr.bf16.gmra.mrb[0].mxu0 %v6170
        %v7195 = vpop.f32.mrb[0].mxu0
        %v7196 = vadd.f32 %v6843, %v7195
        %v7197 = vpop.f32.mrb[0].mxu0
        %v7198 = vpop.f32.mrb[0].mxu0
        %v7199 = vadd.f32 %v6846, %v7198
        %v7200 = vpop.f32.mrb[0].mxu0
        %7201 = vmatprep.mubr.bf16.mxu0 %v6179
        %7202 = vmatmul.mubr.bf16.gmra.mrb[0].mxu0 %v6178
        %v7203 = vpop.f32.mrb[0].mxu0
        %v7204 = vadd.f32 %v6851, %v7203
        %v7205 = vpop.f32.mrb[0].mxu0
        %v7206 = vpop.f32.mrb[0].mxu0
        %v7207 = vadd.f32 %v6854, %v7206
        %v7208 = vpop.f32.mrb[0].mxu0
        %7209 = vmatprep.mubr.bf16.mxu0 %v6187
        %7210 = vmatmul.mubr.bf16.gmra.mrb[0].mxu0 %v6186
        %v7211 = vpop.f32.mrb[0].mxu0
        %v7212 = vadd.f32 %v6859, %v7211
        %v7213 = vpop.f32.mrb[0].mxu0
        %v7214 = vpop.f32.mrb[0].mxu0
        %v7215 = vadd.f32 %v6862, %v7214
        %v7216 = vpop.f32.mrb[0].mxu0
        %7217 = vmatprep.mubr.bf16.mxu0 %v6195
        %7218 = vmatmul.mubr.bf16.gmra.mrb[0].mxu0 %v6194
        %v7219 = vpop.f32.mrb[0].mxu0
        %v7220 = vadd.f32 %v6867, %v7219
        %v7221 = vpop.f32.mrb[0].mxu0
        %v7222 = vpop.f32.mrb[0].mxu0
        %v7223 = vadd.f32 %v6870, %v7222
        %v7224 = vpop.f32.mrb[0].mxu0
        %7225 = vmatprep.mubr.bf16.mxu0 %v6203
        %7226 = vmatmul.mubr.bf16.gmra.mrb[0].mxu0 %v6202
        %v7227 = vpop.f32.mrb[0].mxu0
        %v7228 = vadd.f32 %v6875, %v7227
        %v7229 = vpop.f32.mrb[0].mxu0
        %v7230 = vpop.f32.mrb[0].mxu0
        %v7231 = vadd.f32 %v6878, %v7230
        %v7232 = vpop.f32.mrb[0].mxu0
        %7233 = vmatprep.mubr.bf16.mxu0 %v6211
        %7234 = vmatmul.mubr.bf16.gmra.mrb[0].mxu0 %v6210
        %v7235 = vpop.f32.mrb[0].mxu0
        %v7236 = vadd.f32 %v6883, %v7235
        %v7237 = vpop.f32.mrb[0].mxu0
        %v7238 = vpop.f32.mrb[0].mxu0
        %v7239 = vadd.f32 %v6886, %v7238
        %v7240 = vpop.f32.mrb[0].mxu0
        %7241 = vmatprep.mubr.bf16.mxu0 %v6219
        %7242 = vmatmul.mubr.bf16.gmra.mrb[0].mxu0 %v6218
        %v7243 = vpop.f32.mrb[0].mxu0
        %v7244 = vadd.f32 %v6891, %v7243
        %v7245 = vpop.f32.mrb[0].mxu0
        %v7246 = vpop.f32.mrb[0].mxu0
        %v7247 = vadd.f32 %v6894, %v7246
        %v7248 = vpop.f32.mrb[0].mxu0
        %7249 = vmatprep.mubr.bf16.mxu0 %v6227
        %7250 = vmatmul.mubr.bf16.gmra.mrb[0].mxu0 %v6226
        %v7251 = vpop.f32.mrb[0].mxu0
        %v7252 = vadd.f32 %v6899, %v7251
        %v7253 = vpop.f32.mrb[0].mxu0
        %v7254 = vpop.f32.mrb[0].mxu0
        %v7255 = vadd.f32 %v6902, %v7254
        %v7256 = vpop.f32.mrb[0].mxu0
        %7257 = vmatprep.mubr.bf16.mxu0 %v6235
        %7258 = vmatmul.mubr.bf16.gmra.mrb[0].mxu0 %v6234
        %v7259 = vpop.f32.mrb[0].mxu0
        %v7260 = vadd.f32 %v6907, %v7259
        %v7261 = vpop.f32.mrb[0].mxu0
        %v7262 = vpop.f32.mrb[0].mxu0
        %v7263 = vadd.f32 %v6910, %v7262
        %v7264 = vpop.f32.mrb[0].mxu0
        %7265 = vmatprep.mubr.bf16.mxu0 %v6243
        %7266 = vmatmul.mubr.bf16.gmra.mrb[0].mxu0 %v6242
        %v7267 = vpop.f32.mrb[0].mxu0
        %v7268 = vadd.f32 %v6915, %v7267
        %v7269 = vpop.f32.mrb[0].mxu0
        %v7270 = vpop.f32.mrb[0].mxu0
        %v7271 = vadd.f32 %v6918, %v7270
        %v7272 = vpop.f32.mrb[0].mxu0
        %7273 = vmatprep.mubr.bf16.mxu0 %v6251
        %7274 = vmatmul.mubr.bf16.gmra.mrb[0].mxu0 %v6250
        %v7275 = vpop.f32.mrb[0].mxu0
        %v7276 = vadd.f32 %v6923, %v7275
        %v7277 = vpop.f32.mrb[0].mxu0
        %v7278 = vpop.f32.mrb[0].mxu0
        %v7279 = vadd.f32 %v6926, %v7278
        %v7280 = vpop.f32.mrb[0].mxu0
        %7281 = vmatprep.mubr.bf16.mxu0 %v6259
        %7282 = vmatmul.mubr.bf16.gmra.mrb[0].mxu0 %v6258
        %v7283 = vpop.f32.mrb[0].mxu0
        %v7284 = vadd.f32 %v6931, %v7283
        %v7285 = vpop.f32.mrb[0].mxu0
        %v7286 = vpop.f32.mrb[0].mxu0
        %v7287 = vadd.f32 %v6934, %v7286
        %v7288 = vpop.f32.mrb[0].mxu0
        %7289 = vmatprep.mubr.bf16.mxu0 %v6267
        %7290 = vmatmul.mubr.bf16.gmra.mrb[0].mxu0 %v6266
        %v7291 = vpop.f32.mrb[0].mxu0
        %v7292 = vadd.f32 %v6939, %v7291
        %v7293 = vpop.f32.mrb[0].mxu0
        %v7294 = vpop.f32.mrb[0].mxu0
        %v7295 = vadd.f32 %v6942, %v7294
        %v7296 = vpop.f32.mrb[0].mxu0
        %7297 = vmatprep.mubr.bf16.mxu0 %v6275
        %7298 = vmatmul.mubr.bf16.gmra.mrb[0].mxu0 %v6274
        %v7299 = vpop.f32.mrb[0].mxu0
        %v7300 = vadd.f32 %v6947, %v7299
        %v7301 = vpop.f32.mrb[0].mxu0
        %v7302 = vpop.f32.mrb[0].mxu0
        %v7303 = vadd.f32 %v6950, %v7302
        %v7304 = vpop.f32.mrb[0].mxu0
        %7305 = vdwg.mxu0
        %7306 = vmatprep.subr.bf16.mxu0 0
        %7307 = vmatpush1.bf16.msra.mxu0 %v4488
        %7308 = vmatprep.subr.bf16.mxu0 0
        %7309 = vmatpush1.bf16.msra.mxu0 %v4489
        %7310 = vmatprep.subr.bf16.mxu0 0
        %7311 = vmatpush1.bf16.msra.mxu0 %v4490
        %7312 = vmatprep.subr.bf16.mxu0 0
        %7313 = vmatpush1.bf16.msra.mxu0 %v4491
        %7314 = vmatprep.subr.bf16.mxu0 0
        %7315 = vmatpush1.bf16.msra.mxu0 %v4492
        %7316 = vmatprep.subr.bf16.mxu0 0
        %7317 = vmatpush1.bf16.msra.mxu0 %v4493
        %7318 = vmatprep.subr.bf16.mxu0 0
        %7319 = vmatpush1.bf16.msra.mxu0 %v4494
        %7320 = vmatprep.subr.bf16.mxu0 0
        %7321 = vmatpush1.bf16.msra.mxu0 %v4495
        %7322 = vmatprep.subr.bf16.mxu0 0
        %7323 = vmatpush1.bf16.msra.mxu0 %v4496
        %7324 = vmatprep.subr.bf16.mxu0 0
        %7325 = vmatpush1.bf16.msra.mxu0 %v4497
        %7326 = vmatprep.subr.bf16.mxu0 0
        %7327 = vmatpush1.bf16.msra.mxu0 %v4498
        %7328 = vmatprep.subr.bf16.mxu0 0
        %7329 = vmatpush1.bf16.msra.mxu0 %v4499
        %7330 = vmatprep.subr.bf16.mxu0 0
        %7331 = vmatpush1.bf16.msra.mxu0 %v4500
        %7332 = vmatprep.subr.bf16.mxu0 0
        %7333 = vmatpush1.bf16.msra.mxu0 %v4501
        %7334 = vmatprep.subr.bf16.mxu0 0
        %7335 = vmatpush1.bf16.msra.mxu0 %v4502
        %7336 = vmatprep.subr.bf16.mxu0 0
        %7337 = vmatpush1.bf16.msra.mxu0 %v4503
        %7338 = vmatprep.mubr.bf16.mxu0 %v5965
        %7339 = vmatmul.mubr.bf16.gmra.mrb[0].mxu0 %v5964
        %v7340 = vpop.f32.mrb[0].mxu0
        %v7341 = vadd.f32 %v6988, %v7340
        %v7342 = vpop.f32.mrb[0].mxu0
        %v7343 = vpop.f32.mrb[0].mxu0
        %v7344 = vadd.f32 %v6991, %v7343
        %v7345 = vpop.f32.mrb[0].mxu0
        %7346 = vmatprep.mubr.bf16.mxu0 %v5973
        %7347 = vmatmul.mubr.bf16.gmra.mrb[0].mxu0 %v5972
        %v7348 = vpop.f32.mrb[0].mxu0
        %v7349 = vadd.f32 %v6996, %v7348
        %v7350 = vpop.f32.mrb[0].mxu0
        %v7351 = vpop.f32.mrb[0].mxu0
        %v7352 = vadd.f32 %v6999, %v7351
        %v7353 = vpop.f32.mrb[0].mxu0
        %7354 = vmatprep.mubr.bf16.mxu0 %v5981
        %7355 = vmatmul.mubr.bf16.gmra.mrb[0].mxu0 %v5980
        %v7356 = vpop.f32.mrb[0].mxu0
        %v7357 = vadd.f32 %v7004, %v7356
        %v7358 = vpop.f32.mrb[0].mxu0
        %v7359 = vpop.f32.mrb[0].mxu0
        %v7360 = vadd.f32 %v7007, %v7359
        %v7361 = vpop.f32.mrb[0].mxu0
        %7362 = vmatprep.mubr.bf16.mxu0 %v5989
        %7363 = vmatmul.mubr.bf16.gmra.mrb[0].mxu0 %v5988
        %v7364 = vpop.f32.mrb[0].mxu0
        %v7365 = vadd.f32 %v7012, %v7364
        %v7366 = vpop.f32.mrb[0].mxu0
        %v7367 = vpop.f32.mrb[0].mxu0
        %v7368 = vadd.f32 %v7015, %v7367
        %v7369 = vpop.f32.mrb[0].mxu0
        %7370 = vmatprep.mubr.bf16.mxu0 %v5997
        %7371 = vmatmul.mubr.bf16.gmra.mrb[0].mxu0 %v5996
        %v7372 = vpop.f32.mrb[0].mxu0
        %v7373 = vadd.f32 %v7020, %v7372
        %v7374 = vpop.f32.mrb[0].mxu0
        %v7375 = vpop.f32.mrb[0].mxu0
        %v7376 = vadd.f32 %v7023, %v7375
        %v7377 = vpop.f32.mrb[0].mxu0
        %7378 = vmatprep.mubr.bf16.mxu0 %v6005
        %7379 = vmatmul.mubr.bf16.gmra.mrb[0].mxu0 %v6004
        %v7380 = vpop.f32.mrb[0].mxu0
        %v7381 = vadd.f32 %v7028, %v7380
        %v7382 = vpop.f32.mrb[0].mxu0
        %v7383 = vpop.f32.mrb[0].mxu0
        %v7384 = vadd.f32 %v7031, %v7383
        %v7385 = vpop.f32.mrb[0].mxu0
        %7386 = vmatprep.mubr.bf16.mxu0 %v6013
        %7387 = vmatmul.mubr.bf16.gmra.mrb[0].mxu0 %v6012
        %v7388 = vpop.f32.mrb[0].mxu0
        %v7389 = vadd.f32 %v7036, %v7388
        %v7390 = vpop.f32.mrb[0].mxu0
        %v7391 = vpop.f32.mrb[0].mxu0
        %v7392 = vadd.f32 %v7039, %v7391
        %v7393 = vpop.f32.mrb[0].mxu0
        %7394 = vmatprep.mubr.bf16.mxu0 %v6021
        %7395 = vmatmul.mubr.bf16.gmra.mrb[0].mxu0 %v6020
        %v7396 = vpop.f32.mrb[0].mxu0
        %v7397 = vadd.f32 %v7044, %v7396
        %v7398 = vpop.f32.mrb[0].mxu0
        %v7399 = vpop.f32.mrb[0].mxu0
        %v7400 = vadd.f32 %v7047, %v7399
        %v7401 = vpop.f32.mrb[0].mxu0
        %7402 = vmatprep.mubr.bf16.mxu0 %v6029
        %7403 = vmatmul.mubr.bf16.gmra.mrb[0].mxu0 %v6028
        %v7404 = vpop.f32.mrb[0].mxu0
        %v7405 = vadd.f32 %v7052, %v7404
        %v7406 = vpop.f32.mrb[0].mxu0
        %v7407 = vpop.f32.mrb[0].mxu0
        %v7408 = vadd.f32 %v7055, %v7407
        %v7409 = vpop.f32.mrb[0].mxu0
        %7410 = vmatprep.mubr.bf16.mxu0 %v6037
        %7411 = vmatmul.mubr.bf16.gmra.mrb[0].mxu0 %v6036
        %v7412 = vpop.f32.mrb[0].mxu0
        %v7413 = vadd.f32 %v7060, %v7412
        %v7414 = vpop.f32.mrb[0].mxu0
        %v7415 = vpop.f32.mrb[0].mxu0
        %v7416 = vadd.f32 %v7063, %v7415
        %v7417 = vpop.f32.mrb[0].mxu0
        %7418 = vmatprep.mubr.bf16.mxu0 %v6045
        %7419 = vmatmul.mubr.bf16.gmra.mrb[0].mxu0 %v6044
        %v7420 = vpop.f32.mrb[0].mxu0
        %v7421 = vadd.f32 %v7068, %v7420
        %v7422 = vpop.f32.mrb[0].mxu0
        %v7423 = vpop.f32.mrb[0].mxu0
        %v7424 = vadd.f32 %v7071, %v7423
        %v7425 = vpop.f32.mrb[0].mxu0
        %7426 = vmatprep.mubr.bf16.mxu0 %v6053
        %7427 = vmatmul.mubr.bf16.gmra.mrb[0].mxu0 %v6052
        %v7428 = vpop.f32.mrb[0].mxu0
        %v7429 = vadd.f32 %v7076, %v7428
        %v7430 = vpop.f32.mrb[0].mxu0
        %v7431 = vpop.f32.mrb[0].mxu0
        %v7432 = vadd.f32 %v7079, %v7431
        %v7433 = vpop.f32.mrb[0].mxu0
        %7434 = vmatprep.mubr.bf16.mxu0 %v6061
        %7435 = vmatmul.mubr.bf16.gmra.mrb[0].mxu0 %v6060
        %v7436 = vpop.f32.mrb[0].mxu0
        %v7437 = vadd.f32 %v7084, %v7436
        %v7438 = vpop.f32.mrb[0].mxu0
        %v7439 = vpop.f32.mrb[0].mxu0
        %v7440 = vadd.f32 %v7087, %v7439
        %v7441 = vpop.f32.mrb[0].mxu0
        %7442 = vmatprep.mubr.bf16.mxu0 %v6069
        %7443 = vmatmul.mubr.bf16.gmra.mrb[0].mxu0 %v6068
        %v7444 = vpop.f32.mrb[0].mxu0
        %v7445 = vadd.f32 %v7092, %v7444
        %v7446 = vpop.f32.mrb[0].mxu0
        %v7447 = vpop.f32.mrb[0].mxu0
        %v7448 = vadd.f32 %v7095, %v7447
        %v7449 = vpop.f32.mrb[0].mxu0
        %7450 = vmatprep.mubr.bf16.mxu0 %v6077
        %7451 = vmatmul.mubr.bf16.gmra.mrb[0].mxu0 %v6076
        %v7452 = vpop.f32.mrb[0].mxu0
        %v7453 = vadd.f32 %v7100, %v7452
        %v7454 = vpop.f32.mrb[0].mxu0
        %v7455 = vpop.f32.mrb[0].mxu0
        %v7456 = vadd.f32 %v7103, %v7455
        %v7457 = vpop.f32.mrb[0].mxu0
        %7458 = vmatprep.mubr.bf16.mxu0 %v6085
        %7459 = vmatmul.mubr.bf16.gmra.mrb[0].mxu0 %v6084
        %v7460 = vpop.f32.mrb[0].mxu0
        %v7461 = vadd.f32 %v7108, %v7460
        %v7462 = vpop.f32.mrb[0].mxu0
        %v7463 = vpop.f32.mrb[0].mxu0
        %v7464 = vadd.f32 %v7111, %v7463
        %v7465 = vpop.f32.mrb[0].mxu0
        %7466 = vmatprep.mubr.bf16.mxu0 %v6093
        %7467 = vmatmul.mubr.bf16.gmra.mrb[0].mxu0 %v6092
        %v7468 = vpop.f32.mrb[0].mxu0
        %v7469 = vadd.f32 %v7116, %v7468
        %v7470 = vpop.f32.mrb[0].mxu0
        %v7471 = vpop.f32.mrb[0].mxu0
        %v7472 = vadd.f32 %v7119, %v7471
        %v7473 = vpop.f32.mrb[0].mxu0
        %7474 = vmatprep.mubr.bf16.mxu0 %v6101
        %7475 = vmatmul.mubr.bf16.gmra.mrb[0].mxu0 %v6100
        %v7476 = vpop.f32.mrb[0].mxu0
        %v7477 = vadd.f32 %v7124, %v7476
        %v7478 = vpop.f32.mrb[0].mxu0
        %v7479 = vpop.f32.mrb[0].mxu0
        %v7480 = vadd.f32 %v7127, %v7479
        %v7481 = vpop.f32.mrb[0].mxu0
        %7482 = vmatprep.mubr.bf16.mxu0 %v6109
        %7483 = vmatmul.mubr.bf16.gmra.mrb[0].mxu0 %v6108
        %v7484 = vpop.f32.mrb[0].mxu0
        %v7485 = vadd.f32 %v7132, %v7484
        %v7486 = vpop.f32.mrb[0].mxu0
        %v7487 = vpop.f32.mrb[0].mxu0
        %v7488 = vadd.f32 %v7135, %v7487
        %v7489 = vpop.f32.mrb[0].mxu0
        %7490 = vmatprep.mubr.bf16.mxu0 %v6117
        %7491 = vmatmul.mubr.bf16.gmra.mrb[0].mxu0 %v6116
        %v7492 = vpop.f32.mrb[0].mxu0
        %v7493 = vadd.f32 %v7140, %v7492
        %v7494 = vpop.f32.mrb[0].mxu0
        %v7495 = vpop.f32.mrb[0].mxu0
        %v7496 = vadd.f32 %v7143, %v7495
        %v7497 = vpop.f32.mrb[0].mxu0
        %7498 = vmatprep.mubr.bf16.mxu0 %v6125
        %7499 = vmatmul.mubr.bf16.gmra.mrb[0].mxu0 %v6124
        %v7500 = vpop.f32.mrb[0].mxu0
        %v7501 = vadd.f32 %v7148, %v7500
        %v7502 = vpop.f32.mrb[0].mxu0
        %v7503 = vpop.f32.mrb[0].mxu0
        %v7504 = vadd.f32 %v7151, %v7503
        %v7505 = vpop.f32.mrb[0].mxu0
        %7506 = vmatprep.mubr.bf16.mxu0 %v6133
        %7507 = vmatmul.mubr.bf16.gmra.mrb[0].mxu0 %v6132
        %v7508 = vpop.f32.mrb[0].mxu0
        %v7509 = vadd.f32 %v7156, %v7508
        %v7510 = vpop.f32.mrb[0].mxu0
        %v7511 = vpop.f32.mrb[0].mxu0
        %v7512 = vadd.f32 %v7159, %v7511
        %v7513 = vpop.f32.mrb[0].mxu0
        %7514 = vmatprep.mubr.bf16.mxu0 %v6141
        %7515 = vmatmul.mubr.bf16.gmra.mrb[0].mxu0 %v6140
        %v7516 = vpop.f32.mrb[0].mxu0
        %v7517 = vadd.f32 %v7164, %v7516
        %v7518 = vpop.f32.mrb[0].mxu0
        %v7519 = vpop.f32.mrb[0].mxu0
        %v7520 = vadd.f32 %v7167, %v7519
        %v7521 = vpop.f32.mrb[0].mxu0
        %7522 = vmatprep.mubr.bf16.mxu0 %v6149
        %7523 = vmatmul.mubr.bf16.gmra.mrb[0].mxu0 %v6148
        %v7524 = vpop.f32.mrb[0].mxu0
        %v7525 = vadd.f32 %v7172, %v7524
        %v7526 = vpop.f32.mrb[0].mxu0
        %v7527 = vpop.f32.mrb[0].mxu0
        %v7528 = vadd.f32 %v7175, %v7527
        %v7529 = vpop.f32.mrb[0].mxu0
        %7530 = vmatprep.mubr.bf16.mxu0 %v6157
        %7531 = vmatmul.mubr.bf16.gmra.mrb[0].mxu0 %v6156
        %v7532 = vpop.f32.mrb[0].mxu0
        %v7533 = vadd.f32 %v7180, %v7532
        %v7534 = vpop.f32.mrb[0].mxu0
        %v7535 = vpop.f32.mrb[0].mxu0
        %v7536 = vadd.f32 %v7183, %v7535
        %v7537 = vpop.f32.mrb[0].mxu0
        %7538 = vmatprep.mubr.bf16.mxu0 %v6165
        %7539 = vmatmul.mubr.bf16.gmra.mrb[0].mxu0 %v6164
        %v7540 = vpop.f32.mrb[0].mxu0
        %v7541 = vadd.f32 %v7188, %v7540
        %v7542 = vpop.f32.mrb[0].mxu0
        %v7543 = vpop.f32.mrb[0].mxu0
        %v7544 = vadd.f32 %v7191, %v7543
        %v7545 = vpop.f32.mrb[0].mxu0
        %7546 = vmatprep.mubr.bf16.mxu0 %v6173
        %7547 = vmatmul.mubr.bf16.gmra.mrb[0].mxu0 %v6172
        %v7548 = vpop.f32.mrb[0].mxu0
        %v7549 = vadd.f32 %v7196, %v7548
        %v7550 = vpop.f32.mrb[0].mxu0
        %v7551 = vpop.f32.mrb[0].mxu0
        %v7552 = vadd.f32 %v7199, %v7551
        %v7553 = vpop.f32.mrb[0].mxu0
        %7554 = vmatprep.mubr.bf16.mxu0 %v6181
        %7555 = vmatmul.mubr.bf16.gmra.mrb[0].mxu0 %v6180
        %v7556 = vpop.f32.mrb[0].mxu0
        %v7557 = vadd.f32 %v7204, %v7556
        %v7558 = vpop.f32.mrb[0].mxu0
        %v7559 = vpop.f32.mrb[0].mxu0
        %v7560 = vadd.f32 %v7207, %v7559
        %v7561 = vpop.f32.mrb[0].mxu0
        %7562 = vmatprep.mubr.bf16.mxu0 %v6189
        %7563 = vmatmul.mubr.bf16.gmra.mrb[0].mxu0 %v6188
        %v7564 = vpop.f32.mrb[0].mxu0
        %v7565 = vadd.f32 %v7212, %v7564
        %v7566 = vpop.f32.mrb[0].mxu0
        %v7567 = vpop.f32.mrb[0].mxu0
        %v7568 = vadd.f32 %v7215, %v7567
        %v7569 = vpop.f32.mrb[0].mxu0
        %7570 = vmatprep.mubr.bf16.mxu0 %v6197
        %7571 = vmatmul.mubr.bf16.gmra.mrb[0].mxu0 %v6196
        %v7572 = vpop.f32.mrb[0].mxu0
        %v7573 = vadd.f32 %v7220, %v7572
        %v7574 = vpop.f32.mrb[0].mxu0
        %v7575 = vpop.f32.mrb[0].mxu0
        %v7576 = vadd.f32 %v7223, %v7575
        %v7577 = vpop.f32.mrb[0].mxu0
        %7578 = vmatprep.mubr.bf16.mxu0 %v6205
        %7579 = vmatmul.mubr.bf16.gmra.mrb[0].mxu0 %v6204
        %v7580 = vpop.f32.mrb[0].mxu0
        %v7581 = vadd.f32 %v7228, %v7580
        %v7582 = vpop.f32.mrb[0].mxu0
        %v7583 = vpop.f32.mrb[0].mxu0
        %v7584 = vadd.f32 %v7231, %v7583
        %v7585 = vpop.f32.mrb[0].mxu0
        %7586 = vmatprep.mubr.bf16.mxu0 %v6213
        %7587 = vmatmul.mubr.bf16.gmra.mrb[0].mxu0 %v6212
        %v7588 = vpop.f32.mrb[0].mxu0
        %v7589 = vadd.f32 %v7236, %v7588
        %v7590 = vpop.f32.mrb[0].mxu0
        %v7591 = vpop.f32.mrb[0].mxu0
        %v7592 = vadd.f32 %v7239, %v7591
        %v7593 = vpop.f32.mrb[0].mxu0
        %7594 = vmatprep.mubr.bf16.mxu0 %v6221
        %7595 = vmatmul.mubr.bf16.gmra.mrb[0].mxu0 %v6220
        %v7596 = vpop.f32.mrb[0].mxu0
        %v7597 = vadd.f32 %v7244, %v7596
        %v7598 = vpop.f32.mrb[0].mxu0
        %v7599 = vpop.f32.mrb[0].mxu0
        %v7600 = vadd.f32 %v7247, %v7599
        %v7601 = vpop.f32.mrb[0].mxu0
        %7602 = vmatprep.mubr.bf16.mxu0 %v6229
        %7603 = vmatmul.mubr.bf16.gmra.mrb[0].mxu0 %v6228
        %v7604 = vpop.f32.mrb[0].mxu0
        %v7605 = vadd.f32 %v7252, %v7604
        %v7606 = vpop.f32.mrb[0].mxu0
        %v7607 = vpop.f32.mrb[0].mxu0
        %v7608 = vadd.f32 %v7255, %v7607
        %v7609 = vpop.f32.mrb[0].mxu0
        %7610 = vmatprep.mubr.bf16.mxu0 %v6237
        %7611 = vmatmul.mubr.bf16.gmra.mrb[0].mxu0 %v6236
        %v7612 = vpop.f32.mrb[0].mxu0
        %v7613 = vadd.f32 %v7260, %v7612
        %v7614 = vpop.f32.mrb[0].mxu0
        %v7615 = vpop.f32.mrb[0].mxu0
        %v7616 = vadd.f32 %v7263, %v7615
        %v7617 = vpop.f32.mrb[0].mxu0
        %7618 = vmatprep.mubr.bf16.mxu0 %v6245
        %7619 = vmatmul.mubr.bf16.gmra.mrb[0].mxu0 %v6244
        %v7620 = vpop.f32.mrb[0].mxu0
        %v7621 = vadd.f32 %v7268, %v7620
        %v7622 = vpop.f32.mrb[0].mxu0
        %v7623 = vpop.f32.mrb[0].mxu0
        %v7624 = vadd.f32 %v7271, %v7623
        %v7625 = vpop.f32.mrb[0].mxu0
        %7626 = vmatprep.mubr.bf16.mxu0 %v6253
        %7627 = vmatmul.mubr.bf16.gmra.mrb[0].mxu0 %v6252
        %v7628 = vpop.f32.mrb[0].mxu0
        %v7629 = vadd.f32 %v7276, %v7628
        %v7630 = vpop.f32.mrb[0].mxu0
        %v7631 = vpop.f32.mrb[0].mxu0
        %v7632 = vadd.f32 %v7279, %v7631
        %v7633 = vpop.f32.mrb[0].mxu0
        %7634 = vmatprep.mubr.bf16.mxu0 %v6261
        %7635 = vmatmul.mubr.bf16.gmra.mrb[0].mxu0 %v6260
        %v7636 = vpop.f32.mrb[0].mxu0
        %v7637 = vadd.f32 %v7284, %v7636
        %v7638 = vpop.f32.mrb[0].mxu0
        %v7639 = vpop.f32.mrb[0].mxu0
        %v7640 = vadd.f32 %v7287, %v7639
        %v7641 = vpop.f32.mrb[0].mxu0
        %7642 = vmatprep.mubr.bf16.mxu0 %v6269
        %7643 = vmatmul.mubr.bf16.gmra.mrb[0].mxu0 %v6268
        %v7644 = vpop.f32.mrb[0].mxu0
        %v7645 = vadd.f32 %v7292, %v7644
        %v7646 = vpop.f32.mrb[0].mxu0
        %v7647 = vpop.f32.mrb[0].mxu0
        %v7648 = vadd.f32 %v7295, %v7647
        %v7649 = vpop.f32.mrb[0].mxu0
        %7650 = vmatprep.mubr.bf16.mxu0 %v6277
        %7651 = vmatmul.mubr.bf16.gmra.mrb[0].mxu0 %v6276
        %v7652 = vpop.f32.mrb[0].mxu0
        %v7653 = vadd.f32 %v7300, %v7652
        %v7654 = vpop.f32.mrb[0].mxu0
        %v7655 = vpop.f32.mrb[0].mxu0
        %v7656 = vadd.f32 %v7303, %v7655
        %v7657 = vpop.f32.mrb[0].mxu0
        %7658 = vdwg.mxu0
        %7659 = vmatprep.subr.bf16.mxu0 0
        %7660 = vmatpush1.bf16.msra.mxu0 %v4504
        %7661 = vmatprep.subr.bf16.mxu0 0
        %7662 = vmatpush1.bf16.msra.mxu0 %v4505
        %7663 = vmatprep.subr.bf16.mxu0 0
        %7664 = vmatpush1.bf16.msra.mxu0 %v4506
        %7665 = vmatprep.subr.bf16.mxu0 0
        %7666 = vmatpush1.bf16.msra.mxu0 %v4507
        %7667 = vmatprep.subr.bf16.mxu0 0
        %7668 = vmatpush1.bf16.msra.mxu0 %v4508
        %7669 = vmatprep.subr.bf16.mxu0 0
        %7670 = vmatpush1.bf16.msra.mxu0 %v4509
        %7671 = vmatprep.subr.bf16.mxu0 0
        %7672 = vmatpush1.bf16.msra.mxu0 %v4510
        %7673 = vmatprep.subr.bf16.mxu0 0
        %7674 = vmatpush1.bf16.msra.mxu0 %v4511
        %7675 = vmatprep.subr.bf16.mxu0 0
        %7676 = vmatpush1.bf16.msra.mxu0 %v4512
        %7677 = vmatprep.subr.bf16.mxu0 0
        %7678 = vmatpush1.bf16.msra.mxu0 %v4513
        %7679 = vmatprep.subr.bf16.mxu0 0
        %7680 = vmatpush1.bf16.msra.mxu0 %v4514
        %7681 = vmatprep.subr.bf16.mxu0 0
        %7682 = vmatpush1.bf16.msra.mxu0 %v4515
        %7683 = vmatprep.subr.bf16.mxu0 0
        %7684 = vmatpush1.bf16.msra.mxu0 %v4516
        %7685 = vmatprep.subr.bf16.mxu0 0
        %7686 = vmatpush1.bf16.msra.mxu0 %v4517
        %7687 = vmatprep.subr.bf16.mxu0 0
        %7688 = vmatpush1.bf16.msra.mxu0 %v4518
        %7689 = vmatprep.subr.bf16.mxu0 0
        %7690 = vmatpush1.bf16.msra.mxu0 %v4519
        %7691 = vmatprep.mubr.bf16.mxu0 %v5967
        %7692 = vmatmul.mubr.bf16.gmra.mrb[0].mxu0 %v5966
        %v7693 = vpop.f32.mrb[0].mxu0
        %v7694 = vadd.f32 %v7341, %v7693
        %v7695 = vpop.f32.mrb[0].mxu0
        %v7696 = vpop.f32.mrb[0].mxu0
        %v7697 = vadd.f32 %v7344, %v7696
        %v7698 = vpop.f32.mrb[0].mxu0
        %7699 = vmatprep.mubr.bf16.mxu0 %v5975
        %7700 = vmatmul.mubr.bf16.gmra.mrb[0].mxu0 %v5974
        %v7701 = vpop.f32.mrb[0].mxu0
        %v7702 = vadd.f32 %v7349, %v7701
        %v7703 = vpop.f32.mrb[0].mxu0
        %v7704 = vpop.f32.mrb[0].mxu0
        %v7705 = vadd.f32 %v7352, %v7704
        %v7706 = vpop.f32.mrb[0].mxu0
        %7707 = vmatprep.mubr.bf16.mxu0 %v5983
        %7708 = vmatmul.mubr.bf16.gmra.mrb[0].mxu0 %v5982
        %v7709 = vpop.f32.mrb[0].mxu0
        %v7710 = vadd.f32 %v7357, %v7709
        %v7711 = vpop.f32.mrb[0].mxu0
        %v7712 = vpop.f32.mrb[0].mxu0
        %v7713 = vadd.f32 %v7360, %v7712
        %v7714 = vpop.f32.mrb[0].mxu0
        %7715 = vmatprep.mubr.bf16.mxu0 %v5991
        %7716 = vmatmul.mubr.bf16.gmra.mrb[0].mxu0 %v5990
        %v7717 = vpop.f32.mrb[0].mxu0
        %v7718 = vadd.f32 %v7365, %v7717
        %v7719 = vpop.f32.mrb[0].mxu0
        %v7720 = vpop.f32.mrb[0].mxu0
        %v7721 = vadd.f32 %v7368, %v7720
        %v7722 = vpop.f32.mrb[0].mxu0
        %7723 = vmatprep.mubr.bf16.mxu0 %v5999
        %7724 = vmatmul.mubr.bf16.gmra.mrb[0].mxu0 %v5998
        %v7725 = vpop.f32.mrb[0].mxu0
        %v7726 = vadd.f32 %v7373, %v7725
        %v7727 = vpop.f32.mrb[0].mxu0
        %v7728 = vpop.f32.mrb[0].mxu0
        %v7729 = vadd.f32 %v7376, %v7728
        %v7730 = vpop.f32.mrb[0].mxu0
        %7731 = vmatprep.mubr.bf16.mxu0 %v6007
        %7732 = vmatmul.mubr.bf16.gmra.mrb[0].mxu0 %v6006
        %v7733 = vpop.f32.mrb[0].mxu0
        %v7734 = vadd.f32 %v7381, %v7733
        %v7735 = vpop.f32.mrb[0].mxu0
        %v7736 = vpop.f32.mrb[0].mxu0
        %v7737 = vadd.f32 %v7384, %v7736
        %v7738 = vpop.f32.mrb[0].mxu0
        %7739 = vmatprep.mubr.bf16.mxu0 %v6015
        %7740 = vmatmul.mubr.bf16.gmra.mrb[0].mxu0 %v6014
        %v7741 = vpop.f32.mrb[0].mxu0
        %v7742 = vadd.f32 %v7389, %v7741
        %v7743 = vpop.f32.mrb[0].mxu0
        %v7744 = vpop.f32.mrb[0].mxu0
        %v7745 = vadd.f32 %v7392, %v7744
        %v7746 = vpop.f32.mrb[0].mxu0
        %7747 = vmatprep.mubr.bf16.mxu0 %v6023
        %7748 = vmatmul.mubr.bf16.gmra.mrb[0].mxu0 %v6022
        %v7749 = vpop.f32.mrb[0].mxu0
        %v7750 = vadd.f32 %v7397, %v7749
        %v7751 = vpop.f32.mrb[0].mxu0
        %v7752 = vpop.f32.mrb[0].mxu0
        %v7753 = vadd.f32 %v7400, %v7752
        %v7754 = vpop.f32.mrb[0].mxu0
        %7755 = vmatprep.mubr.bf16.mxu0 %v6031
        %7756 = vmatmul.mubr.bf16.gmra.mrb[0].mxu0 %v6030
        %v7757 = vpop.f32.mrb[0].mxu0
        %v7758 = vadd.f32 %v7405, %v7757
        %v7759 = vpop.f32.mrb[0].mxu0
        %v7760 = vpop.f32.mrb[0].mxu0
        %v7761 = vadd.f32 %v7408, %v7760
        %v7762 = vpop.f32.mrb[0].mxu0
        %7763 = vmatprep.mubr.bf16.mxu0 %v6039
        %7764 = vmatmul.mubr.bf16.gmra.mrb[0].mxu0 %v6038
        %v7765 = vpop.f32.mrb[0].mxu0
        %v7766 = vadd.f32 %v7413, %v7765
        %v7767 = vpop.f32.mrb[0].mxu0
        %v7768 = vpop.f32.mrb[0].mxu0
        %v7769 = vadd.f32 %v7416, %v7768
        %v7770 = vpop.f32.mrb[0].mxu0
        %7771 = vmatprep.mubr.bf16.mxu0 %v6047
        %7772 = vmatmul.mubr.bf16.gmra.mrb[0].mxu0 %v6046
        %v7773 = vpop.f32.mrb[0].mxu0
        %v7774 = vadd.f32 %v7421, %v7773
        %v7775 = vpop.f32.mrb[0].mxu0
        %v7776 = vpop.f32.mrb[0].mxu0
        %v7777 = vadd.f32 %v7424, %v7776
        %v7778 = vpop.f32.mrb[0].mxu0
        %7779 = vmatprep.mubr.bf16.mxu0 %v6055
        %7780 = vmatmul.mubr.bf16.gmra.mrb[0].mxu0 %v6054
        %v7781 = vpop.f32.mrb[0].mxu0
        %v7782 = vadd.f32 %v7429, %v7781
        %v7783 = vpop.f32.mrb[0].mxu0
        %v7784 = vpop.f32.mrb[0].mxu0
        %v7785 = vadd.f32 %v7432, %v7784
        %v7786 = vpop.f32.mrb[0].mxu0
        %7787 = vmatprep.mubr.bf16.mxu0 %v6063
        %7788 = vmatmul.mubr.bf16.gmra.mrb[0].mxu0 %v6062
        %v7789 = vpop.f32.mrb[0].mxu0
        %v7790 = vadd.f32 %v7437, %v7789
        %v7791 = vpop.f32.mrb[0].mxu0
        %v7792 = vpop.f32.mrb[0].mxu0
        %v7793 = vadd.f32 %v7440, %v7792
        %v7794 = vpop.f32.mrb[0].mxu0
        %7795 = vmatprep.mubr.bf16.mxu0 %v6071
        %7796 = vmatmul.mubr.bf16.gmra.mrb[0].mxu0 %v6070
        %v7797 = vpop.f32.mrb[0].mxu0
        %v7798 = vadd.f32 %v7445, %v7797
        %v7799 = vpop.f32.mrb[0].mxu0
        %v7800 = vpop.f32.mrb[0].mxu0
        %v7801 = vadd.f32 %v7448, %v7800
        %v7802 = vpop.f32.mrb[0].mxu0
        %7803 = vmatprep.mubr.bf16.mxu0 %v6079
        %7804 = vmatmul.mubr.bf16.gmra.mrb[0].mxu0 %v6078
        %v7805 = vpop.f32.mrb[0].mxu0
        %v7806 = vadd.f32 %v7453, %v7805
        %v7807 = vpop.f32.mrb[0].mxu0
        %v7808 = vpop.f32.mrb[0].mxu0
        %v7809 = vadd.f32 %v7456, %v7808
        %v7810 = vpop.f32.mrb[0].mxu0
        %7811 = vmatprep.mubr.bf16.mxu0 %v6087
        %7812 = vmatmul.mubr.bf16.gmra.mrb[0].mxu0 %v6086
        %v7813 = vpop.f32.mrb[0].mxu0
        %v7814 = vadd.f32 %v7461, %v7813
        %v7815 = vpop.f32.mrb[0].mxu0
        %v7816 = vpop.f32.mrb[0].mxu0
        %v7817 = vadd.f32 %v7464, %v7816
        %v7818 = vpop.f32.mrb[0].mxu0
        %7819 = vmatprep.mubr.bf16.mxu0 %v6095
        %7820 = vmatmul.mubr.bf16.gmra.mrb[0].mxu0 %v6094
        %v7821 = vpop.f32.mrb[0].mxu0
        %v7822 = vadd.f32 %v7469, %v7821
        %v7823 = vpop.f32.mrb[0].mxu0
        %v7824 = vpop.f32.mrb[0].mxu0
        %v7825 = vadd.f32 %v7472, %v7824
        %v7826 = vpop.f32.mrb[0].mxu0
        %7827 = vmatprep.mubr.bf16.mxu0 %v6103
        %7828 = vmatmul.mubr.bf16.gmra.mrb[0].mxu0 %v6102
        %v7829 = vpop.f32.mrb[0].mxu0
        %v7830 = vadd.f32 %v7477, %v7829
        %v7831 = vpop.f32.mrb[0].mxu0
        %v7832 = vpop.f32.mrb[0].mxu0
        %v7833 = vadd.f32 %v7480, %v7832
        %v7834 = vpop.f32.mrb[0].mxu0
        %7835 = vmatprep.mubr.bf16.mxu0 %v6111
        %7836 = vmatmul.mubr.bf16.gmra.mrb[0].mxu0 %v6110
        %v7837 = vpop.f32.mrb[0].mxu0
        %v7838 = vadd.f32 %v7485, %v7837
        %v7839 = vpop.f32.mrb[0].mxu0
        %v7840 = vpop.f32.mrb[0].mxu0
        %v7841 = vadd.f32 %v7488, %v7840
        %v7842 = vpop.f32.mrb[0].mxu0
        %7843 = vmatprep.mubr.bf16.mxu0 %v6119
        %7844 = vmatmul.mubr.bf16.gmra.mrb[0].mxu0 %v6118
        %v7845 = vpop.f32.mrb[0].mxu0
        %v7846 = vadd.f32 %v7493, %v7845
        %v7847 = vpop.f32.mrb[0].mxu0
        %v7848 = vpop.f32.mrb[0].mxu0
        %v7849 = vadd.f32 %v7496, %v7848
        %v7850 = vpop.f32.mrb[0].mxu0
        %7851 = vmatprep.mubr.bf16.mxu0 %v6127
        %7852 = vmatmul.mubr.bf16.gmra.mrb[0].mxu0 %v6126
        %v7853 = vpop.f32.mrb[0].mxu0
        %v7854 = vadd.f32 %v7501, %v7853
        %v7855 = vpop.f32.mrb[0].mxu0
        %v7856 = vpop.f32.mrb[0].mxu0
        %v7857 = vadd.f32 %v7504, %v7856
        %v7858 = vpop.f32.mrb[0].mxu0
        %7859 = vmatprep.mubr.bf16.mxu0 %v6135
        %7860 = vmatmul.mubr.bf16.gmra.mrb[0].mxu0 %v6134
        %v7861 = vpop.f32.mrb[0].mxu0
        %v7862 = vadd.f32 %v7509, %v7861
        %v7863 = vpop.f32.mrb[0].mxu0
        %v7864 = vpop.f32.mrb[0].mxu0
        %v7865 = vadd.f32 %v7512, %v7864
        %v7866 = vpop.f32.mrb[0].mxu0
        %7867 = vmatprep.mubr.bf16.mxu0 %v6143
        %7868 = vmatmul.mubr.bf16.gmra.mrb[0].mxu0 %v6142
        %v7869 = vpop.f32.mrb[0].mxu0
        %v7870 = vadd.f32 %v7517, %v7869
        %v7871 = vpop.f32.mrb[0].mxu0
        %v7872 = vpop.f32.mrb[0].mxu0
        %v7873 = vadd.f32 %v7520, %v7872
        %v7874 = vpop.f32.mrb[0].mxu0
        %7875 = vmatprep.mubr.bf16.mxu0 %v6151
        %7876 = vmatmul.mubr.bf16.gmra.mrb[0].mxu0 %v6150
        %v7877 = vpop.f32.mrb[0].mxu0
        %v7878 = vadd.f32 %v7525, %v7877
        %v7879 = vpop.f32.mrb[0].mxu0
        %v7880 = vpop.f32.mrb[0].mxu0
        %v7881 = vadd.f32 %v7528, %v7880
        %v7882 = vpop.f32.mrb[0].mxu0
        %7883 = vmatprep.mubr.bf16.mxu0 %v6159
        %7884 = vmatmul.mubr.bf16.gmra.mrb[0].mxu0 %v6158
        %v7885 = vpop.f32.mrb[0].mxu0
        %v7886 = vadd.f32 %v7533, %v7885
        %v7887 = vpop.f32.mrb[0].mxu0
        %v7888 = vpop.f32.mrb[0].mxu0
        %v7889 = vadd.f32 %v7536, %v7888
        %v7890 = vpop.f32.mrb[0].mxu0
        %7891 = vmatprep.mubr.bf16.mxu0 %v6167
        %7892 = vmatmul.mubr.bf16.gmra.mrb[0].mxu0 %v6166
        %v7893 = vpop.f32.mrb[0].mxu0
        %v7894 = vadd.f32 %v7541, %v7893
        %v7895 = vpop.f32.mrb[0].mxu0
        %v7896 = vpop.f32.mrb[0].mxu0
        %v7897 = vadd.f32 %v7544, %v7896
        %v7898 = vpop.f32.mrb[0].mxu0
        %7899 = vmatprep.mubr.bf16.mxu0 %v6175
        %7900 = vmatmul.mubr.bf16.gmra.mrb[0].mxu0 %v6174
        %v7901 = vpop.f32.mrb[0].mxu0
        %v7902 = vadd.f32 %v7549, %v7901
        %v7903 = vpop.f32.mrb[0].mxu0
        %v7904 = vpop.f32.mrb[0].mxu0
        %v7905 = vadd.f32 %v7552, %v7904
        %v7906 = vpop.f32.mrb[0].mxu0
        %7907 = vmatprep.mubr.bf16.mxu0 %v6183
        %7908 = vmatmul.mubr.bf16.gmra.mrb[0].mxu0 %v6182
        %v7909 = vpop.f32.mrb[0].mxu0
        %v7910 = vadd.f32 %v7557, %v7909
        %v7911 = vpop.f32.mrb[0].mxu0
        %v7912 = vpop.f32.mrb[0].mxu0
        %v7913 = vadd.f32 %v7560, %v7912
        %v7914 = vpop.f32.mrb[0].mxu0
        %7915 = vmatprep.mubr.bf16.mxu0 %v6191
        %7916 = vmatmul.mubr.bf16.gmra.mrb[0].mxu0 %v6190
        %v7917 = vpop.f32.mrb[0].mxu0
        %v7918 = vadd.f32 %v7565, %v7917
        %v7919 = vpop.f32.mrb[0].mxu0
        %v7920 = vpop.f32.mrb[0].mxu0
        %v7921 = vadd.f32 %v7568, %v7920
        %v7922 = vpop.f32.mrb[0].mxu0
        %7923 = vmatprep.mubr.bf16.mxu0 %v6199
        %7924 = vmatmul.mubr.bf16.gmra.mrb[0].mxu0 %v6198
        %v7925 = vpop.f32.mrb[0].mxu0
        %v7926 = vadd.f32 %v7573, %v7925
        %v7927 = vpop.f32.mrb[0].mxu0
        %v7928 = vpop.f32.mrb[0].mxu0
        %v7929 = vadd.f32 %v7576, %v7928
        %v7930 = vpop.f32.mrb[0].mxu0
        %7931 = vmatprep.mubr.bf16.mxu0 %v6207
        %7932 = vmatmul.mubr.bf16.gmra.mrb[0].mxu0 %v6206
        %v7933 = vpop.f32.mrb[0].mxu0
        %v7934 = vadd.f32 %v7581, %v7933
        %v7935 = vpop.f32.mrb[0].mxu0
        %v7936 = vpop.f32.mrb[0].mxu0
        %v7937 = vadd.f32 %v7584, %v7936
        %v7938 = vpop.f32.mrb[0].mxu0
        %7939 = vmatprep.mubr.bf16.mxu0 %v6215
        %7940 = vmatmul.mubr.bf16.gmra.mrb[0].mxu0 %v6214
        %v7941 = vpop.f32.mrb[0].mxu0
        %v7942 = vadd.f32 %v7589, %v7941
        %v7943 = vpop.f32.mrb[0].mxu0
        %v7944 = vpop.f32.mrb[0].mxu0
        %v7945 = vadd.f32 %v7592, %v7944
        %v7946 = vpop.f32.mrb[0].mxu0
        %7947 = vmatprep.mubr.bf16.mxu0 %v6223
        %7948 = vmatmul.mubr.bf16.gmra.mrb[0].mxu0 %v6222
        %v7949 = vpop.f32.mrb[0].mxu0
        %v7950 = vadd.f32 %v7597, %v7949
        %v7951 = vpop.f32.mrb[0].mxu0
        %v7952 = vpop.f32.mrb[0].mxu0
        %v7953 = vadd.f32 %v7600, %v7952
        %v7954 = vpop.f32.mrb[0].mxu0
        %7955 = vmatprep.mubr.bf16.mxu0 %v6231
        %7956 = vmatmul.mubr.bf16.gmra.mrb[0].mxu0 %v6230
        %v7957 = vpop.f32.mrb[0].mxu0
        %v7958 = vadd.f32 %v7605, %v7957
        %v7959 = vpop.f32.mrb[0].mxu0
        %v7960 = vpop.f32.mrb[0].mxu0
        %v7961 = vadd.f32 %v7608, %v7960
        %v7962 = vpop.f32.mrb[0].mxu0
        %7963 = vmatprep.mubr.bf16.mxu0 %v6239
        %7964 = vmatmul.mubr.bf16.gmra.mrb[0].mxu0 %v6238
        %v7965 = vpop.f32.mrb[0].mxu0
        %v7966 = vadd.f32 %v7613, %v7965
        %v7967 = vpop.f32.mrb[0].mxu0
        %v7968 = vpop.f32.mrb[0].mxu0
        %v7969 = vadd.f32 %v7616, %v7968
        %v7970 = vpop.f32.mrb[0].mxu0
        %7971 = vmatprep.mubr.bf16.mxu0 %v6247
        %7972 = vmatmul.mubr.bf16.gmra.mrb[0].mxu0 %v6246
        %v7973 = vpop.f32.mrb[0].mxu0
        %v7974 = vadd.f32 %v7621, %v7973
        %v7975 = vpop.f32.mrb[0].mxu0
        %v7976 = vpop.f32.mrb[0].mxu0
        %v7977 = vadd.f32 %v7624, %v7976
        %v7978 = vpop.f32.mrb[0].mxu0
        %7979 = vmatprep.mubr.bf16.mxu0 %v6255
        %7980 = vmatmul.mubr.bf16.gmra.mrb[0].mxu0 %v6254
        %v7981 = vpop.f32.mrb[0].mxu0
        %v7982 = vadd.f32 %v7629, %v7981
        %v7983 = vpop.f32.mrb[0].mxu0
        %v7984 = vpop.f32.mrb[0].mxu0
        %v7985 = vadd.f32 %v7632, %v7984
        %v7986 = vpop.f32.mrb[0].mxu0
        %7987 = vmatprep.mubr.bf16.mxu0 %v6263
        %7988 = vmatmul.mubr.bf16.gmra.mrb[0].mxu0 %v6262
        %v7989 = vpop.f32.mrb[0].mxu0
        %v7990 = vadd.f32 %v7637, %v7989
        %v7991 = vpop.f32.mrb[0].mxu0
        %v7992 = vpop.f32.mrb[0].mxu0
        %v7993 = vadd.f32 %v7640, %v7992
        %v7994 = vpop.f32.mrb[0].mxu0
        %7995 = vmatprep.mubr.bf16.mxu0 %v6271
        %7996 = vmatmul.mubr.bf16.gmra.mrb[0].mxu0 %v6270
        %v7997 = vpop.f32.mrb[0].mxu0
        %v7998 = vadd.f32 %v7645, %v7997
        %v7999 = vpop.f32.mrb[0].mxu0
        %v8000 = vpop.f32.mrb[0].mxu0
        %v8001 = vadd.f32 %v7648, %v8000
        %v8002 = vpop.f32.mrb[0].mxu0
        %8003 = vmatprep.mubr.bf16.mxu0 %v6279
        %8004 = vmatmul.mubr.bf16.gmra.mrb[0].mxu0 %v6278
        %v8005 = vpop.f32.mrb[0].mxu0
        %v8006 = vadd.f32 %v7653, %v8005
        %v8007 = vpop.f32.mrb[0].mxu0
        %v8008 = vpop.f32.mrb[0].mxu0
        %v8009 = vadd.f32 %v7656, %v8008
        %v8010 = vpop.f32.mrb[0].mxu0
        %8011 = vdwg.mxu0
        %v8012 = vlaneseq
        %v8013 = vshrl.u32 %v8012, 7
        %v8014 = vadd.s32 %v8013, 8
        %v8015 = vadd.s32 %v8013, 16
        %v8016 = vadd.s32 %v8013, 24
        %v8017 = vadd.s32 %v8013, 32
        %v8018 = vadd.s32 %v8013, 40
        %v8019 = vadd.s32 %v8013, 48
        %v8020 = vadd.s32 %v8013, 56
        %v8021 = vadd.s32 %v8013, 64
        %v8022 = vadd.s32 %v8013, 72
        %v8023 = vadd.s32 %v8013, 80
        %v8024 = vadd.s32 %v8013, 88
        %v8025 = vadd.s32 %v8013, 96
        %v8026 = vadd.s32 %v8013, 104
        %v8027 = vadd.s32 %v8013, 112
        %v8028 = vadd.s32 %v8013, 120
        %v8029 = vadd.s32 %v8013, 128
        %v8030 = vadd.s32 %v8013, 136
        %v8031 = vadd.s32 %v8013, 144
        %v8032 = vadd.s32 %v8013, 152
        %v8033 = vadd.s32 %v8013, 160
        %v8034 = vadd.s32 %v8013, 168
        %v8035 = vadd.s32 %v8013, 176
        %v8036 = vadd.s32 %v8013, 184
        %v8037 = vadd.s32 %v8013, 192
        %v8038 = vadd.s32 %v8013, 200
        %v8039 = vadd.s32 %v8013, 208
        %v8040 = vadd.s32 %v8013, 216
        %v8041 = vadd.s32 %v8013, 224
        %v8042 = vadd.s32 %v8013, 232
        %v8043 = vadd.s32 %v8013, 240
        %v8044 = vadd.s32 %v8013, 248
        %v8045 = vadd.s32 %v8013, 256
        %v8046 = vadd.s32 %v8013, 264
        %v8047 = vadd.s32 %v8013, 272
        %v8048 = vadd.s32 %v8013, 280
        %v8049 = vadd.s32 %v8013, 288
        %v8050 = vadd.s32 %v8013, 296
        %v8051 = vadd.s32 %v8013, 304
        %v8052 = vadd.s32 %v8013, 312
        %v8053 = vmax.f32 %v7694, %v7710
        %v8054 = vmax.f32 %v7697, %v7713
        %v8055 = vmax.f32 %v7702, %v7718
        %v8056 = vmax.f32 %v7705, %v7721
        %v8057 = vmax.f32 %v8053, %v7726
        %v8058 = vmax.f32 %v8054, %v7729
        %v8059 = vmax.f32 %v8055, %v7734
        %v8060 = vmax.f32 %v8056, %v7737
        %v8061 = vmax.f32 %v8057, %v7742
        %v8062 = vmax.f32 %v8058, %v7745
        %v8063 = vmax.f32 %v8059, %v7750
        %v8064 = vmax.f32 %v8060, %v7753
        %v8065 = vmax.f32 %v8061, %v7758
        %v8066 = vmax.f32 %v8062, %v7761
        %v8067 = vmax.f32 %v8063, %v7766
        %v8068 = vmax.f32 %v8064, %v7769
        %v8069 = vmax.f32 %v8065, %v7774
        %v8070 = vmax.f32 %v8066, %v7777
        %v8071 = vmax.f32 %v8067, %v7782
        %v8072 = vmax.f32 %v8068, %v7785
        %v8073 = vmax.f32 %v8069, %v7790
        %v8074 = vmax.f32 %v8070, %v7793
        %v8075 = vmax.f32 %v8071, %v7798
        %v8076 = vmax.f32 %v8072, %v7801
        %v8077 = vmax.f32 %v8073, %v7806
        %v8078 = vmax.f32 %v8074, %v7809
        %v8079 = vmax.f32 %v8075, %v7814
        %v8080 = vmax.f32 %v8076, %v7817
        %v8081 = vmax.f32 %v8077, %v7822
        %v8082 = vmax.f32 %v8078, %v7825
        %v8083 = vmax.f32 %v8079, %v7830
        %v8084 = vmax.f32 %v8080, %v7833
        %v8085 = vmax.f32 %v8081, %v7838
        %v8086 = vmax.f32 %v8082, %v7841
        %v8087 = vmax.f32 %v8083, %v7846
        %v8088 = vmax.f32 %v8084, %v7849
        %v8089 = vmax.f32 %v8085, %v8086
        %v8090 = vmax.f32 %v8087, %v8088
        %v8091 = vmax.f32 %v8089, %v8090
        %v8092 = vrot.slane %v8091, 4
        %v8093 = vmax.f32 %v8091, %v8092
        %v8094 = vrot.slane %v8093, 2
        %v8095 = vmax.f32 %v8093, %v8094
        %v8096 = vrot.slane %v8095, 1
        %v8097 = vmax.f32 %v8095, %v8096
        %vm8098 = vcmp.eq.f32.partialorder %v7694, %v8097
        %vm8099 = vcmp.eq.f32.partialorder %v7697, %v8097
        %vm8100 = vcmp.eq.f32.partialorder %v7702, %v8097
        %vm8101 = vcmp.eq.f32.partialorder %v7705, %v8097
        %vm8102 = vcmp.eq.f32.partialorder %v7710, %v8097
        %vm8103 = vcmp.eq.f32.partialorder %v7713, %v8097
        %vm8104 = vcmp.eq.f32.partialorder %v7718, %v8097
        %vm8105 = vcmp.eq.f32.partialorder %v7721, %v8097
        %vm8106 = vcmp.eq.f32.partialorder %v7726, %v8097
        %vm8107 = vcmp.eq.f32.partialorder %v7729, %v8097
        %vm8108 = vcmp.eq.f32.partialorder %v7734, %v8097
        %vm8109 = vcmp.eq.f32.partialorder %v7737, %v8097
        %vm8110 = vcmp.eq.f32.partialorder %v7742, %v8097
        %vm8111 = vcmp.eq.f32.partialorder %v7745, %v8097
        %vm8112 = vcmp.eq.f32.partialorder %v7750, %v8097
        %vm8113 = vcmp.eq.f32.partialorder %v7753, %v8097
        %vm8114 = vcmp.eq.f32.partialorder %v7758, %v8097
        %vm8115 = vcmp.eq.f32.partialorder %v7761, %v8097
        %vm8116 = vcmp.eq.f32.partialorder %v7766, %v8097
        %vm8117 = vcmp.eq.f32.partialorder %v7769, %v8097
        %vm8118 = vcmp.eq.f32.partialorder %v7774, %v8097
        %vm8119 = vcmp.eq.f32.partialorder %v7777, %v8097
        %vm8120 = vcmp.eq.f32.partialorder %v7782, %v8097
        %vm8121 = vcmp.eq.f32.partialorder %v7785, %v8097
        %vm8122 = vcmp.eq.f32.partialorder %v7790, %v8097
        %vm8123 = vcmp.eq.f32.partialorder %v7793, %v8097
        %vm8124 = vcmp.eq.f32.partialorder %v7798, %v8097
        %vm8125 = vcmp.eq.f32.partialorder %v7801, %v8097
        %vm8126 = vcmp.eq.f32.partialorder %v7806, %v8097
        %vm8127 = vcmp.eq.f32.partialorder %v7809, %v8097
        %vm8128 = vcmp.eq.f32.partialorder %v7814, %v8097
        %vm8129 = vcmp.eq.f32.partialorder %v7817, %v8097
        %vm8130 = vcmp.eq.f32.partialorder %v7822, %v8097
        %vm8131 = vcmp.eq.f32.partialorder %v7825, %v8097
        %vm8132 = vcmp.eq.f32.partialorder %v7830, %v8097
        %vm8133 = vcmp.eq.f32.partialorder %v7833, %v8097
        %vm8134 = vcmp.eq.f32.partialorder %v7838, %v8097
        %vm8135 = vcmp.eq.f32.partialorder %v7841, %v8097
        %vm8136 = vcmp.eq.f32.partialorder %v7846, %v8097
        %vm8137 = vcmp.eq.f32.partialorder %v7849, %v8097
        %v8138 = vsel %vm8098, %v8013, 320
        %v8139 = vsel %vm8099, %v8014, 320
        %v8140 = vsel %vm8100, %v8015, 320
        %v8141 = vsel %vm8101, %v8016, 320
        %v8142 = vsel %vm8102, %v8017, 320
        %v8143 = vsel %vm8103, %v8018, 320
        %v8144 = vsel %vm8104, %v8019, 320
        %v8145 = vsel %vm8105, %v8020, 320
        %v8146 = vsel %vm8106, %v8021, 320
        %v8147 = vsel %vm8107, %v8022, 320
        %v8148 = vsel %vm8108, %v8023, 320
        %v8149 = vsel %vm8109, %v8024, 320
        %v8150 = vsel %vm8110, %v8025, 320
        %v8151 = vsel %vm8111, %v8026, 320
        %v8152 = vsel %vm8112, %v8027, 320
        %v8153 = vsel %vm8113, %v8028, 320
        %v8154 = vsel %vm8114, %v8029, 320
        %v8155 = vsel %vm8115, %v8030, 320
        %v8156 = vsel %vm8116, %v8031, 320
        %v8157 = vsel %vm8117, %v8032, 320
        %v8158 = vsel %vm8118, %v8033, 320
        %v8159 = vsel %vm8119, %v8034, 320
        %v8160 = vsel %vm8120, %v8035, 320
        %v8161 = vsel %vm8121, %v8036, 320
        %v8162 = vsel %vm8122, %v8037, 320
        %v8163 = vsel %vm8123, %v8038, 320
        %v8164 = vsel %vm8124, %v8039, 320
        %v8165 = vsel %vm8125, %v8040, 320
        %v8166 = vsel %vm8126, %v8041, 320
        %v8167 = vsel %vm8127, %v8042, 320
        %v8168 = vsel %vm8128, %v8043, 320
        %v8169 = vsel %vm8129, %v8044, 320
        %v8170 = vsel %vm8130, %v8045, 320
        %v8171 = vsel %vm8131, %v8046, 320
        %v8172 = vsel %vm8132, %v8047, 320
        %v8173 = vsel %vm8133, %v8048, 320
        %v8174 = vsel %vm8134, %v8049, 320
        %v8175 = vsel %vm8135, %v8050, 320
        %v8176 = vsel %vm8136, %v8051, 320
        %v8177 = vsel %vm8137, %v8052, 320
        %vm8178 = vcmp.lt.s32.totalorder %v8138, %v8142
        %v8179 = vsel %vm8178, %v8138, %v8142
        %vm8180 = vcmp.lt.s32.totalorder %v8139, %v8143
        %v8181 = vsel %vm8180, %v8139, %v8143
        %vm8182 = vcmp.lt.s32.totalorder %v8140, %v8144
        %v8183 = vsel %vm8182, %v8140, %v8144
        %vm8184 = vcmp.lt.s32.totalorder %v8141, %v8145
        %v8185 = vsel %vm8184, %v8141, %v8145
        %vm8186 = vcmp.lt.s32.totalorder %v8179, %v8146
        %v8187 = vsel %vm8186, %v8179, %v8146
        %vm8188 = vcmp.lt.s32.totalorder %v8181, %v8147
        %v8189 = vsel %vm8188, %v8181, %v8147
        %vm8190 = vcmp.lt.s32.totalorder %v8183, %v8148
        %v8191 = vsel %vm8190, %v8183, %v8148
        %vm8192 = vcmp.lt.s32.totalorder %v8185, %v8149
        %v8193 = vsel %vm8192, %v8185, %v8149
        %vm8194 = vcmp.lt.s32.totalorder %v8187, %v8150
        %v8195 = vsel %vm8194, %v8187, %v8150
        %vm8196 = vcmp.lt.s32.totalorder %v8189, %v8151
        %v8197 = vsel %vm8196, %v8189, %v8151
        %vm8198 = vcmp.lt.s32.totalorder %v8191, %v8152
        %v8199 = vsel %vm8198, %v8191, %v8152
        %vm8200 = vcmp.lt.s32.totalorder %v8193, %v8153
        %v8201 = vsel %vm8200, %v8193, %v8153
        %vm8202 = vcmp.lt.s32.totalorder %v8195, %v8154
        %v8203 = vsel %vm8202, %v8195, %v8154
        %vm8204 = vcmp.lt.s32.totalorder %v8197, %v8155
        %v8205 = vsel %vm8204, %v8197, %v8155
        %vm8206 = vcmp.lt.s32.totalorder %v8199, %v8156
        %v8207 = vsel %vm8206, %v8199, %v8156
        %vm8208 = vcmp.lt.s32.totalorder %v8201, %v8157
        %v8209 = vsel %vm8208, %v8201, %v8157
        %vm8210 = vcmp.lt.s32.totalorder %v8203, %v8158
        %v8211 = vsel %vm8210, %v8203, %v8158
        %vm8212 = vcmp.lt.s32.totalorder %v8205, %v8159
        %v8213 = vsel %vm8212, %v8205, %v8159
        %vm8214 = vcmp.lt.s32.totalorder %v8207, %v8160
        %v8215 = vsel %vm8214, %v8207, %v8160
        %vm8216 = vcmp.lt.s32.totalorder %v8209, %v8161
        %v8217 = vsel %vm8216, %v8209, %v8161
        %vm8218 = vcmp.lt.s32.totalorder %v8211, %v8162
        %v8219 = vsel %vm8218, %v8211, %v8162
        %vm8220 = vcmp.lt.s32.totalorder %v8213, %v8163
        %v8221 = vsel %vm8220, %v8213, %v8163
        %vm8222 = vcmp.lt.s32.totalorder %v8215, %v8164
        %v8223 = vsel %vm8222, %v8215, %v8164
        %vm8224 = vcmp.lt.s32.totalorder %v8217, %v8165
        %v8225 = vsel %vm8224, %v8217, %v8165
        %vm8226 = vcmp.lt.s32.totalorder %v8219, %v8166
        %v8227 = vsel %vm8226, %v8219, %v8166
        %vm8228 = vcmp.lt.s32.totalorder %v8221, %v8167
        %v8229 = vsel %vm8228, %v8221, %v8167
        %vm8230 = vcmp.lt.s32.totalorder %v8223, %v8168
        %v8231 = vsel %vm8230, %v8223, %v8168
        %vm8232 = vcmp.lt.s32.totalorder %v8225, %v8169
        %v8233 = vsel %vm8232, %v8225, %v8169
        %vm8234 = vcmp.lt.s32.totalorder %v8227, %v8170
        %v8235 = vsel %vm8234, %v8227, %v8170
        %vm8236 = vcmp.lt.s32.totalorder %v8229, %v8171
        %v8237 = vsel %vm8236, %v8229, %v8171
        %vm8238 = vcmp.lt.s32.totalorder %v8231, %v8172
        %v8239 = vsel %vm8238, %v8231, %v8172
        %vm8240 = vcmp.lt.s32.totalorder %v8233, %v8173
        %v8241 = vsel %vm8240, %v8233, %v8173
        %vm8242 = vcmp.lt.s32.totalorder %v8235, %v8174
        %v8243 = vsel %vm8242, %v8235, %v8174
        %vm8244 = vcmp.lt.s32.totalorder %v8237, %v8175
        %v8245 = vsel %vm8244, %v8237, %v8175
        %vm8246 = vcmp.lt.s32.totalorder %v8239, %v8176
        %v8247 = vsel %vm8246, %v8239, %v8176
        %vm8248 = vcmp.lt.s32.totalorder %v8241, %v8177
        %v8249 = vsel %vm8248, %v8241, %v8177
        %vm8250 = vcmp.lt.s32.totalorder %v8243, %v8245
        %v8251 = vsel %vm8250, %v8243, %v8245
        %vm8252 = vcmp.lt.s32.totalorder %v8247, %v8249
        %v8253 = vsel %vm8252, %v8247, %v8249
        %vm8254 = vcmp.lt.s32.totalorder %v8251, %v8253
        %v8255 = vsel %vm8254, %v8251, %v8253
        %v8256 = vrot.slane %v8255, 4
        %vm8257 = vcmp.lt.s32.totalorder %v8255, %v8256
        %v8258 = vsel %vm8257, %v8255, %v8256
        %v8259 = vrot.slane %v8258, 2
        %vm8260 = vcmp.lt.s32.totalorder %v8258, %v8259
        %v8261 = vsel %vm8260, %v8258, %v8259
        %v8262 = vrot.slane %v8261, 1
        %vm8263 = vcmp.lt.s32.totalorder %v8261, %v8262
        %v8264 = vsel %vm8263, %v8261, %v8262
        %vm8265 = vcmp.eq.s32.totalorder %v8013, %v8264
        %vm8266 = vcmp.eq.s32.totalorder %v8014, %v8264
        %vm8267 = vcmp.eq.s32.totalorder %v8015, %v8264
        %vm8268 = vcmp.eq.s32.totalorder %v8016, %v8264
        %vm8269 = vcmp.eq.s32.totalorder %v8017, %v8264
        %vm8270 = vcmp.eq.s32.totalorder %v8018, %v8264
        %vm8271 = vcmp.eq.s32.totalorder %v8019, %v8264
        %vm8272 = vcmp.eq.s32.totalorder %v8020, %v8264
        %vm8273 = vcmp.eq.s32.totalorder %v8021, %v8264
        %vm8274 = vcmp.eq.s32.totalorder %v8022, %v8264
        %vm8275 = vcmp.eq.s32.totalorder %v8023, %v8264
        %vm8276 = vcmp.eq.s32.totalorder %v8024, %v8264
        %vm8277 = vcmp.eq.s32.totalorder %v8025, %v8264
        %vm8278 = vcmp.eq.s32.totalorder %v8026, %v8264
        %vm8279 = vcmp.eq.s32.totalorder %v8027, %v8264
        %vm8280 = vcmp.eq.s32.totalorder %v8028, %v8264
        %vm8281 = vcmp.eq.s32.totalorder %v8029, %v8264
        %vm8282 = vcmp.eq.s32.totalorder %v8030, %v8264
        %vm8283 = vcmp.eq.s32.totalorder %v8031, %v8264
        %vm8284 = vcmp.eq.s32.totalorder %v8032, %v8264
        %vm8285 = vcmp.eq.s32.totalorder %v8033, %v8264
        %vm8286 = vcmp.eq.s32.totalorder %v8034, %v8264
        %vm8287 = vcmp.eq.s32.totalorder %v8035, %v8264
        %vm8288 = vcmp.eq.s32.totalorder %v8036, %v8264
        %vm8289 = vcmp.eq.s32.totalorder %v8037, %v8264
        %vm8290 = vcmp.eq.s32.totalorder %v8038, %v8264
        %vm8291 = vcmp.eq.s32.totalorder %v8039, %v8264
        %vm8292 = vcmp.eq.s32.totalorder %v8040, %v8264
        %vm8293 = vcmp.eq.s32.totalorder %v8041, %v8264
        %vm8294 = vcmp.eq.s32.totalorder %v8042, %v8264
        %vm8295 = vcmp.eq.s32.totalorder %v8043, %v8264
        %vm8296 = vcmp.eq.s32.totalorder %v8044, %v8264
        %vm8297 = vcmp.eq.s32.totalorder %v8045, %v8264
        %vm8298 = vcmp.eq.s32.totalorder %v8046, %v8264
        %vm8299 = vcmp.eq.s32.totalorder %v8047, %v8264
        %vm8300 = vcmp.eq.s32.totalorder %v8048, %v8264
        %vm8301 = vcmp.eq.s32.totalorder %v8049, %v8264
        %vm8302 = vcmp.eq.s32.totalorder %v8050, %v8264
        %vm8303 = vcmp.eq.s32.totalorder %v8051, %v8264
        %vm8304 = vcmp.eq.s32.totalorder %v8052, %v8264
        %v8305 = vsel %vm8265, 1, 0
        %v8306 = vsel %vm8266, 1, 0
        %v8307 = vsel %vm8267, 1, 0
        %v8308 = vsel %vm8268, 1, 0
        %v8309 = vsel %vm8269, 1, 0
        %v8310 = vsel %vm8270, 1, 0
        %v8311 = vsel %vm8271, 1, 0
        %v8312 = vsel %vm8272, 1, 0
        %v8313 = vsel %vm8273, 1, 0
        %v8314 = vsel %vm8274, 1, 0
        %v8315 = vsel %vm8275, 1, 0
        %v8316 = vsel %vm8276, 1, 0
        %v8317 = vsel %vm8277, 1, 0
        %v8318 = vsel %vm8278, 1, 0
        %v8319 = vsel %vm8279, 1, 0
        %v8320 = vsel %vm8280, 1, 0
        %v8321 = vsel %vm8281, 1, 0
        %v8322 = vsel %vm8282, 1, 0
        %v8323 = vsel %vm8283, 1, 0
        %v8324 = vsel %vm8284, 1, 0
        %v8325 = vsel %vm8285, 1, 0
        %v8326 = vsel %vm8286, 1, 0
        %v8327 = vsel %vm8287, 1, 0
        %v8328 = vsel %vm8288, 1, 0
        %v8329 = vsel %vm8289, 1, 0
        %v8330 = vsel %vm8290, 1, 0
        %v8331 = vsel %vm8291, 1, 0
        %v8332 = vsel %vm8292, 1, 0
        %v8333 = vsel %vm8293, 1, 0
        %v8334 = vsel %vm8294, 1, 0
        %v8335 = vsel %vm8295, 1, 0
        %v8336 = vsel %vm8296, 1, 0
        %v8337 = vsel %vm8297, 1, 0
        %v8338 = vsel %vm8298, 1, 0
        %v8339 = vsel %vm8299, 1, 0
        %v8340 = vsel %vm8300, 1, 0
        %v8341 = vsel %vm8301, 1, 0
        %v8342 = vsel %vm8302, 1, 0
        %v8343 = vsel %vm8303, 1, 0
        %v8344 = vsel %vm8304, 1, 0
        %v8345 = vcvt.s32.f32 %v8305
        %v8346 = vcvt.s32.f32 %v8306
        %v8347 = vcvt.s32.f32 %v8307
        %v8348 = vcvt.s32.f32 %v8308
        %v8349 = vcvt.s32.f32 %v8309
        %v8350 = vcvt.s32.f32 %v8310
        %v8351 = vcvt.s32.f32 %v8311
        %v8352 = vcvt.s32.f32 %v8312
        %v8353 = vcvt.s32.f32 %v8313
        %v8354 = vcvt.s32.f32 %v8314
        %v8355 = vcvt.s32.f32 %v8315
        %v8356 = vcvt.s32.f32 %v8316
        %v8357 = vcvt.s32.f32 %v8317
        %v8358 = vcvt.s32.f32 %v8318
        %v8359 = vcvt.s32.f32 %v8319
        %v8360 = vcvt.s32.f32 %v8320
        %v8361 = vcvt.s32.f32 %v8321
        %v8362 = vcvt.s32.f32 %v8322
        %v8363 = vcvt.s32.f32 %v8323
        %v8364 = vcvt.s32.f32 %v8324
        %v8365 = vcvt.s32.f32 %v8325
        %v8366 = vcvt.s32.f32 %v8326
        %v8367 = vcvt.s32.f32 %v8327
        %v8368 = vcvt.s32.f32 %v8328
        %v8369 = vcvt.s32.f32 %v8329
        %v8370 = vcvt.s32.f32 %v8330
        %v8371 = vcvt.s32.f32 %v8331
        %v8372 = vcvt.s32.f32 %v8332
        %v8373 = vcvt.s32.f32 %v8333
        %v8374 = vcvt.s32.f32 %v8334
        %v8375 = vcvt.s32.f32 %v8335
        %v8376 = vcvt.s32.f32 %v8336
        %v8377 = vcvt.s32.f32 %v8337
        %v8378 = vcvt.s32.f32 %v8338
        %v8379 = vcvt.s32.f32 %v8339
        %v8380 = vcvt.s32.f32 %v8340
        %v8381 = vcvt.s32.f32 %v8341
        %v8382 = vcvt.s32.f32 %v8342
        %v8383 = vcvt.s32.f32 %v8343
        %v8384 = vcvt.s32.f32 %v8344
        %v8385 = vpack.c.bf16 %v8346, %v8345
        %v8386 = vpack.c.bf16 %v8348, %v8347
        %v8387 = vpack.c.bf16 %v8350, %v8349
        %v8388 = vpack.c.bf16 %v8352, %v8351
        %v8389 = vpack.c.bf16 %v8354, %v8353
        %v8390 = vpack.c.bf16 %v8356, %v8355
        %v8391 = vpack.c.bf16 %v8358, %v8357
        %v8392 = vpack.c.bf16 %v8360, %v8359
        %v8393 = vpack.c.bf16 %v8362, %v8361
        %v8394 = vpack.c.bf16 %v8364, %v8363
        %v8395 = vpack.c.bf16 %v8366, %v8365
        %v8396 = vpack.c.bf16 %v8368, %v8367
        %v8397 = vpack.c.bf16 %v8370, %v8369
        %v8398 = vpack.c.bf16 %v8372, %v8371
        %v8399 = vpack.c.bf16 %v8374, %v8373
        %v8400 = vpack.c.bf16 %v8376, %v8375
        %v8401 = vpack.c.bf16 %v8378, %v8377
        %v8402 = vpack.c.bf16 %v8380, %v8379
        %v8403 = vpack.c.bf16 %v8382, %v8381
        %v8404 = vpack.c.bf16 %v8384, %v8383
        %v8405 = vld [vmem:[%s5] sm:$0xff]
        %v8406 = vld [vmem:[%s5 + $0x8] sm:$0xf]
        %v8407 = vld [vmem:[%s5 + $0xc] sm:$0xff]
        %v8408 = vld [vmem:[%s5 + $0x14] sm:$0xf]
        %v8409 = vld [vmem:[%s5 + $0x18] sm:$0xff]
        %v8410 = vld [vmem:[%s5 + $0x20] sm:$0xf]
        %v8411 = vld [vmem:[%s5 + $0x24] sm:$0xff]
        %v8412 = vld [vmem:[%s5 + $0x2c] sm:$0xf]
        %v8413 = vld [vmem:[%s5 + $0x30] sm:$0xff]
        %v8414 = vld [vmem:[%s5 + $0x38] sm:$0xf]
        %v8415 = vld [vmem:[%s5 + $0x3c] sm:$0xff]
        %v8416 = vld [vmem:[%s5 + $0x44] sm:$0xf]
        %v8417 = vld [vmem:[%s5 + $0x48] sm:$0xff]
        %v8418 = vld [vmem:[%s5 + $0x50] sm:$0xf]
        %v8419 = vld [vmem:[%s5 + $0x54] sm:$0xff]
        %v8420 = vld [vmem:[%s5 + $0x5c] sm:$0xf]
        %v8421 = vld [vmem:[%s5 + $0x60] sm:$0xff]
        %v8422 = vld [vmem:[%s5 + $0x68] sm:$0xf]
        %v8423 = vld [vmem:[%s5 + $0x6c] sm:$0xff]
        %v8424 = vld [vmem:[%s5 + $0x74] sm:$0xf]
        %v8425 = vld [vmem:[%s5 + $0x78] sm:$0xff]
        %v8426 = vld [vmem:[%s5 + $0x80] sm:$0xf]
        %v8427 = vld [vmem:[%s5 + $0x84] sm:$0xff]
        %v8428 = vld [vmem:[%s5 + $0x8c] sm:$0xf]
        %v8429 = vld [vmem:[%s5 + $0x90] sm:$0xff]
        %v8430 = vld [vmem:[%s5 + $0x98] sm:$0xf]
        %v8431 = vld [vmem:[%s5 + $0x9c] sm:$0xff]
        %v8432 = vld [vmem:[%s5 + $0xa4] sm:$0xf]
        %v8433 = vld [vmem:[%s5 + $0xa8] sm:$0xff]
        %v8434 = vld [vmem:[%s5 + $0xb0] sm:$0xf]
        %v8435 = vld [vmem:[%s5 + $0xb4] sm:$0xff]
        %v8436 = vld [vmem:[%s5 + $0xbc] sm:$0xf]
        %v8437 = vld [vmem:[%s5 + $0xc0] sm:$0xff]
        %v8438 = vld [vmem:[%s5 + $0xc8] sm:$0xf]
        %v8439 = vld [vmem:[%s5 + $0xcc] sm:$0xff]
        %v8440 = vld [vmem:[%s5 + $0xd4] sm:$0xf]
        %v8441 = vld [vmem:[%s5 + $0xd8] sm:$0xff]
        %v8442 = vld [vmem:[%s5 + $0xe0] sm:$0xf]
        %v8443 = vld [vmem:[%s5 + $0xe4] sm:$0xff]
        %v8444 = vld [vmem:[%s5 + $0xec] sm:$0xf]
        %v8445 = vld [vmem:[%s5 + $0xf0] sm:$0xff]
        %v8446 = vld [vmem:[%s5 + $0xf8] sm:$0xf]
        %v8447 = vld [vmem:[%s5 + $0xfc] sm:$0xff]
        %v8448 = vld [vmem:[%s5 + $0x104] sm:$0xf]
        %v8449 = vld [vmem:[%s5 + $0x108] sm:$0xff]
        %v8450 = vld [vmem:[%s5 + $0x110] sm:$0xf]
        %v8451 = vld [vmem:[%s5 + $0x114] sm:$0xff]
        %v8452 = vld [vmem:[%s5 + $0x11c] sm:$0xf]
        %v8453 = vld [vmem:[%s5 + $0x120] sm:$0xff]
        %v8454 = vld [vmem:[%s5 + $0x128] sm:$0xf]
        %v8455 = vld [vmem:[%s5 + $0x12c] sm:$0xff]
        %v8456 = vld [vmem:[%s5 + $0x134] sm:$0xf]
        %v8457 = vld [vmem:[%s5 + $0x138] sm:$0xff]
        %v8458 = vld [vmem:[%s5 + $0x140] sm:$0xf]
        %v8459 = vld [vmem:[%s5 + $0x144] sm:$0xff]
        %v8460 = vld [vmem:[%s5 + $0x14c] sm:$0xf]
        %v8461 = vld [vmem:[%s5 + $0x150] sm:$0xff]
        %v8462 = vld [vmem:[%s5 + $0x158] sm:$0xf]
        %v8463 = vld [vmem:[%s5 + $0x15c] sm:$0xff]
        %v8464 = vld [vmem:[%s5 + $0x164] sm:$0xf]
        %v8465 = vld [vmem:[%s5 + $0x168] sm:$0xff]
        %v8466 = vld [vmem:[%s5 + $0x170] sm:$0xf]
        %v8467 = vld [vmem:[%s5 + $0x174] sm:$0xff]
        %v8468 = vld [vmem:[%s5 + $0x17c] sm:$0xf]
        %v8469 = vld [vmem:[%s6] sm:$0xff]
        %v8470 = vld [vmem:[%s6 + $0x8] sm:$0xf]
        %v8471 = vld [vmem:[%s6 + $0xc] sm:$0xff]
        %v8472 = vld [vmem:[%s6 + $0x14] sm:$0xf]
        %v8473 = vld [vmem:[%s6 + $0x18] sm:$0xff]
        %v8474 = vld [vmem:[%s6 + $0x20] sm:$0xf]
        %v8475 = vld [vmem:[%s6 + $0x24] sm:$0xff]
        %v8476 = vld [vmem:[%s6 + $0x2c] sm:$0xf]
        %v8477 = vld [vmem:[%s6 + $0x30] sm:$0xff]
        %v8478 = vld [vmem:[%s6 + $0x38] sm:$0xf]
        %v8479 = vld [vmem:[%s6 + $0x3c] sm:$0xff]
        %v8480 = vld [vmem:[%s6 + $0x44] sm:$0xf]
        %v8481 = vld [vmem:[%s6 + $0x48] sm:$0xff]
        %v8482 = vld [vmem:[%s6 + $0x50] sm:$0xf]
        %v8483 = vld [vmem:[%s6 + $0x54] sm:$0xff]
        %v8484 = vld [vmem:[%s6 + $0x5c] sm:$0xf]
        %v8485 = vld [vmem:[%s6 + $0x60] sm:$0xff]
        %v8486 = vld [vmem:[%s6 + $0x68] sm:$0xf]
        %v8487 = vld [vmem:[%s6 + $0x6c] sm:$0xff]
        %v8488 = vld [vmem:[%s6 + $0x74] sm:$0xf]
        %v8489 = vld [vmem:[%s6 + $0x78] sm:$0xff]
        %v8490 = vld [vmem:[%s6 + $0x80] sm:$0xf]
        %v8491 = vld [vmem:[%s6 + $0x84] sm:$0xff]
        %v8492 = vld [vmem:[%s6 + $0x8c] sm:$0xf]
        %v8493 = vld [vmem:[%s6 + $0x90] sm:$0xff]
        %v8494 = vld [vmem:[%s6 + $0x98] sm:$0xf]
        %v8495 = vld [vmem:[%s6 + $0x9c] sm:$0xff]
        %v8496 = vld [vmem:[%s6 + $0xa4] sm:$0xf]
        %v8497 = vld [vmem:[%s6 + $0xa8] sm:$0xff]
        %v8498 = vld [vmem:[%s6 + $0xb0] sm:$0xf]
        %v8499 = vld [vmem:[%s6 + $0xb4] sm:$0xff]
        %v8500 = vld [vmem:[%s6 + $0xbc] sm:$0xf]
        %v8501 = vld [vmem:[%s6 + $0xc0] sm:$0xff]
        %v8502 = vld [vmem:[%s6 + $0xc8] sm:$0xf]
        %v8503 = vld [vmem:[%s6 + $0xcc] sm:$0xff]
        %v8504 = vld [vmem:[%s6 + $0xd4] sm:$0xf]
        %v8505 = vld [vmem:[%s6 + $0xd8] sm:$0xff]
        %v8506 = vld [vmem:[%s6 + $0xe0] sm:$0xf]
        %v8507 = vld [vmem:[%s6 + $0xe4] sm:$0xff]
        %v8508 = vld [vmem:[%s6 + $0xec] sm:$0xf]
        %v8509 = vld [vmem:[%s6 + $0xf0] sm:$0xff]
        %v8510 = vld [vmem:[%s6 + $0xf8] sm:$0xf]
        %v8511 = vld [vmem:[%s6 + $0xfc] sm:$0xff]
        %v8512 = vld [vmem:[%s6 + $0x104] sm:$0xf]
        %v8513 = vld [vmem:[%s6 + $0x108] sm:$0xff]
        %v8514 = vld [vmem:[%s6 + $0x110] sm:$0xf]
        %v8515 = vld [vmem:[%s6 + $0x114] sm:$0xff]
        %v8516 = vld [vmem:[%s6 + $0x11c] sm:$0xf]
        %v8517 = vld [vmem:[%s6 + $0x120] sm:$0xff]
        %v8518 = vld [vmem:[%s6 + $0x128] sm:$0xf]
        %v8519 = vld [vmem:[%s6 + $0x12c] sm:$0xff]
        %v8520 = vld [vmem:[%s6 + $0x134] sm:$0xf]
        %v8521 = vld [vmem:[%s6 + $0x138] sm:$0xff]
        %v8522 = vld [vmem:[%s6 + $0x140] sm:$0xf]
        %v8523 = vld [vmem:[%s6 + $0x144] sm:$0xff]
        %v8524 = vld [vmem:[%s6 + $0x14c] sm:$0xf]
        %v8525 = vld [vmem:[%s6 + $0x150] sm:$0xff]
        %v8526 = vld [vmem:[%s6 + $0x158] sm:$0xf]
        %v8527 = vld [vmem:[%s6 + $0x15c] sm:$0xff]
        %v8528 = vld [vmem:[%s6 + $0x164] sm:$0xf]
        %v8529 = vld [vmem:[%s6 + $0x168] sm:$0xff]
        %v8530 = vld [vmem:[%s6 + $0x170] sm:$0xf]
        %v8531 = vld [vmem:[%s6 + $0x174] sm:$0xff]
        %v8532 = vld [vmem:[%s6 + $0x17c] sm:$0xf]
        %v8597 = vunpack.c.l.b16 %v8469
        %v8598 = vunpack.c.h.b16 %v8469
        %v8599 = vunpack.c.l.b16 %v8470
        %v8600 = vunpack.c.l.b16 %v8471
        %v8601 = vunpack.c.h.b16 %v8471
        %v8602 = vunpack.c.l.b16 %v8472
        %v8603 = vunpack.c.l.b16 %v8473
        %v8604 = vunpack.c.h.b16 %v8473
        %v8605 = vunpack.c.l.b16 %v8474
        %v8606 = vunpack.c.l.b16 %v8475
        %v8607 = vunpack.c.h.b16 %v8475
        %v8608 = vunpack.c.l.b16 %v8476
        %v8609 = vunpack.c.l.b16 %v8477
        %v8610 = vunpack.c.h.b16 %v8477
        %v8611 = vunpack.c.l.b16 %v8478
        %v8612 = vunpack.c.l.b16 %v8479
        %v8613 = vunpack.c.h.b16 %v8479
        %v8614 = vunpack.c.l.b16 %v8480
        %v8615 = vunpack.c.l.b16 %v8481
        %v8616 = vunpack.c.h.b16 %v8481
        %v8617 = vunpack.c.l.b16 %v8482
        %v8618 = vunpack.c.l.b16 %v8483
        %v8619 = vunpack.c.h.b16 %v8483
        %v8620 = vunpack.c.l.b16 %v8484
        %v8621 = vunpack.c.l.b16 %v8485
        %v8622 = vunpack.c.h.b16 %v8485
        %v8623 = vunpack.c.l.b16 %v8486
        %v8624 = vunpack.c.l.b16 %v8487
        %v8625 = vunpack.c.h.b16 %v8487
        %v8626 = vunpack.c.l.b16 %v8488
        %v8627 = vunpack.c.l.b16 %v8489
        %v8628 = vunpack.c.h.b16 %v8489
        %v8629 = vunpack.c.l.b16 %v8490
        %v8630 = vunpack.c.l.b16 %v8491
        %v8631 = vunpack.c.h.b16 %v8491
        %v8632 = vunpack.c.l.b16 %v8492
        %v8633 = vunpack.c.l.b16 %v8493
        %v8634 = vunpack.c.h.b16 %v8493
        %v8635 = vunpack.c.l.b16 %v8494
        %v8636 = vunpack.c.l.b16 %v8495
        %v8637 = vunpack.c.h.b16 %v8495
        %v8638 = vunpack.c.l.b16 %v8496
        %v8639 = vunpack.c.l.b16 %v8497
        %v8640 = vunpack.c.h.b16 %v8497
        %v8641 = vunpack.c.l.b16 %v8498
        %v8642 = vunpack.c.l.b16 %v8499
        %v8643 = vunpack.c.h.b16 %v8499
        %v8644 = vunpack.c.l.b16 %v8500
        %v8645 = vunpack.c.l.b16 %v8501
        %v8646 = vunpack.c.h.b16 %v8501
        %v8647 = vunpack.c.l.b16 %v8502
        %v8648 = vunpack.c.l.b16 %v8503
        %v8649 = vunpack.c.h.b16 %v8503
        %v8650 = vunpack.c.l.b16 %v8504
        %v8651 = vunpack.c.l.b16 %v8505
        %v8652 = vunpack.c.h.b16 %v8505
        %v8653 = vunpack.c.l.b16 %v8506
        %v8654 = vunpack.c.l.b16 %v8507
        %v8655 = vunpack.c.h.b16 %v8507
        %v8656 = vunpack.c.l.b16 %v8508
        %v8657 = vunpack.c.l.b16 %v8509
        %v8658 = vunpack.c.h.b16 %v8509
        %v8659 = vunpack.c.l.b16 %v8510
        %v8660 = vunpack.c.l.b16 %v8511
        %v8661 = vunpack.c.h.b16 %v8511
        %v8662 = vunpack.c.l.b16 %v8512
        %v8663 = vunpack.c.l.b16 %v8513
        %v8664 = vunpack.c.h.b16 %v8513
        %v8665 = vunpack.c.l.b16 %v8514
        %v8666 = vunpack.c.l.b16 %v8515
        %v8667 = vunpack.c.h.b16 %v8515
        %v8668 = vunpack.c.l.b16 %v8516
        %v8669 = vunpack.c.l.b16 %v8517
        %v8670 = vunpack.c.h.b16 %v8517
        %v8671 = vunpack.c.l.b16 %v8518
        %v8672 = vunpack.c.l.b16 %v8519
        %v8673 = vunpack.c.h.b16 %v8519
        %v8674 = vunpack.c.l.b16 %v8520
        %v8675 = vunpack.c.l.b16 %v8521
        %v8676 = vunpack.c.h.b16 %v8521
        %v8677 = vunpack.c.l.b16 %v8522
        %v8678 = vunpack.c.l.b16 %v8523
        %v8679 = vunpack.c.h.b16 %v8523
        %v8680 = vunpack.c.l.b16 %v8524
        %v8681 = vunpack.c.l.b16 %v8525
        %v8682 = vunpack.c.h.b16 %v8525
        %v8683 = vunpack.c.l.b16 %v8526
        %v8684 = vunpack.c.l.b16 %v8527
        %v8685 = vunpack.c.h.b16 %v8527
        %v8686 = vunpack.c.l.b16 %v8528
        %v8687 = vunpack.c.l.b16 %v8529
        %v8688 = vunpack.c.h.b16 %v8529
        %v8689 = vunpack.c.l.b16 %v8530
        %v8690 = vunpack.c.l.b16 %v8531
        %v8691 = vunpack.c.h.b16 %v8531
        %v8692 = vunpack.c.l.b16 %v8532
        %v8693 = vpack.c.b16 %v8600, %v8597
        %v8694 = vpack.c.b16 %v8601, %v8598
        %v8695 = vpack.c.b16 %v8602, %v8599
        %v8696 = vpack.c.b16 %v8606, %v8603
        %v8697 = vpack.c.b16 %v8607, %v8604
        %v8698 = vpack.c.b16 %v8608, %v8605
        %v8699 = vpack.c.b16 %v8612, %v8609
        %v8700 = vpack.c.b16 %v8613, %v8610
        %v8701 = vpack.c.b16 %v8614, %v8611
        %v8702 = vpack.c.b16 %v8618, %v8615
        %v8703 = vpack.c.b16 %v8619, %v8616
        %v8704 = vpack.c.b16 %v8620, %v8617
        %v8705 = vpack.c.b16 %v8624, %v8621
        %v8706 = vpack.c.b16 %v8625, %v8622
        %v8707 = vpack.c.b16 %v8626, %v8623
        %v8708 = vpack.c.b16 %v8630, %v8627
        %v8709 = vpack.c.b16 %v8631, %v8628
        %v8710 = vpack.c.b16 %v8632, %v8629
        %v8711 = vpack.c.b16 %v8636, %v8633
        %v8712 = vpack.c.b16 %v8637, %v8634
        %v8713 = vpack.c.b16 %v8638, %v8635
        %v8714 = vpack.c.b16 %v8642, %v8639
        %v8715 = vpack.c.b16 %v8643, %v8640
        %v8716 = vpack.c.b16 %v8644, %v8641
        %v8717 = vpack.c.b16 %v8648, %v8645
        %v8718 = vpack.c.b16 %v8649, %v8646
        %v8719 = vpack.c.b16 %v8650, %v8647
        %v8720 = vpack.c.b16 %v8654, %v8651
        %v8721 = vpack.c.b16 %v8655, %v8652
        %v8722 = vpack.c.b16 %v8656, %v8653
        %v8723 = vpack.c.b16 %v8660, %v8657
        %v8724 = vpack.c.b16 %v8661, %v8658
        %v8725 = vpack.c.b16 %v8662, %v8659
        %v8726 = vpack.c.b16 %v8666, %v8663
        %v8727 = vpack.c.b16 %v8667, %v8664
        %v8728 = vpack.c.b16 %v8668, %v8665
        %v8729 = vpack.c.b16 %v8672, %v8669
        %v8730 = vpack.c.b16 %v8673, %v8670
        %v8731 = vpack.c.b16 %v8674, %v8671
        %v8732 = vpack.c.b16 %v8678, %v8675
        %v8733 = vpack.c.b16 %v8679, %v8676
        %v8734 = vpack.c.b16 %v8680, %v8677
        %v8735 = vpack.c.b16 %v8684, %v8681
        %v8736 = vpack.c.b16 %v8685, %v8682
        %v8737 = vpack.c.b16 %v8686, %v8683
        %v8738 = vpack.c.b16 %v8690, %v8687
        %v8739 = vpack.c.b16 %v8691, %v8688
        %v8740 = vpack.c.b16 %v8692, %v8689
        %vm8773 = vcmask 523264
        %v8775 = vsel %vm8773, %v8695, 0
        %v8778 = vsel %vm8773, %v8698, 0
        %v8781 = vsel %vm8773, %v8701, 0
        %v8784 = vsel %vm8773, %v8704, 0
        %v8787 = vsel %vm8773, %v8707, 0
        %v8790 = vsel %vm8773, %v8710, 0
        %v8793 = vsel %vm8773, %v8713, 0
        %v8796 = vsel %vm8773, %v8716, 0
        %v8799 = vsel %vm8773, %v8719, 0
        %v8802 = vsel %vm8773, %v8722, 0
        %v8805 = vsel %vm8773, %v8725, 0
        %v8808 = vsel %vm8773, %v8728, 0
        %v8811 = vsel %vm8773, %v8731, 0
        %v8814 = vsel %vm8773, %v8734, 0
        %v8817 = vsel %vm8773, %v8737, 0
        %v8820 = vsel %vm8773, %v8740, 0
        %8822 = vmatprep.subr.bf16.mxu0 0
        %8823 = vmatpush1.bf16.msra.mxu0 %v8385
        %8824 = vmatprep.subr.bf16.mxu0 0
        %8825 = vmatpush1.bf16.msra.mxu0 %v8386
        %8826 = vmatprep.subr.bf16.mxu0 0
        %8827 = vmatpush1.bf16.msra.mxu0 %v8387
        %8828 = vmatprep.subr.bf16.mxu0 0
        %8829 = vmatpush1.bf16.msra.mxu0 %v8388
        %8830 = vmatprep.subr.bf16.mxu0 0
        %8831 = vmatpush1.bf16.msra.mxu0 %v8389
        %8832 = vmatprep.subr.bf16.mxu0 0
        %8833 = vmatpush1.bf16.msra.mxu0 %v8390
        %8834 = vmatprep.subr.bf16.mxu0 0
        %8835 = vmatpush1.bf16.msra.mxu0 %v8391
        %8836 = vmatprep.subr.bf16.mxu0 0
        %8837 = vmatpush1.bf16.msra.mxu0 %v8392
        %8838 = vmatprep.subr.bf16.mxu0 0
        %8839 = vmatpush1.bf16.msra.mxu0 %v8393
        %8840 = vmatprep.subr.bf16.mxu0 0
        %8841 = vmatpush1.bf16.msra.mxu0 %v8394
        %8842 = vmatprep.subr.bf16.mxu0 0
        %8843 = vmatpush1.bf16.msra.mxu0 %v8395
        %8844 = vmatprep.subr.bf16.mxu0 0
        %8845 = vmatpush1.bf16.msra.mxu0 %v8396
        %8846 = vmatprep.subr.bf16.mxu0 0
        %8847 = vmatpush1.bf16.msra.mxu0 %v8397
        %8848 = vmatprep.subr.bf16.mxu0 0
        %8849 = vmatpush1.bf16.msra.mxu0 %v8398
        %8850 = vmatprep.subr.bf16.mxu0 0
        %8851 = vmatpush1.bf16.msra.mxu0 %v8399
        %8852 = vmatprep.subr.bf16.mxu0 0
        %8853 = vmatpush1.bf16.msra.mxu0 %v8400
        %8854 = vmatprep.mubr.bf16.mxu0 %v8694
        %8855 = vmatmul.mubr.bf16.gmra.mrb[0].mxu0 %v8693
        %v8856 = vpop.f32.mrb[0].mxu0
        %v8857 = vadd.f32 0.0, %v8856
        %v8858 = vpop.f32.mrb[0].mxu0
        %v8859 = vpop.f32.mrb[0].mxu0
        %v8860 = vadd.f32 0.0, %v8859
        %v8861 = vpop.f32.mrb[0].mxu0
        %8862 = vmatprep.mubr.bf16.mxu0 %v8697
        %8863 = vmatmul.mubr.bf16.gmra.mrb[0].mxu0 %v8696
        %v8864 = vpop.f32.mrb[0].mxu0
        %v8865 = vadd.f32 0.0, %v8864
        %v8866 = vpop.f32.mrb[0].mxu0
        %v8867 = vpop.f32.mrb[0].mxu0
        %v8868 = vadd.f32 0.0, %v8867
        %v8869 = vpop.f32.mrb[0].mxu0
        %8870 = vmatprep.mubr.bf16.mxu0 %v8700
        %8871 = vmatmul.mubr.bf16.gmra.mrb[0].mxu0 %v8699
        %v8872 = vpop.f32.mrb[0].mxu0
        %v8873 = vadd.f32 0.0, %v8872
        %v8874 = vpop.f32.mrb[0].mxu0
        %v8875 = vpop.f32.mrb[0].mxu0
        %v8876 = vadd.f32 0.0, %v8875
        %v8877 = vpop.f32.mrb[0].mxu0
        %8878 = vmatprep.mubr.bf16.mxu0 %v8703
        %8879 = vmatmul.mubr.bf16.gmra.mrb[0].mxu0 %v8702
        %v8880 = vpop.f32.mrb[0].mxu0
        %v8881 = vadd.f32 0.0, %v8880
        %v8882 = vpop.f32.mrb[0].mxu0
        %v8883 = vpop.f32.mrb[0].mxu0
        %v8884 = vadd.f32 0.0, %v8883
        %v8885 = vpop.f32.mrb[0].mxu0
        %8886 = vmatprep.mubr.bf16.mxu0 %v8706
        %8887 = vmatmul.mubr.bf16.gmra.mrb[0].mxu0 %v8705
        %v8888 = vpop.f32.mrb[0].mxu0
        %v8889 = vadd.f32 0.0, %v8888
        %v8890 = vpop.f32.mrb[0].mxu0
        %v8891 = vpop.f32.mrb[0].mxu0
        %v8892 = vadd.f32 0.0, %v8891
        %v8893 = vpop.f32.mrb[0].mxu0
        %8894 = vmatprep.mubr.bf16.mxu0 %v8709
        %8895 = vmatmul.mubr.bf16.gmra.mrb[0].mxu0 %v8708
        %v8896 = vpop.f32.mrb[0].mxu0
        %v8897 = vadd.f32 0.0, %v8896
        %v8898 = vpop.f32.mrb[0].mxu0
        %v8899 = vpop.f32.mrb[0].mxu0
        %v8900 = vadd.f32 0.0, %v8899
        %v8901 = vpop.f32.mrb[0].mxu0
        %8902 = vmatprep.mubr.bf16.mxu0 %v8712
        %8903 = vmatmul.mubr.bf16.gmra.mrb[0].mxu0 %v8711
        %v8904 = vpop.f32.mrb[0].mxu0
        %v8905 = vadd.f32 0.0, %v8904
        %v8906 = vpop.f32.mrb[0].mxu0
        %v8907 = vpop.f32.mrb[0].mxu0
        %v8908 = vadd.f32 0.0, %v8907
        %v8909 = vpop.f32.mrb[0].mxu0
        %8910 = vmatprep.mubr.bf16.mxu0 %v8715
        %8911 = vmatmul.mubr.bf16.gmra.mrb[0].mxu0 %v8714
        %v8912 = vpop.f32.mrb[0].mxu0
        %v8913 = vadd.f32 0.0, %v8912
        %v8914 = vpop.f32.mrb[0].mxu0
        %v8915 = vpop.f32.mrb[0].mxu0
        %v8916 = vadd.f32 0.0, %v8915
        %v8917 = vpop.f32.mrb[0].mxu0
        %8918 = vmatprep.mubr.bf16.mxu0 %v8718
        %8919 = vmatmul.mubr.bf16.gmra.mrb[0].mxu0 %v8717
        %v8920 = vpop.f32.mrb[0].mxu0
        %v8921 = vadd.f32 0.0, %v8920
        %v8922 = vpop.f32.mrb[0].mxu0
        %v8923 = vpop.f32.mrb[0].mxu0
        %v8924 = vadd.f32 0.0, %v8923
        %v8925 = vpop.f32.mrb[0].mxu0
        %8926 = vmatprep.mubr.bf16.mxu0 %v8721
        %8927 = vmatmul.mubr.bf16.gmra.mrb[0].mxu0 %v8720
        %v8928 = vpop.f32.mrb[0].mxu0
        %v8929 = vadd.f32 0.0, %v8928
        %v8930 = vpop.f32.mrb[0].mxu0
        %v8931 = vpop.f32.mrb[0].mxu0
        %v8932 = vadd.f32 0.0, %v8931
        %v8933 = vpop.f32.mrb[0].mxu0
        %8934 = vmatprep.mubr.bf16.mxu0 %v8724
        %8935 = vmatmul.mubr.bf16.gmra.mrb[0].mxu0 %v8723
        %v8936 = vpop.f32.mrb[0].mxu0
        %v8937 = vadd.f32 0.0, %v8936
        %v8938 = vpop.f32.mrb[0].mxu0
        %v8939 = vpop.f32.mrb[0].mxu0
        %v8940 = vadd.f32 0.0, %v8939
        %v8941 = vpop.f32.mrb[0].mxu0
        %8942 = vmatprep.mubr.bf16.mxu0 %v8727
        %8943 = vmatmul.mubr.bf16.gmra.mrb[0].mxu0 %v8726
        %v8944 = vpop.f32.mrb[0].mxu0
        %v8945 = vadd.f32 0.0, %v8944
        %v8946 = vpop.f32.mrb[0].mxu0
        %v8947 = vpop.f32.mrb[0].mxu0
        %v8948 = vadd.f32 0.0, %v8947
        %v8949 = vpop.f32.mrb[0].mxu0
        %8950 = vmatprep.mubr.bf16.mxu0 %v8730
        %8951 = vmatmul.mubr.bf16.gmra.mrb[0].mxu0 %v8729
        %v8952 = vpop.f32.mrb[0].mxu0
        %v8953 = vadd.f32 0.0, %v8952
        %v8954 = vpop.f32.mrb[0].mxu0
        %v8955 = vpop.f32.mrb[0].mxu0
        %v8956 = vadd.f32 0.0, %v8955
        %v8957 = vpop.f32.mrb[0].mxu0
        %8958 = vmatprep.mubr.bf16.mxu0 %v8733
        %8959 = vmatmul.mubr.bf16.gmra.mrb[0].mxu0 %v8732
        %v8960 = vpop.f32.mrb[0].mxu0
        %v8961 = vadd.f32 0.0, %v8960
        %v8962 = vpop.f32.mrb[0].mxu0
        %v8963 = vpop.f32.mrb[0].mxu0
        %v8964 = vadd.f32 0.0, %v8963
        %v8965 = vpop.f32.mrb[0].mxu0
        %8966 = vmatprep.mubr.bf16.mxu0 %v8736
        %8967 = vmatmul.mubr.bf16.gmra.mrb[0].mxu0 %v8735
        %v8968 = vpop.f32.mrb[0].mxu0
        %v8969 = vadd.f32 0.0, %v8968
        %v8970 = vpop.f32.mrb[0].mxu0
        %v8971 = vpop.f32.mrb[0].mxu0
        %v8972 = vadd.f32 0.0, %v8971
        %v8973 = vpop.f32.mrb[0].mxu0
        %8974 = vmatprep.mubr.bf16.mxu0 %v8739
        %8975 = vmatmul.mubr.bf16.gmra.mrb[0].mxu0 %v8738
        %v8976 = vpop.f32.mrb[0].mxu0
        %v8977 = vadd.f32 0.0, %v8976
        %v8978 = vpop.f32.mrb[0].mxu0
        %v8979 = vpop.f32.mrb[0].mxu0
        %v8980 = vadd.f32 0.0, %v8979
        %v8981 = vpop.f32.mrb[0].mxu0
        %8982 = vdwg.mxu0
        %8983 = vmatprep.subr.bf16.mxu0 0
        %8984 = vmatpush1.bf16.msra.mxu0 %v8401
        %8985 = vmatprep.subr.bf16.mxu0 0
        %8986 = vmatpush1.bf16.msra.mxu0 %v8402
        %8987 = vmatprep.subr.bf16.mxu0 0
        %8988 = vmatpush1.bf16.msra.mxu0 %v8403
        %8989 = vmatprep.subr.bf16.mxu0 0
        %8990 = vmatpush1.bf16.msra.mxu0 %v8404
        %8991 = vmatprep.subr.bf16.mxu0 0
        %8992 = vmatpush1.bf16.msra.mxu0 0
        %8993 = vmatprep.subr.bf16.mxu0 0
        %8994 = vmatpush1.bf16.msra.mxu0 0
        %8995 = vmatprep.subr.bf16.mxu0 0
        %8996 = vmatpush1.bf16.msra.mxu0 0
        %8997 = vmatprep.subr.bf16.mxu0 0
        %8998 = vmatpush1.bf16.msra.mxu0 0
        %8999 = vmatprep.subr.bf16.mxu0 0
        %9000 = vmatpush1.bf16.msra.mxu0 0
        %9001 = vmatprep.subr.bf16.mxu0 0
        %9002 = vmatpush1.bf16.msra.mxu0 0
        %9003 = vmatprep.subr.bf16.mxu0 0
        %9004 = vmatpush1.bf16.msra.mxu0 0
        %9005 = vmatprep.subr.bf16.mxu0 0
        %9006 = vmatpush1.bf16.msra.mxu0 0
        %9007 = vmatprep.subr.bf16.mxu0 0
        %9008 = vmatpush1.bf16.msra.mxu0 0
        %9009 = vmatprep.subr.bf16.mxu0 0
        %9010 = vmatpush1.bf16.msra.mxu0 0
        %9011 = vmatprep.subr.bf16.mxu0 0
        %9012 = vmatpush1.bf16.msra.mxu0 0
        %9013 = vmatprep.subr.bf16.mxu0 0
        %9014 = vmatpush1.bf16.msra.mxu0 0
        %9015 = vmatprep.mubr.bf16.mxu0 0
        %9016 = vmatmul.mubr.bf16.gmra.mrb[0].mxu0 %v8775
        %v9017 = vpop.f32.mrb[0].mxu0
        %v9018 = vadd.f32 %v8857, %v9017
        %v9019 = vpop.f32.mrb[0].mxu0
        %v9020 = vpop.f32.mrb[0].mxu0
        %v9021 = vadd.f32 %v8860, %v9020
        %v9022 = vpop.f32.mrb[0].mxu0
        %9023 = vmatprep.mubr.bf16.mxu0 0
        %9024 = vmatmul.mubr.bf16.gmra.mrb[0].mxu0 %v8778
        %v9025 = vpop.f32.mrb[0].mxu0
        %v9026 = vadd.f32 %v8865, %v9025
        %v9027 = vpop.f32.mrb[0].mxu0
        %v9028 = vpop.f32.mrb[0].mxu0
        %v9029 = vadd.f32 %v8868, %v9028
        %v9030 = vpop.f32.mrb[0].mxu0
        %9031 = vmatprep.mubr.bf16.mxu0 0
        %9032 = vmatmul.mubr.bf16.gmra.mrb[0].mxu0 %v8781
        %v9033 = vpop.f32.mrb[0].mxu0
        %v9034 = vadd.f32 %v8873, %v9033
        %v9035 = vpop.f32.mrb[0].mxu0
        %v9036 = vpop.f32.mrb[0].mxu0
        %v9037 = vadd.f32 %v8876, %v9036
        %v9038 = vpop.f32.mrb[0].mxu0
        %9039 = vmatprep.mubr.bf16.mxu0 0
        %9040 = vmatmul.mubr.bf16.gmra.mrb[0].mxu0 %v8784
        %v9041 = vpop.f32.mrb[0].mxu0
        %v9042 = vadd.f32 %v8881, %v9041
        %v9043 = vpop.f32.mrb[0].mxu0
        %v9044 = vpop.f32.mrb[0].mxu0
        %v9045 = vadd.f32 %v8884, %v9044
        %v9046 = vpop.f32.mrb[0].mxu0
        %9047 = vmatprep.mubr.bf16.mxu0 0
        %9048 = vmatmul.mubr.bf16.gmra.mrb[0].mxu0 %v8787
        %v9049 = vpop.f32.mrb[0].mxu0
        %v9050 = vadd.f32 %v8889, %v9049
        %v9051 = vpop.f32.mrb[0].mxu0
        %v9052 = vpop.f32.mrb[0].mxu0
        %v9053 = vadd.f32 %v8892, %v9052
        %v9054 = vpop.f32.mrb[0].mxu0
        %9055 = vmatprep.mubr.bf16.mxu0 0
        %9056 = vmatmul.mubr.bf16.gmra.mrb[0].mxu0 %v8790
        %v9057 = vpop.f32.mrb[0].mxu0
        %v9058 = vadd.f32 %v8897, %v9057
        %v9059 = vpop.f32.mrb[0].mxu0
        %v9060 = vpop.f32.mrb[0].mxu0
        %v9061 = vadd.f32 %v8900, %v9060
        %v9062 = vpop.f32.mrb[0].mxu0
        %9063 = vmatprep.mubr.bf16.mxu0 0
        %9064 = vmatmul.mubr.bf16.gmra.mrb[0].mxu0 %v8793
        %v9065 = vpop.f32.mrb[0].mxu0
        %v9066 = vadd.f32 %v8905, %v9065
        %v9067 = vpop.f32.mrb[0].mxu0
        %v9068 = vpop.f32.mrb[0].mxu0
        %v9069 = vadd.f32 %v8908, %v9068
        %v9070 = vpop.f32.mrb[0].mxu0
        %9071 = vmatprep.mubr.bf16.mxu0 0
        %9072 = vmatmul.mubr.bf16.gmra.mrb[0].mxu0 %v8796
        %v9073 = vpop.f32.mrb[0].mxu0
        %v9074 = vadd.f32 %v8913, %v9073
        %v9075 = vpop.f32.mrb[0].mxu0
        %v9076 = vpop.f32.mrb[0].mxu0
        %v9077 = vadd.f32 %v8916, %v9076
        %v9078 = vpop.f32.mrb[0].mxu0
        %9079 = vmatprep.mubr.bf16.mxu0 0
        %9080 = vmatmul.mubr.bf16.gmra.mrb[0].mxu0 %v8799
        %v9081 = vpop.f32.mrb[0].mxu0
        %v9082 = vadd.f32 %v8921, %v9081
        %v9083 = vpop.f32.mrb[0].mxu0
        %v9084 = vpop.f32.mrb[0].mxu0
        %v9085 = vadd.f32 %v8924, %v9084
        %v9086 = vpop.f32.mrb[0].mxu0
        %9087 = vmatprep.mubr.bf16.mxu0 0
        %9088 = vmatmul.mubr.bf16.gmra.mrb[0].mxu0 %v8802
        %v9089 = vpop.f32.mrb[0].mxu0
        %v9090 = vadd.f32 %v8929, %v9089
        %v9091 = vpop.f32.mrb[0].mxu0
        %v9092 = vpop.f32.mrb[0].mxu0
        %v9093 = vadd.f32 %v8932, %v9092
        %v9094 = vpop.f32.mrb[0].mxu0
        %9095 = vmatprep.mubr.bf16.mxu0 0
        %9096 = vmatmul.mubr.bf16.gmra.mrb[0].mxu0 %v8805
        %v9097 = vpop.f32.mrb[0].mxu0
        %v9098 = vadd.f32 %v8937, %v9097
        %v9099 = vpop.f32.mrb[0].mxu0
        %v9100 = vpop.f32.mrb[0].mxu0
        %v9101 = vadd.f32 %v8940, %v9100
        %v9102 = vpop.f32.mrb[0].mxu0
        %9103 = vmatprep.mubr.bf16.mxu0 0
        %9104 = vmatmul.mubr.bf16.gmra.mrb[0].mxu0 %v8808
        %v9105 = vpop.f32.mrb[0].mxu0
        %v9106 = vadd.f32 %v8945, %v9105
        %v9107 = vpop.f32.mrb[0].mxu0
        %v9108 = vpop.f32.mrb[0].mxu0
        %v9109 = vadd.f32 %v8948, %v9108
        %v9110 = vpop.f32.mrb[0].mxu0
        %9111 = vmatprep.mubr.bf16.mxu0 0
        %9112 = vmatmul.mubr.bf16.gmra.mrb[0].mxu0 %v8811
        %v9113 = vpop.f32.mrb[0].mxu0
        %v9114 = vadd.f32 %v8953, %v9113
        %v9115 = vpop.f32.mrb[0].mxu0
        %v9116 = vpop.f32.mrb[0].mxu0
        %v9117 = vadd.f32 %v8956, %v9116
        %v9118 = vpop.f32.mrb[0].mxu0
        %9119 = vmatprep.mubr.bf16.mxu0 0
        %9120 = vmatmul.mubr.bf16.gmra.mrb[0].mxu0 %v8814
        %v9121 = vpop.f32.mrb[0].mxu0
        %v9122 = vadd.f32 %v8961, %v9121
        %v9123 = vpop.f32.mrb[0].mxu0
        %v9124 = vpop.f32.mrb[0].mxu0
        %v9125 = vadd.f32 %v8964, %v9124
        %v9126 = vpop.f32.mrb[0].mxu0
        %9127 = vmatprep.mubr.bf16.mxu0 0
        %9128 = vmatmul.mubr.bf16.gmra.mrb[0].mxu0 %v8817
        %v9129 = vpop.f32.mrb[0].mxu0
        %v9130 = vadd.f32 %v8969, %v9129
        %v9131 = vpop.f32.mrb[0].mxu0
        %v9132 = vpop.f32.mrb[0].mxu0
        %v9133 = vadd.f32 %v8972, %v9132
        %v9134 = vpop.f32.mrb[0].mxu0
        %9135 = vmatprep.mubr.bf16.mxu0 0
        %9136 = vmatmul.mubr.bf16.gmra.mrb[0].mxu0 %v8820
        %v9137 = vpop.f32.mrb[0].mxu0
        %v9138 = vadd.f32 %v8977, %v9137
        %v9139 = vpop.f32.mrb[0].mxu0
        %v9140 = vpop.f32.mrb[0].mxu0
        %v9141 = vadd.f32 %v8980, %v9140
        %v9142 = vpop.f32.mrb[0].mxu0
        %9143 = vdwg.mxu0
        %v9208 = vunpack.c.l.b16 %v8405
        %v9209 = vunpack.c.h.b16 %v8405
        %v9210 = vunpack.c.l.b16 %v8406
        %v9211 = vunpack.c.l.b16 %v8407
        %v9212 = vunpack.c.h.b16 %v8407
        %v9213 = vunpack.c.l.b16 %v8408
        %v9214 = vunpack.c.l.b16 %v8409
        %v9215 = vunpack.c.h.b16 %v8409
        %v9216 = vunpack.c.l.b16 %v8410
        %v9217 = vunpack.c.l.b16 %v8411
        %v9218 = vunpack.c.h.b16 %v8411
        %v9219 = vunpack.c.l.b16 %v8412
        %v9220 = vunpack.c.l.b16 %v8413
        %v9221 = vunpack.c.h.b16 %v8413
        %v9222 = vunpack.c.l.b16 %v8414
        %v9223 = vunpack.c.l.b16 %v8415
        %v9224 = vunpack.c.h.b16 %v8415
        %v9225 = vunpack.c.l.b16 %v8416
        %v9226 = vunpack.c.l.b16 %v8417
        %v9227 = vunpack.c.h.b16 %v8417
        %v9228 = vunpack.c.l.b16 %v8418
        %v9229 = vunpack.c.l.b16 %v8419
        %v9230 = vunpack.c.h.b16 %v8419
        %v9231 = vunpack.c.l.b16 %v8420
        %v9232 = vunpack.c.l.b16 %v8421
        %v9233 = vunpack.c.h.b16 %v8421
        %v9234 = vunpack.c.l.b16 %v8422
        %v9235 = vunpack.c.l.b16 %v8423
        %v9236 = vunpack.c.h.b16 %v8423
        %v9237 = vunpack.c.l.b16 %v8424
        %v9238 = vunpack.c.l.b16 %v8425
        %v9239 = vunpack.c.h.b16 %v8425
        %v9240 = vunpack.c.l.b16 %v8426
        %v9241 = vunpack.c.l.b16 %v8427
        %v9242 = vunpack.c.h.b16 %v8427
        %v9243 = vunpack.c.l.b16 %v8428
        %v9244 = vunpack.c.l.b16 %v8429
        %v9245 = vunpack.c.h.b16 %v8429
        %v9246 = vunpack.c.l.b16 %v8430
        %v9247 = vunpack.c.l.b16 %v8431
        %v9248 = vunpack.c.h.b16 %v8431
        %v9249 = vunpack.c.l.b16 %v8432
        %v9250 = vunpack.c.l.b16 %v8433
        %v9251 = vunpack.c.h.b16 %v8433
        %v9252 = vunpack.c.l.b16 %v8434
        %v9253 = vunpack.c.l.b16 %v8435
        %v9254 = vunpack.c.h.b16 %v8435
        %v9255 = vunpack.c.l.b16 %v8436
        %v9256 = vunpack.c.l.b16 %v8437
        %v9257 = vunpack.c.h.b16 %v8437
        %v9258 = vunpack.c.l.b16 %v8438
        %v9259 = vunpack.c.l.b16 %v8439
        %v9260 = vunpack.c.h.b16 %v8439
        %v9261 = vunpack.c.l.b16 %v8440
        %v9262 = vunpack.c.l.b16 %v8441
        %v9263 = vunpack.c.h.b16 %v8441
        %v9264 = vunpack.c.l.b16 %v8442
        %v9265 = vunpack.c.l.b16 %v8443
        %v9266 = vunpack.c.h.b16 %v8443
        %v9267 = vunpack.c.l.b16 %v8444
        %v9268 = vunpack.c.l.b16 %v8445
        %v9269 = vunpack.c.h.b16 %v8445
        %v9270 = vunpack.c.l.b16 %v8446
        %v9271 = vunpack.c.l.b16 %v8447
        %v9272 = vunpack.c.h.b16 %v8447
        %v9273 = vunpack.c.l.b16 %v8448
        %v9274 = vunpack.c.l.b16 %v8449
        %v9275 = vunpack.c.h.b16 %v8449
        %v9276 = vunpack.c.l.b16 %v8450
        %v9277 = vunpack.c.l.b16 %v8451
        %v9278 = vunpack.c.h.b16 %v8451
        %v9279 = vunpack.c.l.b16 %v8452
        %v9280 = vunpack.c.l.b16 %v8453
        %v9281 = vunpack.c.h.b16 %v8453
        %v9282 = vunpack.c.l.b16 %v8454
        %v9283 = vunpack.c.l.b16 %v8455
        %v9284 = vunpack.c.h.b16 %v8455
        %v9285 = vunpack.c.l.b16 %v8456
        %v9286 = vunpack.c.l.b16 %v8457
        %v9287 = vunpack.c.h.b16 %v8457
        %v9288 = vunpack.c.l.b16 %v8458
        %v9289 = vunpack.c.l.b16 %v8459
        %v9290 = vunpack.c.h.b16 %v8459
        %v9291 = vunpack.c.l.b16 %v8460
        %v9292 = vunpack.c.l.b16 %v8461
        %v9293 = vunpack.c.h.b16 %v8461
        %v9294 = vunpack.c.l.b16 %v8462
        %v9295 = vunpack.c.l.b16 %v8463
        %v9296 = vunpack.c.h.b16 %v8463
        %v9297 = vunpack.c.l.b16 %v8464
        %v9298 = vunpack.c.l.b16 %v8465
        %v9299 = vunpack.c.h.b16 %v8465
        %v9300 = vunpack.c.l.b16 %v8466
        %v9301 = vunpack.c.l.b16 %v8467
        %v9302 = vunpack.c.h.b16 %v8467
        %v9303 = vunpack.c.l.b16 %v8468
        %v9304 = vpack.c.b16 %v9211, %v9208
        %v9305 = vpack.c.b16 %v9212, %v9209
        %v9306 = vpack.c.b16 %v9213, %v9210
        %v9307 = vpack.c.b16 %v9217, %v9214
        %v9308 = vpack.c.b16 %v9218, %v9215
        %v9309 = vpack.c.b16 %v9219, %v9216
        %v9310 = vpack.c.b16 %v9223, %v9220
        %v9311 = vpack.c.b16 %v9224, %v9221
        %v9312 = vpack.c.b16 %v9225, %v9222
        %v9313 = vpack.c.b16 %v9229, %v9226
        %v9314 = vpack.c.b16 %v9230, %v9227
        %v9315 = vpack.c.b16 %v9231, %v9228
        %v9316 = vpack.c.b16 %v9235, %v9232
        %v9317 = vpack.c.b16 %v9236, %v9233
        %v9318 = vpack.c.b16 %v9237, %v9234
        %v9319 = vpack.c.b16 %v9241, %v9238
        %v9320 = vpack.c.b16 %v9242, %v9239
        %v9321 = vpack.c.b16 %v9243, %v9240
        %v9322 = vpack.c.b16 %v9247, %v9244
        %v9323 = vpack.c.b16 %v9248, %v9245
        %v9324 = vpack.c.b16 %v9249, %v9246
        %v9325 = vpack.c.b16 %v9253, %v9250
        %v9326 = vpack.c.b16 %v9254, %v9251
        %v9327 = vpack.c.b16 %v9255, %v9252
        %v9328 = vpack.c.b16 %v9259, %v9256
        %v9329 = vpack.c.b16 %v9260, %v9257
        %v9330 = vpack.c.b16 %v9261, %v9258
        %v9331 = vpack.c.b16 %v9265, %v9262
        %v9332 = vpack.c.b16 %v9266, %v9263
        %v9333 = vpack.c.b16 %v9267, %v9264
        %v9334 = vpack.c.b16 %v9271, %v9268
        %v9335 = vpack.c.b16 %v9272, %v9269
        %v9336 = vpack.c.b16 %v9273, %v9270
        %v9337 = vpack.c.b16 %v9277, %v9274
        %v9338 = vpack.c.b16 %v9278, %v9275
        %v9339 = vpack.c.b16 %v9279, %v9276
        %v9340 = vpack.c.b16 %v9283, %v9280
        %v9341 = vpack.c.b16 %v9284, %v9281
        %v9342 = vpack.c.b16 %v9285, %v9282
        %v9343 = vpack.c.b16 %v9289, %v9286
        %v9344 = vpack.c.b16 %v9290, %v9287
        %v9345 = vpack.c.b16 %v9291, %v9288
        %v9346 = vpack.c.b16 %v9295, %v9292
        %v9347 = vpack.c.b16 %v9296, %v9293
        %v9348 = vpack.c.b16 %v9297, %v9294
        %v9349 = vpack.c.b16 %v9301, %v9298
        %v9350 = vpack.c.b16 %v9302, %v9299
        %v9351 = vpack.c.b16 %v9303, %v9300
        %v9385 = vsel %vm8773, %v9306, 0
        %v9388 = vsel %vm8773, %v9309, 0
        %v9391 = vsel %vm8773, %v9312, 0
        %v9394 = vsel %vm8773, %v9315, 0
        %v9397 = vsel %vm8773, %v9318, 0
        %v9400 = vsel %vm8773, %v9321, 0
        %v9403 = vsel %vm8773, %v9324, 0
        %v9406 = vsel %vm8773, %v9327, 0
        %v9409 = vsel %vm8773, %v9330, 0
        %v9412 = vsel %vm8773, %v9333, 0
        %v9415 = vsel %vm8773, %v9336, 0
        %v9418 = vsel %vm8773, %v9339, 0
        %v9421 = vsel %vm8773, %v9342, 0
        %v9424 = vsel %vm8773, %v9345, 0
        %v9427 = vsel %vm8773, %v9348, 0
        %v9430 = vsel %vm8773, %v9351, 0
        %9432 = vmatprep.subr.bf16.mxu0 0
        %9433 = vmatpush1.bf16.msra.mxu0 %v8385
        %9434 = vmatprep.subr.bf16.mxu0 0
        %9435 = vmatpush1.bf16.msra.mxu0 %v8386
        %9436 = vmatprep.subr.bf16.mxu0 0
        %9437 = vmatpush1.bf16.msra.mxu0 %v8387
        %9438 = vmatprep.subr.bf16.mxu0 0
        %9439 = vmatpush1.bf16.msra.mxu0 %v8388
        %9440 = vmatprep.subr.bf16.mxu0 0
        %9441 = vmatpush1.bf16.msra.mxu0 %v8389
        %9442 = vmatprep.subr.bf16.mxu0 0
        %9443 = vmatpush1.bf16.msra.mxu0 %v8390
        %9444 = vmatprep.subr.bf16.mxu0 0
        %9445 = vmatpush1.bf16.msra.mxu0 %v8391
        %9446 = vmatprep.subr.bf16.mxu0 0
        %9447 = vmatpush1.bf16.msra.mxu0 %v8392
        %9448 = vmatprep.subr.bf16.mxu0 0
        %9449 = vmatpush1.bf16.msra.mxu0 %v8393
        %9450 = vmatprep.subr.bf16.mxu0 0
        %9451 = vmatpush1.bf16.msra.mxu0 %v8394
        %9452 = vmatprep.subr.bf16.mxu0 0
        %9453 = vmatpush1.bf16.msra.mxu0 %v8395
        %9454 = vmatprep.subr.bf16.mxu0 0
        %9455 = vmatpush1.bf16.msra.mxu0 %v8396
        %9456 = vmatprep.subr.bf16.mxu0 0
        %9457 = vmatpush1.bf16.msra.mxu0 %v8397
        %9458 = vmatprep.subr.bf16.mxu0 0
        %9459 = vmatpush1.bf16.msra.mxu0 %v8398
        %9460 = vmatprep.subr.bf16.mxu0 0
        %9461 = vmatpush1.bf16.msra.mxu0 %v8399
        %9462 = vmatprep.subr.bf16.mxu0 0
        %9463 = vmatpush1.bf16.msra.mxu0 %v8400
        %9464 = vmatprep.mubr.bf16.mxu0 %v9305
        %9465 = vmatmul.mubr.bf16.gmra.mrb[0].mxu0 %v9304
        %v9466 = vpop.f32.mrb[0].mxu0
        %v9467 = vadd.f32 %v9018, %v9466
        %v9468 = vpop.f32.mrb[0].mxu0
        %v9469 = vpop.f32.mrb[0].mxu0
        %v9470 = vadd.f32 %v9021, %v9469
        %v9471 = vpop.f32.mrb[0].mxu0
        %9472 = vmatprep.mubr.bf16.mxu0 %v9308
        %9473 = vmatmul.mubr.bf16.gmra.mrb[0].mxu0 %v9307
        %v9474 = vpop.f32.mrb[0].mxu0
        %v9475 = vadd.f32 %v9026, %v9474
        %v9476 = vpop.f32.mrb[0].mxu0
        %v9477 = vpop.f32.mrb[0].mxu0
        %v9478 = vadd.f32 %v9029, %v9477
        %v9479 = vpop.f32.mrb[0].mxu0
        %9480 = vmatprep.mubr.bf16.mxu0 %v9311
        %9481 = vmatmul.mubr.bf16.gmra.mrb[0].mxu0 %v9310
        %v9482 = vpop.f32.mrb[0].mxu0
        %v9483 = vadd.f32 %v9034, %v9482
        %v9484 = vpop.f32.mrb[0].mxu0
        %v9485 = vpop.f32.mrb[0].mxu0
        %v9486 = vadd.f32 %v9037, %v9485
        %v9487 = vpop.f32.mrb[0].mxu0
        %9488 = vmatprep.mubr.bf16.mxu0 %v9314
        %9489 = vmatmul.mubr.bf16.gmra.mrb[0].mxu0 %v9313
        %v9490 = vpop.f32.mrb[0].mxu0
        %v9491 = vadd.f32 %v9042, %v9490
        %v9492 = vpop.f32.mrb[0].mxu0
        %v9493 = vpop.f32.mrb[0].mxu0
        %v9494 = vadd.f32 %v9045, %v9493
        %v9495 = vpop.f32.mrb[0].mxu0
        %9496 = vmatprep.mubr.bf16.mxu0 %v9317
        %9497 = vmatmul.mubr.bf16.gmra.mrb[0].mxu0 %v9316
        %v9498 = vpop.f32.mrb[0].mxu0
        %v9499 = vadd.f32 %v9050, %v9498
        %v9500 = vpop.f32.mrb[0].mxu0
        %v9501 = vpop.f32.mrb[0].mxu0
        %v9502 = vadd.f32 %v9053, %v9501
        %v9503 = vpop.f32.mrb[0].mxu0
        %9504 = vmatprep.mubr.bf16.mxu0 %v9320
        %9505 = vmatmul.mubr.bf16.gmra.mrb[0].mxu0 %v9319
        %v9506 = vpop.f32.mrb[0].mxu0
        %v9507 = vadd.f32 %v9058, %v9506
        %v9508 = vpop.f32.mrb[0].mxu0
        %v9509 = vpop.f32.mrb[0].mxu0
        %v9510 = vadd.f32 %v9061, %v9509
        %v9511 = vpop.f32.mrb[0].mxu0
        %9512 = vmatprep.mubr.bf16.mxu0 %v9323
        %9513 = vmatmul.mubr.bf16.gmra.mrb[0].mxu0 %v9322
        %v9514 = vpop.f32.mrb[0].mxu0
        %v9515 = vadd.f32 %v9066, %v9514
        %v9516 = vpop.f32.mrb[0].mxu0
        %v9517 = vpop.f32.mrb[0].mxu0
        %v9518 = vadd.f32 %v9069, %v9517
        %v9519 = vpop.f32.mrb[0].mxu0
        %9520 = vmatprep.mubr.bf16.mxu0 %v9326
        %9521 = vmatmul.mubr.bf16.gmra.mrb[0].mxu0 %v9325
        %v9522 = vpop.f32.mrb[0].mxu0
        %v9523 = vadd.f32 %v9074, %v9522
        %v9524 = vpop.f32.mrb[0].mxu0
        %v9525 = vpop.f32.mrb[0].mxu0
        %v9526 = vadd.f32 %v9077, %v9525
        %v9527 = vpop.f32.mrb[0].mxu0
        %9528 = vmatprep.mubr.bf16.mxu0 %v9329
        %9529 = vmatmul.mubr.bf16.gmra.mrb[0].mxu0 %v9328
        %v9530 = vpop.f32.mrb[0].mxu0
        %v9531 = vadd.f32 %v9082, %v9530
        %v9532 = vpop.f32.mrb[0].mxu0
        %v9533 = vpop.f32.mrb[0].mxu0
        %v9534 = vadd.f32 %v9085, %v9533
        %v9535 = vpop.f32.mrb[0].mxu0
        %9536 = vmatprep.mubr.bf16.mxu0 %v9332
        %9537 = vmatmul.mubr.bf16.gmra.mrb[0].mxu0 %v9331
        %v9538 = vpop.f32.mrb[0].mxu0
        %v9539 = vadd.f32 %v9090, %v9538
        %v9540 = vpop.f32.mrb[0].mxu0
        %v9541 = vpop.f32.mrb[0].mxu0
        %v9542 = vadd.f32 %v9093, %v9541
        %v9543 = vpop.f32.mrb[0].mxu0
        %9544 = vmatprep.mubr.bf16.mxu0 %v9335
        %9545 = vmatmul.mubr.bf16.gmra.mrb[0].mxu0 %v9334
        %v9546 = vpop.f32.mrb[0].mxu0
        %v9547 = vadd.f32 %v9098, %v9546
        %v9548 = vpop.f32.mrb[0].mxu0
        %v9549 = vpop.f32.mrb[0].mxu0
        %v9550 = vadd.f32 %v9101, %v9549
        %v9551 = vpop.f32.mrb[0].mxu0
        %9552 = vmatprep.mubr.bf16.mxu0 %v9338
        %9553 = vmatmul.mubr.bf16.gmra.mrb[0].mxu0 %v9337
        %v9554 = vpop.f32.mrb[0].mxu0
        %v9555 = vadd.f32 %v9106, %v9554
        %v9556 = vpop.f32.mrb[0].mxu0
        %v9557 = vpop.f32.mrb[0].mxu0
        %v9558 = vadd.f32 %v9109, %v9557
        %v9559 = vpop.f32.mrb[0].mxu0
        %9560 = vmatprep.mubr.bf16.mxu0 %v9341
        %9561 = vmatmul.mubr.bf16.gmra.mrb[0].mxu0 %v9340
        %v9562 = vpop.f32.mrb[0].mxu0
        %v9563 = vadd.f32 %v9114, %v9562
        %v9564 = vpop.f32.mrb[0].mxu0
        %v9565 = vpop.f32.mrb[0].mxu0
        %v9566 = vadd.f32 %v9117, %v9565
        %v9567 = vpop.f32.mrb[0].mxu0
        %9568 = vmatprep.mubr.bf16.mxu0 %v9344
        %9569 = vmatmul.mubr.bf16.gmra.mrb[0].mxu0 %v9343
        %v9570 = vpop.f32.mrb[0].mxu0
        %v9571 = vadd.f32 %v9122, %v9570
        %v9572 = vpop.f32.mrb[0].mxu0
        %v9573 = vpop.f32.mrb[0].mxu0
        %v9574 = vadd.f32 %v9125, %v9573
        %v9575 = vpop.f32.mrb[0].mxu0
        %9576 = vmatprep.mubr.bf16.mxu0 %v9347
        %9577 = vmatmul.mubr.bf16.gmra.mrb[0].mxu0 %v9346
        %v9578 = vpop.f32.mrb[0].mxu0
        %v9579 = vadd.f32 %v9130, %v9578
        %v9580 = vpop.f32.mrb[0].mxu0
        %v9581 = vpop.f32.mrb[0].mxu0
        %v9582 = vadd.f32 %v9133, %v9581
        %v9583 = vpop.f32.mrb[0].mxu0
        %9584 = vmatprep.mubr.bf16.mxu0 %v9350
        %9585 = vmatmul.mubr.bf16.gmra.mrb[0].mxu0 %v9349
        %v9586 = vpop.f32.mrb[0].mxu0
        %v9587 = vadd.f32 %v9138, %v9586
        %v9588 = vpop.f32.mrb[0].mxu0
        %v9589 = vpop.f32.mrb[0].mxu0
        %v9590 = vadd.f32 %v9141, %v9589
        %v9591 = vpop.f32.mrb[0].mxu0
        %9592 = vdwg.mxu0
        %9593 = vmatprep.subr.bf16.mxu0 0
        %9594 = vmatpush1.bf16.msra.mxu0 %v8401
        %9595 = vmatprep.subr.bf16.mxu0 0
        %9596 = vmatpush1.bf16.msra.mxu0 %v8402
        %9597 = vmatprep.subr.bf16.mxu0 0
        %9598 = vmatpush1.bf16.msra.mxu0 %v8403
        %9599 = vmatprep.subr.bf16.mxu0 0
        %9600 = vmatpush1.bf16.msra.mxu0 %v8404
        %9601 = vmatprep.subr.bf16.mxu0 0
        %9602 = vmatpush1.bf16.msra.mxu0 0
        %9603 = vmatprep.subr.bf16.mxu0 0
        %9604 = vmatpush1.bf16.msra.mxu0 0
        %9605 = vmatprep.subr.bf16.mxu0 0
        %9606 = vmatpush1.bf16.msra.mxu0 0
        %9607 = vmatprep.subr.bf16.mxu0 0
        %9608 = vmatpush1.bf16.msra.mxu0 0
        %9609 = vmatprep.subr.bf16.mxu0 0
        %9610 = vmatpush1.bf16.msra.mxu0 0
        %9611 = vmatprep.subr.bf16.mxu0 0
        %9612 = vmatpush1.bf16.msra.mxu0 0
        %9613 = vmatprep.subr.bf16.mxu0 0
        %9614 = vmatpush1.bf16.msra.mxu0 0
        %9615 = vmatprep.subr.bf16.mxu0 0
        %9616 = vmatpush1.bf16.msra.mxu0 0
        %9617 = vmatprep.subr.bf16.mxu0 0
        %9618 = vmatpush1.bf16.msra.mxu0 0
        %9619 = vmatprep.subr.bf16.mxu0 0
        %9620 = vmatpush1.bf16.msra.mxu0 0
        %9621 = vmatprep.subr.bf16.mxu0 0
        %9622 = vmatpush1.bf16.msra.mxu0 0
        %9623 = vmatprep.subr.bf16.mxu0 0
        %9624 = vmatpush1.bf16.msra.mxu0 0
        %9625 = vmatprep.mubr.bf16.mxu0 0
        %9626 = vmatmul.mubr.bf16.gmra.mrb[0].mxu0 %v9385
        %v9627 = vpop.f32.mrb[0].mxu0
        %v9628 = vadd.f32 %v9467, %v9627
        %v9629 = vpop.f32.mrb[0].mxu0
        %v9630 = vpop.f32.mrb[0].mxu0
        %v9631 = vadd.f32 %v9470, %v9630
        %v9632 = vpop.f32.mrb[0].mxu0
        %9633 = vmatprep.mubr.bf16.mxu0 0
        %9634 = vmatmul.mubr.bf16.gmra.mrb[0].mxu0 %v9388
        %v9635 = vpop.f32.mrb[0].mxu0
        %v9636 = vadd.f32 %v9475, %v9635
        %v9637 = vpop.f32.mrb[0].mxu0
        %v9638 = vpop.f32.mrb[0].mxu0
        %v9639 = vadd.f32 %v9478, %v9638
        %v9640 = vpop.f32.mrb[0].mxu0
        %9641 = vmatprep.mubr.bf16.mxu0 0
        %9642 = vmatmul.mubr.bf16.gmra.mrb[0].mxu0 %v9391
        %v9643 = vpop.f32.mrb[0].mxu0
        %v9644 = vadd.f32 %v9483, %v9643
        %v9645 = vpop.f32.mrb[0].mxu0
        %v9646 = vpop.f32.mrb[0].mxu0
        %v9647 = vadd.f32 %v9486, %v9646
        %v9648 = vpop.f32.mrb[0].mxu0
        %9649 = vmatprep.mubr.bf16.mxu0 0
        %9650 = vmatmul.mubr.bf16.gmra.mrb[0].mxu0 %v9394
        %v9651 = vpop.f32.mrb[0].mxu0
        %v9652 = vadd.f32 %v9491, %v9651
        %v9653 = vpop.f32.mrb[0].mxu0
        %v9654 = vpop.f32.mrb[0].mxu0
        %v9655 = vadd.f32 %v9494, %v9654
        %v9656 = vpop.f32.mrb[0].mxu0
        %9657 = vmatprep.mubr.bf16.mxu0 0
        %9658 = vmatmul.mubr.bf16.gmra.mrb[0].mxu0 %v9397
        %v9659 = vpop.f32.mrb[0].mxu0
        %v9660 = vadd.f32 %v9499, %v9659
        %v9661 = vpop.f32.mrb[0].mxu0
        %v9662 = vpop.f32.mrb[0].mxu0
        %v9663 = vadd.f32 %v9502, %v9662
        %v9664 = vpop.f32.mrb[0].mxu0
        %9665 = vmatprep.mubr.bf16.mxu0 0
        %9666 = vmatmul.mubr.bf16.gmra.mrb[0].mxu0 %v9400
        %v9667 = vpop.f32.mrb[0].mxu0
        %v9668 = vadd.f32 %v9507, %v9667
        %v9669 = vpop.f32.mrb[0].mxu0
        %v9670 = vpop.f32.mrb[0].mxu0
        %v9671 = vadd.f32 %v9510, %v9670
        %v9672 = vpop.f32.mrb[0].mxu0
        %9673 = vmatprep.mubr.bf16.mxu0 0
        %9674 = vmatmul.mubr.bf16.gmra.mrb[0].mxu0 %v9403
        %v9675 = vpop.f32.mrb[0].mxu0
        %v9676 = vadd.f32 %v9515, %v9675
        %v9677 = vpop.f32.mrb[0].mxu0
        %v9678 = vpop.f32.mrb[0].mxu0
        %v9679 = vadd.f32 %v9518, %v9678
        %v9680 = vpop.f32.mrb[0].mxu0
        %9681 = vmatprep.mubr.bf16.mxu0 0
        %9682 = vmatmul.mubr.bf16.gmra.mrb[0].mxu0 %v9406
        %v9683 = vpop.f32.mrb[0].mxu0
        %v9684 = vadd.f32 %v9523, %v9683
        %v9685 = vpop.f32.mrb[0].mxu0
        %v9686 = vpop.f32.mrb[0].mxu0
        %v9687 = vadd.f32 %v9526, %v9686
        %v9688 = vpop.f32.mrb[0].mxu0
        %9689 = vmatprep.mubr.bf16.mxu0 0
        %9690 = vmatmul.mubr.bf16.gmra.mrb[0].mxu0 %v9409
        %v9691 = vpop.f32.mrb[0].mxu0
        %v9692 = vadd.f32 %v9531, %v9691
        %v9693 = vpop.f32.mrb[0].mxu0
        %v9694 = vpop.f32.mrb[0].mxu0
        %v9695 = vadd.f32 %v9534, %v9694
        %v9696 = vpop.f32.mrb[0].mxu0
        %9697 = vmatprep.mubr.bf16.mxu0 0
        %9698 = vmatmul.mubr.bf16.gmra.mrb[0].mxu0 %v9412
        %v9699 = vpop.f32.mrb[0].mxu0
        %v9700 = vadd.f32 %v9539, %v9699
        %v9701 = vpop.f32.mrb[0].mxu0
        %v9702 = vpop.f32.mrb[0].mxu0
        %v9703 = vadd.f32 %v9542, %v9702
        %v9704 = vpop.f32.mrb[0].mxu0
        %9705 = vmatprep.mubr.bf16.mxu0 0
        %9706 = vmatmul.mubr.bf16.gmra.mrb[0].mxu0 %v9415
        %v9707 = vpop.f32.mrb[0].mxu0
        %v9708 = vadd.f32 %v9547, %v9707
        %v9709 = vpop.f32.mrb[0].mxu0
        %v9710 = vpop.f32.mrb[0].mxu0
        %v9711 = vadd.f32 %v9550, %v9710
        %v9712 = vpop.f32.mrb[0].mxu0
        %9713 = vmatprep.mubr.bf16.mxu0 0
        %9714 = vmatmul.mubr.bf16.gmra.mrb[0].mxu0 %v9418
        %v9715 = vpop.f32.mrb[0].mxu0
        %v9716 = vadd.f32 %v9555, %v9715
        %v9717 = vpop.f32.mrb[0].mxu0
        %v9718 = vpop.f32.mrb[0].mxu0
        %v9719 = vadd.f32 %v9558, %v9718
        %v9720 = vpop.f32.mrb[0].mxu0
        %9721 = vmatprep.mubr.bf16.mxu0 0
        %9722 = vmatmul.mubr.bf16.gmra.mrb[0].mxu0 %v9421
        %v9723 = vpop.f32.mrb[0].mxu0
        %v9724 = vadd.f32 %v9563, %v9723
        %v9725 = vpop.f32.mrb[0].mxu0
        %v9726 = vpop.f32.mrb[0].mxu0
        %v9727 = vadd.f32 %v9566, %v9726
        %v9728 = vpop.f32.mrb[0].mxu0
        %9729 = vmatprep.mubr.bf16.mxu0 0
        %9730 = vmatmul.mubr.bf16.gmra.mrb[0].mxu0 %v9424
        %v9731 = vpop.f32.mrb[0].mxu0
        %v9732 = vadd.f32 %v9571, %v9731
        %v9733 = vpop.f32.mrb[0].mxu0
        %v9734 = vpop.f32.mrb[0].mxu0
        %v9735 = vadd.f32 %v9574, %v9734
        %v9736 = vpop.f32.mrb[0].mxu0
        %9737 = vmatprep.mubr.bf16.mxu0 0
        %9738 = vmatmul.mubr.bf16.gmra.mrb[0].mxu0 %v9427
        %v9739 = vpop.f32.mrb[0].mxu0
        %v9740 = vadd.f32 %v9579, %v9739
        %v9741 = vpop.f32.mrb[0].mxu0
        %v9742 = vpop.f32.mrb[0].mxu0
        %v9743 = vadd.f32 %v9582, %v9742
        %v9744 = vpop.f32.mrb[0].mxu0
        %9745 = vmatprep.mubr.bf16.mxu0 0
        %9746 = vmatmul.mubr.bf16.gmra.mrb[0].mxu0 %v9430
        %v9747 = vpop.f32.mrb[0].mxu0
        %v9748 = vadd.f32 %v9587, %v9747
        %v9749 = vpop.f32.mrb[0].mxu0
        %v9750 = vpop.f32.mrb[0].mxu0
        %v9751 = vadd.f32 %v9590, %v9750
        %v9752 = vpop.f32.mrb[0].mxu0
        %9753 = vdwg.mxu0
        %9754 = vst [vmem:[%s341] sm:$0xff] %v9628
        %9755 = vst [vmem:[%s341 + $0x8] sm:$0xff] %v9631
        %9756 = vst [vmem:[%s341 + $0x10] sm:$0xff] %v9636
        %9757 = vst [vmem:[%s341 + $0x18] sm:$0xff] %v9639
        %9758 = vst [vmem:[%s341 + $0x20] sm:$0xff] %v9644
        %9759 = vst [vmem:[%s341 + $0x28] sm:$0xff] %v9647
        %9760 = vst [vmem:[%s341 + $0x30] sm:$0xff] %v9652
        %9761 = vst [vmem:[%s341 + $0x38] sm:$0xff] %v9655
        %9762 = vst [vmem:[%s341 + $0x40] sm:$0xff] %v9660
        %9763 = vst [vmem:[%s341 + $0x48] sm:$0xff] %v9663
        %9764 = vst [vmem:[%s341 + $0x50] sm:$0xff] %v9668
        %9765 = vst [vmem:[%s341 + $0x58] sm:$0xff] %v9671
        %9766 = vst [vmem:[%s341 + $0x60] sm:$0xff] %v9676
        %9767 = vst [vmem:[%s341 + $0x68] sm:$0xff] %v9679
        %9768 = vst [vmem:[%s341 + $0x70] sm:$0xff] %v9684
        %9769 = vst [vmem:[%s341 + $0x78] sm:$0xff] %v9687
        %9770 = vst [vmem:[%s341 + $0x80] sm:$0xff] %v9692
        %9771 = vst [vmem:[%s341 + $0x88] sm:$0xff] %v9695
        %9772 = vst [vmem:[%s341 + $0x90] sm:$0xff] %v9700
        %9773 = vst [vmem:[%s341 + $0x98] sm:$0xff] %v9703
        %9774 = vst [vmem:[%s341 + $0xa0] sm:$0xff] %v9708
        %9775 = vst [vmem:[%s341 + $0xa8] sm:$0xff] %v9711
        %9776 = vst [vmem:[%s341 + $0xb0] sm:$0xff] %v9716
        %9777 = vst [vmem:[%s341 + $0xb8] sm:$0xff] %v9719
        %9778 = vst [vmem:[%s341 + $0xc0] sm:$0xff] %v9724
        %9779 = vst [vmem:[%s341 + $0xc8] sm:$0xff] %v9727
        %9780 = vst [vmem:[%s341 + $0xd0] sm:$0xff] %v9732
        %9781 = vst [vmem:[%s341 + $0xd8] sm:$0xff] %v9735
        %9782 = vst [vmem:[%s341 + $0xe0] sm:$0xff] %v9740
        %9783 = vst [vmem:[%s341 + $0xe8] sm:$0xff] %v9743
        %9784 = vst [vmem:[%s341 + $0xf0] sm:$0xff] %v9748
        %9785 = vst [vmem:[%s341 + $0xf8] sm:$0xff] %v9751
        %9786 = vst [vmem:[%s348] sm:$0x1] %v8264
        %v9787 = vmax.f32 %v7854, %v7870
        %v9788 = vmax.f32 %v7857, %v7873
        %v9789 = vmax.f32 %v7862, %v7878
        %v9790 = vmax.f32 %v7865, %v7881
        %v9791 = vmax.f32 %v9787, %v7886
        %v9792 = vmax.f32 %v9788, %v7889
        %v9793 = vmax.f32 %v9789, %v7894
        %v9794 = vmax.f32 %v9790, %v7897
        %v9795 = vmax.f32 %v9791, %v7902
        %v9796 = vmax.f32 %v9792, %v7905
        %v9797 = vmax.f32 %v9793, %v7910
        %v9798 = vmax.f32 %v9794, %v7913
        %v9799 = vmax.f32 %v9795, %v7918
        %v9800 = vmax.f32 %v9796, %v7921
        %v9801 = vmax.f32 %v9797, %v7926
        %v9802 = vmax.f32 %v9798, %v7929
        %v9803 = vmax.f32 %v9799, %v7934
        %v9804 = vmax.f32 %v9800, %v7937
        %v9805 = vmax.f32 %v9801, %v7942
        %v9806 = vmax.f32 %v9802, %v7945
        %v9807 = vmax.f32 %v9803, %v7950
        %v9808 = vmax.f32 %v9804, %v7953
        %v9809 = vmax.f32 %v9805, %v7958
        %v9810 = vmax.f32 %v9806, %v7961
        %v9811 = vmax.f32 %v9807, %v7966
        %v9812 = vmax.f32 %v9808, %v7969
        %v9813 = vmax.f32 %v9809, %v7974
        %v9814 = vmax.f32 %v9810, %v7977
        %v9815 = vmax.f32 %v9811, %v7982
        %v9816 = vmax.f32 %v9812, %v7985
        %v9817 = vmax.f32 %v9813, %v7990
        %v9818 = vmax.f32 %v9814, %v7993
        %v9819 = vmax.f32 %v9815, %v7998
        %v9820 = vmax.f32 %v9816, %v8001
        %v9821 = vmax.f32 %v9817, %v8006
        %v9822 = vmax.f32 %v9818, %v8009
        %v9823 = vmax.f32 %v9819, %v9820
        %v9824 = vmax.f32 %v9821, %v9822
        %v9825 = vmax.f32 %v9823, %v9824
        %v9826 = vrot.slane %v9825, 4
        %v9827 = vmax.f32 %v9825, %v9826
        %v9828 = vrot.slane %v9827, 2
        %v9829 = vmax.f32 %v9827, %v9828
        %v9830 = vrot.slane %v9829, 1
        %v9831 = vmax.f32 %v9829, %v9830
        %vm9832 = vcmp.eq.f32.partialorder %v7854, %v9831
        %vm9833 = vcmp.eq.f32.partialorder %v7857, %v9831
        %vm9834 = vcmp.eq.f32.partialorder %v7862, %v9831
        %vm9835 = vcmp.eq.f32.partialorder %v7865, %v9831
        %vm9836 = vcmp.eq.f32.partialorder %v7870, %v9831
        %vm9837 = vcmp.eq.f32.partialorder %v7873, %v9831
        %vm9838 = vcmp.eq.f32.partialorder %v7878, %v9831
        %vm9839 = vcmp.eq.f32.partialorder %v7881, %v9831
        %vm9840 = vcmp.eq.f32.partialorder %v7886, %v9831
        %vm9841 = vcmp.eq.f32.partialorder %v7889, %v9831
        %vm9842 = vcmp.eq.f32.partialorder %v7894, %v9831
        %vm9843 = vcmp.eq.f32.partialorder %v7897, %v9831
        %vm9844 = vcmp.eq.f32.partialorder %v7902, %v9831
        %vm9845 = vcmp.eq.f32.partialorder %v7905, %v9831
        %vm9846 = vcmp.eq.f32.partialorder %v7910, %v9831
        %vm9847 = vcmp.eq.f32.partialorder %v7913, %v9831
        %vm9848 = vcmp.eq.f32.partialorder %v7918, %v9831
        %vm9849 = vcmp.eq.f32.partialorder %v7921, %v9831
        %vm9850 = vcmp.eq.f32.partialorder %v7926, %v9831
        %vm9851 = vcmp.eq.f32.partialorder %v7929, %v9831
        %vm9852 = vcmp.eq.f32.partialorder %v7934, %v9831
        %vm9853 = vcmp.eq.f32.partialorder %v7937, %v9831
        %vm9854 = vcmp.eq.f32.partialorder %v7942, %v9831
        %vm9855 = vcmp.eq.f32.partialorder %v7945, %v9831
        %vm9856 = vcmp.eq.f32.partialorder %v7950, %v9831
        %vm9857 = vcmp.eq.f32.partialorder %v7953, %v9831
        %vm9858 = vcmp.eq.f32.partialorder %v7958, %v9831
        %vm9859 = vcmp.eq.f32.partialorder %v7961, %v9831
        %vm9860 = vcmp.eq.f32.partialorder %v7966, %v9831
        %vm9861 = vcmp.eq.f32.partialorder %v7969, %v9831
        %vm9862 = vcmp.eq.f32.partialorder %v7974, %v9831
        %vm9863 = vcmp.eq.f32.partialorder %v7977, %v9831
        %vm9864 = vcmp.eq.f32.partialorder %v7982, %v9831
        %vm9865 = vcmp.eq.f32.partialorder %v7985, %v9831
        %vm9866 = vcmp.eq.f32.partialorder %v7990, %v9831
        %vm9867 = vcmp.eq.f32.partialorder %v7993, %v9831
        %vm9868 = vcmp.eq.f32.partialorder %v7998, %v9831
        %vm9869 = vcmp.eq.f32.partialorder %v8001, %v9831
        %vm9870 = vcmp.eq.f32.partialorder %v8006, %v9831
        %vm9871 = vcmp.eq.f32.partialorder %v8009, %v9831
        %v9872 = vsel %vm9832, %v8013, 320
        %v9873 = vsel %vm9833, %v8014, 320
        %v9874 = vsel %vm9834, %v8015, 320
        %v9875 = vsel %vm9835, %v8016, 320
        %v9876 = vsel %vm9836, %v8017, 320
        %v9877 = vsel %vm9837, %v8018, 320
        %v9878 = vsel %vm9838, %v8019, 320
        %v9879 = vsel %vm9839, %v8020, 320
        %v9880 = vsel %vm9840, %v8021, 320
        %v9881 = vsel %vm9841, %v8022, 320
        %v9882 = vsel %vm9842, %v8023, 320
        %v9883 = vsel %vm9843, %v8024, 320
        %v9884 = vsel %vm9844, %v8025, 320
        %v9885 = vsel %vm9845, %v8026, 320
        %v9886 = vsel %vm9846, %v8027, 320
        %v9887 = vsel %vm9847, %v8028, 320
        %v9888 = vsel %vm9848, %v8029, 320
        %v9889 = vsel %vm9849, %v8030, 320
        %v9890 = vsel %vm9850, %v8031, 320
        %v9891 = vsel %vm9851, %v8032, 320
        %v9892 = vsel %vm9852, %v8033, 320
        %v9893 = vsel %vm9853, %v8034, 320
        %v9894 = vsel %vm9854, %v8035, 320
        %v9895 = vsel %vm9855, %v8036, 320
        %v9896 = vsel %vm9856, %v8037, 320
        %v9897 = vsel %vm9857, %v8038, 320
        %v9898 = vsel %vm9858, %v8039, 320
        %v9899 = vsel %vm9859, %v8040, 320
        %v9900 = vsel %vm9860, %v8041, 320
        %v9901 = vsel %vm9861, %v8042, 320
        %v9902 = vsel %vm9862, %v8043, 320
        %v9903 = vsel %vm9863, %v8044, 320
        %v9904 = vsel %vm9864, %v8045, 320
        %v9905 = vsel %vm9865, %v8046, 320
        %v9906 = vsel %vm9866, %v8047, 320
        %v9907 = vsel %vm9867, %v8048, 320
        %v9908 = vsel %vm9868, %v8049, 320
        %v9909 = vsel %vm9869, %v8050, 320
        %v9910 = vsel %vm9870, %v8051, 320
        %v9911 = vsel %vm9871, %v8052, 320
        %vm9912 = vcmp.lt.s32.totalorder %v9872, %v9876
        %v9913 = vsel %vm9912, %v9872, %v9876
        %vm9914 = vcmp.lt.s32.totalorder %v9873, %v9877
        %v9915 = vsel %vm9914, %v9873, %v9877
        %vm9916 = vcmp.lt.s32.totalorder %v9874, %v9878
        %v9917 = vsel %vm9916, %v9874, %v9878
        %vm9918 = vcmp.lt.s32.totalorder %v9875, %v9879
        %v9919 = vsel %vm9918, %v9875, %v9879
        %vm9920 = vcmp.lt.s32.totalorder %v9913, %v9880
        %v9921 = vsel %vm9920, %v9913, %v9880
        %vm9922 = vcmp.lt.s32.totalorder %v9915, %v9881
        %v9923 = vsel %vm9922, %v9915, %v9881
        %vm9924 = vcmp.lt.s32.totalorder %v9917, %v9882
        %v9925 = vsel %vm9924, %v9917, %v9882
        %vm9926 = vcmp.lt.s32.totalorder %v9919, %v9883
        %v9927 = vsel %vm9926, %v9919, %v9883
        %vm9928 = vcmp.lt.s32.totalorder %v9921, %v9884
        %v9929 = vsel %vm9928, %v9921, %v9884
        %vm9930 = vcmp.lt.s32.totalorder %v9923, %v9885
        %v9931 = vsel %vm9930, %v9923, %v9885
        %vm9932 = vcmp.lt.s32.totalorder %v9925, %v9886
        %v9933 = vsel %vm9932, %v9925, %v9886
        %vm9934 = vcmp.lt.s32.totalorder %v9927, %v9887
        %v9935 = vsel %vm9934, %v9927, %v9887
        %vm9936 = vcmp.lt.s32.totalorder %v9929, %v9888
        %v9937 = vsel %vm9936, %v9929, %v9888
        %vm9938 = vcmp.lt.s32.totalorder %v9931, %v9889
        %v9939 = vsel %vm9938, %v9931, %v9889
        %vm9940 = vcmp.lt.s32.totalorder %v9933, %v9890
        %v9941 = vsel %vm9940, %v9933, %v9890
        %vm9942 = vcmp.lt.s32.totalorder %v9935, %v9891
        %v9943 = vsel %vm9942, %v9935, %v9891
        %vm9944 = vcmp.lt.s32.totalorder %v9937, %v9892
        %v9945 = vsel %vm9944, %v9937, %v9892
        %vm9946 = vcmp.lt.s32.totalorder %v9939, %v9893
        %v9947 = vsel %vm9946, %v9939, %v9893
        %vm9948 = vcmp.lt.s32.totalorder %v9941, %v9894
        %v9949 = vsel %vm9948, %v9941, %v9894
        %vm9950 = vcmp.lt.s32.totalorder %v9943, %v9895
        %v9951 = vsel %vm9950, %v9943, %v9895
        %vm9952 = vcmp.lt.s32.totalorder %v9945, %v9896
        %v9953 = vsel %vm9952, %v9945, %v9896
        %vm9954 = vcmp.lt.s32.totalorder %v9947, %v9897
        %v9955 = vsel %vm9954, %v9947, %v9897
        %vm9956 = vcmp.lt.s32.totalorder %v9949, %v9898
        %v9957 = vsel %vm9956, %v9949, %v9898
        %vm9958 = vcmp.lt.s32.totalorder %v9951, %v9899
        %v9959 = vsel %vm9958, %v9951, %v9899
        %vm9960 = vcmp.lt.s32.totalorder %v9953, %v9900
        %v9961 = vsel %vm9960, %v9953, %v9900
        %vm9962 = vcmp.lt.s32.totalorder %v9955, %v9901
        %v9963 = vsel %vm9962, %v9955, %v9901
        %vm9964 = vcmp.lt.s32.totalorder %v9957, %v9902
        %v9965 = vsel %vm9964, %v9957, %v9902
        %vm9966 = vcmp.lt.s32.totalorder %v9959, %v9903
        %v9967 = vsel %vm9966, %v9959, %v9903
        %vm9968 = vcmp.lt.s32.totalorder %v9961, %v9904
        %v9969 = vsel %vm9968, %v9961, %v9904
        %vm9970 = vcmp.lt.s32.totalorder %v9963, %v9905
        %v9971 = vsel %vm9970, %v9963, %v9905
        %vm9972 = vcmp.lt.s32.totalorder %v9965, %v9906
        %v9973 = vsel %vm9972, %v9965, %v9906
        %vm9974 = vcmp.lt.s32.totalorder %v9967, %v9907
        %v9975 = vsel %vm9974, %v9967, %v9907
        %vm9976 = vcmp.lt.s32.totalorder %v9969, %v9908
        %v9977 = vsel %vm9976, %v9969, %v9908
        %vm9978 = vcmp.lt.s32.totalorder %v9971, %v9909
        %v9979 = vsel %vm9978, %v9971, %v9909
        %vm9980 = vcmp.lt.s32.totalorder %v9973, %v9910
        %v9981 = vsel %vm9980, %v9973, %v9910
        %vm9982 = vcmp.lt.s32.totalorder %v9975, %v9911
        %v9983 = vsel %vm9982, %v9975, %v9911
        %vm9984 = vcmp.lt.s32.totalorder %v9977, %v9979
        %v9985 = vsel %vm9984, %v9977, %v9979
        %vm9986 = vcmp.lt.s32.totalorder %v9981, %v9983
        %v9987 = vsel %vm9986, %v9981, %v9983
        %vm9988 = vcmp.lt.s32.totalorder %v9985, %v9987
        %v9989 = vsel %vm9988, %v9985, %v9987
        %v9990 = vrot.slane %v9989, 4
        %vm9991 = vcmp.lt.s32.totalorder %v9989, %v9990
        %v9992 = vsel %vm9991, %v9989, %v9990
        %v9993 = vrot.slane %v9992, 2
        %vm9994 = vcmp.lt.s32.totalorder %v9992, %v9993
        %v9995 = vsel %vm9994, %v9992, %v9993
        %v9996 = vrot.slane %v9995, 1
        %vm9997 = vcmp.lt.s32.totalorder %v9995, %v9996
        %v9998 = vsel %vm9997, %v9995, %v9996
        %vm9999 = vcmp.eq.s32.totalorder %v8013, %v9998
        %vm10000 = vcmp.eq.s32.totalorder %v8014, %v9998
        %vm10001 = vcmp.eq.s32.totalorder %v8015, %v9998
        %vm10002 = vcmp.eq.s32.totalorder %v8016, %v9998
        %vm10003 = vcmp.eq.s32.totalorder %v8017, %v9998
        %vm10004 = vcmp.eq.s32.totalorder %v8018, %v9998
        %vm10005 = vcmp.eq.s32.totalorder %v8019, %v9998
        %vm10006 = vcmp.eq.s32.totalorder %v8020, %v9998
        %vm10007 = vcmp.eq.s32.totalorder %v8021, %v9998
        %vm10008 = vcmp.eq.s32.totalorder %v8022, %v9998
        %vm10009 = vcmp.eq.s32.totalorder %v8023, %v9998
        %vm10010 = vcmp.eq.s32.totalorder %v8024, %v9998
        %vm10011 = vcmp.eq.s32.totalorder %v8025, %v9998
        %vm10012 = vcmp.eq.s32.totalorder %v8026, %v9998
        %vm10013 = vcmp.eq.s32.totalorder %v8027, %v9998
        %vm10014 = vcmp.eq.s32.totalorder %v8028, %v9998
        %vm10015 = vcmp.eq.s32.totalorder %v8029, %v9998
        %vm10016 = vcmp.eq.s32.totalorder %v8030, %v9998
        %vm10017 = vcmp.eq.s32.totalorder %v8031, %v9998
        %vm10018 = vcmp.eq.s32.totalorder %v8032, %v9998
        %vm10019 = vcmp.eq.s32.totalorder %v8033, %v9998
        %vm10020 = vcmp.eq.s32.totalorder %v8034, %v9998
        %vm10021 = vcmp.eq.s32.totalorder %v8035, %v9998
        %vm10022 = vcmp.eq.s32.totalorder %v8036, %v9998
        %vm10023 = vcmp.eq.s32.totalorder %v8037, %v9998
        %vm10024 = vcmp.eq.s32.totalorder %v8038, %v9998
        %vm10025 = vcmp.eq.s32.totalorder %v8039, %v9998
        %vm10026 = vcmp.eq.s32.totalorder %v8040, %v9998
        %vm10027 = vcmp.eq.s32.totalorder %v8041, %v9998
        %vm10028 = vcmp.eq.s32.totalorder %v8042, %v9998
        %vm10029 = vcmp.eq.s32.totalorder %v8043, %v9998
        %vm10030 = vcmp.eq.s32.totalorder %v8044, %v9998
        %vm10031 = vcmp.eq.s32.totalorder %v8045, %v9998
        %vm10032 = vcmp.eq.s32.totalorder %v8046, %v9998
        %vm10033 = vcmp.eq.s32.totalorder %v8047, %v9998
        %vm10034 = vcmp.eq.s32.totalorder %v8048, %v9998
        %vm10035 = vcmp.eq.s32.totalorder %v8049, %v9998
        %vm10036 = vcmp.eq.s32.totalorder %v8050, %v9998
        %vm10037 = vcmp.eq.s32.totalorder %v8051, %v9998
        %vm10038 = vcmp.eq.s32.totalorder %v8052, %v9998
        %v10039 = vsel %vm9999, 1, 0
        %v10040 = vsel %vm10000, 1, 0
        %v10041 = vsel %vm10001, 1, 0
        %v10042 = vsel %vm10002, 1, 0
        %v10043 = vsel %vm10003, 1, 0
        %v10044 = vsel %vm10004, 1, 0
        %v10045 = vsel %vm10005, 1, 0
        %v10046 = vsel %vm10006, 1, 0
        %v10047 = vsel %vm10007, 1, 0
        %v10048 = vsel %vm10008, 1, 0
        %v10049 = vsel %vm10009, 1, 0
        %v10050 = vsel %vm10010, 1, 0
        %v10051 = vsel %vm10011, 1, 0
        %v10052 = vsel %vm10012, 1, 0
        %v10053 = vsel %vm10013, 1, 0
        %v10054 = vsel %vm10014, 1, 0
        %v10055 = vsel %vm10015, 1, 0
        %v10056 = vsel %vm10016, 1, 0
        %v10057 = vsel %vm10017, 1, 0
        %v10058 = vsel %vm10018, 1, 0
        %v10059 = vsel %vm10019, 1, 0
        %v10060 = vsel %vm10020, 1, 0
        %v10061 = vsel %vm10021, 1, 0
        %v10062 = vsel %vm10022, 1, 0
        %v10063 = vsel %vm10023, 1, 0
        %v10064 = vsel %vm10024, 1, 0
        %v10065 = vsel %vm10025, 1, 0
        %v10066 = vsel %vm10026, 1, 0
        %v10067 = vsel %vm10027, 1, 0
        %v10068 = vsel %vm10028, 1, 0
        %v10069 = vsel %vm10029, 1, 0
        %v10070 = vsel %vm10030, 1, 0
        %v10071 = vsel %vm10031, 1, 0
        %v10072 = vsel %vm10032, 1, 0
        %v10073 = vsel %vm10033, 1, 0
        %v10074 = vsel %vm10034, 1, 0
        %v10075 = vsel %vm10035, 1, 0
        %v10076 = vsel %vm10036, 1, 0
        %v10077 = vsel %vm10037, 1, 0
        %v10078 = vsel %vm10038, 1, 0
        %v10079 = vcvt.s32.f32 %v10039
        %v10080 = vcvt.s32.f32 %v10040
        %v10081 = vcvt.s32.f32 %v10041
        %v10082 = vcvt.s32.f32 %v10042
        %v10083 = vcvt.s32.f32 %v10043
        %v10084 = vcvt.s32.f32 %v10044
        %v10085 = vcvt.s32.f32 %v10045
        %v10086 = vcvt.s32.f32 %v10046
        %v10087 = vcvt.s32.f32 %v10047
        %v10088 = vcvt.s32.f32 %v10048
        %v10089 = vcvt.s32.f32 %v10049
        %v10090 = vcvt.s32.f32 %v10050
        %v10091 = vcvt.s32.f32 %v10051
        %v10092 = vcvt.s32.f32 %v10052
        %v10093 = vcvt.s32.f32 %v10053
        %v10094 = vcvt.s32.f32 %v10054
        %v10095 = vcvt.s32.f32 %v10055
        %v10096 = vcvt.s32.f32 %v10056
        %v10097 = vcvt.s32.f32 %v10057
        %v10098 = vcvt.s32.f32 %v10058
        %v10099 = vcvt.s32.f32 %v10059
        %v10100 = vcvt.s32.f32 %v10060
        %v10101 = vcvt.s32.f32 %v10061
        %v10102 = vcvt.s32.f32 %v10062
        %v10103 = vcvt.s32.f32 %v10063
        %v10104 = vcvt.s32.f32 %v10064
        %v10105 = vcvt.s32.f32 %v10065
        %v10106 = vcvt.s32.f32 %v10066
        %v10107 = vcvt.s32.f32 %v10067
        %v10108 = vcvt.s32.f32 %v10068
        %v10109 = vcvt.s32.f32 %v10069
        %v10110 = vcvt.s32.f32 %v10070
        %v10111 = vcvt.s32.f32 %v10071
        %v10112 = vcvt.s32.f32 %v10072
        %v10113 = vcvt.s32.f32 %v10073
        %v10114 = vcvt.s32.f32 %v10074
        %v10115 = vcvt.s32.f32 %v10075
        %v10116 = vcvt.s32.f32 %v10076
        %v10117 = vcvt.s32.f32 %v10077
        %v10118 = vcvt.s32.f32 %v10078
        %v10119 = vpack.c.bf16 %v10080, %v10079
        %v10120 = vpack.c.bf16 %v10082, %v10081
        %v10121 = vpack.c.bf16 %v10084, %v10083
        %v10122 = vpack.c.bf16 %v10086, %v10085
        %v10123 = vpack.c.bf16 %v10088, %v10087
        %v10124 = vpack.c.bf16 %v10090, %v10089
        %v10125 = vpack.c.bf16 %v10092, %v10091
        %v10126 = vpack.c.bf16 %v10094, %v10093
        %v10127 = vpack.c.bf16 %v10096, %v10095
        %v10128 = vpack.c.bf16 %v10098, %v10097
        %v10129 = vpack.c.bf16 %v10100, %v10099
        %v10130 = vpack.c.bf16 %v10102, %v10101
        %v10131 = vpack.c.bf16 %v10104, %v10103
        %v10132 = vpack.c.bf16 %v10106, %v10105
        %v10133 = vpack.c.bf16 %v10108, %v10107
        %v10134 = vpack.c.bf16 %v10110, %v10109
        %v10135 = vpack.c.bf16 %v10112, %v10111
        %v10136 = vpack.c.bf16 %v10114, %v10113
        %v10137 = vpack.c.bf16 %v10116, %v10115
        %v10138 = vpack.c.bf16 %v10118, %v10117
        %v10139 = vld [vmem:[%s5 + $0x180] sm:$0xff]
        %v10140 = vld [vmem:[%s5 + $0x188] sm:$0xf]
        %v10141 = vld [vmem:[%s5 + $0x18c] sm:$0xff]
        %v10142 = vld [vmem:[%s5 + $0x194] sm:$0xf]
        %v10143 = vld [vmem:[%s5 + $0x198] sm:$0xff]
        %v10144 = vld [vmem:[%s5 + $0x1a0] sm:$0xf]
        %v10145 = vld [vmem:[%s5 + $0x1a4] sm:$0xff]
        %v10146 = vld [vmem:[%s5 + $0x1ac] sm:$0xf]
        %v10147 = vld [vmem:[%s5 + $0x1b0] sm:$0xff]
        %v10148 = vld [vmem:[%s5 + $0x1b8] sm:$0xf]
        %v10149 = vld [vmem:[%s5 + $0x1bc] sm:$0xff]
        %v10150 = vld [vmem:[%s5 + $0x1c4] sm:$0xf]
        %v10151 = vld [vmem:[%s5 + $0x1c8] sm:$0xff]
        %v10152 = vld [vmem:[%s5 + $0x1d0] sm:$0xf]
        %v10153 = vld [vmem:[%s5 + $0x1d4] sm:$0xff]
        %v10154 = vld [vmem:[%s5 + $0x1dc] sm:$0xf]
        %v10155 = vld [vmem:[%s5 + $0x1e0] sm:$0xff]
        %v10156 = vld [vmem:[%s5 + $0x1e8] sm:$0xf]
        %v10157 = vld [vmem:[%s5 + $0x1ec] sm:$0xff]
        %v10158 = vld [vmem:[%s5 + $0x1f4] sm:$0xf]
        %v10159 = vld [vmem:[%s5 + $0x1f8] sm:$0xff]
        %v10160 = vld [vmem:[%s5 + $0x200] sm:$0xf]
        %v10161 = vld [vmem:[%s5 + $0x204] sm:$0xff]
        %v10162 = vld [vmem:[%s5 + $0x20c] sm:$0xf]
        %v10163 = vld [vmem:[%s5 + $0x210] sm:$0xff]
        %v10164 = vld [vmem:[%s5 + $0x218] sm:$0xf]
        %v10165 = vld [vmem:[%s5 + $0x21c] sm:$0xff]
        %v10166 = vld [vmem:[%s5 + $0x224] sm:$0xf]
        %v10167 = vld [vmem:[%s5 + $0x228] sm:$0xff]
        %v10168 = vld [vmem:[%s5 + $0x230] sm:$0xf]
        %v10169 = vld [vmem:[%s5 + $0x234] sm:$0xff]
        %v10170 = vld [vmem:[%s5 + $0x23c] sm:$0xf]
        %v10171 = vld [vmem:[%s5 + $0x240] sm:$0xff]
        %v10172 = vld [vmem:[%s5 + $0x248] sm:$0xf]
        %v10173 = vld [vmem:[%s5 + $0x24c] sm:$0xff]
        %v10174 = vld [vmem:[%s5 + $0x254] sm:$0xf]
        %v10175 = vld [vmem:[%s5 + $0x258] sm:$0xff]
        %v10176 = vld [vmem:[%s5 + $0x260] sm:$0xf]
        %v10177 = vld [vmem:[%s5 + $0x264] sm:$0xff]
        %v10178 = vld [vmem:[%s5 + $0x26c] sm:$0xf]
        %v10179 = vld [vmem:[%s5 + $0x270] sm:$0xff]
        %v10180 = vld [vmem:[%s5 + $0x278] sm:$0xf]
        %v10181 = vld [vmem:[%s5 + $0x27c] sm:$0xff]
        %v10182 = vld [vmem:[%s5 + $0x284] sm:$0xf]
        %v10183 = vld [vmem:[%s5 + $0x288] sm:$0xff]
        %v10184 = vld [vmem:[%s5 + $0x290] sm:$0xf]
        %v10185 = vld [vmem:[%s5 + $0x294] sm:$0xff]
        %v10186 = vld [vmem:[%s5 + $0x29c] sm:$0xf]
        %v10187 = vld [vmem:[%s5 + $0x2a0] sm:$0xff]
        %v10188 = vld [vmem:[%s5 + $0x2a8] sm:$0xf]
        %v10189 = vld [vmem:[%s5 + $0x2ac] sm:$0xff]
        %v10190 = vld [vmem:[%s5 + $0x2b4] sm:$0xf]
        %v10191 = vld [vmem:[%s5 + $0x2b8] sm:$0xff]
        %v10192 = vld [vmem:[%s5 + $0x2c0] sm:$0xf]
        %v10193 = vld [vmem:[%s5 + $0x2c4] sm:$0xff]
        %v10194 = vld [vmem:[%s5 + $0x2cc] sm:$0xf]
        %v10195 = vld [vmem:[%s5 + $0x2d0] sm:$0xff]
        %v10196 = vld [vmem:[%s5 + $0x2d8] sm:$0xf]
        %v10197 = vld [vmem:[%s5 + $0x2dc] sm:$0xff]
        %v10198 = vld [vmem:[%s5 + $0x2e4] sm:$0xf]
        %v10199 = vld [vmem:[%s5 + $0x2e8] sm:$0xff]
        %v10200 = vld [vmem:[%s5 + $0x2f0] sm:$0xf]
        %v10201 = vld [vmem:[%s5 + $0x2f4] sm:$0xff]
        %v10202 = vld [vmem:[%s5 + $0x2fc] sm:$0xf]
        %v10203 = vld [vmem:[%s6 + $0x180] sm:$0xff]
        %v10204 = vld [vmem:[%s6 + $0x188] sm:$0xf]
        %v10205 = vld [vmem:[%s6 + $0x18c] sm:$0xff]
        %v10206 = vld [vmem:[%s6 + $0x194] sm:$0xf]
        %v10207 = vld [vmem:[%s6 + $0x198] sm:$0xff]
        %v10208 = vld [vmem:[%s6 + $0x1a0] sm:$0xf]
        %v10209 = vld [vmem:[%s6 + $0x1a4] sm:$0xff]
        %v10210 = vld [vmem:[%s6 + $0x1ac] sm:$0xf]
        %v10211 = vld [vmem:[%s6 + $0x1b0] sm:$0xff]
        %v10212 = vld [vmem:[%s6 + $0x1b8] sm:$0xf]
        %v10213 = vld [vmem:[%s6 + $0x1bc] sm:$0xff]
        %v10214 = vld [vmem:[%s6 + $0x1c4] sm:$0xf]
        %v10215 = vld [vmem:[%s6 + $0x1c8] sm:$0xff]
        %v10216 = vld [vmem:[%s6 + $0x1d0] sm:$0xf]
        %v10217 = vld [vmem:[%s6 + $0x1d4] sm:$0xff]
        %v10218 = vld [vmem:[%s6 + $0x1dc] sm:$0xf]
        %v10219 = vld [vmem:[%s6 + $0x1e0] sm:$0xff]
        %v10220 = vld [vmem:[%s6 + $0x1e8] sm:$0xf]
        %v10221 = vld [vmem:[%s6 + $0x1ec] sm:$0xff]
        %v10222 = vld [vmem:[%s6 + $0x1f4] sm:$0xf]
        %v10223 = vld [vmem:[%s6 + $0x1f8] sm:$0xff]
        %v10224 = vld [vmem:[%s6 + $0x200] sm:$0xf]
        %v10225 = vld [vmem:[%s6 + $0x204] sm:$0xff]
        %v10226 = vld [vmem:[%s6 + $0x20c] sm:$0xf]
        %v10227 = vld [vmem:[%s6 + $0x210] sm:$0xff]
        %v10228 = vld [vmem:[%s6 + $0x218] sm:$0xf]
        %v10229 = vld [vmem:[%s6 + $0x21c] sm:$0xff]
        %v10230 = vld [vmem:[%s6 + $0x224] sm:$0xf]
        %v10231 = vld [vmem:[%s6 + $0x228] sm:$0xff]
        %v10232 = vld [vmem:[%s6 + $0x230] sm:$0xf]
        %v10233 = vld [vmem:[%s6 + $0x234] sm:$0xff]
        %v10234 = vld [vmem:[%s6 + $0x23c] sm:$0xf]
        %v10235 = vld [vmem:[%s6 + $0x240] sm:$0xff]
        %v10236 = vld [vmem:[%s6 + $0x248] sm:$0xf]
        %v10237 = vld [vmem:[%s6 + $0x24c] sm:$0xff]
        %v10238 = vld [vmem:[%s6 + $0x254] sm:$0xf]
        %v10239 = vld [vmem:[%s6 + $0x258] sm:$0xff]
        %v10240 = vld [vmem:[%s6 + $0x260] sm:$0xf]
        %v10241 = vld [vmem:[%s6 + $0x264] sm:$0xff]
        %v10242 = vld [vmem:[%s6 + $0x26c] sm:$0xf]
        %v10243 = vld [vmem:[%s6 + $0x270] sm:$0xff]
        %v10244 = vld [vmem:[%s6 + $0x278] sm:$0xf]
        %v10245 = vld [vmem:[%s6 + $0x27c] sm:$0xff]
        %v10246 = vld [vmem:[%s6 + $0x284] sm:$0xf]
        %v10247 = vld [vmem:[%s6 + $0x288] sm:$0xff]
        %v10248 = vld [vmem:[%s6 + $0x290] sm:$0xf]
        %v10249 = vld [vmem:[%s6 + $0x294] sm:$0xff]
        %v10250 = vld [vmem:[%s6 + $0x29c] sm:$0xf]
        %v10251 = vld [vmem:[%s6 + $0x2a0] sm:$0xff]
        %v10252 = vld [vmem:[%s6 + $0x2a8] sm:$0xf]
        %v10253 = vld [vmem:[%s6 + $0x2ac] sm:$0xff]
        %v10254 = vld [vmem:[%s6 + $0x2b4] sm:$0xf]
        %v10255 = vld [vmem:[%s6 + $0x2b8] sm:$0xff]
        %v10256 = vld [vmem:[%s6 + $0x2c0] sm:$0xf]
        %v10257 = vld [vmem:[%s6 + $0x2c4] sm:$0xff]
        %v10258 = vld [vmem:[%s6 + $0x2cc] sm:$0xf]
        %v10259 = vld [vmem:[%s6 + $0x2d0] sm:$0xff]
        %v10260 = vld [vmem:[%s6 + $0x2d8] sm:$0xf]
        %v10261 = vld [vmem:[%s6 + $0x2dc] sm:$0xff]
        %v10262 = vld [vmem:[%s6 + $0x2e4] sm:$0xf]
        %v10263 = vld [vmem:[%s6 + $0x2e8] sm:$0xff]
        %v10264 = vld [vmem:[%s6 + $0x2f0] sm:$0xf]
        %v10265 = vld [vmem:[%s6 + $0x2f4] sm:$0xff]
        %v10266 = vld [vmem:[%s6 + $0x2fc] sm:$0xf]
        %v10331 = vunpack.c.l.b16 %v10203
        %v10332 = vunpack.c.h.b16 %v10203
        %v10333 = vunpack.c.l.b16 %v10204
        %v10334 = vunpack.c.l.b16 %v10205
        %v10335 = vunpack.c.h.b16 %v10205
        %v10336 = vunpack.c.l.b16 %v10206
        %v10337 = vunpack.c.l.b16 %v10207
        %v10338 = vunpack.c.h.b16 %v10207
        %v10339 = vunpack.c.l.b16 %v10208
        %v10340 = vunpack.c.l.b16 %v10209
        %v10341 = vunpack.c.h.b16 %v10209
        %v10342 = vunpack.c.l.b16 %v10210
        %v10343 = vunpack.c.l.b16 %v10211
        %v10344 = vunpack.c.h.b16 %v10211
        %v10345 = vunpack.c.l.b16 %v10212
        %v10346 = vunpack.c.l.b16 %v10213
        %v10347 = vunpack.c.h.b16 %v10213
        %v10348 = vunpack.c.l.b16 %v10214
        %v10349 = vunpack.c.l.b16 %v10215
        %v10350 = vunpack.c.h.b16 %v10215
        %v10351 = vunpack.c.l.b16 %v10216
        %v10352 = vunpack.c.l.b16 %v10217
        %v10353 = vunpack.c.h.b16 %v10217
        %v10354 = vunpack.c.l.b16 %v10218
        %v10355 = vunpack.c.l.b16 %v10219
        %v10356 = vunpack.c.h.b16 %v10219
        %v10357 = vunpack.c.l.b16 %v10220
        %v10358 = vunpack.c.l.b16 %v10221
        %v10359 = vunpack.c.h.b16 %v10221
        %v10360 = vunpack.c.l.b16 %v10222
        %v10361 = vunpack.c.l.b16 %v10223
        %v10362 = vunpack.c.h.b16 %v10223
        %v10363 = vunpack.c.l.b16 %v10224
        %v10364 = vunpack.c.l.b16 %v10225
        %v10365 = vunpack.c.h.b16 %v10225
        %v10366 = vunpack.c.l.b16 %v10226
        %v10367 = vunpack.c.l.b16 %v10227
        %v10368 = vunpack.c.h.b16 %v10227
        %v10369 = vunpack.c.l.b16 %v10228
        %v10370 = vunpack.c.l.b16 %v10229
        %v10371 = vunpack.c.h.b16 %v10229
        %v10372 = vunpack.c.l.b16 %v10230
        %v10373 = vunpack.c.l.b16 %v10231
        %v10374 = vunpack.c.h.b16 %v10231
        %v10375 = vunpack.c.l.b16 %v10232
        %v10376 = vunpack.c.l.b16 %v10233
        %v10377 = vunpack.c.h.b16 %v10233
        %v10378 = vunpack.c.l.b16 %v10234
        %v10379 = vunpack.c.l.b16 %v10235
        %v10380 = vunpack.c.h.b16 %v10235
        %v10381 = vunpack.c.l.b16 %v10236
        %v10382 = vunpack.c.l.b16 %v10237
        %v10383 = vunpack.c.h.b16 %v10237
        %v10384 = vunpack.c.l.b16 %v10238
        %v10385 = vunpack.c.l.b16 %v10239
        %v10386 = vunpack.c.h.b16 %v10239
        %v10387 = vunpack.c.l.b16 %v10240
        %v10388 = vunpack.c.l.b16 %v10241
        %v10389 = vunpack.c.h.b16 %v10241
        %v10390 = vunpack.c.l.b16 %v10242
        %v10391 = vunpack.c.l.b16 %v10243
        %v10392 = vunpack.c.h.b16 %v10243
        %v10393 = vunpack.c.l.b16 %v10244
        %v10394 = vunpack.c.l.b16 %v10245
        %v10395 = vunpack.c.h.b16 %v10245
        %v10396 = vunpack.c.l.b16 %v10246
        %v10397 = vunpack.c.l.b16 %v10247
        %v10398 = vunpack.c.h.b16 %v10247
        %v10399 = vunpack.c.l.b16 %v10248
        %v10400 = vunpack.c.l.b16 %v10249
        %v10401 = vunpack.c.h.b16 %v10249
        %v10402 = vunpack.c.l.b16 %v10250
        %v10403 = vunpack.c.l.b16 %v10251
        %v10404 = vunpack.c.h.b16 %v10251
        %v10405 = vunpack.c.l.b16 %v10252
        %v10406 = vunpack.c.l.b16 %v10253
        %v10407 = vunpack.c.h.b16 %v10253
        %v10408 = vunpack.c.l.b16 %v10254
        %v10409 = vunpack.c.l.b16 %v10255
        %v10410 = vunpack.c.h.b16 %v10255
        %v10411 = vunpack.c.l.b16 %v10256
        %v10412 = vunpack.c.l.b16 %v10257
        %v10413 = vunpack.c.h.b16 %v10257
        %v10414 = vunpack.c.l.b16 %v10258
        %v10415 = vunpack.c.l.b16 %v10259
        %v10416 = vunpack.c.h.b16 %v10259
        %v10417 = vunpack.c.l.b16 %v10260
        %v10418 = vunpack.c.l.b16 %v10261
        %v10419 = vunpack.c.h.b16 %v10261
        %v10420 = vunpack.c.l.b16 %v10262
        %v10421 = vunpack.c.l.b16 %v10263
        %v10422 = vunpack.c.h.b16 %v10263
        %v10423 = vunpack.c.l.b16 %v10264
        %v10424 = vunpack.c.l.b16 %v10265
        %v10425 = vunpack.c.h.b16 %v10265
        %v10426 = vunpack.c.l.b16 %v10266
        %v10427 = vpack.c.b16 %v10334, %v10331
        %v10428 = vpack.c.b16 %v10335, %v10332
        %v10429 = vpack.c.b16 %v10336, %v10333
        %v10430 = vpack.c.b16 %v10340, %v10337
        %v10431 = vpack.c.b16 %v10341, %v10338
        %v10432 = vpack.c.b16 %v10342, %v10339
        %v10433 = vpack.c.b16 %v10346, %v10343
        %v10434 = vpack.c.b16 %v10347, %v10344
        %v10435 = vpack.c.b16 %v10348, %v10345
        %v10436 = vpack.c.b16 %v10352, %v10349
        %v10437 = vpack.c.b16 %v10353, %v10350
        %v10438 = vpack.c.b16 %v10354, %v10351
        %v10439 = vpack.c.b16 %v10358, %v10355
        %v10440 = vpack.c.b16 %v10359, %v10356
        %v10441 = vpack.c.b16 %v10360, %v10357
        %v10442 = vpack.c.b16 %v10364, %v10361
        %v10443 = vpack.c.b16 %v10365, %v10362
        %v10444 = vpack.c.b16 %v10366, %v10363
        %v10445 = vpack.c.b16 %v10370, %v10367
        %v10446 = vpack.c.b16 %v10371, %v10368
        %v10447 = vpack.c.b16 %v10372, %v10369
        %v10448 = vpack.c.b16 %v10376, %v10373
        %v10449 = vpack.c.b16 %v10377, %v10374
        %v10450 = vpack.c.b16 %v10378, %v10375
        %v10451 = vpack.c.b16 %v10382, %v10379
        %v10452 = vpack.c.b16 %v10383, %v10380
        %v10453 = vpack.c.b16 %v10384, %v10381
        %v10454 = vpack.c.b16 %v10388, %v10385
        %v10455 = vpack.c.b16 %v10389, %v10386
        %v10456 = vpack.c.b16 %v10390, %v10387
        %v10457 = vpack.c.b16 %v10394, %v10391
        %v10458 = vpack.c.b16 %v10395, %v10392
        %v10459 = vpack.c.b16 %v10396, %v10393
        %v10460 = vpack.c.b16 %v10400, %v10397
        %v10461 = vpack.c.b16 %v10401, %v10398
        %v10462 = vpack.c.b16 %v10402, %v10399
        %v10463 = vpack.c.b16 %v10406, %v10403
        %v10464 = vpack.c.b16 %v10407, %v10404
        %v10465 = vpack.c.b16 %v10408, %v10405
        %v10466 = vpack.c.b16 %v10412, %v10409
        %v10467 = vpack.c.b16 %v10413, %v10410
        %v10468 = vpack.c.b16 %v10414, %v10411
        %v10469 = vpack.c.b16 %v10418, %v10415
        %v10470 = vpack.c.b16 %v10419, %v10416
        %v10471 = vpack.c.b16 %v10420, %v10417
        %v10472 = vpack.c.b16 %v10424, %v10421
        %v10473 = vpack.c.b16 %v10425, %v10422
        %v10474 = vpack.c.b16 %v10426, %v10423
        %v10508 = vsel %vm8773, %v10429, 0
        %v10511 = vsel %vm8773, %v10432, 0
        %v10514 = vsel %vm8773, %v10435, 0
        %v10517 = vsel %vm8773, %v10438, 0
        %v10520 = vsel %vm8773, %v10441, 0
        %v10523 = vsel %vm8773, %v10444, 0
        %v10526 = vsel %vm8773, %v10447, 0
        %v10529 = vsel %vm8773, %v10450, 0
        %v10532 = vsel %vm8773, %v10453, 0
        %v10535 = vsel %vm8773, %v10456, 0
        %v10538 = vsel %vm8773, %v10459, 0
        %v10541 = vsel %vm8773, %v10462, 0
        %v10544 = vsel %vm8773, %v10465, 0
        %v10547 = vsel %vm8773, %v10468, 0
        %v10550 = vsel %vm8773, %v10471, 0
        %v10553 = vsel %vm8773, %v10474, 0
        %10555 = vmatprep.subr.bf16.mxu0 0
        %10556 = vmatpush1.bf16.msra.mxu0 %v10119
        %10557 = vmatprep.subr.bf16.mxu0 0
        %10558 = vmatpush1.bf16.msra.mxu0 %v10120
        %10559 = vmatprep.subr.bf16.mxu0 0
        %10560 = vmatpush1.bf16.msra.mxu0 %v10121
        %10561 = vmatprep.subr.bf16.mxu0 0
        %10562 = vmatpush1.bf16.msra.mxu0 %v10122
        %10563 = vmatprep.subr.bf16.mxu0 0
        %10564 = vmatpush1.bf16.msra.mxu0 %v10123
        %10565 = vmatprep.subr.bf16.mxu0 0
        %10566 = vmatpush1.bf16.msra.mxu0 %v10124
        %10567 = vmatprep.subr.bf16.mxu0 0
        %10568 = vmatpush1.bf16.msra.mxu0 %v10125
        %10569 = vmatprep.subr.bf16.mxu0 0
        %10570 = vmatpush1.bf16.msra.mxu0 %v10126
        %10571 = vmatprep.subr.bf16.mxu0 0
        %10572 = vmatpush1.bf16.msra.mxu0 %v10127
        %10573 = vmatprep.subr.bf16.mxu0 0
        %10574 = vmatpush1.bf16.msra.mxu0 %v10128
        %10575 = vmatprep.subr.bf16.mxu0 0
        %10576 = vmatpush1.bf16.msra.mxu0 %v10129
        %10577 = vmatprep.subr.bf16.mxu0 0
        %10578 = vmatpush1.bf16.msra.mxu0 %v10130
        %10579 = vmatprep.subr.bf16.mxu0 0
        %10580 = vmatpush1.bf16.msra.mxu0 %v10131
        %10581 = vmatprep.subr.bf16.mxu0 0
        %10582 = vmatpush1.bf16.msra.mxu0 %v10132
        %10583 = vmatprep.subr.bf16.mxu0 0
        %10584 = vmatpush1.bf16.msra.mxu0 %v10133
        %10585 = vmatprep.subr.bf16.mxu0 0
        %10586 = vmatpush1.bf16.msra.mxu0 %v10134
        %10587 = vmatprep.mubr.bf16.mxu0 %v10428
        %10588 = vmatmul.mubr.bf16.gmra.mrb[0].mxu0 %v10427
        %v10589 = vpop.f32.mrb[0].mxu0
        %v10590 = vadd.f32 0.0, %v10589
        %v10591 = vpop.f32.mrb[0].mxu0
        %v10592 = vpop.f32.mrb[0].mxu0
        %v10593 = vadd.f32 0.0, %v10592
        %v10594 = vpop.f32.mrb[0].mxu0
        %10595 = vmatprep.mubr.bf16.mxu0 %v10431
        %10596 = vmatmul.mubr.bf16.gmra.mrb[0].mxu0 %v10430
        %v10597 = vpop.f32.mrb[0].mxu0
        %v10598 = vadd.f32 0.0, %v10597
        %v10599 = vpop.f32.mrb[0].mxu0
        %v10600 = vpop.f32.mrb[0].mxu0
        %v10601 = vadd.f32 0.0, %v10600
        %v10602 = vpop.f32.mrb[0].mxu0
        %10603 = vmatprep.mubr.bf16.mxu0 %v10434
        %10604 = vmatmul.mubr.bf16.gmra.mrb[0].mxu0 %v10433
        %v10605 = vpop.f32.mrb[0].mxu0
        %v10606 = vadd.f32 0.0, %v10605
        %v10607 = vpop.f32.mrb[0].mxu0
        %v10608 = vpop.f32.mrb[0].mxu0
        %v10609 = vadd.f32 0.0, %v10608
        %v10610 = vpop.f32.mrb[0].mxu0
        %10611 = vmatprep.mubr.bf16.mxu0 %v10437
        %10612 = vmatmul.mubr.bf16.gmra.mrb[0].mxu0 %v10436
        %v10613 = vpop.f32.mrb[0].mxu0
        %v10614 = vadd.f32 0.0, %v10613
        %v10615 = vpop.f32.mrb[0].mxu0
        %v10616 = vpop.f32.mrb[0].mxu0
        %v10617 = vadd.f32 0.0, %v10616
        %v10618 = vpop.f32.mrb[0].mxu0
        %10619 = vmatprep.mubr.bf16.mxu0 %v10440
        %10620 = vmatmul.mubr.bf16.gmra.mrb[0].mxu0 %v10439
        %v10621 = vpop.f32.mrb[0].mxu0
        %v10622 = vadd.f32 0.0, %v10621
        %v10623 = vpop.f32.mrb[0].mxu0
        %v10624 = vpop.f32.mrb[0].mxu0
        %v10625 = vadd.f32 0.0, %v10624
        %v10626 = vpop.f32.mrb[0].mxu0
        %10627 = vmatprep.mubr.bf16.mxu0 %v10443
        %10628 = vmatmul.mubr.bf16.gmra.mrb[0].mxu0 %v10442
        %v10629 = vpop.f32.mrb[0].mxu0
        %v10630 = vadd.f32 0.0, %v10629
        %v10631 = vpop.f32.mrb[0].mxu0
        %v10632 = vpop.f32.mrb[0].mxu0
        %v10633 = vadd.f32 0.0, %v10632
        %v10634 = vpop.f32.mrb[0].mxu0
        %10635 = vmatprep.mubr.bf16.mxu0 %v10446
        %10636 = vmatmul.mubr.bf16.gmra.mrb[0].mxu0 %v10445
        %v10637 = vpop.f32.mrb[0].mxu0
        %v10638 = vadd.f32 0.0, %v10637
        %v10639 = vpop.f32.mrb[0].mxu0
        %v10640 = vpop.f32.mrb[0].mxu0
        %v10641 = vadd.f32 0.0, %v10640
        %v10642 = vpop.f32.mrb[0].mxu0
        %10643 = vmatprep.mubr.bf16.mxu0 %v10449
        %10644 = vmatmul.mubr.bf16.gmra.mrb[0].mxu0 %v10448
        %v10645 = vpop.f32.mrb[0].mxu0
        %v10646 = vadd.f32 0.0, %v10645
        %v10647 = vpop.f32.mrb[0].mxu0
        %v10648 = vpop.f32.mrb[0].mxu0
        %v10649 = vadd.f32 0.0, %v10648
        %v10650 = vpop.f32.mrb[0].mxu0
        %10651 = vmatprep.mubr.bf16.mxu0 %v10452
        %10652 = vmatmul.mubr.bf16.gmra.mrb[0].mxu0 %v10451
        %v10653 = vpop.f32.mrb[0].mxu0
        %v10654 = vadd.f32 0.0, %v10653
        %v10655 = vpop.f32.mrb[0].mxu0
        %v10656 = vpop.f32.mrb[0].mxu0
        %v10657 = vadd.f32 0.0, %v10656
        %v10658 = vpop.f32.mrb[0].mxu0
        %10659 = vmatprep.mubr.bf16.mxu0 %v10455
        %10660 = vmatmul.mubr.bf16.gmra.mrb[0].mxu0 %v10454
        %v10661 = vpop.f32.mrb[0].mxu0
        %v10662 = vadd.f32 0.0, %v10661
        %v10663 = vpop.f32.mrb[0].mxu0
        %v10664 = vpop.f32.mrb[0].mxu0
        %v10665 = vadd.f32 0.0, %v10664
        %v10666 = vpop.f32.mrb[0].mxu0
        %10667 = vmatprep.mubr.bf16.mxu0 %v10458
        %10668 = vmatmul.mubr.bf16.gmra.mrb[0].mxu0 %v10457
        %v10669 = vpop.f32.mrb[0].mxu0
        %v10670 = vadd.f32 0.0, %v10669
        %v10671 = vpop.f32.mrb[0].mxu0
        %v10672 = vpop.f32.mrb[0].mxu0
        %v10673 = vadd.f32 0.0, %v10672
        %v10674 = vpop.f32.mrb[0].mxu0
        %10675 = vmatprep.mubr.bf16.mxu0 %v10461
        %10676 = vmatmul.mubr.bf16.gmra.mrb[0].mxu0 %v10460
        %v10677 = vpop.f32.mrb[0].mxu0
        %v10678 = vadd.f32 0.0, %v10677
        %v10679 = vpop.f32.mrb[0].mxu0
        %v10680 = vpop.f32.mrb[0].mxu0
        %v10681 = vadd.f32 0.0, %v10680
        %v10682 = vpop.f32.mrb[0].mxu0
        %10683 = vmatprep.mubr.bf16.mxu0 %v10464
        %10684 = vmatmul.mubr.bf16.gmra.mrb[0].mxu0 %v10463
        %v10685 = vpop.f32.mrb[0].mxu0
        %v10686 = vadd.f32 0.0, %v10685
        %v10687 = vpop.f32.mrb[0].mxu0
        %v10688 = vpop.f32.mrb[0].mxu0
        %v10689 = vadd.f32 0.0, %v10688
        %v10690 = vpop.f32.mrb[0].mxu0
        %10691 = vmatprep.mubr.bf16.mxu0 %v10467
        %10692 = vmatmul.mubr.bf16.gmra.mrb[0].mxu0 %v10466
        %v10693 = vpop.f32.mrb[0].mxu0
        %v10694 = vadd.f32 0.0, %v10693
        %v10695 = vpop.f32.mrb[0].mxu0
        %v10696 = vpop.f32.mrb[0].mxu0
        %v10697 = vadd.f32 0.0, %v10696
        %v10698 = vpop.f32.mrb[0].mxu0
        %10699 = vmatprep.mubr.bf16.mxu0 %v10470
        %10700 = vmatmul.mubr.bf16.gmra.mrb[0].mxu0 %v10469
        %v10701 = vpop.f32.mrb[0].mxu0
        %v10702 = vadd.f32 0.0, %v10701
        %v10703 = vpop.f32.mrb[0].mxu0
        %v10704 = vpop.f32.mrb[0].mxu0
        %v10705 = vadd.f32 0.0, %v10704
        %v10706 = vpop.f32.mrb[0].mxu0
        %10707 = vmatprep.mubr.bf16.mxu0 %v10473
        %10708 = vmatmul.mubr.bf16.gmra.mrb[0].mxu0 %v10472
        %v10709 = vpop.f32.mrb[0].mxu0
        %v10710 = vadd.f32 0.0, %v10709
        %v10711 = vpop.f32.mrb[0].mxu0
        %v10712 = vpop.f32.mrb[0].mxu0
        %v10713 = vadd.f32 0.0, %v10712
        %v10714 = vpop.f32.mrb[0].mxu0
        %10715 = vdwg.mxu0
        %10716 = vmatprep.subr.bf16.mxu0 0
        %10717 = vmatpush1.bf16.msra.mxu0 %v10135
        %10718 = vmatprep.subr.bf16.mxu0 0
        %10719 = vmatpush1.bf16.msra.mxu0 %v10136
        %10720 = vmatprep.subr.bf16.mxu0 0
        %10721 = vmatpush1.bf16.msra.mxu0 %v10137
        %10722 = vmatprep.subr.bf16.mxu0 0
        %10723 = vmatpush1.bf16.msra.mxu0 %v10138
        %10724 = vmatprep.subr.bf16.mxu0 0
        %10725 = vmatpush1.bf16.msra.mxu0 0
        %10726 = vmatprep.subr.bf16.mxu0 0
        %10727 = vmatpush1.bf16.msra.mxu0 0
        %10728 = vmatprep.subr.bf16.mxu0 0
        %10729 = vmatpush1.bf16.msra.mxu0 0
        %10730 = vmatprep.subr.bf16.mxu0 0
        %10731 = vmatpush1.bf16.msra.mxu0 0
        %10732 = vmatprep.subr.bf16.mxu0 0
        %10733 = vmatpush1.bf16.msra.mxu0 0
        %10734 = vmatprep.subr.bf16.mxu0 0
        %10735 = vmatpush1.bf16.msra.mxu0 0
        %10736 = vmatprep.subr.bf16.mxu0 0
        %10737 = vmatpush1.bf16.msra.mxu0 0
        %10738 = vmatprep.subr.bf16.mxu0 0
        %10739 = vmatpush1.bf16.msra.mxu0 0
        %10740 = vmatprep.subr.bf16.mxu0 0
        %10741 = vmatpush1.bf16.msra.mxu0 0
        %10742 = vmatprep.subr.bf16.mxu0 0
        %10743 = vmatpush1.bf16.msra.mxu0 0
        %10744 = vmatprep.subr.bf16.mxu0 0
        %10745 = vmatpush1.bf16.msra.mxu0 0
        %10746 = vmatprep.subr.bf16.mxu0 0
        %10747 = vmatpush1.bf16.msra.mxu0 0
        %10748 = vmatprep.mubr.bf16.mxu0 0
        %10749 = vmatmul.mubr.bf16.gmra.mrb[0].mxu0 %v10508
        %v10750 = vpop.f32.mrb[0].mxu0
        %v10751 = vadd.f32 %v10590, %v10750
        %v10752 = vpop.f32.mrb[0].mxu0
        %v10753 = vpop.f32.mrb[0].mxu0
        %v10754 = vadd.f32 %v10593, %v10753
        %v10755 = vpop.f32.mrb[0].mxu0
        %10756 = vmatprep.mubr.bf16.mxu0 0
        %10757 = vmatmul.mubr.bf16.gmra.mrb[0].mxu0 %v10511
        %v10758 = vpop.f32.mrb[0].mxu0
        %v10759 = vadd.f32 %v10598, %v10758
        %v10760 = vpop.f32.mrb[0].mxu0
        %v10761 = vpop.f32.mrb[0].mxu0
        %v10762 = vadd.f32 %v10601, %v10761
        %v10763 = vpop.f32.mrb[0].mxu0
        %10764 = vmatprep.mubr.bf16.mxu0 0
        %10765 = vmatmul.mubr.bf16.gmra.mrb[0].mxu0 %v10514
        %v10766 = vpop.f32.mrb[0].mxu0
        %v10767 = vadd.f32 %v10606, %v10766
        %v10768 = vpop.f32.mrb[0].mxu0
        %v10769 = vpop.f32.mrb[0].mxu0
        %v10770 = vadd.f32 %v10609, %v10769
        %v10771 = vpop.f32.mrb[0].mxu0
        %10772 = vmatprep.mubr.bf16.mxu0 0
        %10773 = vmatmul.mubr.bf16.gmra.mrb[0].mxu0 %v10517
        %v10774 = vpop.f32.mrb[0].mxu0
        %v10775 = vadd.f32 %v10614, %v10774
        %v10776 = vpop.f32.mrb[0].mxu0
        %v10777 = vpop.f32.mrb[0].mxu0
        %v10778 = vadd.f32 %v10617, %v10777
        %v10779 = vpop.f32.mrb[0].mxu0
        %10780 = vmatprep.mubr.bf16.mxu0 0
        %10781 = vmatmul.mubr.bf16.gmra.mrb[0].mxu0 %v10520
        %v10782 = vpop.f32.mrb[0].mxu0
        %v10783 = vadd.f32 %v10622, %v10782
        %v10784 = vpop.f32.mrb[0].mxu0
        %v10785 = vpop.f32.mrb[0].mxu0
        %v10786 = vadd.f32 %v10625, %v10785
        %v10787 = vpop.f32.mrb[0].mxu0
        %10788 = vmatprep.mubr.bf16.mxu0 0
        %10789 = vmatmul.mubr.bf16.gmra.mrb[0].mxu0 %v10523
        %v10790 = vpop.f32.mrb[0].mxu0
        %v10791 = vadd.f32 %v10630, %v10790
        %v10792 = vpop.f32.mrb[0].mxu0
        %v10793 = vpop.f32.mrb[0].mxu0
        %v10794 = vadd.f32 %v10633, %v10793
        %v10795 = vpop.f32.mrb[0].mxu0
        %10796 = vmatprep.mubr.bf16.mxu0 0
        %10797 = vmatmul.mubr.bf16.gmra.mrb[0].mxu0 %v10526
        %v10798 = vpop.f32.mrb[0].mxu0
        %v10799 = vadd.f32 %v10638, %v10798
        %v10800 = vpop.f32.mrb[0].mxu0
        %v10801 = vpop.f32.mrb[0].mxu0
        %v10802 = vadd.f32 %v10641, %v10801
        %v10803 = vpop.f32.mrb[0].mxu0
        %10804 = vmatprep.mubr.bf16.mxu0 0
        %10805 = vmatmul.mubr.bf16.gmra.mrb[0].mxu0 %v10529
        %v10806 = vpop.f32.mrb[0].mxu0
        %v10807 = vadd.f32 %v10646, %v10806
        %v10808 = vpop.f32.mrb[0].mxu0
        %v10809 = vpop.f32.mrb[0].mxu0
        %v10810 = vadd.f32 %v10649, %v10809
        %v10811 = vpop.f32.mrb[0].mxu0
        %10812 = vmatprep.mubr.bf16.mxu0 0
        %10813 = vmatmul.mubr.bf16.gmra.mrb[0].mxu0 %v10532
        %v10814 = vpop.f32.mrb[0].mxu0
        %v10815 = vadd.f32 %v10654, %v10814
        %v10816 = vpop.f32.mrb[0].mxu0
        %v10817 = vpop.f32.mrb[0].mxu0
        %v10818 = vadd.f32 %v10657, %v10817
        %v10819 = vpop.f32.mrb[0].mxu0
        %10820 = vmatprep.mubr.bf16.mxu0 0
        %10821 = vmatmul.mubr.bf16.gmra.mrb[0].mxu0 %v10535
        %v10822 = vpop.f32.mrb[0].mxu0
        %v10823 = vadd.f32 %v10662, %v10822
        %v10824 = vpop.f32.mrb[0].mxu0
        %v10825 = vpop.f32.mrb[0].mxu0
        %v10826 = vadd.f32 %v10665, %v10825
        %v10827 = vpop.f32.mrb[0].mxu0
        %10828 = vmatprep.mubr.bf16.mxu0 0
        %10829 = vmatmul.mubr.bf16.gmra.mrb[0].mxu0 %v10538
        %v10830 = vpop.f32.mrb[0].mxu0
        %v10831 = vadd.f32 %v10670, %v10830
        %v10832 = vpop.f32.mrb[0].mxu0
        %v10833 = vpop.f32.mrb[0].mxu0
        %v10834 = vadd.f32 %v10673, %v10833
        %v10835 = vpop.f32.mrb[0].mxu0
        %10836 = vmatprep.mubr.bf16.mxu0 0
        %10837 = vmatmul.mubr.bf16.gmra.mrb[0].mxu0 %v10541
        %v10838 = vpop.f32.mrb[0].mxu0
        %v10839 = vadd.f32 %v10678, %v10838
        %v10840 = vpop.f32.mrb[0].mxu0
        %v10841 = vpop.f32.mrb[0].mxu0
        %v10842 = vadd.f32 %v10681, %v10841
        %v10843 = vpop.f32.mrb[0].mxu0
        %10844 = vmatprep.mubr.bf16.mxu0 0
        %10845 = vmatmul.mubr.bf16.gmra.mrb[0].mxu0 %v10544
        %v10846 = vpop.f32.mrb[0].mxu0
        %v10847 = vadd.f32 %v10686, %v10846
        %v10848 = vpop.f32.mrb[0].mxu0
        %v10849 = vpop.f32.mrb[0].mxu0
        %v10850 = vadd.f32 %v10689, %v10849
        %v10851 = vpop.f32.mrb[0].mxu0
        %10852 = vmatprep.mubr.bf16.mxu0 0
        %10853 = vmatmul.mubr.bf16.gmra.mrb[0].mxu0 %v10547
        %v10854 = vpop.f32.mrb[0].mxu0
        %v10855 = vadd.f32 %v10694, %v10854
        %v10856 = vpop.f32.mrb[0].mxu0
        %v10857 = vpop.f32.mrb[0].mxu0
        %v10858 = vadd.f32 %v10697, %v10857
        %v10859 = vpop.f32.mrb[0].mxu0
        %10860 = vmatprep.mubr.bf16.mxu0 0
        %10861 = vmatmul.mubr.bf16.gmra.mrb[0].mxu0 %v10550
        %v10862 = vpop.f32.mrb[0].mxu0
        %v10863 = vadd.f32 %v10702, %v10862
        %v10864 = vpop.f32.mrb[0].mxu0
        %v10865 = vpop.f32.mrb[0].mxu0
        %v10866 = vadd.f32 %v10705, %v10865
        %v10867 = vpop.f32.mrb[0].mxu0
        %10868 = vmatprep.mubr.bf16.mxu0 0
        %10869 = vmatmul.mubr.bf16.gmra.mrb[0].mxu0 %v10553
        %v10870 = vpop.f32.mrb[0].mxu0
        %v10871 = vadd.f32 %v10710, %v10870
        %v10872 = vpop.f32.mrb[0].mxu0
        %v10873 = vpop.f32.mrb[0].mxu0
        %v10874 = vadd.f32 %v10713, %v10873
        %v10875 = vpop.f32.mrb[0].mxu0
        %10876 = vdwg.mxu0
        %v10941 = vunpack.c.l.b16 %v10139
        %v10942 = vunpack.c.h.b16 %v10139
        %v10943 = vunpack.c.l.b16 %v10140
        %v10944 = vunpack.c.l.b16 %v10141
        %v10945 = vunpack.c.h.b16 %v10141
        %v10946 = vunpack.c.l.b16 %v10142
        %v10947 = vunpack.c.l.b16 %v10143
        %v10948 = vunpack.c.h.b16 %v10143
        %v10949 = vunpack.c.l.b16 %v10144
        %v10950 = vunpack.c.l.b16 %v10145
        %v10951 = vunpack.c.h.b16 %v10145
        %v10952 = vunpack.c.l.b16 %v10146
        %v10953 = vunpack.c.l.b16 %v10147
        %v10954 = vunpack.c.h.b16 %v10147
        %v10955 = vunpack.c.l.b16 %v10148
        %v10956 = vunpack.c.l.b16 %v10149
        %v10957 = vunpack.c.h.b16 %v10149
        %v10958 = vunpack.c.l.b16 %v10150
        %v10959 = vunpack.c.l.b16 %v10151
        %v10960 = vunpack.c.h.b16 %v10151
        %v10961 = vunpack.c.l.b16 %v10152
        %v10962 = vunpack.c.l.b16 %v10153
        %v10963 = vunpack.c.h.b16 %v10153
        %v10964 = vunpack.c.l.b16 %v10154
        %v10965 = vunpack.c.l.b16 %v10155
        %v10966 = vunpack.c.h.b16 %v10155
        %v10967 = vunpack.c.l.b16 %v10156
        %v10968 = vunpack.c.l.b16 %v10157
        %v10969 = vunpack.c.h.b16 %v10157
        %v10970 = vunpack.c.l.b16 %v10158
        %v10971 = vunpack.c.l.b16 %v10159
        %v10972 = vunpack.c.h.b16 %v10159
        %v10973 = vunpack.c.l.b16 %v10160
        %v10974 = vunpack.c.l.b16 %v10161
        %v10975 = vunpack.c.h.b16 %v10161
        %v10976 = vunpack.c.l.b16 %v10162
        %v10977 = vunpack.c.l.b16 %v10163
        %v10978 = vunpack.c.h.b16 %v10163
        %v10979 = vunpack.c.l.b16 %v10164
        %v10980 = vunpack.c.l.b16 %v10165
        %v10981 = vunpack.c.h.b16 %v10165
        %v10982 = vunpack.c.l.b16 %v10166
        %v10983 = vunpack.c.l.b16 %v10167
        %v10984 = vunpack.c.h.b16 %v10167
        %v10985 = vunpack.c.l.b16 %v10168
        %v10986 = vunpack.c.l.b16 %v10169
        %v10987 = vunpack.c.h.b16 %v10169
        %v10988 = vunpack.c.l.b16 %v10170
        %v10989 = vunpack.c.l.b16 %v10171
        %v10990 = vunpack.c.h.b16 %v10171
        %v10991 = vunpack.c.l.b16 %v10172
        %v10992 = vunpack.c.l.b16 %v10173
        %v10993 = vunpack.c.h.b16 %v10173
        %v10994 = vunpack.c.l.b16 %v10174
        %v10995 = vunpack.c.l.b16 %v10175
        %v10996 = vunpack.c.h.b16 %v10175
        %v10997 = vunpack.c.l.b16 %v10176
        %v10998 = vunpack.c.l.b16 %v10177
        %v10999 = vunpack.c.h.b16 %v10177
        %v11000 = vunpack.c.l.b16 %v10178
        %v11001 = vunpack.c.l.b16 %v10179
        %v11002 = vunpack.c.h.b16 %v10179
        %v11003 = vunpack.c.l.b16 %v10180
        %v11004 = vunpack.c.l.b16 %v10181
        %v11005 = vunpack.c.h.b16 %v10181
        %v11006 = vunpack.c.l.b16 %v10182
        %v11007 = vunpack.c.l.b16 %v10183
        %v11008 = vunpack.c.h.b16 %v10183
        %v11009 = vunpack.c.l.b16 %v10184
        %v11010 = vunpack.c.l.b16 %v10185
        %v11011 = vunpack.c.h.b16 %v10185
        %v11012 = vunpack.c.l.b16 %v10186
        %v11013 = vunpack.c.l.b16 %v10187
        %v11014 = vunpack.c.h.b16 %v10187
        %v11015 = vunpack.c.l.b16 %v10188
        %v11016 = vunpack.c.l.b16 %v10189
        %v11017 = vunpack.c.h.b16 %v10189
        %v11018 = vunpack.c.l.b16 %v10190
        %v11019 = vunpack.c.l.b16 %v10191
        %v11020 = vunpack.c.h.b16 %v10191
        %v11021 = vunpack.c.l.b16 %v10192
        %v11022 = vunpack.c.l.b16 %v10193
        %v11023 = vunpack.c.h.b16 %v10193
        %v11024 = vunpack.c.l.b16 %v10194
        %v11025 = vunpack.c.l.b16 %v10195
        %v11026 = vunpack.c.h.b16 %v10195
        %v11027 = vunpack.c.l.b16 %v10196
        %v11028 = vunpack.c.l.b16 %v10197
        %v11029 = vunpack.c.h.b16 %v10197
        %v11030 = vunpack.c.l.b16 %v10198
        %v11031 = vunpack.c.l.b16 %v10199
        %v11032 = vunpack.c.h.b16 %v10199
        %v11033 = vunpack.c.l.b16 %v10200
        %v11034 = vunpack.c.l.b16 %v10201
        %v11035 = vunpack.c.h.b16 %v10201
        %v11036 = vunpack.c.l.b16 %v10202
        %v11037 = vpack.c.b16 %v10944, %v10941
        %v11038 = vpack.c.b16 %v10945, %v10942
        %v11039 = vpack.c.b16 %v10946, %v10943
        %v11040 = vpack.c.b16 %v10950, %v10947
        %v11041 = vpack.c.b16 %v10951, %v10948
        %v11042 = vpack.c.b16 %v10952, %v10949
        %v11043 = vpack.c.b16 %v10956, %v10953
        %v11044 = vpack.c.b16 %v10957, %v10954
        %v11045 = vpack.c.b16 %v10958, %v10955
        %v11046 = vpack.c.b16 %v10962, %v10959
        %v11047 = vpack.c.b16 %v10963, %v10960
        %v11048 = vpack.c.b16 %v10964, %v10961
        %v11049 = vpack.c.b16 %v10968, %v10965
        %v11050 = vpack.c.b16 %v10969, %v10966
        %v11051 = vpack.c.b16 %v10970, %v10967
        %v11052 = vpack.c.b16 %v10974, %v10971
        %v11053 = vpack.c.b16 %v10975, %v10972
        %v11054 = vpack.c.b16 %v10976, %v10973
        %v11055 = vpack.c.b16 %v10980, %v10977
        %v11056 = vpack.c.b16 %v10981, %v10978
        %v11057 = vpack.c.b16 %v10982, %v10979
        %v11058 = vpack.c.b16 %v10986, %v10983
        %v11059 = vpack.c.b16 %v10987, %v10984
        %v11060 = vpack.c.b16 %v10988, %v10985
        %v11061 = vpack.c.b16 %v10992, %v10989
        %v11062 = vpack.c.b16 %v10993, %v10990
        %v11063 = vpack.c.b16 %v10994, %v10991
        %v11064 = vpack.c.b16 %v10998, %v10995
        %v11065 = vpack.c.b16 %v10999, %v10996
        %v11066 = vpack.c.b16 %v11000, %v10997
        %v11067 = vpack.c.b16 %v11004, %v11001
        %v11068 = vpack.c.b16 %v11005, %v11002
        %v11069 = vpack.c.b16 %v11006, %v11003
        %v11070 = vpack.c.b16 %v11010, %v11007
        %v11071 = vpack.c.b16 %v11011, %v11008
        %v11072 = vpack.c.b16 %v11012, %v11009
        %v11073 = vpack.c.b16 %v11016, %v11013
        %v11074 = vpack.c.b16 %v11017, %v11014
        %v11075 = vpack.c.b16 %v11018, %v11015
        %v11076 = vpack.c.b16 %v11022, %v11019
        %v11077 = vpack.c.b16 %v11023, %v11020
        %v11078 = vpack.c.b16 %v11024, %v11021
        %v11079 = vpack.c.b16 %v11028, %v11025
        %v11080 = vpack.c.b16 %v11029, %v11026
        %v11081 = vpack.c.b16 %v11030, %v11027
        %v11082 = vpack.c.b16 %v11034, %v11031
        %v11083 = vpack.c.b16 %v11035, %v11032
        %v11084 = vpack.c.b16 %v11036, %v11033
        %v11118 = vsel %vm8773, %v11039, 0
        %v11121 = vsel %vm8773, %v11042, 0
        %v11124 = vsel %vm8773, %v11045, 0
        %v11127 = vsel %vm8773, %v11048, 0
        %v11130 = vsel %vm8773, %v11051, 0
        %v11133 = vsel %vm8773, %v11054, 0
        %v11136 = vsel %vm8773, %v11057, 0
        %v11139 = vsel %vm8773, %v11060, 0
        %v11142 = vsel %vm8773, %v11063, 0
        %v11145 = vsel %vm8773, %v11066, 0
        %v11148 = vsel %vm8773, %v11069, 0
        %v11151 = vsel %vm8773, %v11072, 0
        %v11154 = vsel %vm8773, %v11075, 0
        %v11157 = vsel %vm8773, %v11078, 0
        %v11160 = vsel %vm8773, %v11081, 0
        %v11163 = vsel %vm8773, %v11084, 0
        %11165 = vmatprep.subr.bf16.mxu0 0
        %11166 = vmatpush1.bf16.msra.mxu0 %v10119
        %11167 = vmatprep.subr.bf16.mxu0 0
        %11168 = vmatpush1.bf16.msra.mxu0 %v10120
        %11169 = vmatprep.subr.bf16.mxu0 0
        %11170 = vmatpush1.bf16.msra.mxu0 %v10121
        %11171 = vmatprep.subr.bf16.mxu0 0
        %11172 = vmatpush1.bf16.msra.mxu0 %v10122
        %11173 = vmatprep.subr.bf16.mxu0 0
        %11174 = vmatpush1.bf16.msra.mxu0 %v10123
        %11175 = vmatprep.subr.bf16.mxu0 0
        %11176 = vmatpush1.bf16.msra.mxu0 %v10124
        %11177 = vmatprep.subr.bf16.mxu0 0
        %11178 = vmatpush1.bf16.msra.mxu0 %v10125
        %11179 = vmatprep.subr.bf16.mxu0 0
        %11180 = vmatpush1.bf16.msra.mxu0 %v10126
        %11181 = vmatprep.subr.bf16.mxu0 0
        %11182 = vmatpush1.bf16.msra.mxu0 %v10127
        %11183 = vmatprep.subr.bf16.mxu0 0
        %11184 = vmatpush1.bf16.msra.mxu0 %v10128
        %11185 = vmatprep.subr.bf16.mxu0 0
        %11186 = vmatpush1.bf16.msra.mxu0 %v10129
        %11187 = vmatprep.subr.bf16.mxu0 0
        %11188 = vmatpush1.bf16.msra.mxu0 %v10130
        %11189 = vmatprep.subr.bf16.mxu0 0
        %11190 = vmatpush1.bf16.msra.mxu0 %v10131
        %11191 = vmatprep.subr.bf16.mxu0 0
        %11192 = vmatpush1.bf16.msra.mxu0 %v10132
        %11193 = vmatprep.subr.bf16.mxu0 0
        %11194 = vmatpush1.bf16.msra.mxu0 %v10133
        %11195 = vmatprep.subr.bf16.mxu0 0
        %11196 = vmatpush1.bf16.msra.mxu0 %v10134
        %11197 = vmatprep.mubr.bf16.mxu0 %v11038
        %11198 = vmatmul.mubr.bf16.gmra.mrb[0].mxu0 %v11037
        %v11199 = vpop.f32.mrb[0].mxu0
        %v11200 = vadd.f32 %v10751, %v11199
        %v11201 = vpop.f32.mrb[0].mxu0
        %v11202 = vpop.f32.mrb[0].mxu0
        %v11203 = vadd.f32 %v10754, %v11202
        %v11204 = vpop.f32.mrb[0].mxu0
        %11205 = vmatprep.mubr.bf16.mxu0 %v11041
        %11206 = vmatmul.mubr.bf16.gmra.mrb[0].mxu0 %v11040
        %v11207 = vpop.f32.mrb[0].mxu0
        %v11208 = vadd.f32 %v10759, %v11207
        %v11209 = vpop.f32.mrb[0].mxu0
        %v11210 = vpop.f32.mrb[0].mxu0
        %v11211 = vadd.f32 %v10762, %v11210
        %v11212 = vpop.f32.mrb[0].mxu0
        %11213 = vmatprep.mubr.bf16.mxu0 %v11044
        %11214 = vmatmul.mubr.bf16.gmra.mrb[0].mxu0 %v11043
        %v11215 = vpop.f32.mrb[0].mxu0
        %v11216 = vadd.f32 %v10767, %v11215
        %v11217 = vpop.f32.mrb[0].mxu0
        %v11218 = vpop.f32.mrb[0].mxu0
        %v11219 = vadd.f32 %v10770, %v11218
        %v11220 = vpop.f32.mrb[0].mxu0
        %11221 = vmatprep.mubr.bf16.mxu0 %v11047
        %11222 = vmatmul.mubr.bf16.gmra.mrb[0].mxu0 %v11046
        %v11223 = vpop.f32.mrb[0].mxu0
        %v11224 = vadd.f32 %v10775, %v11223
        %v11225 = vpop.f32.mrb[0].mxu0
        %v11226 = vpop.f32.mrb[0].mxu0
        %v11227 = vadd.f32 %v10778, %v11226
        %v11228 = vpop.f32.mrb[0].mxu0
        %11229 = vmatprep.mubr.bf16.mxu0 %v11050
        %11230 = vmatmul.mubr.bf16.gmra.mrb[0].mxu0 %v11049
        %v11231 = vpop.f32.mrb[0].mxu0
        %v11232 = vadd.f32 %v10783, %v11231
        %v11233 = vpop.f32.mrb[0].mxu0
        %v11234 = vpop.f32.mrb[0].mxu0
        %v11235 = vadd.f32 %v10786, %v11234
        %v11236 = vpop.f32.mrb[0].mxu0
        %11237 = vmatprep.mubr.bf16.mxu0 %v11053
        %11238 = vmatmul.mubr.bf16.gmra.mrb[0].mxu0 %v11052
        %v11239 = vpop.f32.mrb[0].mxu0
        %v11240 = vadd.f32 %v10791, %v11239
        %v11241 = vpop.f32.mrb[0].mxu0
        %v11242 = vpop.f32.mrb[0].mxu0
        %v11243 = vadd.f32 %v10794, %v11242
        %v11244 = vpop.f32.mrb[0].mxu0
        %11245 = vmatprep.mubr.bf16.mxu0 %v11056
        %11246 = vmatmul.mubr.bf16.gmra.mrb[0].mxu0 %v11055
        %v11247 = vpop.f32.mrb[0].mxu0
        %v11248 = vadd.f32 %v10799, %v11247
        %v11249 = vpop.f32.mrb[0].mxu0
        %v11250 = vpop.f32.mrb[0].mxu0
        %v11251 = vadd.f32 %v10802, %v11250
        %v11252 = vpop.f32.mrb[0].mxu0
        %11253 = vmatprep.mubr.bf16.mxu0 %v11059
        %11254 = vmatmul.mubr.bf16.gmra.mrb[0].mxu0 %v11058
        %v11255 = vpop.f32.mrb[0].mxu0
        %v11256 = vadd.f32 %v10807, %v11255
        %v11257 = vpop.f32.mrb[0].mxu0
        %v11258 = vpop.f32.mrb[0].mxu0
        %v11259 = vadd.f32 %v10810, %v11258
        %v11260 = vpop.f32.mrb[0].mxu0
        %11261 = vmatprep.mubr.bf16.mxu0 %v11062
        %11262 = vmatmul.mubr.bf16.gmra.mrb[0].mxu0 %v11061
        %v11263 = vpop.f32.mrb[0].mxu0
        %v11264 = vadd.f32 %v10815, %v11263
        %v11265 = vpop.f32.mrb[0].mxu0
        %v11266 = vpop.f32.mrb[0].mxu0
        %v11267 = vadd.f32 %v10818, %v11266
        %v11268 = vpop.f32.mrb[0].mxu0
        %11269 = vmatprep.mubr.bf16.mxu0 %v11065
        %11270 = vmatmul.mubr.bf16.gmra.mrb[0].mxu0 %v11064
        %v11271 = vpop.f32.mrb[0].mxu0
        %v11272 = vadd.f32 %v10823, %v11271
        %v11273 = vpop.f32.mrb[0].mxu0
        %v11274 = vpop.f32.mrb[0].mxu0
        %v11275 = vadd.f32 %v10826, %v11274
        %v11276 = vpop.f32.mrb[0].mxu0
        %11277 = vmatprep.mubr.bf16.mxu0 %v11068
        %11278 = vmatmul.mubr.bf16.gmra.mrb[0].mxu0 %v11067
        %v11279 = vpop.f32.mrb[0].mxu0
        %v11280 = vadd.f32 %v10831, %v11279
        %v11281 = vpop.f32.mrb[0].mxu0
        %v11282 = vpop.f32.mrb[0].mxu0
        %v11283 = vadd.f32 %v10834, %v11282
        %v11284 = vpop.f32.mrb[0].mxu0
        %11285 = vmatprep.mubr.bf16.mxu0 %v11071
        %11286 = vmatmul.mubr.bf16.gmra.mrb[0].mxu0 %v11070
        %v11287 = vpop.f32.mrb[0].mxu0
        %v11288 = vadd.f32 %v10839, %v11287
        %v11289 = vpop.f32.mrb[0].mxu0
        %v11290 = vpop.f32.mrb[0].mxu0
        %v11291 = vadd.f32 %v10842, %v11290
        %v11292 = vpop.f32.mrb[0].mxu0
        %11293 = vmatprep.mubr.bf16.mxu0 %v11074
        %11294 = vmatmul.mubr.bf16.gmra.mrb[0].mxu0 %v11073
        %v11295 = vpop.f32.mrb[0].mxu0
        %v11296 = vadd.f32 %v10847, %v11295
        %v11297 = vpop.f32.mrb[0].mxu0
        %v11298 = vpop.f32.mrb[0].mxu0
        %v11299 = vadd.f32 %v10850, %v11298
        %v11300 = vpop.f32.mrb[0].mxu0
        %11301 = vmatprep.mubr.bf16.mxu0 %v11077
        %11302 = vmatmul.mubr.bf16.gmra.mrb[0].mxu0 %v11076
        %v11303 = vpop.f32.mrb[0].mxu0
        %v11304 = vadd.f32 %v10855, %v11303
        %v11305 = vpop.f32.mrb[0].mxu0
        %v11306 = vpop.f32.mrb[0].mxu0
        %v11307 = vadd.f32 %v10858, %v11306
        %v11308 = vpop.f32.mrb[0].mxu0
        %11309 = vmatprep.mubr.bf16.mxu0 %v11080
        %11310 = vmatmul.mubr.bf16.gmra.mrb[0].mxu0 %v11079
        %v11311 = vpop.f32.mrb[0].mxu0
        %v11312 = vadd.f32 %v10863, %v11311
        %v11313 = vpop.f32.mrb[0].mxu0
        %v11314 = vpop.f32.mrb[0].mxu0
        %v11315 = vadd.f32 %v10866, %v11314
        %v11316 = vpop.f32.mrb[0].mxu0
        %11317 = vmatprep.mubr.bf16.mxu0 %v11083
        %11318 = vmatmul.mubr.bf16.gmra.mrb[0].mxu0 %v11082
        %v11319 = vpop.f32.mrb[0].mxu0
        %v11320 = vadd.f32 %v10871, %v11319
        %v11321 = vpop.f32.mrb[0].mxu0
        %v11322 = vpop.f32.mrb[0].mxu0
        %v11323 = vadd.f32 %v10874, %v11322
        %v11324 = vpop.f32.mrb[0].mxu0
        %11325 = vdwg.mxu0
        %11326 = vmatprep.subr.bf16.mxu0 0
        %11327 = vmatpush1.bf16.msra.mxu0 %v10135
        %11328 = vmatprep.subr.bf16.mxu0 0
        %11329 = vmatpush1.bf16.msra.mxu0 %v10136
        %11330 = vmatprep.subr.bf16.mxu0 0
        %11331 = vmatpush1.bf16.msra.mxu0 %v10137
        %11332 = vmatprep.subr.bf16.mxu0 0
        %11333 = vmatpush1.bf16.msra.mxu0 %v10138
        %11334 = vmatprep.subr.bf16.mxu0 0
        %11335 = vmatpush1.bf16.msra.mxu0 0
        %11336 = vmatprep.subr.bf16.mxu0 0
        %11337 = vmatpush1.bf16.msra.mxu0 0
        %11338 = vmatprep.subr.bf16.mxu0 0
        %11339 = vmatpush1.bf16.msra.mxu0 0
        %11340 = vmatprep.subr.bf16.mxu0 0
        %11341 = vmatpush1.bf16.msra.mxu0 0
        %11342 = vmatprep.subr.bf16.mxu0 0
        %11343 = vmatpush1.bf16.msra.mxu0 0
        %11344 = vmatprep.subr.bf16.mxu0 0
        %11345 = vmatpush1.bf16.msra.mxu0 0
        %11346 = vmatprep.subr.bf16.mxu0 0
        %11347 = vmatpush1.bf16.msra.mxu0 0
        %11348 = vmatprep.subr.bf16.mxu0 0
        %11349 = vmatpush1.bf16.msra.mxu0 0
        %11350 = vmatprep.subr.bf16.mxu0 0
        %11351 = vmatpush1.bf16.msra.mxu0 0
        %11352 = vmatprep.subr.bf16.mxu0 0
        %11353 = vmatpush1.bf16.msra.mxu0 0
        %11354 = vmatprep.subr.bf16.mxu0 0
        %11355 = vmatpush1.bf16.msra.mxu0 0
        %11356 = vmatprep.subr.bf16.mxu0 0
        %11357 = vmatpush1.bf16.msra.mxu0 0
        %11358 = vmatprep.mubr.bf16.mxu0 0
        %11359 = vmatmul.mubr.bf16.gmra.mrb[0].mxu0 %v11118
        %v11360 = vpop.f32.mrb[0].mxu0
        %v11361 = vadd.f32 %v11200, %v11360
        %v11362 = vpop.f32.mrb[0].mxu0
        %v11363 = vpop.f32.mrb[0].mxu0
        %v11364 = vadd.f32 %v11203, %v11363
        %v11365 = vpop.f32.mrb[0].mxu0
        %11366 = vmatprep.mubr.bf16.mxu0 0
        %11367 = vmatmul.mubr.bf16.gmra.mrb[0].mxu0 %v11121
        %v11368 = vpop.f32.mrb[0].mxu0
        %v11369 = vadd.f32 %v11208, %v11368
        %v11370 = vpop.f32.mrb[0].mxu0
        %v11371 = vpop.f32.mrb[0].mxu0
        %v11372 = vadd.f32 %v11211, %v11371
        %v11373 = vpop.f32.mrb[0].mxu0
        %11374 = vmatprep.mubr.bf16.mxu0 0
        %11375 = vmatmul.mubr.bf16.gmra.mrb[0].mxu0 %v11124
        %v11376 = vpop.f32.mrb[0].mxu0
        %v11377 = vadd.f32 %v11216, %v11376
        %v11378 = vpop.f32.mrb[0].mxu0
        %v11379 = vpop.f32.mrb[0].mxu0
        %v11380 = vadd.f32 %v11219, %v11379
        %v11381 = vpop.f32.mrb[0].mxu0
        %11382 = vmatprep.mubr.bf16.mxu0 0
        %11383 = vmatmul.mubr.bf16.gmra.mrb[0].mxu0 %v11127
        %v11384 = vpop.f32.mrb[0].mxu0
        %v11385 = vadd.f32 %v11224, %v11384
        %v11386 = vpop.f32.mrb[0].mxu0
        %v11387 = vpop.f32.mrb[0].mxu0
        %v11388 = vadd.f32 %v11227, %v11387
        %v11389 = vpop.f32.mrb[0].mxu0
        %11390 = vmatprep.mubr.bf16.mxu0 0
        %11391 = vmatmul.mubr.bf16.gmra.mrb[0].mxu0 %v11130
        %v11392 = vpop.f32.mrb[0].mxu0
        %v11393 = vadd.f32 %v11232, %v11392
        %v11394 = vpop.f32.mrb[0].mxu0
        %v11395 = vpop.f32.mrb[0].mxu0
        %v11396 = vadd.f32 %v11235, %v11395
        %v11397 = vpop.f32.mrb[0].mxu0
        %11398 = vmatprep.mubr.bf16.mxu0 0
        %11399 = vmatmul.mubr.bf16.gmra.mrb[0].mxu0 %v11133
        %v11400 = vpop.f32.mrb[0].mxu0
        %v11401 = vadd.f32 %v11240, %v11400
        %v11402 = vpop.f32.mrb[0].mxu0
        %v11403 = vpop.f32.mrb[0].mxu0
        %v11404 = vadd.f32 %v11243, %v11403
        %v11405 = vpop.f32.mrb[0].mxu0
        %11406 = vmatprep.mubr.bf16.mxu0 0
        %11407 = vmatmul.mubr.bf16.gmra.mrb[0].mxu0 %v11136
        %v11408 = vpop.f32.mrb[0].mxu0
        %v11409 = vadd.f32 %v11248, %v11408
        %v11410 = vpop.f32.mrb[0].mxu0
        %v11411 = vpop.f32.mrb[0].mxu0
        %v11412 = vadd.f32 %v11251, %v11411
        %v11413 = vpop.f32.mrb[0].mxu0
        %11414 = vmatprep.mubr.bf16.mxu0 0
        %11415 = vmatmul.mubr.bf16.gmra.mrb[0].mxu0 %v11139
        %v11416 = vpop.f32.mrb[0].mxu0
        %v11417 = vadd.f32 %v11256, %v11416
        %v11418 = vpop.f32.mrb[0].mxu0
        %v11419 = vpop.f32.mrb[0].mxu0
        %v11420 = vadd.f32 %v11259, %v11419
        %v11421 = vpop.f32.mrb[0].mxu0
        %11422 = vmatprep.mubr.bf16.mxu0 0
        %11423 = vmatmul.mubr.bf16.gmra.mrb[0].mxu0 %v11142
        %v11424 = vpop.f32.mrb[0].mxu0
        %v11425 = vadd.f32 %v11264, %v11424
        %v11426 = vpop.f32.mrb[0].mxu0
        %v11427 = vpop.f32.mrb[0].mxu0
        %v11428 = vadd.f32 %v11267, %v11427
        %v11429 = vpop.f32.mrb[0].mxu0
        %11430 = vmatprep.mubr.bf16.mxu0 0
        %11431 = vmatmul.mubr.bf16.gmra.mrb[0].mxu0 %v11145
        %v11432 = vpop.f32.mrb[0].mxu0
        %v11433 = vadd.f32 %v11272, %v11432
        %v11434 = vpop.f32.mrb[0].mxu0
        %v11435 = vpop.f32.mrb[0].mxu0
        %v11436 = vadd.f32 %v11275, %v11435
        %v11437 = vpop.f32.mrb[0].mxu0
        %11438 = vmatprep.mubr.bf16.mxu0 0
        %11439 = vmatmul.mubr.bf16.gmra.mrb[0].mxu0 %v11148
        %v11440 = vpop.f32.mrb[0].mxu0
        %v11441 = vadd.f32 %v11280, %v11440
        %v11442 = vpop.f32.mrb[0].mxu0
        %v11443 = vpop.f32.mrb[0].mxu0
        %v11444 = vadd.f32 %v11283, %v11443
        %v11445 = vpop.f32.mrb[0].mxu0
        %11446 = vmatprep.mubr.bf16.mxu0 0
        %11447 = vmatmul.mubr.bf16.gmra.mrb[0].mxu0 %v11151
        %v11448 = vpop.f32.mrb[0].mxu0
        %v11449 = vadd.f32 %v11288, %v11448
        %v11450 = vpop.f32.mrb[0].mxu0
        %v11451 = vpop.f32.mrb[0].mxu0
        %v11452 = vadd.f32 %v11291, %v11451
        %v11453 = vpop.f32.mrb[0].mxu0
        %11454 = vmatprep.mubr.bf16.mxu0 0
        %11455 = vmatmul.mubr.bf16.gmra.mrb[0].mxu0 %v11154
        %v11456 = vpop.f32.mrb[0].mxu0
        %v11457 = vadd.f32 %v11296, %v11456
        %v11458 = vpop.f32.mrb[0].mxu0
        %v11459 = vpop.f32.mrb[0].mxu0
        %v11460 = vadd.f32 %v11299, %v11459
        %v11461 = vpop.f32.mrb[0].mxu0
        %11462 = vmatprep.mubr.bf16.mxu0 0
        %11463 = vmatmul.mubr.bf16.gmra.mrb[0].mxu0 %v11157
        %v11464 = vpop.f32.mrb[0].mxu0
        %v11465 = vadd.f32 %v11304, %v11464
        %v11466 = vpop.f32.mrb[0].mxu0
        %v11467 = vpop.f32.mrb[0].mxu0
        %v11468 = vadd.f32 %v11307, %v11467
        %v11469 = vpop.f32.mrb[0].mxu0
        %11470 = vmatprep.mubr.bf16.mxu0 0
        %11471 = vmatmul.mubr.bf16.gmra.mrb[0].mxu0 %v11160
        %v11472 = vpop.f32.mrb[0].mxu0
        %v11473 = vadd.f32 %v11312, %v11472
        %v11474 = vpop.f32.mrb[0].mxu0
        %v11475 = vpop.f32.mrb[0].mxu0
        %v11476 = vadd.f32 %v11315, %v11475
        %v11477 = vpop.f32.mrb[0].mxu0
        %11478 = vmatprep.mubr.bf16.mxu0 0
        %11479 = vmatmul.mubr.bf16.gmra.mrb[0].mxu0 %v11163
        %v11480 = vpop.f32.mrb[0].mxu0
        %v11481 = vadd.f32 %v11320, %v11480
        %v11482 = vpop.f32.mrb[0].mxu0
        %v11483 = vpop.f32.mrb[0].mxu0
        %v11484 = vadd.f32 %v11323, %v11483
        %v11485 = vpop.f32.mrb[0].mxu0
        %11486 = vdwg.mxu0
        %11487 = vst [vmem:[%s341 + $0x100] sm:$0xff] %v11361
        %11488 = vst [vmem:[%s341 + $0x108] sm:$0xff] %v11364
        %11489 = vst [vmem:[%s341 + $0x110] sm:$0xff] %v11369
        %11490 = vst [vmem:[%s341 + $0x118] sm:$0xff] %v11372
        %11491 = vst [vmem:[%s341 + $0x120] sm:$0xff] %v11377
        %11492 = vst [vmem:[%s341 + $0x128] sm:$0xff] %v11380
        %11493 = vst [vmem:[%s341 + $0x130] sm:$0xff] %v11385
        %11494 = vst [vmem:[%s341 + $0x138] sm:$0xff] %v11388
        %11495 = vst [vmem:[%s341 + $0x140] sm:$0xff] %v11393
        %11496 = vst [vmem:[%s341 + $0x148] sm:$0xff] %v11396
        %11497 = vst [vmem:[%s341 + $0x150] sm:$0xff] %v11401
        %11498 = vst [vmem:[%s341 + $0x158] sm:$0xff] %v11404
        %11499 = vst [vmem:[%s341 + $0x160] sm:$0xff] %v11409
        %11500 = vst [vmem:[%s341 + $0x168] sm:$0xff] %v11412
        %11501 = vst [vmem:[%s341 + $0x170] sm:$0xff] %v11417
        %11502 = vst [vmem:[%s341 + $0x178] sm:$0xff] %v11420
        %11503 = vst [vmem:[%s341 + $0x180] sm:$0xff] %v11425
        %11504 = vst [vmem:[%s341 + $0x188] sm:$0xff] %v11428
        %11505 = vst [vmem:[%s341 + $0x190] sm:$0xff] %v11433
        %11506 = vst [vmem:[%s341 + $0x198] sm:$0xff] %v11436
        %11507 = vst [vmem:[%s341 + $0x1a0] sm:$0xff] %v11441
        %11508 = vst [vmem:[%s341 + $0x1a8] sm:$0xff] %v11444
        %11509 = vst [vmem:[%s341 + $0x1b0] sm:$0xff] %v11449
        %11510 = vst [vmem:[%s341 + $0x1b8] sm:$0xff] %v11452
        %11511 = vst [vmem:[%s341 + $0x1c0] sm:$0xff] %v11457
        %11512 = vst [vmem:[%s341 + $0x1c8] sm:$0xff] %v11460
        %11513 = vst [vmem:[%s341 + $0x1d0] sm:$0xff] %v11465
        %11514 = vst [vmem:[%s341 + $0x1d8] sm:$0xff] %v11468
        %11515 = vst [vmem:[%s341 + $0x1e0] sm:$0xff] %v11473
        %11516 = vst [vmem:[%s341 + $0x1e8] sm:$0xff] %v11476
        %11517 = vst [vmem:[%s341 + $0x1f0] sm:$0xff] %v11481
        %11518 = vst [vmem:[%s341 + $0x1f8] sm:$0xff] %v11484
        %11519 = vst [vmem:[%s348 + $0x1] sm:$0x1] %v9998
        %s11520 = sand.u32 %s203, 1
        %s11521 = scalar_lea.sflag [#allocation4], %s11520
        %s11522 = sand.u32 %s203, 1
        %s11523 = smul.addr %s11522, 512
        %s11524 = scalar_lea.vmem [#allocation5], %s11523
        %s11525 = sand.u32 %s231, 1
        %s11526 = scalar_lea.sflag [#allocation7], %s11525
        %s11527 = sand.u32 %s231, 1
        %s11528 = smul.addr %s11527, 2
        %s11529 = scalar_lea.vmem [#allocation6], %s11528
        // Predicated region
        $region53: #{tpu_custom_call.1} parent=47 // pred_check
          %p11530 = pneg %p213
        $region54: #{tpu_custom_call.1} parent=47 // pred_check_branch
          %11532 = sbr.rel (%p11530) target = $region56
        $region55: #{tpu_custom_call.1} parent=47 // pred_region
          %s11534 = ssub.s32 8192, 8192
          %11535 = vsyncadd %s11521, %s11534
          %s11536 = smul.addr %s31, 64
          %s11537 = sadd.s32 %s32, %s11536
          %s11538 = smul.addr %s11537, 128
          %s11539 = scalar_lea.hbm %s7, %s11538
          %s11540 = sshll.u32 %s11524, 4
          %s11541 = int_to_ptr.vmem [resolvable:$true] %s11540
          %11546 = dma.vmem_to_hbm [thread:$0]  %s11541, 8192, %s11539, %s11521, 128, 128, 8
        $region56: #{tpu_custom_call.1} parent=47 // pred_fallthru
          _
        // Predicated region
        $region57: #{tpu_custom_call.1} parent=47 // pred_check
          %p11547 = pneg %p241
        $region58: #{tpu_custom_call.1} parent=47 // pred_check_branch
          %11549 = sbr.rel (%p11547) target = $region60
        $region59: #{tpu_custom_call.1} parent=47 // pred_region
          %s11551 = ssub.s32 32, 32
          %11552 = vsyncadd %s11526, %s11551
          %s11553 = sadd.s32 %s32, %s31
          %s11554 = smul.addr %s11553, 32
          %s11555 = scalar_lea.hbm %s8, %s11554
          %s11557 = sshll.u32 %s11529, 4
          %s11558 = int_to_ptr.vmem [resolvable:$true] %s11557
          %11560 = dma.vmem_to_hbm [thread:$0]  %s11558, 32, %s11555, %s11526
        $region60: #{tpu_custom_call.1} parent=47 // pred_fallthru
          _
      $region48: #{tpu_custom_call.1} parent=5 // pred_fallthru
        _
      %p11561 = scmp.le.s32.totalorder 2, %s22
      // Predicated region
      $region61: #{tpu_custom_call.1} parent=5 // pred_check
        %p11562 = pneg %p11561
      $region62: #{tpu_custom_call.1} parent=5 // pred_check_branch
        %11564 = sbr.rel (%p11562) target = $region64
      $region63: #{tpu_custom_call.1} parent=5 // pred_region
        %s11565 = ssub.s32 %s22, 2
        // Predicated region
        $region65: #{tpu_custom_call.1} parent=63 // pred_check
          %p11566 = pneg %p219
        $region66: #{tpu_custom_call.1} parent=63 // pred_check_branch
          %11568 = sbr.rel (%p11566) target = $region68
        $region67: #{tpu_custom_call.1} parent=63 // pred_region
          %s11569 = sand.u32 %s204, 1
          %s11570 = scalar_lea.sflag [#allocation4], %s11569
          %s11571 = sand.u32 %s204, 1
          %s11572 = smul.addr %s11571, 512
          %s11573 = scalar_lea.vmem [#allocation5], %s11572
          %11574 = dma.done %s11570, 8192
        $region68: #{tpu_custom_call.1} parent=63 // pred_fallthru
          _
        // Predicated region
        $region69: #{tpu_custom_call.1} parent=63 // pred_check
          %p11575 = pneg %p247
        $region70: #{tpu_custom_call.1} parent=63 // pred_check_branch
          %11577 = sbr.rel (%p11575) target = $region72
        $region71: #{tpu_custom_call.1} parent=63 // pred_region
          %s11578 = sand.u32 %s232, 1
          %s11579 = scalar_lea.sflag [#allocation7], %s11578
          %s11580 = sand.u32 %s232, 1
          %s11581 = smul.addr %s11580, 2
          %s11582 = scalar_lea.vmem [#allocation6], %s11581
          %11583 = dma.done %s11579, 32
        $region72: #{tpu_custom_call.1} parent=63 // pred_fallthru
          _
      $region64: #{tpu_custom_call.1} parent=5 // pred_fallthru
        _
    $region6: #{tpu_custom_call.1} parent=1 // loop_footer
      %s26 = sadd.s32 1, %s22
    $region7: #{tpu_custom_call.1} parent=1 // loop_footer_branch
      %21 = sbr.rel target = $region3
    $region8: #{tpu_custom_call.1} parent=1 // loop_exit
      _
    %11584 = vsyncpa [#allocation3], 1
    %s11585 = scalar_lea.sflag [#allocation3], 1
    %11586 = vsyncpa %s11585, 1
    %11587 = vsyncpa [#allocation4], 1
    %s11588 = scalar_lea.sflag [#allocation4], 1
    %11589 = vsyncpa %s11588, 1
    %11590 = vsyncpa [#allocation7], 1
    %s11591 = scalar_lea.sflag [#allocation7], 1
    %11592 = vsyncpa %s11591, 1

</llo_original>
